<compile_context>
chip_gen: v7x
topology: tpu7x:2x2x1
jax: 0.10.0
libtpu: 0.0.40
codegen_flags: <defaults>
</compile_context>

<pallas_src>
import math
import functools

import jax
import jax.numpy as jnp
from jax.experimental import pallas as pl
from jax.experimental.pallas import tpu as pltpu


def _make_kernel(B, S, IN, D, H, DH, L, F, O):
    scale = 1.0 / math.sqrt(DH)
    eps = 1e-5
    f32 = jnp.float32
    bf16 = jnp.bfloat16

    def layer_norm(v, w, b):
        mu = jnp.mean(v, axis=-1, keepdims=True)
        var = jnp.mean((v - mu) ** 2, axis=-1, keepdims=True)
        return (v - mu) * jax.lax.rsqrt(var + eps) * w + b

    def kernel(x_ref, emb_w, emb_b,
               wqkv, bqkv, wo, bo,
               ln1_w, ln1_b, w1, b1, w2, b2, ln2_w, ln2_b,
               fc_w, fc_b, out_ref):
        # ---- embedding: (B*S, IN) @ (IN, D), bf16 MXU inputs, f32 accumulate ----
        x = x_ref[...].reshape(B * S, IN).astype(bf16)
        h = jnp.dot(x, emb_w[...], preferred_element_type=f32) + emb_b[...]

        # ---- transformer encoder layers (post-norm, ReLU FFN) ----
        # L is tiny (2); static Python loop with static ref[l] indexing is fine.
        for l in range(L):
            # Fused Q/K/V projection: one MXU matmul with N = 3*D lanes, one bias add.
            qkv = (jnp.dot(h.astype(bf16), wqkv[l], preferred_element_type=f32)
                   + bqkv[l])                                                # (B*S, 3D)
            q = qkv[:, 0 * D:1 * D].reshape(B, S, D)
            k = qkv[:, 1 * D:2 * D].reshape(B, S, D)
            v = qkv[:, 2 * D:3 * D].reshape(B, S, D)

            # Per-head attention, batched over B via 3-D einsums (single batch dim:
            # the Mosaic-supported batched-matmul form).  H is static -> unrolled.
            ctx_heads = []
            for hh in range(H):
                lo = hh * DH
                qh = q[:, :, lo:lo + DH]
                kh = k[:, :, lo:lo + DH]
                vh = v[:, :, lo:lo + DH]
                s = jnp.einsum('bqd,bkd->bqk', qh, kh,
                               preferred_element_type=f32) * scale          # (B, S, S)
                s = s - jnp.max(s, axis=-1, keepdims=True)
                p = jnp.exp(s)
                p = p * pl.reciprocal(jnp.sum(p, axis=-1, keepdims=True), approx=True)
                ctx_heads.append(jnp.einsum('bqk,bkd->bqd', p, vh,
                                            preferred_element_type=f32))    # (B, S, DH)
            # Heads side-by-side on the lane axis -> one out-projection matmul.
            ctx = jnp.concatenate(ctx_heads, axis=-1).reshape(B * S, D)
            attn = (jnp.dot(ctx.astype(bf16), wo[l], preferred_element_type=f32)
                    + bo[l])

            h = layer_norm(h + attn, ln1_w[l], ln1_b[l])

            # FFN: (B*S, D) @ (D, F) -> ReLU -> (B*S, F) @ (F, D), bf16 weights.
            ff = jnp.dot(h.astype(bf16), w1[l], preferred_element_type=f32) + b1[l]
            ff = jnp.maximum(ff, 0.0)
            ff = jnp.dot(ff.astype(bf16), w2[l], preferred_element_type=f32) + b2[l]

            h = layer_norm(h + ff, ln2_w[l], ln2_b[l])

        # ---- last token + final linear (fc Dropout(0.3) is identity at inference) ----
        last = h.reshape(B, S, D)[:, S - 1, :]
        out_ref[...] = jnp.dot(last, fc_w[...], preferred_element_type=f32) + fc_b[...]

    return kernel


def init_params(key, input_size, d_model, nhead, num_layers, dim_ff, output_size):
    """Deterministic synthetic parameters (not a checkpoint load)."""
    D = d_model
    ks = iter(jax.random.split(key, 32))
    nrm = lambda shape, s=0.05: (s * jax.random.normal(next(ks), shape)).astype(jnp.float32)
    zeros = lambda shape: jnp.zeros(shape, jnp.float32)
    ones = lambda shape: jnp.ones(shape, jnp.float32)

    p = dict(
        emb_w=nrm((input_size, D)), emb_b=zeros((1, D)),
        # Fused in-projection: columns [Q | K | V]; head h occupies lanes h*DH:(h+1)*DH
        # inside each D-wide block (same layout as PyTorch in_proj_weight, transposed).
        wqkv=nrm((num_layers, D, 3 * D)),
        bqkv=zeros((num_layers, 1, 3 * D)),
        wo=nrm((num_layers, D, D)),
        bo=zeros((num_layers, 1, D)),
        ln1_w=ones((num_layers, 1, D)), ln1_b=zeros((num_layers, 1, D)),
        w1=nrm((num_layers, D, dim_ff)), b1=zeros((num_layers, 1, dim_ff)),
        w2=nrm((num_layers, dim_ff, D)), b2=zeros((num_layers, 1, D)),
        ln2_w=ones((num_layers, 1, D)), ln2_b=zeros((num_layers, 1, D)),
        fc_w=nrm((D, output_size)), fc_b=zeros((1, output_size)),
    )
    return p


def _cost_estimate(B, S, IN, D, H, DH, L, F, O, args, out_bytes):
    # Advisory only: lets XLA schedule neighbouring ops around this short custom call.
    flops = 2 * B * S * IN * D                                 # embedding
    flops += L * (2 * B * S * D * (3 * D)                      # fused qkv
                  + 2 * (2 * B * H * S * S * DH)               # scores + context
                  + 2 * B * S * D * D                          # out projection
                  + 2 * (2 * B * S * D * F))                   # ffn (w1, w2)
    flops += 2 * B * D * O                                     # fc
    transcendentals = L * B * H * S * S + 2 * L * B * S + L * B * H * S
    bytes_accessed = out_bytes + sum(int(a.size) * a.dtype.itemsize for a in args)
    return pl.CostEstimate(flops=flops, transcendentals=transcendentals,
                           bytes_accessed=bytes_accessed)


@functools.partial(jax.jit, static_argnames=("nhead",))
def time_series_transformer(x, params, *, nhead):
    B, S, IN = x.shape
    D = params["emb_w"].shape[1]
    L = params["wqkv"].shape[0]
    DH = D // nhead
    F = params["w1"].shape[2]
    O = params["fc_w"].shape[1]

    kernel = _make_kernel(B, S, IN, D, nhead, DH, L, F, O)

    # bf16 weights: halves the dominant weight HBM->VMEM DMA and is the MXU's native
    # input dtype on v5e/v6e/v7x.  Accumulation stays f32 inside the kernel via
    # preferred_element_type.  Biases, LN params and the tiny fc head stay f32.
    p = dict(params)
    for name in ("emb_w", "wqkv", "wo", "w1", "w2"):
        p[name] = p[name].astype(jnp.bfloat16)

    order = ["emb_w", "emb_b", "wqkv", "bqkv", "wo", "bo",
             "ln1_w", "ln1_b", "w1", "b1", "w2", "b2", "ln2_w", "ln2_b",
             "fc_w", "fc_b"]
    args = (x,) + tuple(p[k] for k in order)

    vmem = pl.BlockSpec(memory_space=pltpu.MemorySpace.VMEM)
    out_shape = jax.ShapeDtypeStruct((B, O), jnp.float32)
    cost = _cost_estimate(B, S, IN, D, nhead, DH, L, F, O, args,
                          out_bytes=B * O * 4)

    # Single invocation, no grid: resident VMEM footprint (bf16 weights + activations)
    # is well under 1 MiB, far below the default scoped VMEM limit on every generation
    # (incl. v7x's 64 MiB total), so no vmem_limit override.  If B*S grows, add a grid
    # over token tiles (rows >= 128/256) with constant-index weight BlockSpecs and
    # dimension_semantics=("parallel",) so both v7x TensorCores are used.
    return pl.pallas_call(
        kernel,
        out_shape=out_shape,
        in_specs=[vmem] * len(args),
        out_specs=vmem,
        cost_estimate=cost,
    )(*args)


if __name__ == "__main__":
    # Small shapes consistent with the module's forward:
    # x: (batch, seq, input_size); d_model=32, nhead=4, num_layers=2, output_size=1.
    B, S, input_size = 2, 8, 4
    d_model, nhead, num_layers, output_size = 32, 4, 2, 1
    dim_ff = 2048  # nn.TransformerEncoderLayer default dim_feedforward

    key = jax.random.PRNGKey(0)
    kx, kp = jax.random.split(key)
    x = jax.random.normal(kx, (B, S, input_size), dtype=jnp.float32)
    params = init_params(kp, input_size, d_model, nhead, num_layers, dim_ff, output_size)

    out = time_series_transformer(x, params, nhead=nhead)
    out = jax.block_until_ready(out)
    assert out.shape == (B, output_size)
    assert bool(jnp.all(jnp.isfinite(out)))
    print("KERNEL_OK")
</pallas_src>

<mosaic_0001>
module attributes {stable_mosaic.version = 11 : i64} {
  func.func @kernel(%arg0: memref<2x8x4xf32, #tpu.memory_space<vmem>>, %arg1: memref<4x32xbf16, #tpu.memory_space<vmem>>, %arg2: memref<1x32xf32, #tpu.memory_space<vmem>>, %arg3: memref<2x32x96xbf16, #tpu.memory_space<vmem>>, %arg4: memref<2x1x96xf32, #tpu.memory_space<vmem>>, %arg5: memref<2x32x32xbf16, #tpu.memory_space<vmem>>, %arg6: memref<2x1x32xf32, #tpu.memory_space<vmem>>, %arg7: memref<2x1x32xf32, #tpu.memory_space<vmem>>, %arg8: memref<2x1x32xf32, #tpu.memory_space<vmem>>, %arg9: memref<2x32x2048xbf16, #tpu.memory_space<vmem>>, %arg10: memref<2x1x2048xf32, #tpu.memory_space<vmem>>, %arg11: memref<2x2048x32xbf16, #tpu.memory_space<vmem>>, %arg12: memref<2x1x32xf32, #tpu.memory_space<vmem>>, %arg13: memref<2x1x32xf32, #tpu.memory_space<vmem>>, %arg14: memref<2x1x32xf32, #tpu.memory_space<vmem>>, %arg15: memref<32x1xf32, #tpu.memory_space<vmem>>, %arg16: memref<1x1xf32, #tpu.memory_space<vmem>>, %arg17: memref<2x1xf32, #tpu.memory_space<vmem>>) attributes {dimension_semantics = [], scalar_prefetch = 0 : i64, scratch_operands = 0 : i64, tpu.core_type = #tpu.core_type<tc>} {
    %c0 = arith.constant 0 : index
    %c0_0 = arith.constant 0 : index
    %c0_1 = arith.constant 0 : index
    %0 = vector.load %arg0[%c0, %c0_0, %c0_1] : memref<2x8x4xf32, #tpu.memory_space<vmem>>, vector<2x8x4xf32>
    %1 = vector.shape_cast %0 : vector<2x8x4xf32> to vector<16x4xf32>
    %2 = arith.truncf %1 : vector<16x4xf32> to vector<16x4xbf16>
    %c0_2 = arith.constant 0 : index
    %c0_3 = arith.constant 0 : index
    %3 = vector.load %arg1[%c0_2, %c0_3] : memref<4x32xbf16, #tpu.memory_space<vmem>>, vector<4x32xbf16>
    %cst = arith.constant dense<0.000000e+00> : vector<16x32xf32>
    %4 = tpu.matmul %2, %3, %cst {dimension_numbers = #tpu.dot_dimension_numbers<[1], [0], [0], [1], [0, 0, 1, 1], [], []>} : vector<16x4xbf16>, vector<4x32xbf16>, vector<16x32xf32> -> vector<16x32xf32>
    %c0_4 = arith.constant 0 : index
    %c0_5 = arith.constant 0 : index
    %5 = vector.load %arg2[%c0_4, %c0_5] : memref<1x32xf32, #tpu.memory_space<vmem>>, vector<1x32xf32>
    %6 = vector.broadcast %5 : vector<1x32xf32> to vector<16x32xf32>
    %7 = arith.addf %4, %6 : vector<16x32xf32>
    %8 = arith.truncf %7 : vector<16x32xf32> to vector<16x32xbf16>
    %c0_6 = arith.constant 0 : index
    %c0_7 = arith.constant 0 : index
    %c0_8 = arith.constant 0 : index
    %9 = vector.load %arg3[%c0_6, %c0_7, %c0_8] : memref<2x32x96xbf16, #tpu.memory_space<vmem>>, vector<1x32x96xbf16>
    %10 = vector.shape_cast %9 : vector<1x32x96xbf16> to vector<32x96xbf16>
    %cst_9 = arith.constant dense<0.000000e+00> : vector<16x96xf32>
    %11 = tpu.matmul %8, %10, %cst_9 {dimension_numbers = #tpu.dot_dimension_numbers<[1], [0], [0], [1], [0, 0, 1, 1], [], []>} : vector<16x32xbf16>, vector<32x96xbf16>, vector<16x96xf32> -> vector<16x96xf32>
    %c0_10 = arith.constant 0 : index
    %c0_11 = arith.constant 0 : index
    %c0_12 = arith.constant 0 : index
    %12 = vector.load %arg4[%c0_10, %c0_11, %c0_12] : memref<2x1x96xf32, #tpu.memory_space<vmem>>, vector<1x1x96xf32>
    %13 = vector.shape_cast %12 : vector<1x1x96xf32> to vector<1x96xf32>
    %14 = vector.broadcast %13 : vector<1x96xf32> to vector<16x96xf32>
    %15 = arith.addf %11, %14 : vector<16x96xf32>
    %16 = vector.extract_strided_slice %15 {offsets = [0, 0], sizes = [16, 32], strides = [1, 1]} : vector<16x96xf32> to vector<16x32xf32>
    %17 = vector.shape_cast %16 : vector<16x32xf32> to vector<2x8x32xf32>
    %18 = vector.extract_strided_slice %15 {offsets = [0, 32], sizes = [16, 32], strides = [1, 1]} : vector<16x96xf32> to vector<16x32xf32>
    %19 = vector.shape_cast %18 : vector<16x32xf32> to vector<2x8x32xf32>
    %20 = vector.extract_strided_slice %15 {offsets = [0, 64], sizes = [16, 32], strides = [1, 1]} : vector<16x96xf32> to vector<16x32xf32>
    %21 = vector.shape_cast %20 : vector<16x32xf32> to vector<2x8x32xf32>
    %22 = vector.extract_strided_slice %17 {offsets = [0, 0, 0], sizes = [2, 8, 8], strides = [1, 1, 1]} : vector<2x8x32xf32> to vector<2x8x8xf32>
    %23 = vector.extract_strided_slice %19 {offsets = [0, 0, 0], sizes = [2, 8, 8], strides = [1, 1, 1]} : vector<2x8x32xf32> to vector<2x8x8xf32>
    %24 = vector.extract_strided_slice %21 {offsets = [0, 0, 0], sizes = [2, 8, 8], strides = [1, 1, 1]} : vector<2x8x32xf32> to vector<2x8x8xf32>
    "tpu.trace_start"() <{level = 10 : i32, message = "bqd,bkd->bqk"}> : () -> ()
    %cst_13 = arith.constant dense<0.000000e+00> : vector<2x8x8xf32>
    %25 = tpu.matmul %22, %23, %cst_13 {dimension_numbers = #tpu.dot_dimension_numbers<[2], [2], [1], [1], [0, 0, 0, 1, 1, 1], [0], [0]>} : vector<2x8x8xf32>, vector<2x8x8xf32>, vector<2x8x8xf32> -> vector<2x8x8xf32>
    "tpu.trace_stop"() : () -> ()
    %cst_14 = arith.constant 0.353553385 : f32
    %26 = vector.broadcast %cst_14 : f32 to vector<2x8x8xf32>
    %27 = arith.mulf %25, %26 : vector<2x8x8xf32>
    %cst_15 = arith.constant dense<0xFF800000> : vector<2x8xf32>
    %28 = vector.multi_reduction <maximumf>, %27, %cst_15 [2] : vector<2x8x8xf32> to vector<2x8xf32>
    %29 = vector.shape_cast %28 : vector<2x8xf32> to vector<2x8x1xf32>
    %30 = vector.broadcast %29 : vector<2x8x1xf32> to vector<2x8x8xf32>
    %31 = arith.subf %27, %30 : vector<2x8x8xf32>
    %32 = math.exp %31 : vector<2x8x8xf32>
    %cst_16 = arith.constant dense<0.000000e+00> : vector<2x8xf32>
    %33 = vector.multi_reduction <add>, %32, %cst_16 [2] : vector<2x8x8xf32> to vector<2x8xf32>
    %34 = vector.shape_cast %33 : vector<2x8xf32> to vector<2x8x1xf32>
    %35 = tpu.reciprocal %34 {approx = true} : vector<2x8x1xf32> -> vector<2x8x1xf32>
    %36 = vector.broadcast %35 : vector<2x8x1xf32> to vector<2x8x8xf32>
    %37 = arith.mulf %32, %36 : vector<2x8x8xf32>
    "tpu.trace_start"() <{level = 10 : i32, message = "bqk,bkd->bqd"}> : () -> ()
    %cst_17 = arith.constant dense<0.000000e+00> : vector<2x8x8xf32>
    %38 = tpu.matmul %37, %24, %cst_17 {dimension_numbers = #tpu.dot_dimension_numbers<[2], [1], [1], [2], [0, 0, 0, 1, 1, 2], [0], [0]>} : vector<2x8x8xf32>, vector<2x8x8xf32>, vector<2x8x8xf32> -> vector<2x8x8xf32>
    "tpu.trace_stop"() : () -> ()
    %39 = vector.extract_strided_slice %17 {offsets = [0, 0, 8], sizes = [2, 8, 8], strides = [1, 1, 1]} : vector<2x8x32xf32> to vector<2x8x8xf32>
    %40 = vector.extract_strided_slice %19 {offsets = [0, 0, 8], sizes = [2, 8, 8], strides = [1, 1, 1]} : vector<2x8x32xf32> to vector<2x8x8xf32>
    %41 = vector.extract_strided_slice %21 {offsets = [0, 0, 8], sizes = [2, 8, 8], strides = [1, 1, 1]} : vector<2x8x32xf32> to vector<2x8x8xf32>
    "tpu.trace_start"() <{level = 10 : i32, message = "bqd,bkd->bqk"}> : () -> ()
    %cst_18 = arith.constant dense<0.000000e+00> : vector<2x8x8xf32>
    %42 = tpu.matmul %39, %40, %cst_18 {dimension_numbers = #tpu.dot_dimension_numbers<[2], [2], [1], [1], [0, 0, 0, 1, 1, 1], [0], [0]>} : vector<2x8x8xf32>, vector<2x8x8xf32>, vector<2x8x8xf32> -> vector<2x8x8xf32>
    "tpu.trace_stop"() : () -> ()
    %cst_19 = arith.constant 0.353553385 : f32
    %43 = vector.broadcast %cst_19 : f32 to vector<2x8x8xf32>
    %44 = arith.mulf %42, %43 : vector<2x8x8xf32>
    %cst_20 = arith.constant dense<0xFF800000> : vector<2x8xf32>
    %45 = vector.multi_reduction <maximumf>, %44, %cst_20 [2] : vector<2x8x8xf32> to vector<2x8xf32>
    %46 = vector.shape_cast %45 : vector<2x8xf32> to vector<2x8x1xf32>
    %47 = vector.broadcast %46 : vector<2x8x1xf32> to vector<2x8x8xf32>
    %48 = arith.subf %44, %47 : vector<2x8x8xf32>
    %49 = math.exp %48 : vector<2x8x8xf32>
    %cst_21 = arith.constant dense<0.000000e+00> : vector<2x8xf32>
    %50 = vector.multi_reduction <add>, %49, %cst_21 [2] : vector<2x8x8xf32> to vector<2x8xf32>
    %51 = vector.shape_cast %50 : vector<2x8xf32> to vector<2x8x1xf32>
    %52 = tpu.reciprocal %51 {approx = true} : vector<2x8x1xf32> -> vector<2x8x1xf32>
    %53 = vector.broadcast %52 : vector<2x8x1xf32> to vector<2x8x8xf32>
    %54 = arith.mulf %49, %53 : vector<2x8x8xf32>
    "tpu.trace_start"() <{level = 10 : i32, message = "bqk,bkd->bqd"}> : () -> ()
    %cst_22 = arith.constant dense<0.000000e+00> : vector<2x8x8xf32>
    %55 = tpu.matmul %54, %41, %cst_22 {dimension_numbers = #tpu.dot_dimension_numbers<[2], [1], [1], [2], [0, 0, 0, 1, 1, 2], [0], [0]>} : vector<2x8x8xf32>, vector<2x8x8xf32>, vector<2x8x8xf32> -> vector<2x8x8xf32>
    "tpu.trace_stop"() : () -> ()
    %56 = vector.extract_strided_slice %17 {offsets = [0, 0, 16], sizes = [2, 8, 8], strides = [1, 1, 1]} : vector<2x8x32xf32> to vector<2x8x8xf32>
    %57 = vector.extract_strided_slice %19 {offsets = [0, 0, 16], sizes = [2, 8, 8], strides = [1, 1, 1]} : vector<2x8x32xf32> to vector<2x8x8xf32>
    %58 = vector.extract_strided_slice %21 {offsets = [0, 0, 16], sizes = [2, 8, 8], strides = [1, 1, 1]} : vector<2x8x32xf32> to vector<2x8x8xf32>
    "tpu.trace_start"() <{level = 10 : i32, message = "bqd,bkd->bqk"}> : () -> ()
    %cst_23 = arith.constant dense<0.000000e+00> : vector<2x8x8xf32>
    %59 = tpu.matmul %56, %57, %cst_23 {dimension_numbers = #tpu.dot_dimension_numbers<[2], [2], [1], [1], [0, 0, 0, 1, 1, 1], [0], [0]>} : vector<2x8x8xf32>, vector<2x8x8xf32>, vector<2x8x8xf32> -> vector<2x8x8xf32>
    "tpu.trace_stop"() : () -> ()
    %cst_24 = arith.constant 0.353553385 : f32
    %60 = vector.broadcast %cst_24 : f32 to vector<2x8x8xf32>
    %61 = arith.mulf %59, %60 : vector<2x8x8xf32>
    %cst_25 = arith.constant dense<0xFF800000> : vector<2x8xf32>
    %62 = vector.multi_reduction <maximumf>, %61, %cst_25 [2] : vector<2x8x8xf32> to vector<2x8xf32>
    %63 = vector.shape_cast %62 : vector<2x8xf32> to vector<2x8x1xf32>
    %64 = vector.broadcast %63 : vector<2x8x1xf32> to vector<2x8x8xf32>
    %65 = arith.subf %61, %64 : vector<2x8x8xf32>
    %66 = math.exp %65 : vector<2x8x8xf32>
    %cst_26 = arith.constant dense<0.000000e+00> : vector<2x8xf32>
    %67 = vector.multi_reduction <add>, %66, %cst_26 [2] : vector<2x8x8xf32> to vector<2x8xf32>
    %68 = vector.shape_cast %67 : vector<2x8xf32> to vector<2x8x1xf32>
    %69 = tpu.reciprocal %68 {approx = true} : vector<2x8x1xf32> -> vector<2x8x1xf32>
    %70 = vector.broadcast %69 : vector<2x8x1xf32> to vector<2x8x8xf32>
    %71 = arith.mulf %66, %70 : vector<2x8x8xf32>
    "tpu.trace_start"() <{level = 10 : i32, message = "bqk,bkd->bqd"}> : () -> ()
    %cst_27 = arith.constant dense<0.000000e+00> : vector<2x8x8xf32>
    %72 = tpu.matmul %71, %58, %cst_27 {dimension_numbers = #tpu.dot_dimension_numbers<[2], [1], [1], [2], [0, 0, 0, 1, 1, 2], [0], [0]>} : vector<2x8x8xf32>, vector<2x8x8xf32>, vector<2x8x8xf32> -> vector<2x8x8xf32>
    "tpu.trace_stop"() : () -> ()
    %73 = vector.extract_strided_slice %17 {offsets = [0, 0, 24], sizes = [2, 8, 8], strides = [1, 1, 1]} : vector<2x8x32xf32> to vector<2x8x8xf32>
    %74 = vector.extract_strided_slice %19 {offsets = [0, 0, 24], sizes = [2, 8, 8], strides = [1, 1, 1]} : vector<2x8x32xf32> to vector<2x8x8xf32>
    %75 = vector.extract_strided_slice %21 {offsets = [0, 0, 24], sizes = [2, 8, 8], strides = [1, 1, 1]} : vector<2x8x32xf32> to vector<2x8x8xf32>
    "tpu.trace_start"() <{level = 10 : i32, message = "bqd,bkd->bqk"}> : () -> ()
    %cst_28 = arith.constant dense<0.000000e+00> : vector<2x8x8xf32>
    %76 = tpu.matmul %73, %74, %cst_28 {dimension_numbers = #tpu.dot_dimension_numbers<[2], [2], [1], [1], [0, 0, 0, 1, 1, 1], [0], [0]>} : vector<2x8x8xf32>, vector<2x8x8xf32>, vector<2x8x8xf32> -> vector<2x8x8xf32>
    "tpu.trace_stop"() : () -> ()
    %cst_29 = arith.constant 0.353553385 : f32
    %77 = vector.broadcast %cst_29 : f32 to vector<2x8x8xf32>
    %78 = arith.mulf %76, %77 : vector<2x8x8xf32>
    %cst_30 = arith.constant dense<0xFF800000> : vector<2x8xf32>
    %79 = vector.multi_reduction <maximumf>, %78, %cst_30 [2] : vector<2x8x8xf32> to vector<2x8xf32>
    %80 = vector.shape_cast %79 : vector<2x8xf32> to vector<2x8x1xf32>
    %81 = vector.broadcast %80 : vector<2x8x1xf32> to vector<2x8x8xf32>
    %82 = arith.subf %78, %81 : vector<2x8x8xf32>
    %83 = math.exp %82 : vector<2x8x8xf32>
    %cst_31 = arith.constant dense<0.000000e+00> : vector<2x8xf32>
    %84 = vector.multi_reduction <add>, %83, %cst_31 [2] : vector<2x8x8xf32> to vector<2x8xf32>
    %85 = vector.shape_cast %84 : vector<2x8xf32> to vector<2x8x1xf32>
    %86 = tpu.reciprocal %85 {approx = true} : vector<2x8x1xf32> -> vector<2x8x1xf32>
    %87 = vector.broadcast %86 : vector<2x8x1xf32> to vector<2x8x8xf32>
    %88 = arith.mulf %83, %87 : vector<2x8x8xf32>
    "tpu.trace_start"() <{level = 10 : i32, message = "bqk,bkd->bqd"}> : () -> ()
    %cst_32 = arith.constant dense<0.000000e+00> : vector<2x8x8xf32>
    %89 = tpu.matmul %88, %75, %cst_32 {dimension_numbers = #tpu.dot_dimension_numbers<[2], [1], [1], [2], [0, 0, 0, 1, 1, 2], [0], [0]>} : vector<2x8x8xf32>, vector<2x8x8xf32>, vector<2x8x8xf32> -> vector<2x8x8xf32>
    "tpu.trace_stop"() : () -> ()
    %90 = tpu.concatenate %38, %55, %72, %89 in 2 : vector<2x8x8xf32>, vector<2x8x8xf32>, vector<2x8x8xf32>, vector<2x8x8xf32> -> vector<2x8x32xf32>
    %91 = vector.shape_cast %90 : vector<2x8x32xf32> to vector<16x32xf32>
    %92 = arith.truncf %91 : vector<16x32xf32> to vector<16x32xbf16>
    %c0_33 = arith.constant 0 : index
    %c0_34 = arith.constant 0 : index
    %c0_35 = arith.constant 0 : index
    %93 = vector.load %arg5[%c0_33, %c0_34, %c0_35] : memref<2x32x32xbf16, #tpu.memory_space<vmem>>, vector<1x32x32xbf16>
    %94 = vector.shape_cast %93 : vector<1x32x32xbf16> to vector<32x32xbf16>
    %cst_36 = arith.constant dense<0.000000e+00> : vector<16x32xf32>
    %95 = tpu.matmul %92, %94, %cst_36 {dimension_numbers = #tpu.dot_dimension_numbers<[1], [0], [0], [1], [0, 0, 1, 1], [], []>} : vector<16x32xbf16>, vector<32x32xbf16>, vector<16x32xf32> -> vector<16x32xf32>
    %c0_37 = arith.constant 0 : index
    %c0_38 = arith.constant 0 : index
    %c0_39 = arith.constant 0 : index
    %96 = vector.load %arg6[%c0_37, %c0_38, %c0_39] : memref<2x1x32xf32, #tpu.memory_space<vmem>>, vector<1x1x32xf32>
    %97 = vector.shape_cast %96 : vector<1x1x32xf32> to vector<1x32xf32>
    %98 = vector.broadcast %97 : vector<1x32xf32> to vector<16x32xf32>
    %99 = arith.addf %95, %98 : vector<16x32xf32>
    %100 = arith.addf %7, %99 : vector<16x32xf32>
    %c0_40 = arith.constant 0 : index
    %c0_41 = arith.constant 0 : index
    %c0_42 = arith.constant 0 : index
    %101 = vector.load %arg7[%c0_40, %c0_41, %c0_42] : memref<2x1x32xf32, #tpu.memory_space<vmem>>, vector<1x1x32xf32>
    %102 = vector.shape_cast %101 : vector<1x1x32xf32> to vector<1x32xf32>
    %c0_43 = arith.constant 0 : index
    %c0_44 = arith.constant 0 : index
    %c0_45 = arith.constant 0 : index
    %103 = vector.load %arg8[%c0_43, %c0_44, %c0_45] : memref<2x1x32xf32, #tpu.memory_space<vmem>>, vector<1x1x32xf32>
    %104 = vector.shape_cast %103 : vector<1x1x32xf32> to vector<1x32xf32>
    %cst_46 = arith.constant dense<0.000000e+00> : vector<16xf32>
    %105 = vector.multi_reduction <add>, %100, %cst_46 [1] : vector<16x32xf32> to vector<16xf32>
    %106 = vector.shape_cast %105 : vector<16xf32> to vector<16x1xf32>
    %cst_47 = arith.constant 3.200000e+01 : f32
    %107 = vector.broadcast %cst_47 : f32 to vector<16x1xf32>
    %108 = arith.divf %106, %107 : vector<16x1xf32>
    %109 = vector.broadcast %108 : vector<16x1xf32> to vector<16x32xf32>
    %110 = arith.subf %100, %109 : vector<16x32xf32>
    %111 = arith.mulf %110, %110 : vector<16x32xf32>
    %cst_48 = arith.constant dense<0.000000e+00> : vector<16xf32>
    %112 = vector.multi_reduction <add>, %111, %cst_48 [1] : vector<16x32xf32> to vector<16xf32>
    %113 = vector.shape_cast %112 : vector<16xf32> to vector<16x1xf32>
    %cst_49 = arith.constant 3.200000e+01 : f32
    %114 = vector.broadcast %cst_49 : f32 to vector<16x1xf32>
    %115 = arith.divf %113, %114 : vector<16x1xf32>
    %116 = vector.broadcast %108 : vector<16x1xf32> to vector<16x32xf32>
    %117 = arith.subf %100, %116 : vector<16x32xf32>
    %cst_50 = arith.constant 9.99999974E-6 : f32
    %118 = vector.broadcast %cst_50 : f32 to vector<16x1xf32>
    %119 = arith.addf %115, %118 : vector<16x1xf32>
    %120 = math.rsqrt %119 : vector<16x1xf32>
    %121 = vector.broadcast %120 : vector<16x1xf32> to vector<16x32xf32>
    %122 = arith.mulf %117, %121 : vector<16x32xf32>
    %123 = vector.broadcast %102 : vector<1x32xf32> to vector<16x32xf32>
    %124 = arith.mulf %122, %123 : vector<16x32xf32>
    %125 = vector.broadcast %104 : vector<1x32xf32> to vector<16x32xf32>
    %126 = arith.addf %124, %125 : vector<16x32xf32>
    %127 = arith.truncf %126 : vector<16x32xf32> to vector<16x32xbf16>
    %c0_51 = arith.constant 0 : index
    %c0_52 = arith.constant 0 : index
    %c0_53 = arith.constant 0 : index
    %128 = vector.load %arg9[%c0_51, %c0_52, %c0_53] : memref<2x32x2048xbf16, #tpu.memory_space<vmem>>, vector<1x32x2048xbf16>
    %129 = vector.shape_cast %128 : vector<1x32x2048xbf16> to vector<32x2048xbf16>
    %cst_54 = arith.constant dense<0.000000e+00> : vector<16x2048xf32>
    %130 = tpu.matmul %127, %129, %cst_54 {dimension_numbers = #tpu.dot_dimension_numbers<[1], [0], [0], [1], [0, 0, 1, 1], [], []>} : vector<16x32xbf16>, vector<32x2048xbf16>, vector<16x2048xf32> -> vector<16x2048xf32>
    %c0_55 = arith.constant 0 : index
    %c0_56 = arith.constant 0 : index
    %c0_57 = arith.constant 0 : index
    %131 = vector.load %arg10[%c0_55, %c0_56, %c0_57] : memref<2x1x2048xf32, #tpu.memory_space<vmem>>, vector<1x1x2048xf32>
    %132 = vector.shape_cast %131 : vector<1x1x2048xf32> to vector<1x2048xf32>
    %133 = vector.broadcast %132 : vector<1x2048xf32> to vector<16x2048xf32>
    %134 = arith.addf %130, %133 : vector<16x2048xf32>
    %cst_58 = arith.constant 0.000000e+00 : f32
    %135 = vector.broadcast %cst_58 : f32 to vector<16x2048xf32>
    %136 = arith.maximumf %134, %135 : vector<16x2048xf32>
    %137 = arith.truncf %136 : vector<16x2048xf32> to vector<16x2048xbf16>
    %c0_59 = arith.constant 0 : index
    %c0_60 = arith.constant 0 : index
    %c0_61 = arith.constant 0 : index
    %138 = vector.load %arg11[%c0_59, %c0_60, %c0_61] : memref<2x2048x32xbf16, #tpu.memory_space<vmem>>, vector<1x2048x32xbf16>
    %139 = vector.shape_cast %138 : vector<1x2048x32xbf16> to vector<2048x32xbf16>
    %cst_62 = arith.constant dense<0.000000e+00> : vector<16x32xf32>
    %140 = tpu.matmul %137, %139, %cst_62 {dimension_numbers = #tpu.dot_dimension_numbers<[1], [0], [0], [1], [0, 0, 1, 1], [], []>} : vector<16x2048xbf16>, vector<2048x32xbf16>, vector<16x32xf32> -> vector<16x32xf32>
    %c0_63 = arith.constant 0 : index
    %c0_64 = arith.constant 0 : index
    %c0_65 = arith.constant 0 : index
    %141 = vector.load %arg12[%c0_63, %c0_64, %c0_65] : memref<2x1x32xf32, #tpu.memory_space<vmem>>, vector<1x1x32xf32>
    %142 = vector.shape_cast %141 : vector<1x1x32xf32> to vector<1x32xf32>
    %143 = vector.broadcast %142 : vector<1x32xf32> to vector<16x32xf32>
    %144 = arith.addf %140, %143 : vector<16x32xf32>
    %145 = arith.addf %126, %144 : vector<16x32xf32>
    %c0_66 = arith.constant 0 : index
    %c0_67 = arith.constant 0 : index
    %c0_68 = arith.constant 0 : index
    %146 = vector.load %arg13[%c0_66, %c0_67, %c0_68] : memref<2x1x32xf32, #tpu.memory_space<vmem>>, vector<1x1x32xf32>
    %147 = vector.shape_cast %146 : vector<1x1x32xf32> to vector<1x32xf32>
    %c0_69 = arith.constant 0 : index
    %c0_70 = arith.constant 0 : index
    %c0_71 = arith.constant 0 : index
    %148 = vector.load %arg14[%c0_69, %c0_70, %c0_71] : memref<2x1x32xf32, #tpu.memory_space<vmem>>, vector<1x1x32xf32>
    %149 = vector.shape_cast %148 : vector<1x1x32xf32> to vector<1x32xf32>
    %cst_72 = arith.constant dense<0.000000e+00> : vector<16xf32>
    %150 = vector.multi_reduction <add>, %145, %cst_72 [1] : vector<16x32xf32> to vector<16xf32>
    %151 = vector.shape_cast %150 : vector<16xf32> to vector<16x1xf32>
    %cst_73 = arith.constant 3.200000e+01 : f32
    %152 = vector.broadcast %cst_73 : f32 to vector<16x1xf32>
    %153 = arith.divf %151, %152 : vector<16x1xf32>
    %154 = vector.broadcast %153 : vector<16x1xf32> to vector<16x32xf32>
    %155 = arith.subf %145, %154 : vector<16x32xf32>
    %156 = arith.mulf %155, %155 : vector<16x32xf32>
    %cst_74 = arith.constant dense<0.000000e+00> : vector<16xf32>
    %157 = vector.multi_reduction <add>, %156, %cst_74 [1] : vector<16x32xf32> to vector<16xf32>
    %158 = vector.shape_cast %157 : vector<16xf32> to vector<16x1xf32>
    %cst_75 = arith.constant 3.200000e+01 : f32
    %159 = vector.broadcast %cst_75 : f32 to vector<16x1xf32>
    %160 = arith.divf %158, %159 : vector<16x1xf32>
    %161 = vector.broadcast %153 : vector<16x1xf32> to vector<16x32xf32>
    %162 = arith.subf %145, %161 : vector<16x32xf32>
    %cst_76 = arith.constant 9.99999974E-6 : f32
    %163 = vector.broadcast %cst_76 : f32 to vector<16x1xf32>
    %164 = arith.addf %160, %163 : vector<16x1xf32>
    %165 = math.rsqrt %164 : vector<16x1xf32>
    %166 = vector.broadcast %165 : vector<16x1xf32> to vector<16x32xf32>
    %167 = arith.mulf %162, %166 : vector<16x32xf32>
    %168 = vector.broadcast %147 : vector<1x32xf32> to vector<16x32xf32>
    %169 = arith.mulf %167, %168 : vector<16x32xf32>
    %170 = vector.broadcast %149 : vector<1x32xf32> to vector<16x32xf32>
    %171 = arith.addf %169, %170 : vector<16x32xf32>
    %172 = arith.truncf %171 : vector<16x32xf32> to vector<16x32xbf16>
    %c1 = arith.constant 1 : index
    %c0_77 = arith.constant 0 : index
    %c0_78 = arith.constant 0 : index
    %173 = vector.load %arg3[%c1, %c0_77, %c0_78] : memref<2x32x96xbf16, #tpu.memory_space<vmem>>, vector<1x32x96xbf16>
    %174 = vector.shape_cast %173 : vector<1x32x96xbf16> to vector<32x96xbf16>
    %cst_79 = arith.constant dense<0.000000e+00> : vector<16x96xf32>
    %175 = tpu.matmul %172, %174, %cst_79 {dimension_numbers = #tpu.dot_dimension_numbers<[1], [0], [0], [1], [0, 0, 1, 1], [], []>} : vector<16x32xbf16>, vector<32x96xbf16>, vector<16x96xf32> -> vector<16x96xf32>
    %c1_80 = arith.constant 1 : index
    %c0_81 = arith.constant 0 : index
    %c0_82 = arith.constant 0 : index
    %176 = vector.load %arg4[%c1_80, %c0_81, %c0_82] : memref<2x1x96xf32, #tpu.memory_space<vmem>>, vector<1x1x96xf32>
    %177 = vector.shape_cast %176 : vector<1x1x96xf32> to vector<1x96xf32>
    %178 = vector.broadcast %177 : vector<1x96xf32> to vector<16x96xf32>
    %179 = arith.addf %175, %178 : vector<16x96xf32>
    %180 = vector.extract_strided_slice %179 {offsets = [0, 0], sizes = [16, 32], strides = [1, 1]} : vector<16x96xf32> to vector<16x32xf32>
    %181 = vector.shape_cast %180 : vector<16x32xf32> to vector<2x8x32xf32>
    %182 = vector.extract_strided_slice %179 {offsets = [0, 32], sizes = [16, 32], strides = [1, 1]} : vector<16x96xf32> to vector<16x32xf32>
    %183 = vector.shape_cast %182 : vector<16x32xf32> to vector<2x8x32xf32>
    %184 = vector.extract_strided_slice %179 {offsets = [0, 64], sizes = [16, 32], strides = [1, 1]} : vector<16x96xf32> to vector<16x32xf32>
    %185 = vector.shape_cast %184 : vector<16x32xf32> to vector<2x8x32xf32>
    %186 = vector.extract_strided_slice %181 {offsets = [0, 0, 0], sizes = [2, 8, 8], strides = [1, 1, 1]} : vector<2x8x32xf32> to vector<2x8x8xf32>
    %187 = vector.extract_strided_slice %183 {offsets = [0, 0, 0], sizes = [2, 8, 8], strides = [1, 1, 1]} : vector<2x8x32xf32> to vector<2x8x8xf32>
    %188 = vector.extract_strided_slice %185 {offsets = [0, 0, 0], sizes = [2, 8, 8], strides = [1, 1, 1]} : vector<2x8x32xf32> to vector<2x8x8xf32>
    "tpu.trace_start"() <{level = 10 : i32, message = "bqd,bkd->bqk"}> : () -> ()
    %cst_83 = arith.constant dense<0.000000e+00> : vector<2x8x8xf32>
    %189 = tpu.matmul %186, %187, %cst_83 {dimension_numbers = #tpu.dot_dimension_numbers<[2], [2], [1], [1], [0, 0, 0, 1, 1, 1], [0], [0]>} : vector<2x8x8xf32>, vector<2x8x8xf32>, vector<2x8x8xf32> -> vector<2x8x8xf32>
    "tpu.trace_stop"() : () -> ()
    %cst_84 = arith.constant 0.353553385 : f32
    %190 = vector.broadcast %cst_84 : f32 to vector<2x8x8xf32>
    %191 = arith.mulf %189, %190 : vector<2x8x8xf32>
    %cst_85 = arith.constant dense<0xFF800000> : vector<2x8xf32>
    %192 = vector.multi_reduction <maximumf>, %191, %cst_85 [2] : vector<2x8x8xf32> to vector<2x8xf32>
    %193 = vector.shape_cast %192 : vector<2x8xf32> to vector<2x8x1xf32>
    %194 = vector.broadcast %193 : vector<2x8x1xf32> to vector<2x8x8xf32>
    %195 = arith.subf %191, %194 : vector<2x8x8xf32>
    %196 = math.exp %195 : vector<2x8x8xf32>
    %cst_86 = arith.constant dense<0.000000e+00> : vector<2x8xf32>
    %197 = vector.multi_reduction <add>, %196, %cst_86 [2] : vector<2x8x8xf32> to vector<2x8xf32>
    %198 = vector.shape_cast %197 : vector<2x8xf32> to vector<2x8x1xf32>
    %199 = tpu.reciprocal %198 {approx = true} : vector<2x8x1xf32> -> vector<2x8x1xf32>
    %200 = vector.broadcast %199 : vector<2x8x1xf32> to vector<2x8x8xf32>
    %201 = arith.mulf %196, %200 : vector<2x8x8xf32>
    "tpu.trace_start"() <{level = 10 : i32, message = "bqk,bkd->bqd"}> : () -> ()
    %cst_87 = arith.constant dense<0.000000e+00> : vector<2x8x8xf32>
    %202 = tpu.matmul %201, %188, %cst_87 {dimension_numbers = #tpu.dot_dimension_numbers<[2], [1], [1], [2], [0, 0, 0, 1, 1, 2], [0], [0]>} : vector<2x8x8xf32>, vector<2x8x8xf32>, vector<2x8x8xf32> -> vector<2x8x8xf32>
    "tpu.trace_stop"() : () -> ()
    %203 = vector.extract_strided_slice %181 {offsets = [0, 0, 8], sizes = [2, 8, 8], strides = [1, 1, 1]} : vector<2x8x32xf32> to vector<2x8x8xf32>
    %204 = vector.extract_strided_slice %183 {offsets = [0, 0, 8], sizes = [2, 8, 8], strides = [1, 1, 1]} : vector<2x8x32xf32> to vector<2x8x8xf32>
    %205 = vector.extract_strided_slice %185 {offsets = [0, 0, 8], sizes = [2, 8, 8], strides = [1, 1, 1]} : vector<2x8x32xf32> to vector<2x8x8xf32>
    "tpu.trace_start"() <{level = 10 : i32, message = "bqd,bkd->bqk"}> : () -> ()
    %cst_88 = arith.constant dense<0.000000e+00> : vector<2x8x8xf32>
    %206 = tpu.matmul %203, %204, %cst_88 {dimension_numbers = #tpu.dot_dimension_numbers<[2], [2], [1], [1], [0, 0, 0, 1, 1, 1], [0], [0]>} : vector<2x8x8xf32>, vector<2x8x8xf32>, vector<2x8x8xf32> -> vector<2x8x8xf32>
    "tpu.trace_stop"() : () -> ()
    %cst_89 = arith.constant 0.353553385 : f32
    %207 = vector.broadcast %cst_89 : f32 to vector<2x8x8xf32>
    %208 = arith.mulf %206, %207 : vector<2x8x8xf32>
    %cst_90 = arith.constant dense<0xFF800000> : vector<2x8xf32>
    %209 = vector.multi_reduction <maximumf>, %208, %cst_90 [2] : vector<2x8x8xf32> to vector<2x8xf32>
    %210 = vector.shape_cast %209 : vector<2x8xf32> to vector<2x8x1xf32>
    %211 = vector.broadcast %210 : vector<2x8x1xf32> to vector<2x8x8xf32>
    %212 = arith.subf %208, %211 : vector<2x8x8xf32>
    %213 = math.exp %212 : vector<2x8x8xf32>
    %cst_91 = arith.constant dense<0.000000e+00> : vector<2x8xf32>
    %214 = vector.multi_reduction <add>, %213, %cst_91 [2] : vector<2x8x8xf32> to vector<2x8xf32>
    %215 = vector.shape_cast %214 : vector<2x8xf32> to vector<2x8x1xf32>
    %216 = tpu.reciprocal %215 {approx = true} : vector<2x8x1xf32> -> vector<2x8x1xf32>
    %217 = vector.broadcast %216 : vector<2x8x1xf32> to vector<2x8x8xf32>
    %218 = arith.mulf %213, %217 : vector<2x8x8xf32>
    "tpu.trace_start"() <{level = 10 : i32, message = "bqk,bkd->bqd"}> : () -> ()
    %cst_92 = arith.constant dense<0.000000e+00> : vector<2x8x8xf32>
    %219 = tpu.matmul %218, %205, %cst_92 {dimension_numbers = #tpu.dot_dimension_numbers<[2], [1], [1], [2], [0, 0, 0, 1, 1, 2], [0], [0]>} : vector<2x8x8xf32>, vector<2x8x8xf32>, vector<2x8x8xf32> -> vector<2x8x8xf32>
    "tpu.trace_stop"() : () -> ()
    %220 = vector.extract_strided_slice %181 {offsets = [0, 0, 16], sizes = [2, 8, 8], strides = [1, 1, 1]} : vector<2x8x32xf32> to vector<2x8x8xf32>
    %221 = vector.extract_strided_slice %183 {offsets = [0, 0, 16], sizes = [2, 8, 8], strides = [1, 1, 1]} : vector<2x8x32xf32> to vector<2x8x8xf32>
    %222 = vector.extract_strided_slice %185 {offsets = [0, 0, 16], sizes = [2, 8, 8], strides = [1, 1, 1]} : vector<2x8x32xf32> to vector<2x8x8xf32>
    "tpu.trace_start"() <{level = 10 : i32, message = "bqd,bkd->bqk"}> : () -> ()
    %cst_93 = arith.constant dense<0.000000e+00> : vector<2x8x8xf32>
    %223 = tpu.matmul %220, %221, %cst_93 {dimension_numbers = #tpu.dot_dimension_numbers<[2], [2], [1], [1], [0, 0, 0, 1, 1, 1], [0], [0]>} : vector<2x8x8xf32>, vector<2x8x8xf32>, vector<2x8x8xf32> -> vector<2x8x8xf32>
    "tpu.trace_stop"() : () -> ()
    %cst_94 = arith.constant 0.353553385 : f32
    %224 = vector.broadcast %cst_94 : f32 to vector<2x8x8xf32>
    %225 = arith.mulf %223, %224 : vector<2x8x8xf32>
    %cst_95 = arith.constant dense<0xFF800000> : vector<2x8xf32>
    %226 = vector.multi_reduction <maximumf>, %225, %cst_95 [2] : vector<2x8x8xf32> to vector<2x8xf32>
    %227 = vector.shape_cast %226 : vector<2x8xf32> to vector<2x8x1xf32>
    %228 = vector.broadcast %227 : vector<2x8x1xf32> to vector<2x8x8xf32>
    %229 = arith.subf %225, %228 : vector<2x8x8xf32>
    %230 = math.exp %229 : vector<2x8x8xf32>
    %cst_96 = arith.constant dense<0.000000e+00> : vector<2x8xf32>
    %231 = vector.multi_reduction <add>, %230, %cst_96 [2] : vector<2x8x8xf32> to vector<2x8xf32>
    %232 = vector.shape_cast %231 : vector<2x8xf32> to vector<2x8x1xf32>
    %233 = tpu.reciprocal %232 {approx = true} : vector<2x8x1xf32> -> vector<2x8x1xf32>
    %234 = vector.broadcast %233 : vector<2x8x1xf32> to vector<2x8x8xf32>
    %235 = arith.mulf %230, %234 : vector<2x8x8xf32>
    "tpu.trace_start"() <{level = 10 : i32, message = "bqk,bkd->bqd"}> : () -> ()
    %cst_97 = arith.constant dense<0.000000e+00> : vector<2x8x8xf32>
    %236 = tpu.matmul %235, %222, %cst_97 {dimension_numbers = #tpu.dot_dimension_numbers<[2], [1], [1], [2], [0, 0, 0, 1, 1, 2], [0], [0]>} : vector<2x8x8xf32>, vector<2x8x8xf32>, vector<2x8x8xf32> -> vector<2x8x8xf32>
    "tpu.trace_stop"() : () -> ()
    %237 = vector.extract_strided_slice %181 {offsets = [0, 0, 24], sizes = [2, 8, 8], strides = [1, 1, 1]} : vector<2x8x32xf32> to vector<2x8x8xf32>
    %238 = vector.extract_strided_slice %183 {offsets = [0, 0, 24], sizes = [2, 8, 8], strides = [1, 1, 1]} : vector<2x8x32xf32> to vector<2x8x8xf32>
    %239 = vector.extract_strided_slice %185 {offsets = [0, 0, 24], sizes = [2, 8, 8], strides = [1, 1, 1]} : vector<2x8x32xf32> to vector<2x8x8xf32>
    "tpu.trace_start"() <{level = 10 : i32, message = "bqd,bkd->bqk"}> : () -> ()
    %cst_98 = arith.constant dense<0.000000e+00> : vector<2x8x8xf32>
    %240 = tpu.matmul %237, %238, %cst_98 {dimension_numbers = #tpu.dot_dimension_numbers<[2], [2], [1], [1], [0, 0, 0, 1, 1, 1], [0], [0]>} : vector<2x8x8xf32>, vector<2x8x8xf32>, vector<2x8x8xf32> -> vector<2x8x8xf32>
    "tpu.trace_stop"() : () -> ()
    %cst_99 = arith.constant 0.353553385 : f32
    %241 = vector.broadcast %cst_99 : f32 to vector<2x8x8xf32>
    %242 = arith.mulf %240, %241 : vector<2x8x8xf32>
    %cst_100 = arith.constant dense<0xFF800000> : vector<2x8xf32>
    %243 = vector.multi_reduction <maximumf>, %242, %cst_100 [2] : vector<2x8x8xf32> to vector<2x8xf32>
    %244 = vector.shape_cast %243 : vector<2x8xf32> to vector<2x8x1xf32>
    %245 = vector.broadcast %244 : vector<2x8x1xf32> to vector<2x8x8xf32>
    %246 = arith.subf %242, %245 : vector<2x8x8xf32>
    %247 = math.exp %246 : vector<2x8x8xf32>
    %cst_101 = arith.constant dense<0.000000e+00> : vector<2x8xf32>
    %248 = vector.multi_reduction <add>, %247, %cst_101 [2] : vector<2x8x8xf32> to vector<2x8xf32>
    %249 = vector.shape_cast %248 : vector<2x8xf32> to vector<2x8x1xf32>
    %250 = tpu.reciprocal %249 {approx = true} : vector<2x8x1xf32> -> vector<2x8x1xf32>
    %251 = vector.broadcast %250 : vector<2x8x1xf32> to vector<2x8x8xf32>
    %252 = arith.mulf %247, %251 : vector<2x8x8xf32>
    "tpu.trace_start"() <{level = 10 : i32, message = "bqk,bkd->bqd"}> : () -> ()
    %cst_102 = arith.constant dense<0.000000e+00> : vector<2x8x8xf32>
    %253 = tpu.matmul %252, %239, %cst_102 {dimension_numbers = #tpu.dot_dimension_numbers<[2], [1], [1], [2], [0, 0, 0, 1, 1, 2], [0], [0]>} : vector<2x8x8xf32>, vector<2x8x8xf32>, vector<2x8x8xf32> -> vector<2x8x8xf32>
    "tpu.trace_stop"() : () -> ()
    %254 = tpu.concatenate %202, %219, %236, %253 in 2 : vector<2x8x8xf32>, vector<2x8x8xf32>, vector<2x8x8xf32>, vector<2x8x8xf32> -> vector<2x8x32xf32>
    %255 = vector.shape_cast %254 : vector<2x8x32xf32> to vector<16x32xf32>
    %256 = arith.truncf %255 : vector<16x32xf32> to vector<16x32xbf16>
    %c1_103 = arith.constant 1 : index
    %c0_104 = arith.constant 0 : index
    %c0_105 = arith.constant 0 : index
    %257 = vector.load %arg5[%c1_103, %c0_104, %c0_105] : memref<2x32x32xbf16, #tpu.memory_space<vmem>>, vector<1x32x32xbf16>
    %258 = vector.shape_cast %257 : vector<1x32x32xbf16> to vector<32x32xbf16>
    %cst_106 = arith.constant dense<0.000000e+00> : vector<16x32xf32>
    %259 = tpu.matmul %256, %258, %cst_106 {dimension_numbers = #tpu.dot_dimension_numbers<[1], [0], [0], [1], [0, 0, 1, 1], [], []>} : vector<16x32xbf16>, vector<32x32xbf16>, vector<16x32xf32> -> vector<16x32xf32>
    %c1_107 = arith.constant 1 : index
    %c0_108 = arith.constant 0 : index
    %c0_109 = arith.constant 0 : index
    %260 = vector.load %arg6[%c1_107, %c0_108, %c0_109] : memref<2x1x32xf32, #tpu.memory_space<vmem>>, vector<1x1x32xf32>
    %261 = vector.shape_cast %260 : vector<1x1x32xf32> to vector<1x32xf32>
    %262 = vector.broadcast %261 : vector<1x32xf32> to vector<16x32xf32>
    %263 = arith.addf %259, %262 : vector<16x32xf32>
    %264 = arith.addf %171, %263 : vector<16x32xf32>
    %c1_110 = arith.constant 1 : index
    %c0_111 = arith.constant 0 : index
    %c0_112 = arith.constant 0 : index
    %265 = vector.load %arg7[%c1_110, %c0_111, %c0_112] : memref<2x1x32xf32, #tpu.memory_space<vmem>>, vector<1x1x32xf32>
    %266 = vector.shape_cast %265 : vector<1x1x32xf32> to vector<1x32xf32>
    %c1_113 = arith.constant 1 : index
    %c0_114 = arith.constant 0 : index
    %c0_115 = arith.constant 0 : index
    %267 = vector.load %arg8[%c1_113, %c0_114, %c0_115] : memref<2x1x32xf32, #tpu.memory_space<vmem>>, vector<1x1x32xf32>
    %268 = vector.shape_cast %267 : vector<1x1x32xf32> to vector<1x32xf32>
    %cst_116 = arith.constant dense<0.000000e+00> : vector<16xf32>
    %269 = vector.multi_reduction <add>, %264, %cst_116 [1] : vector<16x32xf32> to vector<16xf32>
    %270 = vector.shape_cast %269 : vector<16xf32> to vector<16x1xf32>
    %cst_117 = arith.constant 3.200000e+01 : f32
    %271 = vector.broadcast %cst_117 : f32 to vector<16x1xf32>
    %272 = arith.divf %270, %271 : vector<16x1xf32>
    %273 = vector.broadcast %272 : vector<16x1xf32> to vector<16x32xf32>
    %274 = arith.subf %264, %273 : vector<16x32xf32>
    %275 = arith.mulf %274, %274 : vector<16x32xf32>
    %cst_118 = arith.constant dense<0.000000e+00> : vector<16xf32>
    %276 = vector.multi_reduction <add>, %275, %cst_118 [1] : vector<16x32xf32> to vector<16xf32>
    %277 = vector.shape_cast %276 : vector<16xf32> to vector<16x1xf32>
    %cst_119 = arith.constant 3.200000e+01 : f32
    %278 = vector.broadcast %cst_119 : f32 to vector<16x1xf32>
    %279 = arith.divf %277, %278 : vector<16x1xf32>
    %280 = vector.broadcast %272 : vector<16x1xf32> to vector<16x32xf32>
    %281 = arith.subf %264, %280 : vector<16x32xf32>
    %cst_120 = arith.constant 9.99999974E-6 : f32
    %282 = vector.broadcast %cst_120 : f32 to vector<16x1xf32>
    %283 = arith.addf %279, %282 : vector<16x1xf32>
    %284 = math.rsqrt %283 : vector<16x1xf32>
    %285 = vector.broadcast %284 : vector<16x1xf32> to vector<16x32xf32>
    %286 = arith.mulf %281, %285 : vector<16x32xf32>
    %287 = vector.broadcast %266 : vector<1x32xf32> to vector<16x32xf32>
    %288 = arith.mulf %286, %287 : vector<16x32xf32>
    %289 = vector.broadcast %268 : vector<1x32xf32> to vector<16x32xf32>
    %290 = arith.addf %288, %289 : vector<16x32xf32>
    %291 = arith.truncf %290 : vector<16x32xf32> to vector<16x32xbf16>
    %c1_121 = arith.constant 1 : index
    %c0_122 = arith.constant 0 : index
    %c0_123 = arith.constant 0 : index
    %292 = vector.load %arg9[%c1_121, %c0_122, %c0_123] : memref<2x32x2048xbf16, #tpu.memory_space<vmem>>, vector<1x32x2048xbf16>
    %293 = vector.shape_cast %292 : vector<1x32x2048xbf16> to vector<32x2048xbf16>
    %cst_124 = arith.constant dense<0.000000e+00> : vector<16x2048xf32>
    %294 = tpu.matmul %291, %293, %cst_124 {dimension_numbers = #tpu.dot_dimension_numbers<[1], [0], [0], [1], [0, 0, 1, 1], [], []>} : vector<16x32xbf16>, vector<32x2048xbf16>, vector<16x2048xf32> -> vector<16x2048xf32>
    %c1_125 = arith.constant 1 : index
    %c0_126 = arith.constant 0 : index
    %c0_127 = arith.constant 0 : index
    %295 = vector.load %arg10[%c1_125, %c0_126, %c0_127] : memref<2x1x2048xf32, #tpu.memory_space<vmem>>, vector<1x1x2048xf32>
    %296 = vector.shape_cast %295 : vector<1x1x2048xf32> to vector<1x2048xf32>
    %297 = vector.broadcast %296 : vector<1x2048xf32> to vector<16x2048xf32>
    %298 = arith.addf %294, %297 : vector<16x2048xf32>
    %cst_128 = arith.constant 0.000000e+00 : f32
    %299 = vector.broadcast %cst_128 : f32 to vector<16x2048xf32>
    %300 = arith.maximumf %298, %299 : vector<16x2048xf32>
    %301 = arith.truncf %300 : vector<16x2048xf32> to vector<16x2048xbf16>
    %c1_129 = arith.constant 1 : index
    %c0_130 = arith.constant 0 : index
    %c0_131 = arith.constant 0 : index
    %302 = vector.load %arg11[%c1_129, %c0_130, %c0_131] : memref<2x2048x32xbf16, #tpu.memory_space<vmem>>, vector<1x2048x32xbf16>
    %303 = vector.shape_cast %302 : vector<1x2048x32xbf16> to vector<2048x32xbf16>
    %cst_132 = arith.constant dense<0.000000e+00> : vector<16x32xf32>
    %304 = tpu.matmul %301, %303, %cst_132 {dimension_numbers = #tpu.dot_dimension_numbers<[1], [0], [0], [1], [0, 0, 1, 1], [], []>} : vector<16x2048xbf16>, vector<2048x32xbf16>, vector<16x32xf32> -> vector<16x32xf32>
    %c1_133 = arith.constant 1 : index
    %c0_134 = arith.constant 0 : index
    %c0_135 = arith.constant 0 : index
    %305 = vector.load %arg12[%c1_133, %c0_134, %c0_135] : memref<2x1x32xf32, #tpu.memory_space<vmem>>, vector<1x1x32xf32>
    %306 = vector.shape_cast %305 : vector<1x1x32xf32> to vector<1x32xf32>
    %307 = vector.broadcast %306 : vector<1x32xf32> to vector<16x32xf32>
    %308 = arith.addf %304, %307 : vector<16x32xf32>
    %309 = arith.addf %290, %308 : vector<16x32xf32>
    %c1_136 = arith.constant 1 : index
    %c0_137 = arith.constant 0 : index
    %c0_138 = arith.constant 0 : index
    %310 = vector.load %arg13[%c1_136, %c0_137, %c0_138] : memref<2x1x32xf32, #tpu.memory_space<vmem>>, vector<1x1x32xf32>
    %311 = vector.shape_cast %310 : vector<1x1x32xf32> to vector<1x32xf32>
    %c1_139 = arith.constant 1 : index
    %c0_140 = arith.constant 0 : index
    %c0_141 = arith.constant 0 : index
    %312 = vector.load %arg14[%c1_139, %c0_140, %c0_141] : memref<2x1x32xf32, #tpu.memory_space<vmem>>, vector<1x1x32xf32>
    %313 = vector.shape_cast %312 : vector<1x1x32xf32> to vector<1x32xf32>
    %cst_142 = arith.constant dense<0.000000e+00> : vector<16xf32>
    %314 = vector.multi_reduction <add>, %309, %cst_142 [1] : vector<16x32xf32> to vector<16xf32>
    %315 = vector.shape_cast %314 : vector<16xf32> to vector<16x1xf32>
    %cst_143 = arith.constant 3.200000e+01 : f32
    %316 = vector.broadcast %cst_143 : f32 to vector<16x1xf32>
    %317 = arith.divf %315, %316 : vector<16x1xf32>
    %318 = vector.broadcast %317 : vector<16x1xf32> to vector<16x32xf32>
    %319 = arith.subf %309, %318 : vector<16x32xf32>
    %320 = arith.mulf %319, %319 : vector<16x32xf32>
    %cst_144 = arith.constant dense<0.000000e+00> : vector<16xf32>
    %321 = vector.multi_reduction <add>, %320, %cst_144 [1] : vector<16x32xf32> to vector<16xf32>
    %322 = vector.shape_cast %321 : vector<16xf32> to vector<16x1xf32>
    %cst_145 = arith.constant 3.200000e+01 : f32
    %323 = vector.broadcast %cst_145 : f32 to vector<16x1xf32>
    %324 = arith.divf %322, %323 : vector<16x1xf32>
    %325 = vector.broadcast %317 : vector<16x1xf32> to vector<16x32xf32>
    %326 = arith.subf %309, %325 : vector<16x32xf32>
    %cst_146 = arith.constant 9.99999974E-6 : f32
    %327 = vector.broadcast %cst_146 : f32 to vector<16x1xf32>
    %328 = arith.addf %324, %327 : vector<16x1xf32>
    %329 = math.rsqrt %328 : vector<16x1xf32>
    %330 = vector.broadcast %329 : vector<16x1xf32> to vector<16x32xf32>
    %331 = arith.mulf %326, %330 : vector<16x32xf32>
    %332 = vector.broadcast %311 : vector<1x32xf32> to vector<16x32xf32>
    %333 = arith.mulf %331, %332 : vector<16x32xf32>
    %334 = vector.broadcast %313 : vector<1x32xf32> to vector<16x32xf32>
    %335 = arith.addf %333, %334 : vector<16x32xf32>
    %336 = vector.shape_cast %335 : vector<16x32xf32> to vector<2x8x32xf32>
    %337 = vector.extract_strided_slice %336 {offsets = [0, 7, 0], sizes = [2, 1, 32], strides = [1, 1, 1]} : vector<2x8x32xf32> to vector<2x1x32xf32>
    %338 = vector.shape_cast %337 : vector<2x1x32xf32> to vector<2x32xf32>
    %c0_147 = arith.constant 0 : index
    %c0_148 = arith.constant 0 : index
    %339 = vector.load %arg15[%c0_147, %c0_148] : memref<32x1xf32, #tpu.memory_space<vmem>>, vector<32x1xf32>
    %cst_149 = arith.constant dense<0.000000e+00> : vector<2x1xf32>
    %340 = tpu.matmul %338, %339, %cst_149 {dimension_numbers = #tpu.dot_dimension_numbers<[1], [0], [0], [1], [0, 0, 1, 1], [], []>} : vector<2x32xf32>, vector<32x1xf32>, vector<2x1xf32> -> vector<2x1xf32>
    %c0_150 = arith.constant 0 : index
    %c0_151 = arith.constant 0 : index
    %341 = vector.load %arg16[%c0_150, %c0_151] : memref<1x1xf32, #tpu.memory_space<vmem>>, vector<1x1xf32>
    %342 = vector.broadcast %341 : vector<1x1xf32> to vector<2x1xf32>
    %343 = arith.addf %340, %342 : vector<2x1xf32>
    %c0_152 = arith.constant 0 : index
    %c0_153 = arith.constant 0 : index
    %344 = vector.load %arg17[%c0_152, %c0_153] : memref<2x1xf32, #tpu.memory_space<vmem>>, vector<2x1xf32>
    tpu.vector_store %arg17[%c0_152, %c0_153], %343 {strides = array<i32>} : memref<2x1xf32, #tpu.memory_space<vmem>>, vector<2x1xf32>,
    return
  }
}

</mosaic_0001>

<llo_original>
// kernel: time_series_transformer.1
$region0: #{time_series_transformer.1}
  #allocation0 [shape = 'u32[]', space=smem, size = 0x4, offset = 0x4, fixed_abs, tag = 'smem constant byte address 0x4 - core index']
  #allocation1 [shape = 'u32[144,128]{1,0:T(1,128)}', space=vmem, size = 0x12000, scoped, tag = 'internal scratch']
  #allocation2 [shape = 'f32[1,1]{1,0:T(1,128)S(1)}', space=vmem, size = 0x200, scoped, tag = 'scoped memory for time_series_transformer.1']
  %s0 = inlined_call_operand.vmem [shape: f32[2,8,4], index: 0, kind: input, shape index: {}]
  %s1 = inlined_call_operand.vmem [shape: bf16[4,32], index: 1, kind: input, shape index: {}]
  %s2 = inlined_call_operand.vmem [shape: f32[1,32], index: 2, kind: input, shape index: {}]
  %s3 = inlined_call_operand.vmem [shape: bf16[2,32,96], index: 3, kind: input, shape index: {}]
  %s4 = inlined_call_operand.vmem [shape: f32[2,1,96], index: 4, kind: input, shape index: {}]
  %s5 = inlined_call_operand.vmem [shape: bf16[2,32,32], index: 5, kind: input, shape index: {}]
  %s6 = inlined_call_operand.vmem [shape: f32[2,1,32], index: 6, kind: input, shape index: {}]
  %s7 = inlined_call_operand.vmem [shape: f32[2,1,32], index: 7, kind: input, shape index: {}]
  %s8 = inlined_call_operand.vmem [shape: f32[2,1,32], index: 8, kind: input, shape index: {}]
  %s9 = inlined_call_operand.vmem [shape: bf16[2,32,2048], index: 9, kind: input, shape index: {}]
  %s10 = inlined_call_operand.vmem [shape: f32[2,1,2048], index: 10, kind: input, shape index: {}]
  %s11 = inlined_call_operand.vmem [shape: bf16[2,2048,32], index: 11, kind: input, shape index: {}]
  %s12 = inlined_call_operand.vmem [shape: f32[2,1,32], index: 12, kind: input, shape index: {}]
  %s13 = inlined_call_operand.vmem [shape: f32[2,1,32], index: 13, kind: input, shape index: {}]
  %s14 = inlined_call_operand.vmem [shape: f32[2,1,32], index: 14, kind: input, shape index: {}]
  %s15 = inlined_call_operand.vmem [shape: f32[32,1], index: 15, kind: input, shape index: {}]
  %s16 = inlined_call_operand.<no memory space> [shape: f32[1,1], index: 16, kind: input, shape index: {}]
  %s17 = inlined_call_operand.vmem [shape: f32[2,1], index: 17, kind: output, shape index: {}]
  %s18 = sld [smem:[#allocation0]]
  $region78: #{time_series_transformer.1} parent=0
    _
  %s20 = ssub.s32 1, %s18
  %s21 = scalar_select 0, %s20, %s18
  %v22 = vstv %s16
  %23 = vst [vmem:[#allocation2] sm:$0x1] %v22
  // Predicated region
  $region2: #{time_series_transformer.1} parent=0 // pred_check
    _
  $region3: #{time_series_transformer.1} parent=0 // pred_check_branch
    %25 = sbr.rel (0) target = $region5
  $region4: #{time_series_transformer.1} parent=0 // pred_region
    _
  $region5: #{time_series_transformer.1} parent=0 // pred_fallthru
    _
  // Predicated region
  $region6: #{time_series_transformer.1} parent=0 // pred_check
    _
  $region7: #{time_series_transformer.1} parent=0 // pred_check_branch
    %27 = sbr.rel (0) target = $region9
  $region8: #{time_series_transformer.1} parent=0 // pred_region
    _
  $region9: #{time_series_transformer.1} parent=0 // pred_fallthru
    _
  // Predicated region
  $region10: #{time_series_transformer.1} parent=0 // pred_check
    _
  $region11: #{time_series_transformer.1} parent=0 // pred_check_branch
    %29 = sbr.rel (0) target = $region13
  $region12: #{time_series_transformer.1} parent=0 // pred_region
    _
  $region13: #{time_series_transformer.1} parent=0 // pred_fallthru
    _
  // Predicated region
  $region14: #{time_series_transformer.1} parent=0 // pred_check
    _
  $region15: #{time_series_transformer.1} parent=0 // pred_check_branch
    %31 = sbr.rel (0) target = $region17
  $region16: #{time_series_transformer.1} parent=0 // pred_region
    _
  $region17: #{time_series_transformer.1} parent=0 // pred_fallthru
    _
  // Predicated region
  $region18: #{time_series_transformer.1} parent=0 // pred_check
    _
  $region19: #{time_series_transformer.1} parent=0 // pred_check_branch
    %33 = sbr.rel (0) target = $region21
  $region20: #{time_series_transformer.1} parent=0 // pred_region
    _
  $region21: #{time_series_transformer.1} parent=0 // pred_fallthru
    _
  // Predicated region
  $region22: #{time_series_transformer.1} parent=0 // pred_check
    _
  $region23: #{time_series_transformer.1} parent=0 // pred_check_branch
    %35 = sbr.rel (0) target = $region25
  $region24: #{time_series_transformer.1} parent=0 // pred_region
    _
  $region25: #{time_series_transformer.1} parent=0 // pred_fallthru
    _
  // Predicated region
  $region26: #{time_series_transformer.1} parent=0 // pred_check
    _
  $region27: #{time_series_transformer.1} parent=0 // pred_check_branch
    %37 = sbr.rel (0) target = $region29
  $region28: #{time_series_transformer.1} parent=0 // pred_region
    _
  $region29: #{time_series_transformer.1} parent=0 // pred_fallthru
    _
  // Predicated region
  $region30: #{time_series_transformer.1} parent=0 // pred_check
    _
  $region31: #{time_series_transformer.1} parent=0 // pred_check_branch
    %39 = sbr.rel (0) target = $region33
  $region32: #{time_series_transformer.1} parent=0 // pred_region
    _
  $region33: #{time_series_transformer.1} parent=0 // pred_fallthru
    _
  // Predicated region
  $region34: #{time_series_transformer.1} parent=0 // pred_check
    _
  $region35: #{time_series_transformer.1} parent=0 // pred_check_branch
    %41 = sbr.rel (0) target = $region37
  $region36: #{time_series_transformer.1} parent=0 // pred_region
    _
  $region37: #{time_series_transformer.1} parent=0 // pred_fallthru
    _
  // Predicated region
  $region38: #{time_series_transformer.1} parent=0 // pred_check
    _
  $region39: #{time_series_transformer.1} parent=0 // pred_check_branch
    %43 = sbr.rel (0) target = $region41
  $region40: #{time_series_transformer.1} parent=0 // pred_region
    _
  $region41: #{time_series_transformer.1} parent=0 // pred_fallthru
    _
  // Predicated region
  $region42: #{time_series_transformer.1} parent=0 // pred_check
    _
  $region43: #{time_series_transformer.1} parent=0 // pred_check_branch
    %45 = sbr.rel (0) target = $region45
  $region44: #{time_series_transformer.1} parent=0 // pred_region
    _
  $region45: #{time_series_transformer.1} parent=0 // pred_fallthru
    _
  // Predicated region
  $region46: #{time_series_transformer.1} parent=0 // pred_check
    _
  $region47: #{time_series_transformer.1} parent=0 // pred_check_branch
    %47 = sbr.rel (0) target = $region49
  $region48: #{time_series_transformer.1} parent=0 // pred_region
    _
  $region49: #{time_series_transformer.1} parent=0 // pred_fallthru
    _
  // Predicated region
  $region50: #{time_series_transformer.1} parent=0 // pred_check
    _
  $region51: #{time_series_transformer.1} parent=0 // pred_check_branch
    %49 = sbr.rel (0) target = $region53
  $region52: #{time_series_transformer.1} parent=0 // pred_region
    _
  $region53: #{time_series_transformer.1} parent=0 // pred_fallthru
    _
  // Predicated region
  $region54: #{time_series_transformer.1} parent=0 // pred_check
    _
  $region55: #{time_series_transformer.1} parent=0 // pred_check_branch
    %51 = sbr.rel (0) target = $region57
  $region56: #{time_series_transformer.1} parent=0 // pred_region
    _
  $region57: #{time_series_transformer.1} parent=0 // pred_fallthru
    _
  // Predicated region
  $region58: #{time_series_transformer.1} parent=0 // pred_check
    _
  $region59: #{time_series_transformer.1} parent=0 // pred_check_branch
    %53 = sbr.rel (0) target = $region61
  $region60: #{time_series_transformer.1} parent=0 // pred_region
    _
  $region61: #{time_series_transformer.1} parent=0 // pred_fallthru
    _
  // Predicated region
  $region62: #{time_series_transformer.1} parent=0 // pred_check
    _
  $region63: #{time_series_transformer.1} parent=0 // pred_check_branch
    %55 = sbr.rel (0) target = $region65
  $region64: #{time_series_transformer.1} parent=0 // pred_region
    _
  $region65: #{time_series_transformer.1} parent=0 // pred_fallthru
    _
  // Predicated region
  $region66: #{time_series_transformer.1} parent=0 // pred_check
    _
  $region67: #{time_series_transformer.1} parent=0 // pred_check_branch
    %57 = sbr.rel (0) target = $region69
  $region68: #{time_series_transformer.1} parent=0 // pred_region
    _
  $region69: #{time_series_transformer.1} parent=0 // pred_fallthru
    _
  %v59 = vld [vmem:[%s0] sm:$0xff]
  %v60 = vld [vmem:[%s0 + $0x8] sm:$0xff]
  %v61 = vpack.c.bf16 %v60, %v59
  %v62 = vld [vmem:[%s1] sm:$0x3]
  %v63 = vld [vmem:[%s2] sm:$0x1]
  %v65 = vlaneseq
  %v66 = vshrl.u32 %v65, 7
  %v67 = vsub.s32 0, %v66
  %v68 = vrot.slane %v63, %v67
  %vm70 = vcmask 31744
  %v72 = vsel %vm70, %v61, 0
  %vm74 = vcmask 1041408
  %v76 = vsel %vm74, %v62, 0
  %78 = vmatprep.subr.bf16.mxu0 0
  %79 = vmatpush1.bf16.msra.mxu0 %v76
  %80 = vmatprep.subr.bf16.mxu0 0
  %81 = vmatpush1.bf16.msra.mxu0 0
  %82 = vmatprep.subr.bf16.mxu0 0
  %83 = vmatpush1.bf16.msra.mxu0 0
  %84 = vmatprep.subr.bf16.mxu0 0
  %85 = vmatpush1.bf16.msra.mxu0 0
  %86 = vmatprep.subr.bf16.mxu0 0
  %87 = vmatpush1.bf16.msra.mxu0 0
  %88 = vmatprep.subr.bf16.mxu0 0
  %89 = vmatpush1.bf16.msra.mxu0 0
  %90 = vmatprep.subr.bf16.mxu0 0
  %91 = vmatpush1.bf16.msra.mxu0 0
  %92 = vmatprep.subr.bf16.mxu0 0
  %93 = vmatpush1.bf16.msra.mxu0 0
  %94 = vmatprep.subr.bf16.mxu0 0
  %95 = vmatpush1.bf16.msra.mxu0 0
  %96 = vmatprep.subr.bf16.mxu0 0
  %97 = vmatpush1.bf16.msra.mxu0 0
  %98 = vmatprep.subr.bf16.mxu0 0
  %99 = vmatpush1.bf16.msra.mxu0 0
  %100 = vmatprep.subr.bf16.mxu0 0
  %101 = vmatpush1.bf16.msra.mxu0 0
  %102 = vmatprep.subr.bf16.mxu0 0
  %103 = vmatpush1.bf16.msra.mxu0 0
  %104 = vmatprep.subr.bf16.mxu0 0
  %105 = vmatpush1.bf16.msra.mxu0 0
  %106 = vmatprep.subr.bf16.mxu0 0
  %107 = vmatpush1.bf16.msra.mxu0 0
  %108 = vmatprep.subr.bf16.mxu0 0
  %109 = vmatpush1.bf16.msra.mxu0 0
  %110 = vmatprep.mubr.bf16.mxu0 0
  %111 = vmatmul.mubr.bf16.gmra.mrb[0].mxu0 %v72
  %v112 = vpop.f32.mrb[0].mxu0
  %v113 = vadd.f32 %v68, %v112
  %v114 = vpop.f32.mrb[0].mxu0
  %v115 = vpop.f32.mrb[0].mxu0
  %v116 = vadd.f32 %v68, %v115
  %v117 = vpop.f32.mrb[0].mxu0
  %118 = vdwg.mxu0
  %v119 = vpack.c.bf16 %v116, %v113
  %v120 = vld [vmem:[%s3] sm:$0xf]
  %v121 = vld [vmem:[%s3 + $0x4] sm:$0xf]
  %v122 = vld [vmem:[%s3 + $0x8] sm:$0xf]
  %v123 = vld [vmem:[%s3 + $0xc] sm:$0xf]
  %v124 = vld [vmem:[%s4] sm:$0x1]
  %v126 = vlaneseq
  %v127 = vshrl.u32 %v126, 7
  %v128 = vsub.s32 0, %v127
  %v129 = vrot.slane %v124, %v128
  %v135 = vunpack.c.l.b16 %v120
  %v136 = vunpack.c.l.b16 %v121
  %v137 = vunpack.c.l.b16 %v122
  %v138 = vunpack.c.l.b16 %v123
  %v139 = vpack.c.b16 %v136, %v135
  %v140 = vpack.c.b16 %v138, %v137
  %vm143 = vcmask 261120
  %v145 = vsel %vm143, %v119, 0
  %147 = vmatprep.subr.bf16.mxu0 0
  %148 = vmatpush1.bf16.msra.mxu0 %v139
  %149 = vmatprep.subr.bf16.mxu0 0
  %150 = vmatpush1.bf16.msra.mxu0 %v140
  %151 = vmatprep.subr.bf16.mxu0 0
  %152 = vmatpush1.bf16.msra.mxu0 0
  %153 = vmatprep.subr.bf16.mxu0 0
  %154 = vmatpush1.bf16.msra.mxu0 0
  %155 = vmatprep.subr.bf16.mxu0 0
  %156 = vmatpush1.bf16.msra.mxu0 0
  %157 = vmatprep.subr.bf16.mxu0 0
  %158 = vmatpush1.bf16.msra.mxu0 0
  %159 = vmatprep.subr.bf16.mxu0 0
  %160 = vmatpush1.bf16.msra.mxu0 0
  %161 = vmatprep.subr.bf16.mxu0 0
  %162 = vmatpush1.bf16.msra.mxu0 0
  %163 = vmatprep.subr.bf16.mxu0 0
  %164 = vmatpush1.bf16.msra.mxu0 0
  %165 = vmatprep.subr.bf16.mxu0 0
  %166 = vmatpush1.bf16.msra.mxu0 0
  %167 = vmatprep.subr.bf16.mxu0 0
  %168 = vmatpush1.bf16.msra.mxu0 0
  %169 = vmatprep.subr.bf16.mxu0 0
  %170 = vmatpush1.bf16.msra.mxu0 0
  %171 = vmatprep.subr.bf16.mxu0 0
  %172 = vmatpush1.bf16.msra.mxu0 0
  %173 = vmatprep.subr.bf16.mxu0 0
  %174 = vmatpush1.bf16.msra.mxu0 0
  %175 = vmatprep.subr.bf16.mxu0 0
  %176 = vmatpush1.bf16.msra.mxu0 0
  %177 = vmatprep.subr.bf16.mxu0 0
  %178 = vmatpush1.bf16.msra.mxu0 0
  %179 = vmatprep.mubr.bf16.mxu0 0
  %180 = vmatmul.mubr.bf16.gmra.mrb[0].mxu0 %v145
  %v181 = vpop.f32.mrb[0].mxu0
  %v182 = vadd.f32 %v129, %v181
  %v183 = vpop.f32.mrb[0].mxu0
  %v184 = vpop.f32.mrb[0].mxu0
  %v185 = vadd.f32 %v129, %v184
  %v186 = vpop.f32.mrb[0].mxu0
  %187 = vdwg.mxu0
  %189 = vrot.lane.b32.xlu0 %v182, 96
  %v190 = vpop.permute.xlu0 %189
  %vm191 = vcmask 64512
  %v192 = vsel %vm191, %v182, 0
  %v194 = vsel %vm191, %v190, 0
  %196 = vmatprep.subr.mxu0 0.0
  %197 = vmatpush1.xpose.msra.mxu0 %v194
  %198 = vmatprep.subr.mxu0 0.0
  %199 = vmatpush1.xpose.msra.mxu0 0.0
  %200 = vmatprep.subr.mxu0 0.0
  %201 = vmatpush1.xpose.msra.mxu0 0.0
  %202 = vmatprep.subr.mxu0 0.0
  %203 = vmatpush1.xpose.msra.mxu0 0.0
  %204 = vmatprep.subr.mxu0 0.0
  %205 = vmatpush1.xpose.msra.mxu0 0.0
  %206 = vmatprep.subr.mxu0 0.0
  %207 = vmatpush1.xpose.msra.mxu0 0.0
  %208 = vmatprep.subr.mxu0 0.0
  %209 = vmatpush1.xpose.msra.mxu0 0.0
  %210 = vmatprep.subr.mxu0 0.0
  %211 = vmatpush1.xpose.msra.mxu0 0.0
  %212 = vmatprep.subr.mxu0 0.0
  %213 = vmatpush1.xpose.msra.mxu0 0.0
  %214 = vmatprep.subr.mxu0 0.0
  %215 = vmatpush1.xpose.msra.mxu0 0.0
  %216 = vmatprep.subr.mxu0 0.0
  %217 = vmatpush1.xpose.msra.mxu0 0.0
  %218 = vmatprep.subr.mxu0 0.0
  %219 = vmatpush1.xpose.msra.mxu0 0.0
  %220 = vmatprep.subr.mxu0 0.0
  %221 = vmatpush1.xpose.msra.mxu0 0.0
  %222 = vmatprep.subr.mxu0 0.0
  %223 = vmatpush1.xpose.msra.mxu0 0.0
  %224 = vmatprep.subr.mxu0 0.0
  %225 = vmatpush1.xpose.msra.mxu0 0.0
  %226 = vmatprep.subr.mxu0 0.0
  %227 = vmatpush1.xpose.msra.mxu0 0.0
  %228 = vmatprep.subr.mxu0 0.0
  %229 = vmatpush1.xpose.msra.mxu0 0.0
  %230 = vmatprep.subr.mxu0 0.0
  %231 = vmatpush1.xpose.msra.mxu0 0.0
  %232 = vmatprep.subr.mxu0 0.0
  %233 = vmatpush1.xpose.msra.mxu0 0.0
  %234 = vmatprep.subr.mxu0 0.0
  %235 = vmatpush1.xpose.msra.mxu0 0.0
  %236 = vmatprep.subr.mxu0 0.0
  %237 = vmatpush1.xpose.msra.mxu0 0.0
  %238 = vmatprep.subr.mxu0 0.0
  %239 = vmatpush1.xpose.msra.mxu0 0.0
  %240 = vmatprep.subr.mxu0 0.0
  %241 = vmatpush1.xpose.msra.mxu0 0.0
  %242 = vmatprep.subr.mxu0 0.0
  %243 = vmatpush1.xpose.msra.mxu0 0.0
  %244 = vmatprep.subr.mxu0 0.0
  %245 = vmatpush1.xpose.msra.mxu0 0.0
  %246 = vmatprep.subr.mxu0 0.0
  %247 = vmatpush1.xpose.msra.mxu0 0.0
  %248 = vmatprep.subr.mxu0 0.0
  %249 = vmatpush1.xpose.msra.mxu0 0.0
  %250 = vmatprep.subr.mxu0 0.0
  %251 = vmatpush1.xpose.msra.mxu0 0.0
  %252 = vmatprep.subr.mxu0 0.0
  %253 = vmatpush1.xpose.msra.mxu0 0.0
  %254 = vmatprep.subr.mxu0 0.0
  %255 = vmatpush1.xpose.msra.mxu0 0.0
  %256 = vmatprep.subr.mxu0 0.0
  %257 = vmatpush1.xpose.msra.mxu0 0.0
  %258 = vmatprep.subr.mxu0 0.0
  %259 = vmatpush1.xpose.msra.mxu0 0.0
  %260 = vmatprep.mubr.f32.mxu0 0.0
  %261 = vmatmul.mubr.f32.gmra.mrb[0].mxu0 %v192
  %v262 = vpop.f32.mrb[0].mxu0
  %v263 = vadd.f32 0.0, %v262
  %v264 = vpop.f32.mrb[0].mxu0
  %265 = vdwg.mxu0
  %267 = vrot.lane.b32.xlu0 %v185, 96
  %v268 = vpop.permute.xlu0 %267
  %v269 = vsel %vm191, %v185, 0
  %v271 = vsel %vm191, %v268, 0
  %273 = vmatprep.subr.mxu0 0.0
  %274 = vmatpush1.xpose.msra.mxu0 %v271
  %275 = vmatprep.subr.mxu0 0.0
  %276 = vmatpush1.xpose.msra.mxu0 0.0
  %277 = vmatprep.subr.mxu0 0.0
  %278 = vmatpush1.xpose.msra.mxu0 0.0
  %279 = vmatprep.subr.mxu0 0.0
  %280 = vmatpush1.xpose.msra.mxu0 0.0
  %281 = vmatprep.subr.mxu0 0.0
  %282 = vmatpush1.xpose.msra.mxu0 0.0
  %283 = vmatprep.subr.mxu0 0.0
  %284 = vmatpush1.xpose.msra.mxu0 0.0
  %285 = vmatprep.subr.mxu0 0.0
  %286 = vmatpush1.xpose.msra.mxu0 0.0
  %287 = vmatprep.subr.mxu0 0.0
  %288 = vmatpush1.xpose.msra.mxu0 0.0
  %289 = vmatprep.subr.mxu0 0.0
  %290 = vmatpush1.xpose.msra.mxu0 0.0
  %291 = vmatprep.subr.mxu0 0.0
  %292 = vmatpush1.xpose.msra.mxu0 0.0
  %293 = vmatprep.subr.mxu0 0.0
  %294 = vmatpush1.xpose.msra.mxu0 0.0
  %295 = vmatprep.subr.mxu0 0.0
  %296 = vmatpush1.xpose.msra.mxu0 0.0
  %297 = vmatprep.subr.mxu0 0.0
  %298 = vmatpush1.xpose.msra.mxu0 0.0
  %299 = vmatprep.subr.mxu0 0.0
  %300 = vmatpush1.xpose.msra.mxu0 0.0
  %301 = vmatprep.subr.mxu0 0.0
  %302 = vmatpush1.xpose.msra.mxu0 0.0
  %303 = vmatprep.subr.mxu0 0.0
  %304 = vmatpush1.xpose.msra.mxu0 0.0
  %305 = vmatprep.subr.mxu0 0.0
  %306 = vmatpush1.xpose.msra.mxu0 0.0
  %307 = vmatprep.subr.mxu0 0.0
  %308 = vmatpush1.xpose.msra.mxu0 0.0
  %309 = vmatprep.subr.mxu0 0.0
  %310 = vmatpush1.xpose.msra.mxu0 0.0
  %311 = vmatprep.subr.mxu0 0.0
  %312 = vmatpush1.xpose.msra.mxu0 0.0
  %313 = vmatprep.subr.mxu0 0.0
  %314 = vmatpush1.xpose.msra.mxu0 0.0
  %315 = vmatprep.subr.mxu0 0.0
  %316 = vmatpush1.xpose.msra.mxu0 0.0
  %317 = vmatprep.subr.mxu0 0.0
  %318 = vmatpush1.xpose.msra.mxu0 0.0
  %319 = vmatprep.subr.mxu0 0.0
  %320 = vmatpush1.xpose.msra.mxu0 0.0
  %321 = vmatprep.subr.mxu0 0.0
  %322 = vmatpush1.xpose.msra.mxu0 0.0
  %323 = vmatprep.subr.mxu0 0.0
  %324 = vmatpush1.xpose.msra.mxu0 0.0
  %325 = vmatprep.subr.mxu0 0.0
  %326 = vmatpush1.xpose.msra.mxu0 0.0
  %327 = vmatprep.subr.mxu0 0.0
  %328 = vmatpush1.xpose.msra.mxu0 0.0
  %329 = vmatprep.subr.mxu0 0.0
  %330 = vmatpush1.xpose.msra.mxu0 0.0
  %331 = vmatprep.subr.mxu0 0.0
  %332 = vmatpush1.xpose.msra.mxu0 0.0
  %333 = vmatprep.subr.mxu0 0.0
  %334 = vmatpush1.xpose.msra.mxu0 0.0
  %335 = vmatprep.subr.mxu0 0.0
  %336 = vmatpush1.xpose.msra.mxu0 0.0
  %337 = vmatprep.mubr.f32.mxu0 0.0
  %338 = vmatmul.mubr.f32.gmra.mrb[0].mxu0 %v269
  %v339 = vpop.f32.mrb[0].mxu0
  %v340 = vadd.f32 0.0, %v339
  %v341 = vpop.f32.mrb[0].mxu0
  %342 = vdwg.mxu0
  %v343 = vmul.f32 %v263, 0.35355338
  %v344 = vmul.f32 %v340, 0.35355338
  %v345 = vsel %vm191, %v343, -inf
  %346 = vmax.xlane.f32.xlu0 %v345
  %v347 = vpop.xlane.xlu0 %346
  %v348 = vsel %vm191, %v344, -inf
  %349 = vmax.xlane.f32.xlu0 %v348
  %v350 = vpop.xlane.xlu0 %349
  %v351 = vsub.f32 %v343, %v347
  %v352 = vsub.f32 %v344, %v350
  %v353 = vmul.f32 %v351, 1.442695
  %v354 = vpow.pop %v353
  %v355 = vmul.f32 %v352, 1.442695
  %v356 = vpow.pop %v355
  %v357 = vsel %vm191, %v354, 0.0
  %358 = vadd.xlane.f32.xlu0 %v357
  %v359 = vpop.xlane.xlu0 %358
  %v360 = vsel %vm191, %v356, 0.0
  %361 = vadd.xlane.f32.xlu0 %v360
  %v362 = vpop.xlane.xlu0 %361
  %v363 = vrcp.pop %v359
  %v364 = vrcp.pop %v362
  %v365 = vmul.f32 %v354, %v363
  %v366 = vmul.f32 %v356, %v364
  %367 = vrot.lane.b32.xlu0 %v182, 64
  %v368 = vpop.permute.xlu0 %367
  %v371 = vsel %vm191, %v365, 0
  %373 = vmatprep.subr.mxu0 0.0
  %374 = vmatpush1.msra.mxu0 %v368
  %375 = vmatprep.subr.mxu0 0.0
  %376 = vmatpush1.msra.mxu0 0.0
  %377 = vmatprep.subr.mxu0 0.0
  %378 = vmatpush1.msra.mxu0 0.0
  %379 = vmatprep.subr.mxu0 0.0
  %380 = vmatpush1.msra.mxu0 0.0
  %381 = vmatprep.subr.mxu0 0.0
  %382 = vmatpush1.msra.mxu0 0.0
  %383 = vmatprep.subr.mxu0 0.0
  %384 = vmatpush1.msra.mxu0 0.0
  %385 = vmatprep.subr.mxu0 0.0
  %386 = vmatpush1.msra.mxu0 0.0
  %387 = vmatprep.subr.mxu0 0.0
  %388 = vmatpush1.msra.mxu0 0.0
  %389 = vmatprep.subr.mxu0 0.0
  %390 = vmatpush1.msra.mxu0 0.0
  %391 = vmatprep.subr.mxu0 0.0
  %392 = vmatpush1.msra.mxu0 0.0
  %393 = vmatprep.subr.mxu0 0.0
  %394 = vmatpush1.msra.mxu0 0.0
  %395 = vmatprep.subr.mxu0 0.0
  %396 = vmatpush1.msra.mxu0 0.0
  %397 = vmatprep.subr.mxu0 0.0
  %398 = vmatpush1.msra.mxu0 0.0
  %399 = vmatprep.subr.mxu0 0.0
  %400 = vmatpush1.msra.mxu0 0.0
  %401 = vmatprep.subr.mxu0 0.0
  %402 = vmatpush1.msra.mxu0 0.0
  %403 = vmatprep.subr.mxu0 0.0
  %404 = vmatpush1.msra.mxu0 0.0
  %405 = vmatprep.subr.mxu0 0.0
  %406 = vmatpush1.msra.mxu0 0.0
  %407 = vmatprep.subr.mxu0 0.0
  %408 = vmatpush1.msra.mxu0 0.0
  %409 = vmatprep.subr.mxu0 0.0
  %410 = vmatpush1.msra.mxu0 0.0
  %411 = vmatprep.subr.mxu0 0.0
  %412 = vmatpush1.msra.mxu0 0.0
  %413 = vmatprep.subr.mxu0 0.0
  %414 = vmatpush1.msra.mxu0 0.0
  %415 = vmatprep.subr.mxu0 0.0
  %416 = vmatpush1.msra.mxu0 0.0
  %417 = vmatprep.subr.mxu0 0.0
  %418 = vmatpush1.msra.mxu0 0.0
  %419 = vmatprep.subr.mxu0 0.0
  %420 = vmatpush1.msra.mxu0 0.0
  %421 = vmatprep.subr.mxu0 0.0
  %422 = vmatpush1.msra.mxu0 0.0
  %423 = vmatprep.subr.mxu0 0.0
  %424 = vmatpush1.msra.mxu0 0.0
  %425 = vmatprep.subr.mxu0 0.0
  %426 = vmatpush1.msra.mxu0 0.0
  %427 = vmatprep.subr.mxu0 0.0
  %428 = vmatpush1.msra.mxu0 0.0
  %429 = vmatprep.subr.mxu0 0.0
  %430 = vmatpush1.msra.mxu0 0.0
  %431 = vmatprep.subr.mxu0 0.0
  %432 = vmatpush1.msra.mxu0 0.0
  %433 = vmatprep.subr.mxu0 0.0
  %434 = vmatpush1.msra.mxu0 0.0
  %435 = vmatprep.subr.mxu0 0.0
  %436 = vmatpush1.msra.mxu0 0.0
  %437 = vmatprep.mubr.f32.mxu0 0.0
  %438 = vmatmul.mubr.f32.gmra.mrb[0].mxu0 %v371
  %v439 = vpop.f32.mrb[0].mxu0
  %v440 = vadd.f32 0.0, %v439
  %v441 = vpop.f32.mrb[0].mxu0
  %442 = vdwg.mxu0
  %443 = vrot.lane.b32.xlu0 %v185, 64
  %v444 = vpop.permute.xlu0 %443
  %v447 = vsel %vm191, %v366, 0
  %449 = vmatprep.subr.mxu0 0.0
  %450 = vmatpush1.msra.mxu0 %v444
  %451 = vmatprep.subr.mxu0 0.0
  %452 = vmatpush1.msra.mxu0 0.0
  %453 = vmatprep.subr.mxu0 0.0
  %454 = vmatpush1.msra.mxu0 0.0
  %455 = vmatprep.subr.mxu0 0.0
  %456 = vmatpush1.msra.mxu0 0.0
  %457 = vmatprep.subr.mxu0 0.0
  %458 = vmatpush1.msra.mxu0 0.0
  %459 = vmatprep.subr.mxu0 0.0
  %460 = vmatpush1.msra.mxu0 0.0
  %461 = vmatprep.subr.mxu0 0.0
  %462 = vmatpush1.msra.mxu0 0.0
  %463 = vmatprep.subr.mxu0 0.0
  %464 = vmatpush1.msra.mxu0 0.0
  %465 = vmatprep.subr.mxu0 0.0
  %466 = vmatpush1.msra.mxu0 0.0
  %467 = vmatprep.subr.mxu0 0.0
  %468 = vmatpush1.msra.mxu0 0.0
  %469 = vmatprep.subr.mxu0 0.0
  %470 = vmatpush1.msra.mxu0 0.0
  %471 = vmatprep.subr.mxu0 0.0
  %472 = vmatpush1.msra.mxu0 0.0
  %473 = vmatprep.subr.mxu0 0.0
  %474 = vmatpush1.msra.mxu0 0.0
  %475 = vmatprep.subr.mxu0 0.0
  %476 = vmatpush1.msra.mxu0 0.0
  %477 = vmatprep.subr.mxu0 0.0
  %478 = vmatpush1.msra.mxu0 0.0
  %479 = vmatprep.subr.mxu0 0.0
  %480 = vmatpush1.msra.mxu0 0.0
  %481 = vmatprep.subr.mxu0 0.0
  %482 = vmatpush1.msra.mxu0 0.0
  %483 = vmatprep.subr.mxu0 0.0
  %484 = vmatpush1.msra.mxu0 0.0
  %485 = vmatprep.subr.mxu0 0.0
  %486 = vmatpush1.msra.mxu0 0.0
  %487 = vmatprep.subr.mxu0 0.0
  %488 = vmatpush1.msra.mxu0 0.0
  %489 = vmatprep.subr.mxu0 0.0
  %490 = vmatpush1.msra.mxu0 0.0
  %491 = vmatprep.subr.mxu0 0.0
  %492 = vmatpush1.msra.mxu0 0.0
  %493 = vmatprep.subr.mxu0 0.0
  %494 = vmatpush1.msra.mxu0 0.0
  %495 = vmatprep.subr.mxu0 0.0
  %496 = vmatpush1.msra.mxu0 0.0
  %497 = vmatprep.subr.mxu0 0.0
  %498 = vmatpush1.msra.mxu0 0.0
  %499 = vmatprep.subr.mxu0 0.0
  %500 = vmatpush1.msra.mxu0 0.0
  %501 = vmatprep.subr.mxu0 0.0
  %502 = vmatpush1.msra.mxu0 0.0
  %503 = vmatprep.subr.mxu0 0.0
  %504 = vmatpush1.msra.mxu0 0.0
  %505 = vmatprep.subr.mxu0 0.0
  %506 = vmatpush1.msra.mxu0 0.0
  %507 = vmatprep.subr.mxu0 0.0
  %508 = vmatpush1.msra.mxu0 0.0
  %509 = vmatprep.subr.mxu0 0.0
  %510 = vmatpush1.msra.mxu0 0.0
  %511 = vmatprep.subr.mxu0 0.0
  %512 = vmatpush1.msra.mxu0 0.0
  %513 = vmatprep.mubr.f32.mxu0 0.0
  %514 = vmatmul.mubr.f32.gmra.mrb[0].mxu0 %v447
  %v515 = vpop.f32.mrb[0].mxu0
  %v516 = vadd.f32 0.0, %v515
  %v517 = vpop.f32.mrb[0].mxu0
  %518 = vdwg.mxu0
  %519 = vrot.lane.b32.xlu0 %v182, 120
  %v520 = vpop.permute.xlu0 %519
  %521 = vrot.lane.b32.xlu0 %v182, 88
  %v522 = vpop.permute.xlu0 %521
  %v523 = vsel %vm191, %v520, 0
  %v525 = vsel %vm191, %v522, 0
  %527 = vmatprep.subr.mxu0 0.0
  %528 = vmatpush1.xpose.msra.mxu0 %v525
  %529 = vmatprep.subr.mxu0 0.0
  %530 = vmatpush1.xpose.msra.mxu0 0.0
  %531 = vmatprep.subr.mxu0 0.0
  %532 = vmatpush1.xpose.msra.mxu0 0.0
  %533 = vmatprep.subr.mxu0 0.0
  %534 = vmatpush1.xpose.msra.mxu0 0.0
  %535 = vmatprep.subr.mxu0 0.0
  %536 = vmatpush1.xpose.msra.mxu0 0.0
  %537 = vmatprep.subr.mxu0 0.0
  %538 = vmatpush1.xpose.msra.mxu0 0.0
  %539 = vmatprep.subr.mxu0 0.0
  %540 = vmatpush1.xpose.msra.mxu0 0.0
  %541 = vmatprep.subr.mxu0 0.0
  %542 = vmatpush1.xpose.msra.mxu0 0.0
  %543 = vmatprep.subr.mxu0 0.0
  %544 = vmatpush1.xpose.msra.mxu0 0.0
  %545 = vmatprep.subr.mxu0 0.0
  %546 = vmatpush1.xpose.msra.mxu0 0.0
  %547 = vmatprep.subr.mxu0 0.0
  %548 = vmatpush1.xpose.msra.mxu0 0.0
  %549 = vmatprep.subr.mxu0 0.0
  %550 = vmatpush1.xpose.msra.mxu0 0.0
  %551 = vmatprep.subr.mxu0 0.0
  %552 = vmatpush1.xpose.msra.mxu0 0.0
  %553 = vmatprep.subr.mxu0 0.0
  %554 = vmatpush1.xpose.msra.mxu0 0.0
  %555 = vmatprep.subr.mxu0 0.0
  %556 = vmatpush1.xpose.msra.mxu0 0.0
  %557 = vmatprep.subr.mxu0 0.0
  %558 = vmatpush1.xpose.msra.mxu0 0.0
  %559 = vmatprep.subr.mxu0 0.0
  %560 = vmatpush1.xpose.msra.mxu0 0.0
  %561 = vmatprep.subr.mxu0 0.0
  %562 = vmatpush1.xpose.msra.mxu0 0.0
  %563 = vmatprep.subr.mxu0 0.0
  %564 = vmatpush1.xpose.msra.mxu0 0.0
  %565 = vmatprep.subr.mxu0 0.0
  %566 = vmatpush1.xpose.msra.mxu0 0.0
  %567 = vmatprep.subr.mxu0 0.0
  %568 = vmatpush1.xpose.msra.mxu0 0.0
  %569 = vmatprep.subr.mxu0 0.0
  %570 = vmatpush1.xpose.msra.mxu0 0.0
  %571 = vmatprep.subr.mxu0 0.0
  %572 = vmatpush1.xpose.msra.mxu0 0.0
  %573 = vmatprep.subr.mxu0 0.0
  %574 = vmatpush1.xpose.msra.mxu0 0.0
  %575 = vmatprep.subr.mxu0 0.0
  %576 = vmatpush1.xpose.msra.mxu0 0.0
  %577 = vmatprep.subr.mxu0 0.0
  %578 = vmatpush1.xpose.msra.mxu0 0.0
  %579 = vmatprep.subr.mxu0 0.0
  %580 = vmatpush1.xpose.msra.mxu0 0.0
  %581 = vmatprep.subr.mxu0 0.0
  %582 = vmatpush1.xpose.msra.mxu0 0.0
  %583 = vmatprep.subr.mxu0 0.0
  %584 = vmatpush1.xpose.msra.mxu0 0.0
  %585 = vmatprep.subr.mxu0 0.0
  %586 = vmatpush1.xpose.msra.mxu0 0.0
  %587 = vmatprep.subr.mxu0 0.0
  %588 = vmatpush1.xpose.msra.mxu0 0.0
  %589 = vmatprep.subr.mxu0 0.0
  %590 = vmatpush1.xpose.msra.mxu0 0.0
  %591 = vmatprep.mubr.f32.mxu0 0.0
  %592 = vmatmul.mubr.f32.gmra.mrb[0].mxu0 %v523
  %v593 = vpop.f32.mrb[0].mxu0
  %v594 = vadd.f32 0.0, %v593
  %v595 = vpop.f32.mrb[0].mxu0
  %596 = vdwg.mxu0
  %597 = vrot.lane.b32.xlu0 %v185, 120
  %v598 = vpop.permute.xlu0 %597
  %599 = vrot.lane.b32.xlu0 %v185, 88
  %v600 = vpop.permute.xlu0 %599
  %v601 = vsel %vm191, %v598, 0
  %v603 = vsel %vm191, %v600, 0
  %605 = vmatprep.subr.mxu0 0.0
  %606 = vmatpush1.xpose.msra.mxu0 %v603
  %607 = vmatprep.subr.mxu0 0.0
  %608 = vmatpush1.xpose.msra.mxu0 0.0
  %609 = vmatprep.subr.mxu0 0.0
  %610 = vmatpush1.xpose.msra.mxu0 0.0
  %611 = vmatprep.subr.mxu0 0.0
  %612 = vmatpush1.xpose.msra.mxu0 0.0
  %613 = vmatprep.subr.mxu0 0.0
  %614 = vmatpush1.xpose.msra.mxu0 0.0
  %615 = vmatprep.subr.mxu0 0.0
  %616 = vmatpush1.xpose.msra.mxu0 0.0
  %617 = vmatprep.subr.mxu0 0.0
  %618 = vmatpush1.xpose.msra.mxu0 0.0
  %619 = vmatprep.subr.mxu0 0.0
  %620 = vmatpush1.xpose.msra.mxu0 0.0
  %621 = vmatprep.subr.mxu0 0.0
  %622 = vmatpush1.xpose.msra.mxu0 0.0
  %623 = vmatprep.subr.mxu0 0.0
  %624 = vmatpush1.xpose.msra.mxu0 0.0
  %625 = vmatprep.subr.mxu0 0.0
  %626 = vmatpush1.xpose.msra.mxu0 0.0
  %627 = vmatprep.subr.mxu0 0.0
  %628 = vmatpush1.xpose.msra.mxu0 0.0
  %629 = vmatprep.subr.mxu0 0.0
  %630 = vmatpush1.xpose.msra.mxu0 0.0
  %631 = vmatprep.subr.mxu0 0.0
  %632 = vmatpush1.xpose.msra.mxu0 0.0
  %633 = vmatprep.subr.mxu0 0.0
  %634 = vmatpush1.xpose.msra.mxu0 0.0
  %635 = vmatprep.subr.mxu0 0.0
  %636 = vmatpush1.xpose.msra.mxu0 0.0
  %637 = vmatprep.subr.mxu0 0.0
  %638 = vmatpush1.xpose.msra.mxu0 0.0
  %639 = vmatprep.subr.mxu0 0.0
  %640 = vmatpush1.xpose.msra.mxu0 0.0
  %641 = vmatprep.subr.mxu0 0.0
  %642 = vmatpush1.xpose.msra.mxu0 0.0
  %643 = vmatprep.subr.mxu0 0.0
  %644 = vmatpush1.xpose.msra.mxu0 0.0
  %645 = vmatprep.subr.mxu0 0.0
  %646 = vmatpush1.xpose.msra.mxu0 0.0
  %647 = vmatprep.subr.mxu0 0.0
  %648 = vmatpush1.xpose.msra.mxu0 0.0
  %649 = vmatprep.subr.mxu0 0.0
  %650 = vmatpush1.xpose.msra.mxu0 0.0
  %651 = vmatprep.subr.mxu0 0.0
  %652 = vmatpush1.xpose.msra.mxu0 0.0
  %653 = vmatprep.subr.mxu0 0.0
  %654 = vmatpush1.xpose.msra.mxu0 0.0
  %655 = vmatprep.subr.mxu0 0.0
  %656 = vmatpush1.xpose.msra.mxu0 0.0
  %657 = vmatprep.subr.mxu0 0.0
  %658 = vmatpush1.xpose.msra.mxu0 0.0
  %659 = vmatprep.subr.mxu0 0.0
  %660 = vmatpush1.xpose.msra.mxu0 0.0
  %661 = vmatprep.subr.mxu0 0.0
  %662 = vmatpush1.xpose.msra.mxu0 0.0
  %663 = vmatprep.subr.mxu0 0.0
  %664 = vmatpush1.xpose.msra.mxu0 0.0
  %665 = vmatprep.subr.mxu0 0.0
  %666 = vmatpush1.xpose.msra.mxu0 0.0
  %667 = vmatprep.subr.mxu0 0.0
  %668 = vmatpush1.xpose.msra.mxu0 0.0
  %669 = vmatprep.mubr.f32.mxu0 0.0
  %670 = vmatmul.mubr.f32.gmra.mrb[0].mxu0 %v601
  %v671 = vpop.f32.mrb[0].mxu0
  %v672 = vadd.f32 0.0, %v671
  %v673 = vpop.f32.mrb[0].mxu0
  %674 = vdwg.mxu0
  %v675 = vmul.f32 %v594, 0.35355338
  %v676 = vmul.f32 %v672, 0.35355338
  %v677 = vsel %vm191, %v675, -inf
  %678 = vmax.xlane.f32.xlu0 %v677
  %v679 = vpop.xlane.xlu0 %678
  %v680 = vsel %vm191, %v676, -inf
  %681 = vmax.xlane.f32.xlu0 %v680
  %v682 = vpop.xlane.xlu0 %681
  %v683 = vsub.f32 %v675, %v679
  %v684 = vsub.f32 %v676, %v682
  %v685 = vmul.f32 %v683, 1.442695
  %v686 = vpow.pop %v685
  %v687 = vmul.f32 %v684, 1.442695
  %v688 = vpow.pop %v687
  %v689 = vsel %vm191, %v686, 0.0
  %690 = vadd.xlane.f32.xlu0 %v689
  %v691 = vpop.xlane.xlu0 %690
  %v692 = vsel %vm191, %v688, 0.0
  %693 = vadd.xlane.f32.xlu0 %v692
  %v694 = vpop.xlane.xlu0 %693
  %v695 = vrcp.pop %v691
  %v696 = vrcp.pop %v694
  %v697 = vmul.f32 %v686, %v695
  %v698 = vmul.f32 %v688, %v696
  %699 = vrot.lane.b32.xlu0 %v182, 56
  %v700 = vpop.permute.xlu0 %699
  %v703 = vsel %vm191, %v697, 0
  %705 = vmatprep.subr.mxu0 0.0
  %706 = vmatpush1.msra.mxu0 %v700
  %707 = vmatprep.subr.mxu0 0.0
  %708 = vmatpush1.msra.mxu0 0.0
  %709 = vmatprep.subr.mxu0 0.0
  %710 = vmatpush1.msra.mxu0 0.0
  %711 = vmatprep.subr.mxu0 0.0
  %712 = vmatpush1.msra.mxu0 0.0
  %713 = vmatprep.subr.mxu0 0.0
  %714 = vmatpush1.msra.mxu0 0.0
  %715 = vmatprep.subr.mxu0 0.0
  %716 = vmatpush1.msra.mxu0 0.0
  %717 = vmatprep.subr.mxu0 0.0
  %718 = vmatpush1.msra.mxu0 0.0
  %719 = vmatprep.subr.mxu0 0.0
  %720 = vmatpush1.msra.mxu0 0.0
  %721 = vmatprep.subr.mxu0 0.0
  %722 = vmatpush1.msra.mxu0 0.0
  %723 = vmatprep.subr.mxu0 0.0
  %724 = vmatpush1.msra.mxu0 0.0
  %725 = vmatprep.subr.mxu0 0.0
  %726 = vmatpush1.msra.mxu0 0.0
  %727 = vmatprep.subr.mxu0 0.0
  %728 = vmatpush1.msra.mxu0 0.0
  %729 = vmatprep.subr.mxu0 0.0
  %730 = vmatpush1.msra.mxu0 0.0
  %731 = vmatprep.subr.mxu0 0.0
  %732 = vmatpush1.msra.mxu0 0.0
  %733 = vmatprep.subr.mxu0 0.0
  %734 = vmatpush1.msra.mxu0 0.0
  %735 = vmatprep.subr.mxu0 0.0
  %736 = vmatpush1.msra.mxu0 0.0
  %737 = vmatprep.subr.mxu0 0.0
  %738 = vmatpush1.msra.mxu0 0.0
  %739 = vmatprep.subr.mxu0 0.0
  %740 = vmatpush1.msra.mxu0 0.0
  %741 = vmatprep.subr.mxu0 0.0
  %742 = vmatpush1.msra.mxu0 0.0
  %743 = vmatprep.subr.mxu0 0.0
  %744 = vmatpush1.msra.mxu0 0.0
  %745 = vmatprep.subr.mxu0 0.0
  %746 = vmatpush1.msra.mxu0 0.0
  %747 = vmatprep.subr.mxu0 0.0
  %748 = vmatpush1.msra.mxu0 0.0
  %749 = vmatprep.subr.mxu0 0.0
  %750 = vmatpush1.msra.mxu0 0.0
  %751 = vmatprep.subr.mxu0 0.0
  %752 = vmatpush1.msra.mxu0 0.0
  %753 = vmatprep.subr.mxu0 0.0
  %754 = vmatpush1.msra.mxu0 0.0
  %755 = vmatprep.subr.mxu0 0.0
  %756 = vmatpush1.msra.mxu0 0.0
  %757 = vmatprep.subr.mxu0 0.0
  %758 = vmatpush1.msra.mxu0 0.0
  %759 = vmatprep.subr.mxu0 0.0
  %760 = vmatpush1.msra.mxu0 0.0
  %761 = vmatprep.subr.mxu0 0.0
  %762 = vmatpush1.msra.mxu0 0.0
  %763 = vmatprep.subr.mxu0 0.0
  %764 = vmatpush1.msra.mxu0 0.0
  %765 = vmatprep.subr.mxu0 0.0
  %766 = vmatpush1.msra.mxu0 0.0
  %767 = vmatprep.subr.mxu0 0.0
  %768 = vmatpush1.msra.mxu0 0.0
  %769 = vmatprep.mubr.f32.mxu0 0.0
  %770 = vmatmul.mubr.f32.gmra.mrb[0].mxu0 %v703
  %v771 = vpop.f32.mrb[0].mxu0
  %v772 = vadd.f32 0.0, %v771
  %v773 = vpop.f32.mrb[0].mxu0
  %774 = vdwg.mxu0
  %775 = vrot.lane.b32.xlu0 %v185, 56
  %v776 = vpop.permute.xlu0 %775
  %v779 = vsel %vm191, %v698, 0
  %781 = vmatprep.subr.mxu0 0.0
  %782 = vmatpush1.msra.mxu0 %v776
  %783 = vmatprep.subr.mxu0 0.0
  %784 = vmatpush1.msra.mxu0 0.0
  %785 = vmatprep.subr.mxu0 0.0
  %786 = vmatpush1.msra.mxu0 0.0
  %787 = vmatprep.subr.mxu0 0.0
  %788 = vmatpush1.msra.mxu0 0.0
  %789 = vmatprep.subr.mxu0 0.0
  %790 = vmatpush1.msra.mxu0 0.0
  %791 = vmatprep.subr.mxu0 0.0
  %792 = vmatpush1.msra.mxu0 0.0
  %793 = vmatprep.subr.mxu0 0.0
  %794 = vmatpush1.msra.mxu0 0.0
  %795 = vmatprep.subr.mxu0 0.0
  %796 = vmatpush1.msra.mxu0 0.0
  %797 = vmatprep.subr.mxu0 0.0
  %798 = vmatpush1.msra.mxu0 0.0
  %799 = vmatprep.subr.mxu0 0.0
  %800 = vmatpush1.msra.mxu0 0.0
  %801 = vmatprep.subr.mxu0 0.0
  %802 = vmatpush1.msra.mxu0 0.0
  %803 = vmatprep.subr.mxu0 0.0
  %804 = vmatpush1.msra.mxu0 0.0
  %805 = vmatprep.subr.mxu0 0.0
  %806 = vmatpush1.msra.mxu0 0.0
  %807 = vmatprep.subr.mxu0 0.0
  %808 = vmatpush1.msra.mxu0 0.0
  %809 = vmatprep.subr.mxu0 0.0
  %810 = vmatpush1.msra.mxu0 0.0
  %811 = vmatprep.subr.mxu0 0.0
  %812 = vmatpush1.msra.mxu0 0.0
  %813 = vmatprep.subr.mxu0 0.0
  %814 = vmatpush1.msra.mxu0 0.0
  %815 = vmatprep.subr.mxu0 0.0
  %816 = vmatpush1.msra.mxu0 0.0
  %817 = vmatprep.subr.mxu0 0.0
  %818 = vmatpush1.msra.mxu0 0.0
  %819 = vmatprep.subr.mxu0 0.0
  %820 = vmatpush1.msra.mxu0 0.0
  %821 = vmatprep.subr.mxu0 0.0
  %822 = vmatpush1.msra.mxu0 0.0
  %823 = vmatprep.subr.mxu0 0.0
  %824 = vmatpush1.msra.mxu0 0.0
  %825 = vmatprep.subr.mxu0 0.0
  %826 = vmatpush1.msra.mxu0 0.0
  %827 = vmatprep.subr.mxu0 0.0
  %828 = vmatpush1.msra.mxu0 0.0
  %829 = vmatprep.subr.mxu0 0.0
  %830 = vmatpush1.msra.mxu0 0.0
  %831 = vmatprep.subr.mxu0 0.0
  %832 = vmatpush1.msra.mxu0 0.0
  %833 = vmatprep.subr.mxu0 0.0
  %834 = vmatpush1.msra.mxu0 0.0
  %835 = vmatprep.subr.mxu0 0.0
  %836 = vmatpush1.msra.mxu0 0.0
  %837 = vmatprep.subr.mxu0 0.0
  %838 = vmatpush1.msra.mxu0 0.0
  %839 = vmatprep.subr.mxu0 0.0
  %840 = vmatpush1.msra.mxu0 0.0
  %841 = vmatprep.subr.mxu0 0.0
  %842 = vmatpush1.msra.mxu0 0.0
  %843 = vmatprep.subr.mxu0 0.0
  %844 = vmatpush1.msra.mxu0 0.0
  %845 = vmatprep.mubr.f32.mxu0 0.0
  %846 = vmatmul.mubr.f32.gmra.mrb[0].mxu0 %v779
  %v847 = vpop.f32.mrb[0].mxu0
  %v848 = vadd.f32 0.0, %v847
  %v849 = vpop.f32.mrb[0].mxu0
  %850 = vdwg.mxu0
  %851 = vrot.lane.b32.xlu0 %v182, 112
  %v852 = vpop.permute.xlu0 %851
  %853 = vrot.lane.b32.xlu0 %v182, 80
  %v854 = vpop.permute.xlu0 %853
  %v855 = vsel %vm191, %v852, 0
  %v857 = vsel %vm191, %v854, 0
  %859 = vmatprep.subr.mxu0 0.0
  %860 = vmatpush1.xpose.msra.mxu0 %v857
  %861 = vmatprep.subr.mxu0 0.0
  %862 = vmatpush1.xpose.msra.mxu0 0.0
  %863 = vmatprep.subr.mxu0 0.0
  %864 = vmatpush1.xpose.msra.mxu0 0.0
  %865 = vmatprep.subr.mxu0 0.0
  %866 = vmatpush1.xpose.msra.mxu0 0.0
  %867 = vmatprep.subr.mxu0 0.0
  %868 = vmatpush1.xpose.msra.mxu0 0.0
  %869 = vmatprep.subr.mxu0 0.0
  %870 = vmatpush1.xpose.msra.mxu0 0.0
  %871 = vmatprep.subr.mxu0 0.0
  %872 = vmatpush1.xpose.msra.mxu0 0.0
  %873 = vmatprep.subr.mxu0 0.0
  %874 = vmatpush1.xpose.msra.mxu0 0.0
  %875 = vmatprep.subr.mxu0 0.0
  %876 = vmatpush1.xpose.msra.mxu0 0.0
  %877 = vmatprep.subr.mxu0 0.0
  %878 = vmatpush1.xpose.msra.mxu0 0.0
  %879 = vmatprep.subr.mxu0 0.0
  %880 = vmatpush1.xpose.msra.mxu0 0.0
  %881 = vmatprep.subr.mxu0 0.0
  %882 = vmatpush1.xpose.msra.mxu0 0.0
  %883 = vmatprep.subr.mxu0 0.0
  %884 = vmatpush1.xpose.msra.mxu0 0.0
  %885 = vmatprep.subr.mxu0 0.0
  %886 = vmatpush1.xpose.msra.mxu0 0.0
  %887 = vmatprep.subr.mxu0 0.0
  %888 = vmatpush1.xpose.msra.mxu0 0.0
  %889 = vmatprep.subr.mxu0 0.0
  %890 = vmatpush1.xpose.msra.mxu0 0.0
  %891 = vmatprep.subr.mxu0 0.0
  %892 = vmatpush1.xpose.msra.mxu0 0.0
  %893 = vmatprep.subr.mxu0 0.0
  %894 = vmatpush1.xpose.msra.mxu0 0.0
  %895 = vmatprep.subr.mxu0 0.0
  %896 = vmatpush1.xpose.msra.mxu0 0.0
  %897 = vmatprep.subr.mxu0 0.0
  %898 = vmatpush1.xpose.msra.mxu0 0.0
  %899 = vmatprep.subr.mxu0 0.0
  %900 = vmatpush1.xpose.msra.mxu0 0.0
  %901 = vmatprep.subr.mxu0 0.0
  %902 = vmatpush1.xpose.msra.mxu0 0.0
  %903 = vmatprep.subr.mxu0 0.0
  %904 = vmatpush1.xpose.msra.mxu0 0.0
  %905 = vmatprep.subr.mxu0 0.0
  %906 = vmatpush1.xpose.msra.mxu0 0.0
  %907 = vmatprep.subr.mxu0 0.0
  %908 = vmatpush1.xpose.msra.mxu0 0.0
  %909 = vmatprep.subr.mxu0 0.0
  %910 = vmatpush1.xpose.msra.mxu0 0.0
  %911 = vmatprep.subr.mxu0 0.0
  %912 = vmatpush1.xpose.msra.mxu0 0.0
  %913 = vmatprep.subr.mxu0 0.0
  %914 = vmatpush1.xpose.msra.mxu0 0.0
  %915 = vmatprep.subr.mxu0 0.0
  %916 = vmatpush1.xpose.msra.mxu0 0.0
  %917 = vmatprep.subr.mxu0 0.0
  %918 = vmatpush1.xpose.msra.mxu0 0.0
  %919 = vmatprep.subr.mxu0 0.0
  %920 = vmatpush1.xpose.msra.mxu0 0.0
  %921 = vmatprep.subr.mxu0 0.0
  %922 = vmatpush1.xpose.msra.mxu0 0.0
  %923 = vmatprep.mubr.f32.mxu0 0.0
  %924 = vmatmul.mubr.f32.gmra.mrb[0].mxu0 %v855
  %v925 = vpop.f32.mrb[0].mxu0
  %v926 = vadd.f32 0.0, %v925
  %v927 = vpop.f32.mrb[0].mxu0
  %928 = vdwg.mxu0
  %929 = vrot.lane.b32.xlu0 %v185, 112
  %v930 = vpop.permute.xlu0 %929
  %931 = vrot.lane.b32.xlu0 %v185, 80
  %v932 = vpop.permute.xlu0 %931
  %v933 = vsel %vm191, %v930, 0
  %v935 = vsel %vm191, %v932, 0
  %937 = vmatprep.subr.mxu0 0.0
  %938 = vmatpush1.xpose.msra.mxu0 %v935
  %939 = vmatprep.subr.mxu0 0.0
  %940 = vmatpush1.xpose.msra.mxu0 0.0
  %941 = vmatprep.subr.mxu0 0.0
  %942 = vmatpush1.xpose.msra.mxu0 0.0
  %943 = vmatprep.subr.mxu0 0.0
  %944 = vmatpush1.xpose.msra.mxu0 0.0
  %945 = vmatprep.subr.mxu0 0.0
  %946 = vmatpush1.xpose.msra.mxu0 0.0
  %947 = vmatprep.subr.mxu0 0.0
  %948 = vmatpush1.xpose.msra.mxu0 0.0
  %949 = vmatprep.subr.mxu0 0.0
  %950 = vmatpush1.xpose.msra.mxu0 0.0
  %951 = vmatprep.subr.mxu0 0.0
  %952 = vmatpush1.xpose.msra.mxu0 0.0
  %953 = vmatprep.subr.mxu0 0.0
  %954 = vmatpush1.xpose.msra.mxu0 0.0
  %955 = vmatprep.subr.mxu0 0.0
  %956 = vmatpush1.xpose.msra.mxu0 0.0
  %957 = vmatprep.subr.mxu0 0.0
  %958 = vmatpush1.xpose.msra.mxu0 0.0
  %959 = vmatprep.subr.mxu0 0.0
  %960 = vmatpush1.xpose.msra.mxu0 0.0
  %961 = vmatprep.subr.mxu0 0.0
  %962 = vmatpush1.xpose.msra.mxu0 0.0
  %963 = vmatprep.subr.mxu0 0.0
  %964 = vmatpush1.xpose.msra.mxu0 0.0
  %965 = vmatprep.subr.mxu0 0.0
  %966 = vmatpush1.xpose.msra.mxu0 0.0
  %967 = vmatprep.subr.mxu0 0.0
  %968 = vmatpush1.xpose.msra.mxu0 0.0
  %969 = vmatprep.subr.mxu0 0.0
  %970 = vmatpush1.xpose.msra.mxu0 0.0
  %971 = vmatprep.subr.mxu0 0.0
  %972 = vmatpush1.xpose.msra.mxu0 0.0
  %973 = vmatprep.subr.mxu0 0.0
  %974 = vmatpush1.xpose.msra.mxu0 0.0
  %975 = vmatprep.subr.mxu0 0.0
  %976 = vmatpush1.xpose.msra.mxu0 0.0
  %977 = vmatprep.subr.mxu0 0.0
  %978 = vmatpush1.xpose.msra.mxu0 0.0
  %979 = vmatprep.subr.mxu0 0.0
  %980 = vmatpush1.xpose.msra.mxu0 0.0
  %981 = vmatprep.subr.mxu0 0.0
  %982 = vmatpush1.xpose.msra.mxu0 0.0
  %983 = vmatprep.subr.mxu0 0.0
  %984 = vmatpush1.xpose.msra.mxu0 0.0
  %985 = vmatprep.subr.mxu0 0.0
  %986 = vmatpush1.xpose.msra.mxu0 0.0
  %987 = vmatprep.subr.mxu0 0.0
  %988 = vmatpush1.xpose.msra.mxu0 0.0
  %989 = vmatprep.subr.mxu0 0.0
  %990 = vmatpush1.xpose.msra.mxu0 0.0
  %991 = vmatprep.subr.mxu0 0.0
  %992 = vmatpush1.xpose.msra.mxu0 0.0
  %993 = vmatprep.subr.mxu0 0.0
  %994 = vmatpush1.xpose.msra.mxu0 0.0
  %995 = vmatprep.subr.mxu0 0.0
  %996 = vmatpush1.xpose.msra.mxu0 0.0
  %997 = vmatprep.subr.mxu0 0.0
  %998 = vmatpush1.xpose.msra.mxu0 0.0
  %999 = vmatprep.subr.mxu0 0.0
  %1000 = vmatpush1.xpose.msra.mxu0 0.0
  %1001 = vmatprep.mubr.f32.mxu0 0.0
  %1002 = vmatmul.mubr.f32.gmra.mrb[0].mxu0 %v933
  %v1003 = vpop.f32.mrb[0].mxu0
  %v1004 = vadd.f32 0.0, %v1003
  %v1005 = vpop.f32.mrb[0].mxu0
  %1006 = vdwg.mxu0
  %v1007 = vmul.f32 %v926, 0.35355338
  %v1008 = vmul.f32 %v1004, 0.35355338
  %v1009 = vsel %vm191, %v1007, -inf
  %1010 = vmax.xlane.f32.xlu0 %v1009
  %v1011 = vpop.xlane.xlu0 %1010
  %v1012 = vsel %vm191, %v1008, -inf
  %1013 = vmax.xlane.f32.xlu0 %v1012
  %v1014 = vpop.xlane.xlu0 %1013
  %v1015 = vsub.f32 %v1007, %v1011
  %v1016 = vsub.f32 %v1008, %v1014
  %v1017 = vmul.f32 %v1015, 1.442695
  %v1018 = vpow.pop %v1017
  %v1019 = vmul.f32 %v1016, 1.442695
  %v1020 = vpow.pop %v1019
  %v1021 = vsel %vm191, %v1018, 0.0
  %1022 = vadd.xlane.f32.xlu0 %v1021
  %v1023 = vpop.xlane.xlu0 %1022
  %v1024 = vsel %vm191, %v1020, 0.0
  %1025 = vadd.xlane.f32.xlu0 %v1024
  %v1026 = vpop.xlane.xlu0 %1025
  %v1027 = vrcp.pop %v1023
  %v1028 = vrcp.pop %v1026
  %v1029 = vmul.f32 %v1018, %v1027
  %v1030 = vmul.f32 %v1020, %v1028
  %1031 = vrot.lane.b32.xlu0 %v182, 48
  %v1032 = vpop.permute.xlu0 %1031
  %v1035 = vsel %vm191, %v1029, 0
  %1037 = vmatprep.subr.mxu0 0.0
  %1038 = vmatpush1.msra.mxu0 %v1032
  %1039 = vmatprep.subr.mxu0 0.0
  %1040 = vmatpush1.msra.mxu0 0.0
  %1041 = vmatprep.subr.mxu0 0.0
  %1042 = vmatpush1.msra.mxu0 0.0
  %1043 = vmatprep.subr.mxu0 0.0
  %1044 = vmatpush1.msra.mxu0 0.0
  %1045 = vmatprep.subr.mxu0 0.0
  %1046 = vmatpush1.msra.mxu0 0.0
  %1047 = vmatprep.subr.mxu0 0.0
  %1048 = vmatpush1.msra.mxu0 0.0
  %1049 = vmatprep.subr.mxu0 0.0
  %1050 = vmatpush1.msra.mxu0 0.0
  %1051 = vmatprep.subr.mxu0 0.0
  %1052 = vmatpush1.msra.mxu0 0.0
  %1053 = vmatprep.subr.mxu0 0.0
  %1054 = vmatpush1.msra.mxu0 0.0
  %1055 = vmatprep.subr.mxu0 0.0
  %1056 = vmatpush1.msra.mxu0 0.0
  %1057 = vmatprep.subr.mxu0 0.0
  %1058 = vmatpush1.msra.mxu0 0.0
  %1059 = vmatprep.subr.mxu0 0.0
  %1060 = vmatpush1.msra.mxu0 0.0
  %1061 = vmatprep.subr.mxu0 0.0
  %1062 = vmatpush1.msra.mxu0 0.0
  %1063 = vmatprep.subr.mxu0 0.0
  %1064 = vmatpush1.msra.mxu0 0.0
  %1065 = vmatprep.subr.mxu0 0.0
  %1066 = vmatpush1.msra.mxu0 0.0
  %1067 = vmatprep.subr.mxu0 0.0
  %1068 = vmatpush1.msra.mxu0 0.0
  %1069 = vmatprep.subr.mxu0 0.0
  %1070 = vmatpush1.msra.mxu0 0.0
  %1071 = vmatprep.subr.mxu0 0.0
  %1072 = vmatpush1.msra.mxu0 0.0
  %1073 = vmatprep.subr.mxu0 0.0
  %1074 = vmatpush1.msra.mxu0 0.0
  %1075 = vmatprep.subr.mxu0 0.0
  %1076 = vmatpush1.msra.mxu0 0.0
  %1077 = vmatprep.subr.mxu0 0.0
  %1078 = vmatpush1.msra.mxu0 0.0
  %1079 = vmatprep.subr.mxu0 0.0
  %1080 = vmatpush1.msra.mxu0 0.0
  %1081 = vmatprep.subr.mxu0 0.0
  %1082 = vmatpush1.msra.mxu0 0.0
  %1083 = vmatprep.subr.mxu0 0.0
  %1084 = vmatpush1.msra.mxu0 0.0
  %1085 = vmatprep.subr.mxu0 0.0
  %1086 = vmatpush1.msra.mxu0 0.0
  %1087 = vmatprep.subr.mxu0 0.0
  %1088 = vmatpush1.msra.mxu0 0.0
  %1089 = vmatprep.subr.mxu0 0.0
  %1090 = vmatpush1.msra.mxu0 0.0
  %1091 = vmatprep.subr.mxu0 0.0
  %1092 = vmatpush1.msra.mxu0 0.0
  %1093 = vmatprep.subr.mxu0 0.0
  %1094 = vmatpush1.msra.mxu0 0.0
  %1095 = vmatprep.subr.mxu0 0.0
  %1096 = vmatpush1.msra.mxu0 0.0
  %1097 = vmatprep.subr.mxu0 0.0
  %1098 = vmatpush1.msra.mxu0 0.0
  %1099 = vmatprep.subr.mxu0 0.0
  %1100 = vmatpush1.msra.mxu0 0.0
  %1101 = vmatprep.mubr.f32.mxu0 0.0
  %1102 = vmatmul.mubr.f32.gmra.mrb[0].mxu0 %v1035
  %v1103 = vpop.f32.mrb[0].mxu0
  %v1104 = vadd.f32 0.0, %v1103
  %v1105 = vpop.f32.mrb[0].mxu0
  %1106 = vdwg.mxu0
  %1107 = vrot.lane.b32.xlu0 %v185, 48
  %v1108 = vpop.permute.xlu0 %1107
  %v1111 = vsel %vm191, %v1030, 0
  %1113 = vmatprep.subr.mxu0 0.0
  %1114 = vmatpush1.msra.mxu0 %v1108
  %1115 = vmatprep.subr.mxu0 0.0
  %1116 = vmatpush1.msra.mxu0 0.0
  %1117 = vmatprep.subr.mxu0 0.0
  %1118 = vmatpush1.msra.mxu0 0.0
  %1119 = vmatprep.subr.mxu0 0.0
  %1120 = vmatpush1.msra.mxu0 0.0
  %1121 = vmatprep.subr.mxu0 0.0
  %1122 = vmatpush1.msra.mxu0 0.0
  %1123 = vmatprep.subr.mxu0 0.0
  %1124 = vmatpush1.msra.mxu0 0.0
  %1125 = vmatprep.subr.mxu0 0.0
  %1126 = vmatpush1.msra.mxu0 0.0
  %1127 = vmatprep.subr.mxu0 0.0
  %1128 = vmatpush1.msra.mxu0 0.0
  %1129 = vmatprep.subr.mxu0 0.0
  %1130 = vmatpush1.msra.mxu0 0.0
  %1131 = vmatprep.subr.mxu0 0.0
  %1132 = vmatpush1.msra.mxu0 0.0
  %1133 = vmatprep.subr.mxu0 0.0
  %1134 = vmatpush1.msra.mxu0 0.0
  %1135 = vmatprep.subr.mxu0 0.0
  %1136 = vmatpush1.msra.mxu0 0.0
  %1137 = vmatprep.subr.mxu0 0.0
  %1138 = vmatpush1.msra.mxu0 0.0
  %1139 = vmatprep.subr.mxu0 0.0
  %1140 = vmatpush1.msra.mxu0 0.0
  %1141 = vmatprep.subr.mxu0 0.0
  %1142 = vmatpush1.msra.mxu0 0.0
  %1143 = vmatprep.subr.mxu0 0.0
  %1144 = vmatpush1.msra.mxu0 0.0
  %1145 = vmatprep.subr.mxu0 0.0
  %1146 = vmatpush1.msra.mxu0 0.0
  %1147 = vmatprep.subr.mxu0 0.0
  %1148 = vmatpush1.msra.mxu0 0.0
  %1149 = vmatprep.subr.mxu0 0.0
  %1150 = vmatpush1.msra.mxu0 0.0
  %1151 = vmatprep.subr.mxu0 0.0
  %1152 = vmatpush1.msra.mxu0 0.0
  %1153 = vmatprep.subr.mxu0 0.0
  %1154 = vmatpush1.msra.mxu0 0.0
  %1155 = vmatprep.subr.mxu0 0.0
  %1156 = vmatpush1.msra.mxu0 0.0
  %1157 = vmatprep.subr.mxu0 0.0
  %1158 = vmatpush1.msra.mxu0 0.0
  %1159 = vmatprep.subr.mxu0 0.0
  %1160 = vmatpush1.msra.mxu0 0.0
  %1161 = vmatprep.subr.mxu0 0.0
  %1162 = vmatpush1.msra.mxu0 0.0
  %1163 = vmatprep.subr.mxu0 0.0
  %1164 = vmatpush1.msra.mxu0 0.0
  %1165 = vmatprep.subr.mxu0 0.0
  %1166 = vmatpush1.msra.mxu0 0.0
  %1167 = vmatprep.subr.mxu0 0.0
  %1168 = vmatpush1.msra.mxu0 0.0
  %1169 = vmatprep.subr.mxu0 0.0
  %1170 = vmatpush1.msra.mxu0 0.0
  %1171 = vmatprep.subr.mxu0 0.0
  %1172 = vmatpush1.msra.mxu0 0.0
  %1173 = vmatprep.subr.mxu0 0.0
  %1174 = vmatpush1.msra.mxu0 0.0
  %1175 = vmatprep.subr.mxu0 0.0
  %1176 = vmatpush1.msra.mxu0 0.0
  %1177 = vmatprep.mubr.f32.mxu0 0.0
  %1178 = vmatmul.mubr.f32.gmra.mrb[0].mxu0 %v1111
  %v1179 = vpop.f32.mrb[0].mxu0
  %v1180 = vadd.f32 0.0, %v1179
  %v1181 = vpop.f32.mrb[0].mxu0
  %1182 = vdwg.mxu0
  %1183 = vrot.lane.b32.xlu0 %v182, 104
  %v1184 = vpop.permute.xlu0 %1183
  %1185 = vrot.lane.b32.xlu0 %v182, 72
  %v1186 = vpop.permute.xlu0 %1185
  %v1187 = vsel %vm191, %v1184, 0
  %v1189 = vsel %vm191, %v1186, 0
  %1191 = vmatprep.subr.mxu0 0.0
  %1192 = vmatpush1.xpose.msra.mxu0 %v1189
  %1193 = vmatprep.subr.mxu0 0.0
  %1194 = vmatpush1.xpose.msra.mxu0 0.0
  %1195 = vmatprep.subr.mxu0 0.0
  %1196 = vmatpush1.xpose.msra.mxu0 0.0
  %1197 = vmatprep.subr.mxu0 0.0
  %1198 = vmatpush1.xpose.msra.mxu0 0.0
  %1199 = vmatprep.subr.mxu0 0.0
  %1200 = vmatpush1.xpose.msra.mxu0 0.0
  %1201 = vmatprep.subr.mxu0 0.0
  %1202 = vmatpush1.xpose.msra.mxu0 0.0
  %1203 = vmatprep.subr.mxu0 0.0
  %1204 = vmatpush1.xpose.msra.mxu0 0.0
  %1205 = vmatprep.subr.mxu0 0.0
  %1206 = vmatpush1.xpose.msra.mxu0 0.0
  %1207 = vmatprep.subr.mxu0 0.0
  %1208 = vmatpush1.xpose.msra.mxu0 0.0
  %1209 = vmatprep.subr.mxu0 0.0
  %1210 = vmatpush1.xpose.msra.mxu0 0.0
  %1211 = vmatprep.subr.mxu0 0.0
  %1212 = vmatpush1.xpose.msra.mxu0 0.0
  %1213 = vmatprep.subr.mxu0 0.0
  %1214 = vmatpush1.xpose.msra.mxu0 0.0
  %1215 = vmatprep.subr.mxu0 0.0
  %1216 = vmatpush1.xpose.msra.mxu0 0.0
  %1217 = vmatprep.subr.mxu0 0.0
  %1218 = vmatpush1.xpose.msra.mxu0 0.0
  %1219 = vmatprep.subr.mxu0 0.0
  %1220 = vmatpush1.xpose.msra.mxu0 0.0
  %1221 = vmatprep.subr.mxu0 0.0
  %1222 = vmatpush1.xpose.msra.mxu0 0.0
  %1223 = vmatprep.subr.mxu0 0.0
  %1224 = vmatpush1.xpose.msra.mxu0 0.0
  %1225 = vmatprep.subr.mxu0 0.0
  %1226 = vmatpush1.xpose.msra.mxu0 0.0
  %1227 = vmatprep.subr.mxu0 0.0
  %1228 = vmatpush1.xpose.msra.mxu0 0.0
  %1229 = vmatprep.subr.mxu0 0.0
  %1230 = vmatpush1.xpose.msra.mxu0 0.0
  %1231 = vmatprep.subr.mxu0 0.0
  %1232 = vmatpush1.xpose.msra.mxu0 0.0
  %1233 = vmatprep.subr.mxu0 0.0
  %1234 = vmatpush1.xpose.msra.mxu0 0.0
  %1235 = vmatprep.subr.mxu0 0.0
  %1236 = vmatpush1.xpose.msra.mxu0 0.0
  %1237 = vmatprep.subr.mxu0 0.0
  %1238 = vmatpush1.xpose.msra.mxu0 0.0
  %1239 = vmatprep.subr.mxu0 0.0
  %1240 = vmatpush1.xpose.msra.mxu0 0.0
  %1241 = vmatprep.subr.mxu0 0.0
  %1242 = vmatpush1.xpose.msra.mxu0 0.0
  %1243 = vmatprep.subr.mxu0 0.0
  %1244 = vmatpush1.xpose.msra.mxu0 0.0
  %1245 = vmatprep.subr.mxu0 0.0
  %1246 = vmatpush1.xpose.msra.mxu0 0.0
  %1247 = vmatprep.subr.mxu0 0.0
  %1248 = vmatpush1.xpose.msra.mxu0 0.0
  %1249 = vmatprep.subr.mxu0 0.0
  %1250 = vmatpush1.xpose.msra.mxu0 0.0
  %1251 = vmatprep.subr.mxu0 0.0
  %1252 = vmatpush1.xpose.msra.mxu0 0.0
  %1253 = vmatprep.subr.mxu0 0.0
  %1254 = vmatpush1.xpose.msra.mxu0 0.0
  %1255 = vmatprep.mubr.f32.mxu0 0.0
  %1256 = vmatmul.mubr.f32.gmra.mrb[0].mxu0 %v1187
  %v1257 = vpop.f32.mrb[0].mxu0
  %v1258 = vadd.f32 0.0, %v1257
  %v1259 = vpop.f32.mrb[0].mxu0
  %1260 = vdwg.mxu0
  %1261 = vrot.lane.b32.xlu0 %v185, 104
  %v1262 = vpop.permute.xlu0 %1261
  %1263 = vrot.lane.b32.xlu0 %v185, 72
  %v1264 = vpop.permute.xlu0 %1263
  %v1265 = vsel %vm191, %v1262, 0
  %v1267 = vsel %vm191, %v1264, 0
  %1269 = vmatprep.subr.mxu0 0.0
  %1270 = vmatpush1.xpose.msra.mxu0 %v1267
  %1271 = vmatprep.subr.mxu0 0.0
  %1272 = vmatpush1.xpose.msra.mxu0 0.0
  %1273 = vmatprep.subr.mxu0 0.0
  %1274 = vmatpush1.xpose.msra.mxu0 0.0
  %1275 = vmatprep.subr.mxu0 0.0
  %1276 = vmatpush1.xpose.msra.mxu0 0.0
  %1277 = vmatprep.subr.mxu0 0.0
  %1278 = vmatpush1.xpose.msra.mxu0 0.0
  %1279 = vmatprep.subr.mxu0 0.0
  %1280 = vmatpush1.xpose.msra.mxu0 0.0
  %1281 = vmatprep.subr.mxu0 0.0
  %1282 = vmatpush1.xpose.msra.mxu0 0.0
  %1283 = vmatprep.subr.mxu0 0.0
  %1284 = vmatpush1.xpose.msra.mxu0 0.0
  %1285 = vmatprep.subr.mxu0 0.0
  %1286 = vmatpush1.xpose.msra.mxu0 0.0
  %1287 = vmatprep.subr.mxu0 0.0
  %1288 = vmatpush1.xpose.msra.mxu0 0.0
  %1289 = vmatprep.subr.mxu0 0.0
  %1290 = vmatpush1.xpose.msra.mxu0 0.0
  %1291 = vmatprep.subr.mxu0 0.0
  %1292 = vmatpush1.xpose.msra.mxu0 0.0
  %1293 = vmatprep.subr.mxu0 0.0
  %1294 = vmatpush1.xpose.msra.mxu0 0.0
  %1295 = vmatprep.subr.mxu0 0.0
  %1296 = vmatpush1.xpose.msra.mxu0 0.0
  %1297 = vmatprep.subr.mxu0 0.0
  %1298 = vmatpush1.xpose.msra.mxu0 0.0
  %1299 = vmatprep.subr.mxu0 0.0
  %1300 = vmatpush1.xpose.msra.mxu0 0.0
  %1301 = vmatprep.subr.mxu0 0.0
  %1302 = vmatpush1.xpose.msra.mxu0 0.0
  %1303 = vmatprep.subr.mxu0 0.0
  %1304 = vmatpush1.xpose.msra.mxu0 0.0
  %1305 = vmatprep.subr.mxu0 0.0
  %1306 = vmatpush1.xpose.msra.mxu0 0.0
  %1307 = vmatprep.subr.mxu0 0.0
  %1308 = vmatpush1.xpose.msra.mxu0 0.0
  %1309 = vmatprep.subr.mxu0 0.0
  %1310 = vmatpush1.xpose.msra.mxu0 0.0
  %1311 = vmatprep.subr.mxu0 0.0
  %1312 = vmatpush1.xpose.msra.mxu0 0.0
  %1313 = vmatprep.subr.mxu0 0.0
  %1314 = vmatpush1.xpose.msra.mxu0 0.0
  %1315 = vmatprep.subr.mxu0 0.0
  %1316 = vmatpush1.xpose.msra.mxu0 0.0
  %1317 = vmatprep.subr.mxu0 0.0
  %1318 = vmatpush1.xpose.msra.mxu0 0.0
  %1319 = vmatprep.subr.mxu0 0.0
  %1320 = vmatpush1.xpose.msra.mxu0 0.0
  %1321 = vmatprep.subr.mxu0 0.0
  %1322 = vmatpush1.xpose.msra.mxu0 0.0
  %1323 = vmatprep.subr.mxu0 0.0
  %1324 = vmatpush1.xpose.msra.mxu0 0.0
  %1325 = vmatprep.subr.mxu0 0.0
  %1326 = vmatpush1.xpose.msra.mxu0 0.0
  %1327 = vmatprep.subr.mxu0 0.0
  %1328 = vmatpush1.xpose.msra.mxu0 0.0
  %1329 = vmatprep.subr.mxu0 0.0
  %1330 = vmatpush1.xpose.msra.mxu0 0.0
  %1331 = vmatprep.subr.mxu0 0.0
  %1332 = vmatpush1.xpose.msra.mxu0 0.0
  %1333 = vmatprep.mubr.f32.mxu0 0.0
  %1334 = vmatmul.mubr.f32.gmra.mrb[0].mxu0 %v1265
  %v1335 = vpop.f32.mrb[0].mxu0
  %v1336 = vadd.f32 0.0, %v1335
  %v1337 = vpop.f32.mrb[0].mxu0
  %1338 = vdwg.mxu0
  %v1339 = vmul.f32 %v1258, 0.35355338
  %v1340 = vmul.f32 %v1336, 0.35355338
  %v1341 = vsel %vm191, %v1339, -inf
  %1342 = vmax.xlane.f32.xlu0 %v1341
  %v1343 = vpop.xlane.xlu0 %1342
  %v1344 = vsel %vm191, %v1340, -inf
  %1345 = vmax.xlane.f32.xlu0 %v1344
  %v1346 = vpop.xlane.xlu0 %1345
  %v1347 = vsub.f32 %v1339, %v1343
  %v1348 = vsub.f32 %v1340, %v1346
  %v1349 = vmul.f32 %v1347, 1.442695
  %v1350 = vpow.pop %v1349
  %v1351 = vmul.f32 %v1348, 1.442695
  %v1352 = vpow.pop %v1351
  %v1353 = vsel %vm191, %v1350, 0.0
  %1354 = vadd.xlane.f32.xlu0 %v1353
  %v1355 = vpop.xlane.xlu0 %1354
  %v1356 = vsel %vm191, %v1352, 0.0
  %1357 = vadd.xlane.f32.xlu0 %v1356
  %v1358 = vpop.xlane.xlu0 %1357
  %v1359 = vrcp.pop %v1355
  %v1360 = vrcp.pop %v1358
  %v1361 = vmul.f32 %v1350, %v1359
  %v1362 = vmul.f32 %v1352, %v1360
  %1363 = vrot.lane.b32.xlu0 %v182, 40
  %v1364 = vpop.permute.xlu0 %1363
  %v1367 = vsel %vm191, %v1361, 0
  %1369 = vmatprep.subr.mxu0 0.0
  %1370 = vmatpush1.msra.mxu0 %v1364
  %1371 = vmatprep.subr.mxu0 0.0
  %1372 = vmatpush1.msra.mxu0 0.0
  %1373 = vmatprep.subr.mxu0 0.0
  %1374 = vmatpush1.msra.mxu0 0.0
  %1375 = vmatprep.subr.mxu0 0.0
  %1376 = vmatpush1.msra.mxu0 0.0
  %1377 = vmatprep.subr.mxu0 0.0
  %1378 = vmatpush1.msra.mxu0 0.0
  %1379 = vmatprep.subr.mxu0 0.0
  %1380 = vmatpush1.msra.mxu0 0.0
  %1381 = vmatprep.subr.mxu0 0.0
  %1382 = vmatpush1.msra.mxu0 0.0
  %1383 = vmatprep.subr.mxu0 0.0
  %1384 = vmatpush1.msra.mxu0 0.0
  %1385 = vmatprep.subr.mxu0 0.0
  %1386 = vmatpush1.msra.mxu0 0.0
  %1387 = vmatprep.subr.mxu0 0.0
  %1388 = vmatpush1.msra.mxu0 0.0
  %1389 = vmatprep.subr.mxu0 0.0
  %1390 = vmatpush1.msra.mxu0 0.0
  %1391 = vmatprep.subr.mxu0 0.0
  %1392 = vmatpush1.msra.mxu0 0.0
  %1393 = vmatprep.subr.mxu0 0.0
  %1394 = vmatpush1.msra.mxu0 0.0
  %1395 = vmatprep.subr.mxu0 0.0
  %1396 = vmatpush1.msra.mxu0 0.0
  %1397 = vmatprep.subr.mxu0 0.0
  %1398 = vmatpush1.msra.mxu0 0.0
  %1399 = vmatprep.subr.mxu0 0.0
  %1400 = vmatpush1.msra.mxu0 0.0
  %1401 = vmatprep.subr.mxu0 0.0
  %1402 = vmatpush1.msra.mxu0 0.0
  %1403 = vmatprep.subr.mxu0 0.0
  %1404 = vmatpush1.msra.mxu0 0.0
  %1405 = vmatprep.subr.mxu0 0.0
  %1406 = vmatpush1.msra.mxu0 0.0
  %1407 = vmatprep.subr.mxu0 0.0
  %1408 = vmatpush1.msra.mxu0 0.0
  %1409 = vmatprep.subr.mxu0 0.0
  %1410 = vmatpush1.msra.mxu0 0.0
  %1411 = vmatprep.subr.mxu0 0.0
  %1412 = vmatpush1.msra.mxu0 0.0
  %1413 = vmatprep.subr.mxu0 0.0
  %1414 = vmatpush1.msra.mxu0 0.0
  %1415 = vmatprep.subr.mxu0 0.0
  %1416 = vmatpush1.msra.mxu0 0.0
  %1417 = vmatprep.subr.mxu0 0.0
  %1418 = vmatpush1.msra.mxu0 0.0
  %1419 = vmatprep.subr.mxu0 0.0
  %1420 = vmatpush1.msra.mxu0 0.0
  %1421 = vmatprep.subr.mxu0 0.0
  %1422 = vmatpush1.msra.mxu0 0.0
  %1423 = vmatprep.subr.mxu0 0.0
  %1424 = vmatpush1.msra.mxu0 0.0
  %1425 = vmatprep.subr.mxu0 0.0
  %1426 = vmatpush1.msra.mxu0 0.0
  %1427 = vmatprep.subr.mxu0 0.0
  %1428 = vmatpush1.msra.mxu0 0.0
  %1429 = vmatprep.subr.mxu0 0.0
  %1430 = vmatpush1.msra.mxu0 0.0
  %1431 = vmatprep.subr.mxu0 0.0
  %1432 = vmatpush1.msra.mxu0 0.0
  %1433 = vmatprep.mubr.f32.mxu0 0.0
  %1434 = vmatmul.mubr.f32.gmra.mrb[0].mxu0 %v1367
  %v1435 = vpop.f32.mrb[0].mxu0
  %v1436 = vadd.f32 0.0, %v1435
  %v1437 = vpop.f32.mrb[0].mxu0
  %1438 = vdwg.mxu0
  %1439 = vrot.lane.b32.xlu0 %v185, 40
  %v1440 = vpop.permute.xlu0 %1439
  %v1443 = vsel %vm191, %v1362, 0
  %1445 = vmatprep.subr.mxu0 0.0
  %1446 = vmatpush1.msra.mxu0 %v1440
  %1447 = vmatprep.subr.mxu0 0.0
  %1448 = vmatpush1.msra.mxu0 0.0
  %1449 = vmatprep.subr.mxu0 0.0
  %1450 = vmatpush1.msra.mxu0 0.0
  %1451 = vmatprep.subr.mxu0 0.0
  %1452 = vmatpush1.msra.mxu0 0.0
  %1453 = vmatprep.subr.mxu0 0.0
  %1454 = vmatpush1.msra.mxu0 0.0
  %1455 = vmatprep.subr.mxu0 0.0
  %1456 = vmatpush1.msra.mxu0 0.0
  %1457 = vmatprep.subr.mxu0 0.0
  %1458 = vmatpush1.msra.mxu0 0.0
  %1459 = vmatprep.subr.mxu0 0.0
  %1460 = vmatpush1.msra.mxu0 0.0
  %1461 = vmatprep.subr.mxu0 0.0
  %1462 = vmatpush1.msra.mxu0 0.0
  %1463 = vmatprep.subr.mxu0 0.0
  %1464 = vmatpush1.msra.mxu0 0.0
  %1465 = vmatprep.subr.mxu0 0.0
  %1466 = vmatpush1.msra.mxu0 0.0
  %1467 = vmatprep.subr.mxu0 0.0
  %1468 = vmatpush1.msra.mxu0 0.0
  %1469 = vmatprep.subr.mxu0 0.0
  %1470 = vmatpush1.msra.mxu0 0.0
  %1471 = vmatprep.subr.mxu0 0.0
  %1472 = vmatpush1.msra.mxu0 0.0
  %1473 = vmatprep.subr.mxu0 0.0
  %1474 = vmatpush1.msra.mxu0 0.0
  %1475 = vmatprep.subr.mxu0 0.0
  %1476 = vmatpush1.msra.mxu0 0.0
  %1477 = vmatprep.subr.mxu0 0.0
  %1478 = vmatpush1.msra.mxu0 0.0
  %1479 = vmatprep.subr.mxu0 0.0
  %1480 = vmatpush1.msra.mxu0 0.0
  %1481 = vmatprep.subr.mxu0 0.0
  %1482 = vmatpush1.msra.mxu0 0.0
  %1483 = vmatprep.subr.mxu0 0.0
  %1484 = vmatpush1.msra.mxu0 0.0
  %1485 = vmatprep.subr.mxu0 0.0
  %1486 = vmatpush1.msra.mxu0 0.0
  %1487 = vmatprep.subr.mxu0 0.0
  %1488 = vmatpush1.msra.mxu0 0.0
  %1489 = vmatprep.subr.mxu0 0.0
  %1490 = vmatpush1.msra.mxu0 0.0
  %1491 = vmatprep.subr.mxu0 0.0
  %1492 = vmatpush1.msra.mxu0 0.0
  %1493 = vmatprep.subr.mxu0 0.0
  %1494 = vmatpush1.msra.mxu0 0.0
  %1495 = vmatprep.subr.mxu0 0.0
  %1496 = vmatpush1.msra.mxu0 0.0
  %1497 = vmatprep.subr.mxu0 0.0
  %1498 = vmatpush1.msra.mxu0 0.0
  %1499 = vmatprep.subr.mxu0 0.0
  %1500 = vmatpush1.msra.mxu0 0.0
  %1501 = vmatprep.subr.mxu0 0.0
  %1502 = vmatpush1.msra.mxu0 0.0
  %1503 = vmatprep.subr.mxu0 0.0
  %1504 = vmatpush1.msra.mxu0 0.0
  %1505 = vmatprep.subr.mxu0 0.0
  %1506 = vmatpush1.msra.mxu0 0.0
  %1507 = vmatprep.subr.mxu0 0.0
  %1508 = vmatpush1.msra.mxu0 0.0
  %1509 = vmatprep.mubr.f32.mxu0 0.0
  %1510 = vmatmul.mubr.f32.gmra.mrb[0].mxu0 %v1443
  %v1511 = vpop.f32.mrb[0].mxu0
  %v1512 = vadd.f32 0.0, %v1511
  %v1513 = vpop.f32.mrb[0].mxu0
  %1514 = vdwg.mxu0
  %1517 = vrot.lane.b32.xlu0 %v772, 8
  %v1518 = vpop.permute.xlu0 %1517
  %1519 = vrot.lane.b32.xlu0 %v848, 8
  %v1520 = vpop.permute.xlu0 %1519
  %1525 = vrot.lane.b32.xlu0 %v1104, 16
  %v1526 = vpop.permute.xlu0 %1525
  %1527 = vrot.lane.b32.xlu0 %v1180, 16
  %v1528 = vpop.permute.xlu0 %1527
  %1533 = vrot.lane.b32.xlu0 %v1436, 24
  %v1534 = vpop.permute.xlu0 %1533
  %1535 = vrot.lane.b32.xlu0 %v1512, 24
  %v1536 = vpop.permute.xlu0 %1535
  %v1539 = vsel %vm191, %v440, %v1518
  %v1540 = vsel %vm191, %v516, %v1520
  %vm1541 = vcmask 130048
  %v1542 = vsel %vm1541, %v1539, %v1526
  %v1543 = vsel %vm1541, %v1540, %v1528
  %vm1544 = vcmask 195584
  %v1545 = vsel %vm1544, %v1542, %v1534
  %v1546 = vsel %vm1544, %v1543, %v1536
  %v1547 = vpack.c.bf16 %v1546, %v1545
  %v1548 = vld [vmem:[%s5] sm:$0xf]
  %v1549 = vld [vmem:[%s5 + $0x4] sm:$0xf]
  %v1550 = vld [vmem:[%s5 + $0x8] sm:$0xf]
  %v1551 = vld [vmem:[%s5 + $0xc] sm:$0xf]
  %v1552 = vld [vmem:[%s6] sm:$0x1]
  %v1554 = vlaneseq
  %v1555 = vshrl.u32 %v1554, 7
  %v1556 = vsub.s32 0, %v1555
  %v1557 = vrot.slane %v1552, %v1556
  %v1563 = vunpack.c.l.b16 %v1548
  %v1564 = vunpack.c.l.b16 %v1549
  %v1565 = vunpack.c.l.b16 %v1550
  %v1566 = vunpack.c.l.b16 %v1551
  %v1567 = vpack.c.b16 %v1564, %v1563
  %v1568 = vpack.c.b16 %v1566, %v1565
  %v1572 = vsel %vm143, %v1547, 0
  %1574 = vmatprep.subr.bf16.mxu0 0
  %1575 = vmatpush1.bf16.msra.mxu0 %v1567
  %1576 = vmatprep.subr.bf16.mxu0 0
  %1577 = vmatpush1.bf16.msra.mxu0 %v1568
  %1578 = vmatprep.subr.bf16.mxu0 0
  %1579 = vmatpush1.bf16.msra.mxu0 0
  %1580 = vmatprep.subr.bf16.mxu0 0
  %1581 = vmatpush1.bf16.msra.mxu0 0
  %1582 = vmatprep.subr.bf16.mxu0 0
  %1583 = vmatpush1.bf16.msra.mxu0 0
  %1584 = vmatprep.subr.bf16.mxu0 0
  %1585 = vmatpush1.bf16.msra.mxu0 0
  %1586 = vmatprep.subr.bf16.mxu0 0
  %1587 = vmatpush1.bf16.msra.mxu0 0
  %1588 = vmatprep.subr.bf16.mxu0 0
  %1589 = vmatpush1.bf16.msra.mxu0 0
  %1590 = vmatprep.subr.bf16.mxu0 0
  %1591 = vmatpush1.bf16.msra.mxu0 0
  %1592 = vmatprep.subr.bf16.mxu0 0
  %1593 = vmatpush1.bf16.msra.mxu0 0
  %1594 = vmatprep.subr.bf16.mxu0 0
  %1595 = vmatpush1.bf16.msra.mxu0 0
  %1596 = vmatprep.subr.bf16.mxu0 0
  %1597 = vmatpush1.bf16.msra.mxu0 0
  %1598 = vmatprep.subr.bf16.mxu0 0
  %1599 = vmatpush1.bf16.msra.mxu0 0
  %1600 = vmatprep.subr.bf16.mxu0 0
  %1601 = vmatpush1.bf16.msra.mxu0 0
  %1602 = vmatprep.subr.bf16.mxu0 0
  %1603 = vmatpush1.bf16.msra.mxu0 0
  %1604 = vmatprep.subr.bf16.mxu0 0
  %1605 = vmatpush1.bf16.msra.mxu0 0
  %1606 = vmatprep.mubr.bf16.mxu0 0
  %1607 = vmatmul.mubr.bf16.gmra.mrb[0].mxu0 %v1572
  %v1608 = vpop.f32.mrb[0].mxu0
  %v1609 = vadd.f32 %v1557, %v1608
  %v1610 = vpop.f32.mrb[0].mxu0
  %v1611 = vpop.f32.mrb[0].mxu0
  %v1612 = vadd.f32 %v1557, %v1611
  %v1613 = vpop.f32.mrb[0].mxu0
  %1614 = vdwg.mxu0
  %v1615 = vadd.f32 %v113, %v1609
  %v1616 = vadd.f32 %v116, %v1612
  %v1617 = vld [vmem:[%s7] sm:$0x1]
  %v1618 = vld [vmem:[%s8] sm:$0x1]
  %v1619 = vsel %vm143, %v1615, 0.0
  %1620 = vadd.xlane.f32.xlu0 %v1619
  %v1621 = vpop.xlane.xlu0 %1620
  %v1622 = vsel %vm143, %v1616, 0.0
  %1623 = vadd.xlane.f32.xlu0 %v1622
  %v1624 = vpop.xlane.xlu0 %1623
  %v1625 = vrcp.pop 32.0
  %v1626 = vmul.f32 %v1621, %v1625
  %v1627 = vmul.f32 %v1624, %v1625
  %v1628 = vsub.f32 %v1615, %v1626
  %v1629 = vsub.f32 %v1616, %v1627
  %v1630 = vmul.f32 %v1628, %v1628
  %v1631 = vmul.f32 %v1629, %v1629
  %v1632 = vsel %vm143, %v1630, 0.0
  %1633 = vadd.xlane.f32.xlu0 %v1632
  %v1634 = vpop.xlane.xlu0 %1633
  %v1635 = vsel %vm143, %v1631, 0.0
  %1636 = vadd.xlane.f32.xlu0 %v1635
  %v1637 = vpop.xlane.xlu0 %1636
  %v1638 = vmul.f32 %v1634, %v1625
  %v1639 = vmul.f32 %v1637, %v1625
  %v1640 = vadd.f32 %v1638, 1e-05
  %v1641 = vadd.f32 %v1639, 1e-05
  %v1642 = vrsqrt.pop %v1640
  %v1643 = vrsqrt.pop %v1641
  %v1644 = vmul.f32 %v1628, %v1642
  %v1645 = vmul.f32 %v1629, %v1643
  %v1647 = vlaneseq
  %v1648 = vshrl.u32 %v1647, 7
  %v1649 = vsub.s32 0, %v1648
  %v1650 = vrot.slane %v1617, %v1649
  %v1652 = vmul.f32 %v1644, %v1650
  %v1653 = vmul.f32 %v1645, %v1650
  %v1655 = vlaneseq
  %v1656 = vshrl.u32 %v1655, 7
  %v1657 = vsub.s32 0, %v1656
  %v1658 = vrot.slane %v1618, %v1657
  %v1660 = vadd.f32 %v1652, %v1658
  %v1661 = vadd.f32 %v1653, %v1658
  %v1662 = vpack.c.bf16 %v1661, %v1660
  %v1663 = vld [vmem:[%s9] sm:$0xff]
  %v1664 = vld [vmem:[%s9 + $0x8] sm:$0xff]
  %v1665 = vld [vmem:[%s9 + $0x10] sm:$0xff]
  %v1666 = vld [vmem:[%s9 + $0x18] sm:$0xff]
  %v1667 = vld [vmem:[%s9 + $0x20] sm:$0xff]
  %v1668 = vld [vmem:[%s9 + $0x28] sm:$0xff]
  %v1669 = vld [vmem:[%s9 + $0x30] sm:$0xff]
  %v1670 = vld [vmem:[%s9 + $0x38] sm:$0xff]
  %v1671 = vld [vmem:[%s9 + $0x40] sm:$0xff]
  %v1672 = vld [vmem:[%s9 + $0x48] sm:$0xff]
  %v1673 = vld [vmem:[%s9 + $0x50] sm:$0xff]
  %v1674 = vld [vmem:[%s9 + $0x58] sm:$0xff]
  %v1675 = vld [vmem:[%s9 + $0x60] sm:$0xff]
  %v1676 = vld [vmem:[%s9 + $0x68] sm:$0xff]
  %v1677 = vld [vmem:[%s9 + $0x70] sm:$0xff]
  %v1678 = vld [vmem:[%s9 + $0x78] sm:$0xff]
  %v1679 = vld [vmem:[%s9 + $0x80] sm:$0xff]
  %v1680 = vld [vmem:[%s9 + $0x88] sm:$0xff]
  %v1681 = vld [vmem:[%s9 + $0x90] sm:$0xff]
  %v1682 = vld [vmem:[%s9 + $0x98] sm:$0xff]
  %v1683 = vld [vmem:[%s9 + $0xa0] sm:$0xff]
  %v1684 = vld [vmem:[%s9 + $0xa8] sm:$0xff]
  %v1685 = vld [vmem:[%s9 + $0xb0] sm:$0xff]
  %v1686 = vld [vmem:[%s9 + $0xb8] sm:$0xff]
  %v1687 = vld [vmem:[%s9 + $0xc0] sm:$0xff]
  %v1688 = vld [vmem:[%s9 + $0xc8] sm:$0xff]
  %v1689 = vld [vmem:[%s9 + $0xd0] sm:$0xff]
  %v1690 = vld [vmem:[%s9 + $0xd8] sm:$0xff]
  %v1691 = vld [vmem:[%s9 + $0xe0] sm:$0xff]
  %v1692 = vld [vmem:[%s9 + $0xe8] sm:$0xff]
  %v1693 = vld [vmem:[%s9 + $0xf0] sm:$0xff]
  %v1694 = vld [vmem:[%s9 + $0xf8] sm:$0xff]
  %v1695 = vld [vmem:[%s10] sm:$0xff]
  %v1696 = vld [vmem:[%s10 + $0x8] sm:$0xff]
  %v1699 = vlaneseq
  %v1700 = vshrl.u32 %v1699, 7
  %v1701 = vsub.s32 0, %v1700
  %v1702 = vrot.slane %v1695, %v1701
  %v1703 = vlaneseq
  %v1704 = vshrl.u32 %v1703, 7
  %v1705 = vsub.s32 1, %v1704
  %v1706 = vrot.slane %v1695, %v1705
  %v1707 = vlaneseq
  %v1708 = vshrl.u32 %v1707, 7
  %v1709 = vsub.s32 2, %v1708
  %v1710 = vrot.slane %v1695, %v1709
  %v1711 = vlaneseq
  %v1712 = vshrl.u32 %v1711, 7
  %v1713 = vsub.s32 3, %v1712
  %v1714 = vrot.slane %v1695, %v1713
  %v1715 = vlaneseq
  %v1716 = vshrl.u32 %v1715, 7
  %v1717 = vsub.s32 4, %v1716
  %v1718 = vrot.slane %v1695, %v1717
  %v1719 = vlaneseq
  %v1720 = vshrl.u32 %v1719, 7
  %v1721 = vsub.s32 5, %v1720
  %v1722 = vrot.slane %v1695, %v1721
  %v1723 = vlaneseq
  %v1724 = vshrl.u32 %v1723, 7
  %v1725 = vsub.s32 6, %v1724
  %v1726 = vrot.slane %v1695, %v1725
  %v1727 = vlaneseq
  %v1728 = vshrl.u32 %v1727, 7
  %v1729 = vsub.s32 7, %v1728
  %v1730 = vrot.slane %v1695, %v1729
  %v1731 = vlaneseq
  %v1732 = vshrl.u32 %v1731, 7
  %v1733 = vsub.s32 0, %v1732
  %v1734 = vrot.slane %v1696, %v1733
  %v1735 = vlaneseq
  %v1736 = vshrl.u32 %v1735, 7
  %v1737 = vsub.s32 1, %v1736
  %v1738 = vrot.slane %v1696, %v1737
  %v1739 = vlaneseq
  %v1740 = vshrl.u32 %v1739, 7
  %v1741 = vsub.s32 2, %v1740
  %v1742 = vrot.slane %v1696, %v1741
  %v1743 = vlaneseq
  %v1744 = vshrl.u32 %v1743, 7
  %v1745 = vsub.s32 3, %v1744
  %v1746 = vrot.slane %v1696, %v1745
  %v1747 = vlaneseq
  %v1748 = vshrl.u32 %v1747, 7
  %v1749 = vsub.s32 4, %v1748
  %v1750 = vrot.slane %v1696, %v1749
  %v1751 = vlaneseq
  %v1752 = vshrl.u32 %v1751, 7
  %v1753 = vsub.s32 5, %v1752
  %v1754 = vrot.slane %v1696, %v1753
  %v1755 = vlaneseq
  %v1756 = vshrl.u32 %v1755, 7
  %v1757 = vsub.s32 6, %v1756
  %v1758 = vrot.slane %v1696, %v1757
  %v1759 = vlaneseq
  %v1760 = vshrl.u32 %v1759, 7
  %v1761 = vsub.s32 7, %v1760
  %v1762 = vrot.slane %v1696, %v1761
  %v1811 = vunpack.c.l.b16 %v1663
  %v1812 = vunpack.c.h.b16 %v1663
  %v1813 = vunpack.c.l.b16 %v1664
  %v1814 = vunpack.c.h.b16 %v1664
  %v1815 = vunpack.c.l.b16 %v1665
  %v1816 = vunpack.c.h.b16 %v1665
  %v1817 = vunpack.c.l.b16 %v1666
  %v1818 = vunpack.c.h.b16 %v1666
  %v1819 = vunpack.c.l.b16 %v1667
  %v1820 = vunpack.c.h.b16 %v1667
  %v1821 = vunpack.c.l.b16 %v1668
  %v1822 = vunpack.c.h.b16 %v1668
  %v1823 = vunpack.c.l.b16 %v1669
  %v1824 = vunpack.c.h.b16 %v1669
  %v1825 = vunpack.c.l.b16 %v1670
  %v1826 = vunpack.c.h.b16 %v1670
  %v1827 = vunpack.c.l.b16 %v1671
  %v1828 = vunpack.c.h.b16 %v1671
  %v1829 = vunpack.c.l.b16 %v1672
  %v1830 = vunpack.c.h.b16 %v1672
  %v1831 = vunpack.c.l.b16 %v1673
  %v1832 = vunpack.c.h.b16 %v1673
  %v1833 = vunpack.c.l.b16 %v1674
  %v1834 = vunpack.c.h.b16 %v1674
  %v1835 = vunpack.c.l.b16 %v1675
  %v1836 = vunpack.c.h.b16 %v1675
  %v1837 = vunpack.c.l.b16 %v1676
  %v1838 = vunpack.c.h.b16 %v1676
  %v1839 = vunpack.c.l.b16 %v1677
  %v1840 = vunpack.c.h.b16 %v1677
  %v1841 = vunpack.c.l.b16 %v1678
  %v1842 = vunpack.c.h.b16 %v1678
  %v1843 = vunpack.c.l.b16 %v1679
  %v1844 = vunpack.c.h.b16 %v1679
  %v1845 = vunpack.c.l.b16 %v1680
  %v1846 = vunpack.c.h.b16 %v1680
  %v1847 = vunpack.c.l.b16 %v1681
  %v1848 = vunpack.c.h.b16 %v1681
  %v1849 = vunpack.c.l.b16 %v1682
  %v1850 = vunpack.c.h.b16 %v1682
  %v1851 = vunpack.c.l.b16 %v1683
  %v1852 = vunpack.c.h.b16 %v1683
  %v1853 = vunpack.c.l.b16 %v1684
  %v1854 = vunpack.c.h.b16 %v1684
  %v1855 = vunpack.c.l.b16 %v1685
  %v1856 = vunpack.c.h.b16 %v1685
  %v1857 = vunpack.c.l.b16 %v1686
  %v1858 = vunpack.c.h.b16 %v1686
  %v1859 = vunpack.c.l.b16 %v1687
  %v1860 = vunpack.c.h.b16 %v1687
  %v1861 = vunpack.c.l.b16 %v1688
  %v1862 = vunpack.c.h.b16 %v1688
  %v1863 = vunpack.c.l.b16 %v1689
  %v1864 = vunpack.c.h.b16 %v1689
  %v1865 = vunpack.c.l.b16 %v1690
  %v1866 = vunpack.c.h.b16 %v1690
  %v1867 = vunpack.c.l.b16 %v1691
  %v1868 = vunpack.c.h.b16 %v1691
  %v1869 = vunpack.c.l.b16 %v1692
  %v1870 = vunpack.c.h.b16 %v1692
  %v1871 = vunpack.c.l.b16 %v1693
  %v1872 = vunpack.c.h.b16 %v1693
  %v1873 = vunpack.c.l.b16 %v1694
  %v1874 = vunpack.c.h.b16 %v1694
  %v1875 = vpack.c.b16 %v1827, %v1811
  %v1876 = vpack.c.b16 %v1828, %v1812
  %v1877 = vpack.c.b16 %v1829, %v1813
  %v1878 = vpack.c.b16 %v1830, %v1814
  %v1879 = vpack.c.b16 %v1831, %v1815
  %v1880 = vpack.c.b16 %v1832, %v1816
  %v1881 = vpack.c.b16 %v1833, %v1817
  %v1882 = vpack.c.b16 %v1834, %v1818
  %v1883 = vpack.c.b16 %v1835, %v1819
  %v1884 = vpack.c.b16 %v1836, %v1820
  %v1885 = vpack.c.b16 %v1837, %v1821
  %v1886 = vpack.c.b16 %v1838, %v1822
  %v1887 = vpack.c.b16 %v1839, %v1823
  %v1888 = vpack.c.b16 %v1840, %v1824
  %v1889 = vpack.c.b16 %v1841, %v1825
  %v1890 = vpack.c.b16 %v1842, %v1826
  %v1891 = vpack.c.b16 %v1859, %v1843
  %v1892 = vpack.c.b16 %v1860, %v1844
  %v1893 = vpack.c.b16 %v1861, %v1845
  %v1894 = vpack.c.b16 %v1862, %v1846
  %v1895 = vpack.c.b16 %v1863, %v1847
  %v1896 = vpack.c.b16 %v1864, %v1848
  %v1897 = vpack.c.b16 %v1865, %v1849
  %v1898 = vpack.c.b16 %v1866, %v1850
  %v1899 = vpack.c.b16 %v1867, %v1851
  %v1900 = vpack.c.b16 %v1868, %v1852
  %v1901 = vpack.c.b16 %v1869, %v1853
  %v1902 = vpack.c.b16 %v1870, %v1854
  %v1903 = vpack.c.b16 %v1871, %v1855
  %v1904 = vpack.c.b16 %v1872, %v1856
  %v1905 = vpack.c.b16 %v1873, %v1857
  %v1906 = vpack.c.b16 %v1874, %v1858
  %v1940 = vsel %vm143, %v1662, 0
  %1942 = vmatprep.subr.bf16.mxu0 %v1876
  %1943 = vmatpush1.bf16.msra.mxu0 %v1875
  %1944 = vmatprep.subr.bf16.mxu0 %v1892
  %1945 = vmatpush1.bf16.msra.mxu0 %v1891
  %1946 = vmatprep.subr.bf16.mxu0 0
  %1947 = vmatpush1.bf16.msra.mxu0 0
  %1948 = vmatprep.subr.bf16.mxu0 0
  %1949 = vmatpush1.bf16.msra.mxu0 0
  %1950 = vmatprep.subr.bf16.mxu0 0
  %1951 = vmatpush1.bf16.msra.mxu0 0
  %1952 = vmatprep.subr.bf16.mxu0 0
  %1953 = vmatpush1.bf16.msra.mxu0 0
  %1954 = vmatprep.subr.bf16.mxu0 0
  %1955 = vmatpush1.bf16.msra.mxu0 0
  %1956 = vmatprep.subr.bf16.mxu0 0
  %1957 = vmatpush1.bf16.msra.mxu0 0
  %1958 = vmatprep.subr.bf16.mxu0 0
  %1959 = vmatpush1.bf16.msra.mxu0 0
  %1960 = vmatprep.subr.bf16.mxu0 0
  %1961 = vmatpush1.bf16.msra.mxu0 0
  %1962 = vmatprep.subr.bf16.mxu0 0
  %1963 = vmatpush1.bf16.msra.mxu0 0
  %1964 = vmatprep.subr.bf16.mxu0 0
  %1965 = vmatpush1.bf16.msra.mxu0 0
  %1966 = vmatprep.subr.bf16.mxu0 0
  %1967 = vmatpush1.bf16.msra.mxu0 0
  %1968 = vmatprep.subr.bf16.mxu0 0
  %1969 = vmatpush1.bf16.msra.mxu0 0
  %1970 = vmatprep.subr.bf16.mxu0 0
  %1971 = vmatpush1.bf16.msra.mxu0 0
  %1972 = vmatprep.subr.bf16.mxu0 0
  %1973 = vmatpush1.bf16.msra.mxu0 0
  %1974 = vmatprep.mubr.bf16.mxu0 0
  %1975 = vmatmul.mubr.bf16.gmra.mrb[0].mxu0 %v1940
  %v1976 = vpop.f32.mrb[0].mxu0
  %v1977 = vadd.f32 %v1702, %v1976
  %v1978 = vpop.f32.mrb[0].mxu0
  %v1979 = vadd.f32 %v1706, %v1978
  %v1980 = vpop.f32.mrb[0].mxu0
  %v1981 = vadd.f32 %v1702, %v1980
  %v1982 = vpop.f32.mrb[0].mxu0
  %v1983 = vadd.f32 %v1706, %v1982
  %1984 = vdwg.mxu0
  %1985 = vmatprep.subr.bf16.mxu0 %v1878
  %1986 = vmatpush1.bf16.msra.mxu0 %v1877
  %1987 = vmatprep.subr.bf16.mxu0 %v1894
  %1988 = vmatpush1.bf16.msra.mxu0 %v1893
  %1989 = vmatprep.subr.bf16.mxu0 0
  %1990 = vmatpush1.bf16.msra.mxu0 0
  %1991 = vmatprep.subr.bf16.mxu0 0
  %1992 = vmatpush1.bf16.msra.mxu0 0
  %1993 = vmatprep.subr.bf16.mxu0 0
  %1994 = vmatpush1.bf16.msra.mxu0 0
  %1995 = vmatprep.subr.bf16.mxu0 0
  %1996 = vmatpush1.bf16.msra.mxu0 0
  %1997 = vmatprep.subr.bf16.mxu0 0
  %1998 = vmatpush1.bf16.msra.mxu0 0
  %1999 = vmatprep.subr.bf16.mxu0 0
  %2000 = vmatpush1.bf16.msra.mxu0 0
  %2001 = vmatprep.subr.bf16.mxu0 0
  %2002 = vmatpush1.bf16.msra.mxu0 0
  %2003 = vmatprep.subr.bf16.mxu0 0
  %2004 = vmatpush1.bf16.msra.mxu0 0
  %2005 = vmatprep.subr.bf16.mxu0 0
  %2006 = vmatpush1.bf16.msra.mxu0 0
  %2007 = vmatprep.subr.bf16.mxu0 0
  %2008 = vmatpush1.bf16.msra.mxu0 0
  %2009 = vmatprep.subr.bf16.mxu0 0
  %2010 = vmatpush1.bf16.msra.mxu0 0
  %2011 = vmatprep.subr.bf16.mxu0 0
  %2012 = vmatpush1.bf16.msra.mxu0 0
  %2013 = vmatprep.subr.bf16.mxu0 0
  %2014 = vmatpush1.bf16.msra.mxu0 0
  %2015 = vmatprep.subr.bf16.mxu0 0
  %2016 = vmatpush1.bf16.msra.mxu0 0
  %2017 = vmatprep.mubr.bf16.mxu0 0
  %2018 = vmatmul.mubr.bf16.gmra.mrb[0].mxu0 %v1940
  %v2019 = vpop.f32.mrb[0].mxu0
  %v2020 = vadd.f32 %v1710, %v2019
  %v2021 = vpop.f32.mrb[0].mxu0
  %v2022 = vadd.f32 %v1714, %v2021
  %v2023 = vpop.f32.mrb[0].mxu0
  %v2024 = vadd.f32 %v1710, %v2023
  %v2025 = vpop.f32.mrb[0].mxu0
  %v2026 = vadd.f32 %v1714, %v2025
  %2027 = vdwg.mxu0
  %2028 = vmatprep.subr.bf16.mxu0 %v1880
  %2029 = vmatpush1.bf16.msra.mxu0 %v1879
  %2030 = vmatprep.subr.bf16.mxu0 %v1896
  %2031 = vmatpush1.bf16.msra.mxu0 %v1895
  %2032 = vmatprep.subr.bf16.mxu0 0
  %2033 = vmatpush1.bf16.msra.mxu0 0
  %2034 = vmatprep.subr.bf16.mxu0 0
  %2035 = vmatpush1.bf16.msra.mxu0 0
  %2036 = vmatprep.subr.bf16.mxu0 0
  %2037 = vmatpush1.bf16.msra.mxu0 0
  %2038 = vmatprep.subr.bf16.mxu0 0
  %2039 = vmatpush1.bf16.msra.mxu0 0
  %2040 = vmatprep.subr.bf16.mxu0 0
  %2041 = vmatpush1.bf16.msra.mxu0 0
  %2042 = vmatprep.subr.bf16.mxu0 0
  %2043 = vmatpush1.bf16.msra.mxu0 0
  %2044 = vmatprep.subr.bf16.mxu0 0
  %2045 = vmatpush1.bf16.msra.mxu0 0
  %2046 = vmatprep.subr.bf16.mxu0 0
  %2047 = vmatpush1.bf16.msra.mxu0 0
  %2048 = vmatprep.subr.bf16.mxu0 0
  %2049 = vmatpush1.bf16.msra.mxu0 0
  %2050 = vmatprep.subr.bf16.mxu0 0
  %2051 = vmatpush1.bf16.msra.mxu0 0
  %2052 = vmatprep.subr.bf16.mxu0 0
  %2053 = vmatpush1.bf16.msra.mxu0 0
  %2054 = vmatprep.subr.bf16.mxu0 0
  %2055 = vmatpush1.bf16.msra.mxu0 0
  %2056 = vmatprep.subr.bf16.mxu0 0
  %2057 = vmatpush1.bf16.msra.mxu0 0
  %2058 = vmatprep.subr.bf16.mxu0 0
  %2059 = vmatpush1.bf16.msra.mxu0 0
  %2060 = vmatprep.mubr.bf16.mxu0 0
  %2061 = vmatmul.mubr.bf16.gmra.mrb[0].mxu0 %v1940
  %v2062 = vpop.f32.mrb[0].mxu0
  %v2063 = vadd.f32 %v1718, %v2062
  %v2064 = vpop.f32.mrb[0].mxu0
  %v2065 = vadd.f32 %v1722, %v2064
  %v2066 = vpop.f32.mrb[0].mxu0
  %v2067 = vadd.f32 %v1718, %v2066
  %v2068 = vpop.f32.mrb[0].mxu0
  %v2069 = vadd.f32 %v1722, %v2068
  %2070 = vdwg.mxu0
  %2071 = vmatprep.subr.bf16.mxu0 %v1882
  %2072 = vmatpush1.bf16.msra.mxu0 %v1881
  %2073 = vmatprep.subr.bf16.mxu0 %v1898
  %2074 = vmatpush1.bf16.msra.mxu0 %v1897
  %2075 = vmatprep.subr.bf16.mxu0 0
  %2076 = vmatpush1.bf16.msra.mxu0 0
  %2077 = vmatprep.subr.bf16.mxu0 0
  %2078 = vmatpush1.bf16.msra.mxu0 0
  %2079 = vmatprep.subr.bf16.mxu0 0
  %2080 = vmatpush1.bf16.msra.mxu0 0
  %2081 = vmatprep.subr.bf16.mxu0 0
  %2082 = vmatpush1.bf16.msra.mxu0 0
  %2083 = vmatprep.subr.bf16.mxu0 0
  %2084 = vmatpush1.bf16.msra.mxu0 0
  %2085 = vmatprep.subr.bf16.mxu0 0
  %2086 = vmatpush1.bf16.msra.mxu0 0
  %2087 = vmatprep.subr.bf16.mxu0 0
  %2088 = vmatpush1.bf16.msra.mxu0 0
  %2089 = vmatprep.subr.bf16.mxu0 0
  %2090 = vmatpush1.bf16.msra.mxu0 0
  %2091 = vmatprep.subr.bf16.mxu0 0
  %2092 = vmatpush1.bf16.msra.mxu0 0
  %2093 = vmatprep.subr.bf16.mxu0 0
  %2094 = vmatpush1.bf16.msra.mxu0 0
  %2095 = vmatprep.subr.bf16.mxu0 0
  %2096 = vmatpush1.bf16.msra.mxu0 0
  %2097 = vmatprep.subr.bf16.mxu0 0
  %2098 = vmatpush1.bf16.msra.mxu0 0
  %2099 = vmatprep.subr.bf16.mxu0 0
  %2100 = vmatpush1.bf16.msra.mxu0 0
  %2101 = vmatprep.subr.bf16.mxu0 0
  %2102 = vmatpush1.bf16.msra.mxu0 0
  %2103 = vmatprep.mubr.bf16.mxu0 0
  %2104 = vmatmul.mubr.bf16.gmra.mrb[0].mxu0 %v1940
  %v2105 = vpop.f32.mrb[0].mxu0
  %v2106 = vadd.f32 %v1726, %v2105
  %v2107 = vpop.f32.mrb[0].mxu0
  %v2108 = vadd.f32 %v1730, %v2107
  %v2109 = vpop.f32.mrb[0].mxu0
  %v2110 = vadd.f32 %v1726, %v2109
  %v2111 = vpop.f32.mrb[0].mxu0
  %v2112 = vadd.f32 %v1730, %v2111
  %2113 = vdwg.mxu0
  %2114 = vmatprep.subr.bf16.mxu0 %v1884
  %2115 = vmatpush1.bf16.msra.mxu0 %v1883
  %2116 = vmatprep.subr.bf16.mxu0 %v1900
  %2117 = vmatpush1.bf16.msra.mxu0 %v1899
  %2118 = vmatprep.subr.bf16.mxu0 0
  %2119 = vmatpush1.bf16.msra.mxu0 0
  %2120 = vmatprep.subr.bf16.mxu0 0
  %2121 = vmatpush1.bf16.msra.mxu0 0
  %2122 = vmatprep.subr.bf16.mxu0 0
  %2123 = vmatpush1.bf16.msra.mxu0 0
  %2124 = vmatprep.subr.bf16.mxu0 0
  %2125 = vmatpush1.bf16.msra.mxu0 0
  %2126 = vmatprep.subr.bf16.mxu0 0
  %2127 = vmatpush1.bf16.msra.mxu0 0
  %2128 = vmatprep.subr.bf16.mxu0 0
  %2129 = vmatpush1.bf16.msra.mxu0 0
  %2130 = vmatprep.subr.bf16.mxu0 0
  %2131 = vmatpush1.bf16.msra.mxu0 0
  %2132 = vmatprep.subr.bf16.mxu0 0
  %2133 = vmatpush1.bf16.msra.mxu0 0
  %2134 = vmatprep.subr.bf16.mxu0 0
  %2135 = vmatpush1.bf16.msra.mxu0 0
  %2136 = vmatprep.subr.bf16.mxu0 0
  %2137 = vmatpush1.bf16.msra.mxu0 0
  %2138 = vmatprep.subr.bf16.mxu0 0
  %2139 = vmatpush1.bf16.msra.mxu0 0
  %2140 = vmatprep.subr.bf16.mxu0 0
  %2141 = vmatpush1.bf16.msra.mxu0 0
  %2142 = vmatprep.subr.bf16.mxu0 0
  %2143 = vmatpush1.bf16.msra.mxu0 0
  %2144 = vmatprep.subr.bf16.mxu0 0
  %2145 = vmatpush1.bf16.msra.mxu0 0
  %2146 = vmatprep.mubr.bf16.mxu0 0
  %2147 = vmatmul.mubr.bf16.gmra.mrb[0].mxu0 %v1940
  %v2148 = vpop.f32.mrb[0].mxu0
  %v2149 = vadd.f32 %v1734, %v2148
  %v2150 = vpop.f32.mrb[0].mxu0
  %v2151 = vadd.f32 %v1738, %v2150
  %v2152 = vpop.f32.mrb[0].mxu0
  %v2153 = vadd.f32 %v1734, %v2152
  %v2154 = vpop.f32.mrb[0].mxu0
  %v2155 = vadd.f32 %v1738, %v2154
  %2156 = vdwg.mxu0
  %2157 = vmatprep.subr.bf16.mxu0 %v1886
  %2158 = vmatpush1.bf16.msra.mxu0 %v1885
  %2159 = vmatprep.subr.bf16.mxu0 %v1902
  %2160 = vmatpush1.bf16.msra.mxu0 %v1901
  %2161 = vmatprep.subr.bf16.mxu0 0
  %2162 = vmatpush1.bf16.msra.mxu0 0
  %2163 = vmatprep.subr.bf16.mxu0 0
  %2164 = vmatpush1.bf16.msra.mxu0 0
  %2165 = vmatprep.subr.bf16.mxu0 0
  %2166 = vmatpush1.bf16.msra.mxu0 0
  %2167 = vmatprep.subr.bf16.mxu0 0
  %2168 = vmatpush1.bf16.msra.mxu0 0
  %2169 = vmatprep.subr.bf16.mxu0 0
  %2170 = vmatpush1.bf16.msra.mxu0 0
  %2171 = vmatprep.subr.bf16.mxu0 0
  %2172 = vmatpush1.bf16.msra.mxu0 0
  %2173 = vmatprep.subr.bf16.mxu0 0
  %2174 = vmatpush1.bf16.msra.mxu0 0
  %2175 = vmatprep.subr.bf16.mxu0 0
  %2176 = vmatpush1.bf16.msra.mxu0 0
  %2177 = vmatprep.subr.bf16.mxu0 0
  %2178 = vmatpush1.bf16.msra.mxu0 0
  %2179 = vmatprep.subr.bf16.mxu0 0
  %2180 = vmatpush1.bf16.msra.mxu0 0
  %2181 = vmatprep.subr.bf16.mxu0 0
  %2182 = vmatpush1.bf16.msra.mxu0 0
  %2183 = vmatprep.subr.bf16.mxu0 0
  %2184 = vmatpush1.bf16.msra.mxu0 0
  %2185 = vmatprep.subr.bf16.mxu0 0
  %2186 = vmatpush1.bf16.msra.mxu0 0
  %2187 = vmatprep.subr.bf16.mxu0 0
  %2188 = vmatpush1.bf16.msra.mxu0 0
  %2189 = vmatprep.mubr.bf16.mxu0 0
  %2190 = vmatmul.mubr.bf16.gmra.mrb[0].mxu0 %v1940
  %v2191 = vpop.f32.mrb[0].mxu0
  %v2192 = vadd.f32 %v1742, %v2191
  %v2193 = vpop.f32.mrb[0].mxu0
  %v2194 = vadd.f32 %v1746, %v2193
  %v2195 = vpop.f32.mrb[0].mxu0
  %v2196 = vadd.f32 %v1742, %v2195
  %v2197 = vpop.f32.mrb[0].mxu0
  %v2198 = vadd.f32 %v1746, %v2197
  %2199 = vdwg.mxu0
  %2200 = vmatprep.subr.bf16.mxu0 %v1888
  %2201 = vmatpush1.bf16.msra.mxu0 %v1887
  %2202 = vmatprep.subr.bf16.mxu0 %v1904
  %2203 = vmatpush1.bf16.msra.mxu0 %v1903
  %2204 = vmatprep.subr.bf16.mxu0 0
  %2205 = vmatpush1.bf16.msra.mxu0 0
  %2206 = vmatprep.subr.bf16.mxu0 0
  %2207 = vmatpush1.bf16.msra.mxu0 0
  %2208 = vmatprep.subr.bf16.mxu0 0
  %2209 = vmatpush1.bf16.msra.mxu0 0
  %2210 = vmatprep.subr.bf16.mxu0 0
  %2211 = vmatpush1.bf16.msra.mxu0 0
  %2212 = vmatprep.subr.bf16.mxu0 0
  %2213 = vmatpush1.bf16.msra.mxu0 0
  %2214 = vmatprep.subr.bf16.mxu0 0
  %2215 = vmatpush1.bf16.msra.mxu0 0
  %2216 = vmatprep.subr.bf16.mxu0 0
  %2217 = vmatpush1.bf16.msra.mxu0 0
  %2218 = vmatprep.subr.bf16.mxu0 0
  %2219 = vmatpush1.bf16.msra.mxu0 0
  %2220 = vmatprep.subr.bf16.mxu0 0
  %2221 = vmatpush1.bf16.msra.mxu0 0
  %2222 = vmatprep.subr.bf16.mxu0 0
  %2223 = vmatpush1.bf16.msra.mxu0 0
  %2224 = vmatprep.subr.bf16.mxu0 0
  %2225 = vmatpush1.bf16.msra.mxu0 0
  %2226 = vmatprep.subr.bf16.mxu0 0
  %2227 = vmatpush1.bf16.msra.mxu0 0
  %2228 = vmatprep.subr.bf16.mxu0 0
  %2229 = vmatpush1.bf16.msra.mxu0 0
  %2230 = vmatprep.subr.bf16.mxu0 0
  %2231 = vmatpush1.bf16.msra.mxu0 0
  %2232 = vmatprep.mubr.bf16.mxu0 0
  %2233 = vmatmul.mubr.bf16.gmra.mrb[0].mxu0 %v1940
  %v2234 = vpop.f32.mrb[0].mxu0
  %v2235 = vadd.f32 %v1750, %v2234
  %v2236 = vpop.f32.mrb[0].mxu0
  %v2237 = vadd.f32 %v1754, %v2236
  %v2238 = vpop.f32.mrb[0].mxu0
  %v2239 = vadd.f32 %v1750, %v2238
  %v2240 = vpop.f32.mrb[0].mxu0
  %v2241 = vadd.f32 %v1754, %v2240
  %2242 = vdwg.mxu0
  %2243 = vmatprep.subr.bf16.mxu0 %v1890
  %2244 = vmatpush1.bf16.msra.mxu0 %v1889
  %2245 = vmatprep.subr.bf16.mxu0 %v1906
  %2246 = vmatpush1.bf16.msra.mxu0 %v1905
  %2247 = vmatprep.subr.bf16.mxu0 0
  %2248 = vmatpush1.bf16.msra.mxu0 0
  %2249 = vmatprep.subr.bf16.mxu0 0
  %2250 = vmatpush1.bf16.msra.mxu0 0
  %2251 = vmatprep.subr.bf16.mxu0 0
  %2252 = vmatpush1.bf16.msra.mxu0 0
  %2253 = vmatprep.subr.bf16.mxu0 0
  %2254 = vmatpush1.bf16.msra.mxu0 0
  %2255 = vmatprep.subr.bf16.mxu0 0
  %2256 = vmatpush1.bf16.msra.mxu0 0
  %2257 = vmatprep.subr.bf16.mxu0 0
  %2258 = vmatpush1.bf16.msra.mxu0 0
  %2259 = vmatprep.subr.bf16.mxu0 0
  %2260 = vmatpush1.bf16.msra.mxu0 0
  %2261 = vmatprep.subr.bf16.mxu0 0
  %2262 = vmatpush1.bf16.msra.mxu0 0
  %2263 = vmatprep.subr.bf16.mxu0 0
  %2264 = vmatpush1.bf16.msra.mxu0 0
  %2265 = vmatprep.subr.bf16.mxu0 0
  %2266 = vmatpush1.bf16.msra.mxu0 0
  %2267 = vmatprep.subr.bf16.mxu0 0
  %2268 = vmatpush1.bf16.msra.mxu0 0
  %2269 = vmatprep.subr.bf16.mxu0 0
  %2270 = vmatpush1.bf16.msra.mxu0 0
  %2271 = vmatprep.subr.bf16.mxu0 0
  %2272 = vmatpush1.bf16.msra.mxu0 0
  %2273 = vmatprep.subr.bf16.mxu0 0
  %2274 = vmatpush1.bf16.msra.mxu0 0
  %2275 = vmatprep.mubr.bf16.mxu0 0
  %2276 = vmatmul.mubr.bf16.gmra.mrb[0].mxu0 %v1940
  %v2277 = vpop.f32.mrb[0].mxu0
  %v2278 = vadd.f32 %v1758, %v2277
  %v2279 = vpop.f32.mrb[0].mxu0
  %v2280 = vadd.f32 %v1762, %v2279
  %v2281 = vpop.f32.mrb[0].mxu0
  %v2282 = vadd.f32 %v1758, %v2281
  %v2283 = vpop.f32.mrb[0].mxu0
  %v2284 = vadd.f32 %v1762, %v2283
  %2285 = vdwg.mxu0
  %v2286 = vmax.f32 %v1977, 0.0
  %v2287 = vmax.f32 %v1979, 0.0
  %v2288 = vmax.f32 %v2020, 0.0
  %v2289 = vmax.f32 %v2022, 0.0
  %v2290 = vmax.f32 %v2063, 0.0
  %v2291 = vmax.f32 %v2065, 0.0
  %v2292 = vmax.f32 %v2106, 0.0
  %v2293 = vmax.f32 %v2108, 0.0
  %v2294 = vmax.f32 %v2149, 0.0
  %v2295 = vmax.f32 %v2151, 0.0
  %v2296 = vmax.f32 %v2192, 0.0
  %v2297 = vmax.f32 %v2194, 0.0
  %v2298 = vmax.f32 %v2235, 0.0
  %v2299 = vmax.f32 %v2237, 0.0
  %v2300 = vmax.f32 %v2278, 0.0
  %v2301 = vmax.f32 %v2280, 0.0
  %v2302 = vmax.f32 %v1981, 0.0
  %v2303 = vmax.f32 %v1983, 0.0
  %v2304 = vmax.f32 %v2024, 0.0
  %v2305 = vmax.f32 %v2026, 0.0
  %v2306 = vmax.f32 %v2067, 0.0
  %v2307 = vmax.f32 %v2069, 0.0
  %v2308 = vmax.f32 %v2110, 0.0
  %v2309 = vmax.f32 %v2112, 0.0
  %v2310 = vmax.f32 %v2153, 0.0
  %v2311 = vmax.f32 %v2155, 0.0
  %v2312 = vmax.f32 %v2196, 0.0
  %v2313 = vmax.f32 %v2198, 0.0
  %v2314 = vmax.f32 %v2239, 0.0
  %v2315 = vmax.f32 %v2241, 0.0
  %v2316 = vmax.f32 %v2282, 0.0
  %v2317 = vmax.f32 %v2284, 0.0
  %v2318 = vpack.c.bf16 %v2302, %v2286
  %v2319 = vpack.c.bf16 %v2303, %v2287
  %v2320 = vpack.c.bf16 %v2304, %v2288
  %v2321 = vpack.c.bf16 %v2305, %v2289
  %v2322 = vpack.c.bf16 %v2306, %v2290
  %v2323 = vpack.c.bf16 %v2307, %v2291
  %v2324 = vpack.c.bf16 %v2308, %v2292
  %v2325 = vpack.c.bf16 %v2309, %v2293
  %v2326 = vpack.c.bf16 %v2310, %v2294
  %v2327 = vpack.c.bf16 %v2311, %v2295
  %v2328 = vpack.c.bf16 %v2312, %v2296
  %v2329 = vpack.c.bf16 %v2313, %v2297
  %v2330 = vpack.c.bf16 %v2314, %v2298
  %v2331 = vpack.c.bf16 %v2315, %v2299
  %v2332 = vpack.c.bf16 %v2316, %v2300
  %v2333 = vpack.c.bf16 %v2317, %v2301
  %v2334 = vld [vmem:[%s11] sm:$0xf]
  %v2335 = vld [vmem:[%s11 + $0x4] sm:$0xf]
  %v2336 = vld [vmem:[%s11 + $0x8] sm:$0xf]
  %v2337 = vld [vmem:[%s11 + $0xc] sm:$0xf]
  %v2338 = vld [vmem:[%s11 + $0x10] sm:$0xf]
  %v2339 = vld [vmem:[%s11 + $0x14] sm:$0xf]
  %v2340 = vld [vmem:[%s11 + $0x18] sm:$0xf]
  %v2341 = vld [vmem:[%s11 + $0x1c] sm:$0xf]
  %v2342 = vld [vmem:[%s11 + $0x20] sm:$0xf]
  %v2343 = vld [vmem:[%s11 + $0x24] sm:$0xf]
  %v2344 = vld [vmem:[%s11 + $0x28] sm:$0xf]
  %v2345 = vld [vmem:[%s11 + $0x2c] sm:$0xf]
  %v2346 = vld [vmem:[%s11 + $0x30] sm:$0xf]
  %v2347 = vld [vmem:[%s11 + $0x34] sm:$0xf]
  %v2348 = vld [vmem:[%s11 + $0x38] sm:$0xf]
  %v2349 = vld [vmem:[%s11 + $0x3c] sm:$0xf]
  %v2350 = vld [vmem:[%s11 + $0x40] sm:$0xf]
  %v2351 = vld [vmem:[%s11 + $0x44] sm:$0xf]
  %v2352 = vld [vmem:[%s11 + $0x48] sm:$0xf]
  %v2353 = vld [vmem:[%s11 + $0x4c] sm:$0xf]
  %v2354 = vld [vmem:[%s11 + $0x50] sm:$0xf]
  %v2355 = vld [vmem:[%s11 + $0x54] sm:$0xf]
  %v2356 = vld [vmem:[%s11 + $0x58] sm:$0xf]
  %v2357 = vld [vmem:[%s11 + $0x5c] sm:$0xf]
  %v2358 = vld [vmem:[%s11 + $0x60] sm:$0xf]
  %v2359 = vld [vmem:[%s11 + $0x64] sm:$0xf]
  %v2360 = vld [vmem:[%s11 + $0x68] sm:$0xf]
  %v2361 = vld [vmem:[%s11 + $0x6c] sm:$0xf]
  %v2362 = vld [vmem:[%s11 + $0x70] sm:$0xf]
  %v2363 = vld [vmem:[%s11 + $0x74] sm:$0xf]
  %v2364 = vld [vmem:[%s11 + $0x78] sm:$0xf]
  %v2365 = vld [vmem:[%s11 + $0x7c] sm:$0xf]
  %v2366 = vld [vmem:[%s11 + $0x80] sm:$0xf]
  %v2367 = vld [vmem:[%s11 + $0x84] sm:$0xf]
  %v2368 = vld [vmem:[%s11 + $0x88] sm:$0xf]
  %v2369 = vld [vmem:[%s11 + $0x8c] sm:$0xf]
  %v2370 = vld [vmem:[%s11 + $0x90] sm:$0xf]
  %v2371 = vld [vmem:[%s11 + $0x94] sm:$0xf]
  %v2372 = vld [vmem:[%s11 + $0x98] sm:$0xf]
  %v2373 = vld [vmem:[%s11 + $0x9c] sm:$0xf]
  %v2374 = vld [vmem:[%s11 + $0xa0] sm:$0xf]
  %v2375 = vld [vmem:[%s11 + $0xa4] sm:$0xf]
  %v2376 = vld [vmem:[%s11 + $0xa8] sm:$0xf]
  %v2377 = vld [vmem:[%s11 + $0xac] sm:$0xf]
  %v2378 = vld [vmem:[%s11 + $0xb0] sm:$0xf]
  %v2379 = vld [vmem:[%s11 + $0xb4] sm:$0xf]
  %v2380 = vld [vmem:[%s11 + $0xb8] sm:$0xf]
  %v2381 = vld [vmem:[%s11 + $0xbc] sm:$0xf]
  %v2382 = vld [vmem:[%s11 + $0xc0] sm:$0xf]
  %v2383 = vld [vmem:[%s11 + $0xc4] sm:$0xf]
  %v2384 = vld [vmem:[%s11 + $0xc8] sm:$0xf]
  %v2385 = vld [vmem:[%s11 + $0xcc] sm:$0xf]
  %v2386 = vld [vmem:[%s11 + $0xd0] sm:$0xf]
  %v2387 = vld [vmem:[%s11 + $0xd4] sm:$0xf]
  %v2388 = vld [vmem:[%s11 + $0xd8] sm:$0xf]
  %v2389 = vld [vmem:[%s11 + $0xdc] sm:$0xf]
  %v2390 = vld [vmem:[%s11 + $0xe0] sm:$0xf]
  %v2391 = vld [vmem:[%s11 + $0xe4] sm:$0xf]
  %v2392 = vld [vmem:[%s11 + $0xe8] sm:$0xf]
  %v2393 = vld [vmem:[%s11 + $0xec] sm:$0xf]
  %v2394 = vld [vmem:[%s11 + $0xf0] sm:$0xf]
  %v2395 = vld [vmem:[%s11 + $0xf4] sm:$0xf]
  %v2396 = vld [vmem:[%s11 + $0xf8] sm:$0xf]
  %v2397 = vld [vmem:[%s11 + $0xfc] sm:$0xf]
  %v2398 = vld [vmem:[%s11 + $0x100] sm:$0xf]
  %v2399 = vld [vmem:[%s11 + $0x104] sm:$0xf]
  %v2400 = vld [vmem:[%s11 + $0x108] sm:$0xf]
  %v2401 = vld [vmem:[%s11 + $0x10c] sm:$0xf]
  %v2402 = vld [vmem:[%s11 + $0x110] sm:$0xf]
  %v2403 = vld [vmem:[%s11 + $0x114] sm:$0xf]
  %v2404 = vld [vmem:[%s11 + $0x118] sm:$0xf]
  %v2405 = vld [vmem:[%s11 + $0x11c] sm:$0xf]
  %v2406 = vld [vmem:[%s11 + $0x120] sm:$0xf]
  %v2407 = vld [vmem:[%s11 + $0x124] sm:$0xf]
  %v2408 = vld [vmem:[%s11 + $0x128] sm:$0xf]
  %v2409 = vld [vmem:[%s11 + $0x12c] sm:$0xf]
  %v2410 = vld [vmem:[%s11 + $0x130] sm:$0xf]
  %v2411 = vld [vmem:[%s11 + $0x134] sm:$0xf]
  %v2412 = vld [vmem:[%s11 + $0x138] sm:$0xf]
  %v2413 = vld [vmem:[%s11 + $0x13c] sm:$0xf]
  %v2414 = vld [vmem:[%s11 + $0x140] sm:$0xf]
  %v2415 = vld [vmem:[%s11 + $0x144] sm:$0xf]
  %v2416 = vld [vmem:[%s11 + $0x148] sm:$0xf]
  %v2417 = vld [vmem:[%s11 + $0x14c] sm:$0xf]
  %v2418 = vld [vmem:[%s11 + $0x150] sm:$0xf]
  %v2419 = vld [vmem:[%s11 + $0x154] sm:$0xf]
  %v2420 = vld [vmem:[%s11 + $0x158] sm:$0xf]
  %v2421 = vld [vmem:[%s11 + $0x15c] sm:$0xf]
  %v2422 = vld [vmem:[%s11 + $0x160] sm:$0xf]
  %v2423 = vld [vmem:[%s11 + $0x164] sm:$0xf]
  %v2424 = vld [vmem:[%s11 + $0x168] sm:$0xf]
  %v2425 = vld [vmem:[%s11 + $0x16c] sm:$0xf]
  %v2426 = vld [vmem:[%s11 + $0x170] sm:$0xf]
  %v2427 = vld [vmem:[%s11 + $0x174] sm:$0xf]
  %v2428 = vld [vmem:[%s11 + $0x178] sm:$0xf]
  %v2429 = vld [vmem:[%s11 + $0x17c] sm:$0xf]
  %v2430 = vld [vmem:[%s11 + $0x180] sm:$0xf]
  %v2431 = vld [vmem:[%s11 + $0x184] sm:$0xf]
  %v2432 = vld [vmem:[%s11 + $0x188] sm:$0xf]
  %v2433 = vld [vmem:[%s11 + $0x18c] sm:$0xf]
  %v2434 = vld [vmem:[%s11 + $0x190] sm:$0xf]
  %v2435 = vld [vmem:[%s11 + $0x194] sm:$0xf]
  %v2436 = vld [vmem:[%s11 + $0x198] sm:$0xf]
  %v2437 = vld [vmem:[%s11 + $0x19c] sm:$0xf]
  %v2438 = vld [vmem:[%s11 + $0x1a0] sm:$0xf]
  %v2439 = vld [vmem:[%s11 + $0x1a4] sm:$0xf]
  %v2440 = vld [vmem:[%s11 + $0x1a8] sm:$0xf]
  %v2441 = vld [vmem:[%s11 + $0x1ac] sm:$0xf]
  %v2442 = vld [vmem:[%s11 + $0x1b0] sm:$0xf]
  %v2443 = vld [vmem:[%s11 + $0x1b4] sm:$0xf]
  %v2444 = vld [vmem:[%s11 + $0x1b8] sm:$0xf]
  %v2445 = vld [vmem:[%s11 + $0x1bc] sm:$0xf]
  %v2446 = vld [vmem:[%s11 + $0x1c0] sm:$0xf]
  %v2447 = vld [vmem:[%s11 + $0x1c4] sm:$0xf]
  %v2448 = vld [vmem:[%s11 + $0x1c8] sm:$0xf]
  %v2449 = vld [vmem:[%s11 + $0x1cc] sm:$0xf]
  %v2450 = vld [vmem:[%s11 + $0x1d0] sm:$0xf]
  %v2451 = vld [vmem:[%s11 + $0x1d4] sm:$0xf]
  %v2452 = vld [vmem:[%s11 + $0x1d8] sm:$0xf]
  %v2453 = vld [vmem:[%s11 + $0x1dc] sm:$0xf]
  %v2454 = vld [vmem:[%s11 + $0x1e0] sm:$0xf]
  %v2455 = vld [vmem:[%s11 + $0x1e4] sm:$0xf]
  %v2456 = vld [vmem:[%s11 + $0x1e8] sm:$0xf]
  %v2457 = vld [vmem:[%s11 + $0x1ec] sm:$0xf]
  %v2458 = vld [vmem:[%s11 + $0x1f0] sm:$0xf]
  %v2459 = vld [vmem:[%s11 + $0x1f4] sm:$0xf]
  %v2460 = vld [vmem:[%s11 + $0x1f8] sm:$0xf]
  %v2461 = vld [vmem:[%s11 + $0x1fc] sm:$0xf]
  %v2462 = vld [vmem:[%s11 + $0x200] sm:$0xf]
  %v2463 = vld [vmem:[%s11 + $0x204] sm:$0xf]
  %v2464 = vld [vmem:[%s11 + $0x208] sm:$0xf]
  %v2465 = vld [vmem:[%s11 + $0x20c] sm:$0xf]
  %v2466 = vld [vmem:[%s11 + $0x210] sm:$0xf]
  %v2467 = vld [vmem:[%s11 + $0x214] sm:$0xf]
  %v2468 = vld [vmem:[%s11 + $0x218] sm:$0xf]
  %v2469 = vld [vmem:[%s11 + $0x21c] sm:$0xf]
  %v2470 = vld [vmem:[%s11 + $0x220] sm:$0xf]
  %v2471 = vld [vmem:[%s11 + $0x224] sm:$0xf]
  %v2472 = vld [vmem:[%s11 + $0x228] sm:$0xf]
  %v2473 = vld [vmem:[%s11 + $0x22c] sm:$0xf]
  %v2474 = vld [vmem:[%s11 + $0x230] sm:$0xf]
  %v2475 = vld [vmem:[%s11 + $0x234] sm:$0xf]
  %v2476 = vld [vmem:[%s11 + $0x238] sm:$0xf]
  %v2477 = vld [vmem:[%s11 + $0x23c] sm:$0xf]
  %v2478 = vld [vmem:[%s11 + $0x240] sm:$0xf]
  %v2479 = vld [vmem:[%s11 + $0x244] sm:$0xf]
  %v2480 = vld [vmem:[%s11 + $0x248] sm:$0xf]
  %v2481 = vld [vmem:[%s11 + $0x24c] sm:$0xf]
  %v2482 = vld [vmem:[%s11 + $0x250] sm:$0xf]
  %v2483 = vld [vmem:[%s11 + $0x254] sm:$0xf]
  %v2484 = vld [vmem:[%s11 + $0x258] sm:$0xf]
  %v2485 = vld [vmem:[%s11 + $0x25c] sm:$0xf]
  %v2486 = vld [vmem:[%s11 + $0x260] sm:$0xf]
  %v2487 = vld [vmem:[%s11 + $0x264] sm:$0xf]
  %v2488 = vld [vmem:[%s11 + $0x268] sm:$0xf]
  %v2489 = vld [vmem:[%s11 + $0x26c] sm:$0xf]
  %v2490 = vld [vmem:[%s11 + $0x270] sm:$0xf]
  %v2491 = vld [vmem:[%s11 + $0x274] sm:$0xf]
  %v2492 = vld [vmem:[%s11 + $0x278] sm:$0xf]
  %v2493 = vld [vmem:[%s11 + $0x27c] sm:$0xf]
  %v2494 = vld [vmem:[%s11 + $0x280] sm:$0xf]
  %v2495 = vld [vmem:[%s11 + $0x284] sm:$0xf]
  %v2496 = vld [vmem:[%s11 + $0x288] sm:$0xf]
  %v2497 = vld [vmem:[%s11 + $0x28c] sm:$0xf]
  %v2498 = vld [vmem:[%s11 + $0x290] sm:$0xf]
  %v2499 = vld [vmem:[%s11 + $0x294] sm:$0xf]
  %v2500 = vld [vmem:[%s11 + $0x298] sm:$0xf]
  %v2501 = vld [vmem:[%s11 + $0x29c] sm:$0xf]
  %v2502 = vld [vmem:[%s11 + $0x2a0] sm:$0xf]
  %v2503 = vld [vmem:[%s11 + $0x2a4] sm:$0xf]
  %v2504 = vld [vmem:[%s11 + $0x2a8] sm:$0xf]
  %v2505 = vld [vmem:[%s11 + $0x2ac] sm:$0xf]
  %v2506 = vld [vmem:[%s11 + $0x2b0] sm:$0xf]
  %v2507 = vld [vmem:[%s11 + $0x2b4] sm:$0xf]
  %v2508 = vld [vmem:[%s11 + $0x2b8] sm:$0xf]
  %v2509 = vld [vmem:[%s11 + $0x2bc] sm:$0xf]
  %v2510 = vld [vmem:[%s11 + $0x2c0] sm:$0xf]
  %v2511 = vld [vmem:[%s11 + $0x2c4] sm:$0xf]
  %v2512 = vld [vmem:[%s11 + $0x2c8] sm:$0xf]
  %v2513 = vld [vmem:[%s11 + $0x2cc] sm:$0xf]
  %v2514 = vld [vmem:[%s11 + $0x2d0] sm:$0xf]
  %v2515 = vld [vmem:[%s11 + $0x2d4] sm:$0xf]
  %v2516 = vld [vmem:[%s11 + $0x2d8] sm:$0xf]
  %v2517 = vld [vmem:[%s11 + $0x2dc] sm:$0xf]
  %v2518 = vld [vmem:[%s11 + $0x2e0] sm:$0xf]
  %v2519 = vld [vmem:[%s11 + $0x2e4] sm:$0xf]
  %v2520 = vld [vmem:[%s11 + $0x2e8] sm:$0xf]
  %v2521 = vld [vmem:[%s11 + $0x2ec] sm:$0xf]
  %v2522 = vld [vmem:[%s11 + $0x2f0] sm:$0xf]
  %v2523 = vld [vmem:[%s11 + $0x2f4] sm:$0xf]
  %v2524 = vld [vmem:[%s11 + $0x2f8] sm:$0xf]
  %v2525 = vld [vmem:[%s11 + $0x2fc] sm:$0xf]
  %v2526 = vld [vmem:[%s11 + $0x300] sm:$0xf]
  %v2527 = vld [vmem:[%s11 + $0x304] sm:$0xf]
  %v2528 = vld [vmem:[%s11 + $0x308] sm:$0xf]
  %v2529 = vld [vmem:[%s11 + $0x30c] sm:$0xf]
  %v2530 = vld [vmem:[%s11 + $0x310] sm:$0xf]
  %v2531 = vld [vmem:[%s11 + $0x314] sm:$0xf]
  %v2532 = vld [vmem:[%s11 + $0x318] sm:$0xf]
  %v2533 = vld [vmem:[%s11 + $0x31c] sm:$0xf]
  %v2534 = vld [vmem:[%s11 + $0x320] sm:$0xf]
  %v2535 = vld [vmem:[%s11 + $0x324] sm:$0xf]
  %v2536 = vld [vmem:[%s11 + $0x328] sm:$0xf]
  %v2537 = vld [vmem:[%s11 + $0x32c] sm:$0xf]
  %v2538 = vld [vmem:[%s11 + $0x330] sm:$0xf]
  %v2539 = vld [vmem:[%s11 + $0x334] sm:$0xf]
  %v2540 = vld [vmem:[%s11 + $0x338] sm:$0xf]
  %v2541 = vld [vmem:[%s11 + $0x33c] sm:$0xf]
  %v2542 = vld [vmem:[%s11 + $0x340] sm:$0xf]
  %v2543 = vld [vmem:[%s11 + $0x344] sm:$0xf]
  %v2544 = vld [vmem:[%s11 + $0x348] sm:$0xf]
  %v2545 = vld [vmem:[%s11 + $0x34c] sm:$0xf]
  %v2546 = vld [vmem:[%s11 + $0x350] sm:$0xf]
  %v2547 = vld [vmem:[%s11 + $0x354] sm:$0xf]
  %v2548 = vld [vmem:[%s11 + $0x358] sm:$0xf]
  %v2549 = vld [vmem:[%s11 + $0x35c] sm:$0xf]
  %v2550 = vld [vmem:[%s11 + $0x360] sm:$0xf]
  %v2551 = vld [vmem:[%s11 + $0x364] sm:$0xf]
  %v2552 = vld [vmem:[%s11 + $0x368] sm:$0xf]
  %v2553 = vld [vmem:[%s11 + $0x36c] sm:$0xf]
  %v2554 = vld [vmem:[%s11 + $0x370] sm:$0xf]
  %v2555 = vld [vmem:[%s11 + $0x374] sm:$0xf]
  %v2556 = vld [vmem:[%s11 + $0x378] sm:$0xf]
  %v2557 = vld [vmem:[%s11 + $0x37c] sm:$0xf]
  %v2558 = vld [vmem:[%s11 + $0x380] sm:$0xf]
  %v2559 = vld [vmem:[%s11 + $0x384] sm:$0xf]
  %v2560 = vld [vmem:[%s11 + $0x388] sm:$0xf]
  %v2561 = vld [vmem:[%s11 + $0x38c] sm:$0xf]
  %v2562 = vld [vmem:[%s11 + $0x390] sm:$0xf]
  %v2563 = vld [vmem:[%s11 + $0x394] sm:$0xf]
  %v2564 = vld [vmem:[%s11 + $0x398] sm:$0xf]
  %v2565 = vld [vmem:[%s11 + $0x39c] sm:$0xf]
  %v2566 = vld [vmem:[%s11 + $0x3a0] sm:$0xf]
  %v2567 = vld [vmem:[%s11 + $0x3a4] sm:$0xf]
  %v2568 = vld [vmem:[%s11 + $0x3a8] sm:$0xf]
  %v2569 = vld [vmem:[%s11 + $0x3ac] sm:$0xf]
  %v2570 = vld [vmem:[%s11 + $0x3b0] sm:$0xf]
  %v2571 = vld [vmem:[%s11 + $0x3b4] sm:$0xf]
  %v2572 = vld [vmem:[%s11 + $0x3b8] sm:$0xf]
  %v2573 = vld [vmem:[%s11 + $0x3bc] sm:$0xf]
  %v2574 = vld [vmem:[%s11 + $0x3c0] sm:$0xf]
  %v2575 = vld [vmem:[%s11 + $0x3c4] sm:$0xf]
  %v2576 = vld [vmem:[%s11 + $0x3c8] sm:$0xf]
  %v2577 = vld [vmem:[%s11 + $0x3cc] sm:$0xf]
  %v2578 = vld [vmem:[%s11 + $0x3d0] sm:$0xf]
  %v2579 = vld [vmem:[%s11 + $0x3d4] sm:$0xf]
  %v2580 = vld [vmem:[%s11 + $0x3d8] sm:$0xf]
  %v2581 = vld [vmem:[%s11 + $0x3dc] sm:$0xf]
  %v2582 = vld [vmem:[%s11 + $0x3e0] sm:$0xf]
  %v2583 = vld [vmem:[%s11 + $0x3e4] sm:$0xf]
  %v2584 = vld [vmem:[%s11 + $0x3e8] sm:$0xf]
  %v2585 = vld [vmem:[%s11 + $0x3ec] sm:$0xf]
  %v2586 = vld [vmem:[%s11 + $0x3f0] sm:$0xf]
  %v2587 = vld [vmem:[%s11 + $0x3f4] sm:$0xf]
  %v2588 = vld [vmem:[%s11 + $0x3f8] sm:$0xf]
  %v2589 = vld [vmem:[%s11 + $0x3fc] sm:$0xf]
  %v2590 = vld [vmem:[%s12] sm:$0x1]
  %v2592 = vlaneseq
  %v2593 = vshrl.u32 %v2592, 7
  %v2594 = vsub.s32 0, %v2593
  %v2595 = vrot.slane %v2590, %v2594
  %v2853 = vunpack.c.l.b16 %v2334
  %v2854 = vunpack.c.l.b16 %v2335
  %v2855 = vunpack.c.l.b16 %v2336
  %v2856 = vunpack.c.l.b16 %v2337
  %v2857 = vunpack.c.l.b16 %v2338
  %v2858 = vunpack.c.l.b16 %v2339
  %v2859 = vunpack.c.l.b16 %v2340
  %v2860 = vunpack.c.l.b16 %v2341
  %v2861 = vunpack.c.l.b16 %v2342
  %v2862 = vunpack.c.l.b16 %v2343
  %v2863 = vunpack.c.l.b16 %v2344
  %v2864 = vunpack.c.l.b16 %v2345
  %v2865 = vunpack.c.l.b16 %v2346
  %v2866 = vunpack.c.l.b16 %v2347
  %v2867 = vunpack.c.l.b16 %v2348
  %v2868 = vunpack.c.l.b16 %v2349
  %v2869 = vunpack.c.l.b16 %v2350
  %v2870 = vunpack.c.l.b16 %v2351
  %v2871 = vunpack.c.l.b16 %v2352
  %v2872 = vunpack.c.l.b16 %v2353
  %v2873 = vunpack.c.l.b16 %v2354
  %v2874 = vunpack.c.l.b16 %v2355
  %v2875 = vunpack.c.l.b16 %v2356
  %v2876 = vunpack.c.l.b16 %v2357
  %v2877 = vunpack.c.l.b16 %v2358
  %v2878 = vunpack.c.l.b16 %v2359
  %v2879 = vunpack.c.l.b16 %v2360
  %v2880 = vunpack.c.l.b16 %v2361
  %v2881 = vunpack.c.l.b16 %v2362
  %v2882 = vunpack.c.l.b16 %v2363
  %v2883 = vunpack.c.l.b16 %v2364
  %v2884 = vunpack.c.l.b16 %v2365
  %v2885 = vunpack.c.l.b16 %v2366
  %v2886 = vunpack.c.l.b16 %v2367
  %v2887 = vunpack.c.l.b16 %v2368
  %v2888 = vunpack.c.l.b16 %v2369
  %v2889 = vunpack.c.l.b16 %v2370
  %v2890 = vunpack.c.l.b16 %v2371
  %v2891 = vunpack.c.l.b16 %v2372
  %v2892 = vunpack.c.l.b16 %v2373
  %v2893 = vunpack.c.l.b16 %v2374
  %v2894 = vunpack.c.l.b16 %v2375
  %v2895 = vunpack.c.l.b16 %v2376
  %v2896 = vunpack.c.l.b16 %v2377
  %v2897 = vunpack.c.l.b16 %v2378
  %v2898 = vunpack.c.l.b16 %v2379
  %v2899 = vunpack.c.l.b16 %v2380
  %v2900 = vunpack.c.l.b16 %v2381
  %v2901 = vunpack.c.l.b16 %v2382
  %v2902 = vunpack.c.l.b16 %v2383
  %v2903 = vunpack.c.l.b16 %v2384
  %v2904 = vunpack.c.l.b16 %v2385
  %v2905 = vunpack.c.l.b16 %v2386
  %v2906 = vunpack.c.l.b16 %v2387
  %v2907 = vunpack.c.l.b16 %v2388
  %v2908 = vunpack.c.l.b16 %v2389
  %v2909 = vunpack.c.l.b16 %v2390
  %v2910 = vunpack.c.l.b16 %v2391
  %v2911 = vunpack.c.l.b16 %v2392
  %v2912 = vunpack.c.l.b16 %v2393
  %v2913 = vunpack.c.l.b16 %v2394
  %v2914 = vunpack.c.l.b16 %v2395
  %v2915 = vunpack.c.l.b16 %v2396
  %v2916 = vunpack.c.l.b16 %v2397
  %v2917 = vunpack.c.l.b16 %v2398
  %v2918 = vunpack.c.l.b16 %v2399
  %v2919 = vunpack.c.l.b16 %v2400
  %v2920 = vunpack.c.l.b16 %v2401
  %v2921 = vunpack.c.l.b16 %v2402
  %v2922 = vunpack.c.l.b16 %v2403
  %v2923 = vunpack.c.l.b16 %v2404
  %v2924 = vunpack.c.l.b16 %v2405
  %v2925 = vunpack.c.l.b16 %v2406
  %v2926 = vunpack.c.l.b16 %v2407
  %v2927 = vunpack.c.l.b16 %v2408
  %v2928 = vunpack.c.l.b16 %v2409
  %v2929 = vunpack.c.l.b16 %v2410
  %v2930 = vunpack.c.l.b16 %v2411
  %v2931 = vunpack.c.l.b16 %v2412
  %v2932 = vunpack.c.l.b16 %v2413
  %v2933 = vunpack.c.l.b16 %v2414
  %v2934 = vunpack.c.l.b16 %v2415
  %v2935 = vunpack.c.l.b16 %v2416
  %v2936 = vunpack.c.l.b16 %v2417
  %v2937 = vunpack.c.l.b16 %v2418
  %v2938 = vunpack.c.l.b16 %v2419
  %v2939 = vunpack.c.l.b16 %v2420
  %v2940 = vunpack.c.l.b16 %v2421
  %v2941 = vunpack.c.l.b16 %v2422
  %v2942 = vunpack.c.l.b16 %v2423
  %v2943 = vunpack.c.l.b16 %v2424
  %v2944 = vunpack.c.l.b16 %v2425
  %v2945 = vunpack.c.l.b16 %v2426
  %v2946 = vunpack.c.l.b16 %v2427
  %v2947 = vunpack.c.l.b16 %v2428
  %v2948 = vunpack.c.l.b16 %v2429
  %v2949 = vunpack.c.l.b16 %v2430
  %v2950 = vunpack.c.l.b16 %v2431
  %v2951 = vunpack.c.l.b16 %v2432
  %v2952 = vunpack.c.l.b16 %v2433
  %v2953 = vunpack.c.l.b16 %v2434
  %v2954 = vunpack.c.l.b16 %v2435
  %v2955 = vunpack.c.l.b16 %v2436
  %v2956 = vunpack.c.l.b16 %v2437
  %v2957 = vunpack.c.l.b16 %v2438
  %v2958 = vunpack.c.l.b16 %v2439
  %v2959 = vunpack.c.l.b16 %v2440
  %v2960 = vunpack.c.l.b16 %v2441
  %v2961 = vunpack.c.l.b16 %v2442
  %v2962 = vunpack.c.l.b16 %v2443
  %v2963 = vunpack.c.l.b16 %v2444
  %v2964 = vunpack.c.l.b16 %v2445
  %v2965 = vunpack.c.l.b16 %v2446
  %v2966 = vunpack.c.l.b16 %v2447
  %v2967 = vunpack.c.l.b16 %v2448
  %v2968 = vunpack.c.l.b16 %v2449
  %v2969 = vunpack.c.l.b16 %v2450
  %v2970 = vunpack.c.l.b16 %v2451
  %v2971 = vunpack.c.l.b16 %v2452
  %v2972 = vunpack.c.l.b16 %v2453
  %v2973 = vunpack.c.l.b16 %v2454
  %v2974 = vunpack.c.l.b16 %v2455
  %v2975 = vunpack.c.l.b16 %v2456
  %v2976 = vunpack.c.l.b16 %v2457
  %v2977 = vunpack.c.l.b16 %v2458
  %v2978 = vunpack.c.l.b16 %v2459
  %v2979 = vunpack.c.l.b16 %v2460
  %v2980 = vunpack.c.l.b16 %v2461
  %v2981 = vunpack.c.l.b16 %v2462
  %v2982 = vunpack.c.l.b16 %v2463
  %v2983 = vunpack.c.l.b16 %v2464
  %v2984 = vunpack.c.l.b16 %v2465
  %v2985 = vunpack.c.l.b16 %v2466
  %v2986 = vunpack.c.l.b16 %v2467
  %v2987 = vunpack.c.l.b16 %v2468
  %v2988 = vunpack.c.l.b16 %v2469
  %v2989 = vunpack.c.l.b16 %v2470
  %v2990 = vunpack.c.l.b16 %v2471
  %v2991 = vunpack.c.l.b16 %v2472
  %v2992 = vunpack.c.l.b16 %v2473
  %v2993 = vunpack.c.l.b16 %v2474
  %v2994 = vunpack.c.l.b16 %v2475
  %v2995 = vunpack.c.l.b16 %v2476
  %v2996 = vunpack.c.l.b16 %v2477
  %v2997 = vunpack.c.l.b16 %v2478
  %v2998 = vunpack.c.l.b16 %v2479
  %v2999 = vunpack.c.l.b16 %v2480
  %v3000 = vunpack.c.l.b16 %v2481
  %v3001 = vunpack.c.l.b16 %v2482
  %v3002 = vunpack.c.l.b16 %v2483
  %v3003 = vunpack.c.l.b16 %v2484
  %v3004 = vunpack.c.l.b16 %v2485
  %v3005 = vunpack.c.l.b16 %v2486
  %v3006 = vunpack.c.l.b16 %v2487
  %v3007 = vunpack.c.l.b16 %v2488
  %v3008 = vunpack.c.l.b16 %v2489
  %v3009 = vunpack.c.l.b16 %v2490
  %v3010 = vunpack.c.l.b16 %v2491
  %v3011 = vunpack.c.l.b16 %v2492
  %v3012 = vunpack.c.l.b16 %v2493
  %v3013 = vunpack.c.l.b16 %v2494
  %v3014 = vunpack.c.l.b16 %v2495
  %v3015 = vunpack.c.l.b16 %v2496
  %v3016 = vunpack.c.l.b16 %v2497
  %v3017 = vunpack.c.l.b16 %v2498
  %v3018 = vunpack.c.l.b16 %v2499
  %v3019 = vunpack.c.l.b16 %v2500
  %v3020 = vunpack.c.l.b16 %v2501
  %v3021 = vunpack.c.l.b16 %v2502
  %v3022 = vunpack.c.l.b16 %v2503
  %v3023 = vunpack.c.l.b16 %v2504
  %v3024 = vunpack.c.l.b16 %v2505
  %v3025 = vunpack.c.l.b16 %v2506
  %v3026 = vunpack.c.l.b16 %v2507
  %v3027 = vunpack.c.l.b16 %v2508
  %v3028 = vunpack.c.l.b16 %v2509
  %v3029 = vunpack.c.l.b16 %v2510
  %v3030 = vunpack.c.l.b16 %v2511
  %v3031 = vunpack.c.l.b16 %v2512
  %v3032 = vunpack.c.l.b16 %v2513
  %v3033 = vunpack.c.l.b16 %v2514
  %v3034 = vunpack.c.l.b16 %v2515
  %v3035 = vunpack.c.l.b16 %v2516
  %v3036 = vunpack.c.l.b16 %v2517
  %v3037 = vunpack.c.l.b16 %v2518
  %v3038 = vunpack.c.l.b16 %v2519
  %v3039 = vunpack.c.l.b16 %v2520
  %v3040 = vunpack.c.l.b16 %v2521
  %v3041 = vunpack.c.l.b16 %v2522
  %v3042 = vunpack.c.l.b16 %v2523
  %v3043 = vunpack.c.l.b16 %v2524
  %v3044 = vunpack.c.l.b16 %v2525
  %v3045 = vunpack.c.l.b16 %v2526
  %v3046 = vunpack.c.l.b16 %v2527
  %v3047 = vunpack.c.l.b16 %v2528
  %v3048 = vunpack.c.l.b16 %v2529
  %v3049 = vunpack.c.l.b16 %v2530
  %v3050 = vunpack.c.l.b16 %v2531
  %v3051 = vunpack.c.l.b16 %v2532
  %v3052 = vunpack.c.l.b16 %v2533
  %v3053 = vunpack.c.l.b16 %v2534
  %v3054 = vunpack.c.l.b16 %v2535
  %v3055 = vunpack.c.l.b16 %v2536
  %v3056 = vunpack.c.l.b16 %v2537
  %v3057 = vunpack.c.l.b16 %v2538
  %v3058 = vunpack.c.l.b16 %v2539
  %v3059 = vunpack.c.l.b16 %v2540
  %v3060 = vunpack.c.l.b16 %v2541
  %v3061 = vunpack.c.l.b16 %v2542
  %v3062 = vunpack.c.l.b16 %v2543
  %v3063 = vunpack.c.l.b16 %v2544
  %v3064 = vunpack.c.l.b16 %v2545
  %v3065 = vunpack.c.l.b16 %v2546
  %v3066 = vunpack.c.l.b16 %v2547
  %v3067 = vunpack.c.l.b16 %v2548
  %v3068 = vunpack.c.l.b16 %v2549
  %v3069 = vunpack.c.l.b16 %v2550
  %v3070 = vunpack.c.l.b16 %v2551
  %v3071 = vunpack.c.l.b16 %v2552
  %v3072 = vunpack.c.l.b16 %v2553
  %v3073 = vunpack.c.l.b16 %v2554
  %v3074 = vunpack.c.l.b16 %v2555
  %v3075 = vunpack.c.l.b16 %v2556
  %v3076 = vunpack.c.l.b16 %v2557
  %v3077 = vunpack.c.l.b16 %v2558
  %v3078 = vunpack.c.l.b16 %v2559
  %v3079 = vunpack.c.l.b16 %v2560
  %v3080 = vunpack.c.l.b16 %v2561
  %v3081 = vunpack.c.l.b16 %v2562
  %v3082 = vunpack.c.l.b16 %v2563
  %v3083 = vunpack.c.l.b16 %v2564
  %v3084 = vunpack.c.l.b16 %v2565
  %v3085 = vunpack.c.l.b16 %v2566
  %v3086 = vunpack.c.l.b16 %v2567
  %v3087 = vunpack.c.l.b16 %v2568
  %v3088 = vunpack.c.l.b16 %v2569
  %v3089 = vunpack.c.l.b16 %v2570
  %v3090 = vunpack.c.l.b16 %v2571
  %v3091 = vunpack.c.l.b16 %v2572
  %v3092 = vunpack.c.l.b16 %v2573
  %v3093 = vunpack.c.l.b16 %v2574
  %v3094 = vunpack.c.l.b16 %v2575
  %v3095 = vunpack.c.l.b16 %v2576
  %v3096 = vunpack.c.l.b16 %v2577
  %v3097 = vunpack.c.l.b16 %v2578
  %v3098 = vunpack.c.l.b16 %v2579
  %v3099 = vunpack.c.l.b16 %v2580
  %v3100 = vunpack.c.l.b16 %v2581
  %v3101 = vunpack.c.l.b16 %v2582
  %v3102 = vunpack.c.l.b16 %v2583
  %v3103 = vunpack.c.l.b16 %v2584
  %v3104 = vunpack.c.l.b16 %v2585
  %v3105 = vunpack.c.l.b16 %v2586
  %v3106 = vunpack.c.l.b16 %v2587
  %v3107 = vunpack.c.l.b16 %v2588
  %v3108 = vunpack.c.l.b16 %v2589
  %v3109 = vpack.c.b16 %v2854, %v2853
  %v3110 = vpack.c.b16 %v2856, %v2855
  %v3111 = vpack.c.b16 %v2858, %v2857
  %v3112 = vpack.c.b16 %v2860, %v2859
  %v3113 = vpack.c.b16 %v2862, %v2861
  %v3114 = vpack.c.b16 %v2864, %v2863
  %v3115 = vpack.c.b16 %v2866, %v2865
  %v3116 = vpack.c.b16 %v2868, %v2867
  %v3117 = vpack.c.b16 %v2870, %v2869
  %v3118 = vpack.c.b16 %v2872, %v2871
  %v3119 = vpack.c.b16 %v2874, %v2873
  %v3120 = vpack.c.b16 %v2876, %v2875
  %v3121 = vpack.c.b16 %v2878, %v2877
  %v3122 = vpack.c.b16 %v2880, %v2879
  %v3123 = vpack.c.b16 %v2882, %v2881
  %v3124 = vpack.c.b16 %v2884, %v2883
  %v3125 = vpack.c.b16 %v2886, %v2885
  %v3126 = vpack.c.b16 %v2888, %v2887
  %v3127 = vpack.c.b16 %v2890, %v2889
  %v3128 = vpack.c.b16 %v2892, %v2891
  %v3129 = vpack.c.b16 %v2894, %v2893
  %v3130 = vpack.c.b16 %v2896, %v2895
  %v3131 = vpack.c.b16 %v2898, %v2897
  %v3132 = vpack.c.b16 %v2900, %v2899
  %v3133 = vpack.c.b16 %v2902, %v2901
  %v3134 = vpack.c.b16 %v2904, %v2903
  %v3135 = vpack.c.b16 %v2906, %v2905
  %v3136 = vpack.c.b16 %v2908, %v2907
  %v3137 = vpack.c.b16 %v2910, %v2909
  %v3138 = vpack.c.b16 %v2912, %v2911
  %v3139 = vpack.c.b16 %v2914, %v2913
  %v3140 = vpack.c.b16 %v2916, %v2915
  %v3141 = vpack.c.b16 %v2918, %v2917
  %v3142 = vpack.c.b16 %v2920, %v2919
  %v3143 = vpack.c.b16 %v2922, %v2921
  %v3144 = vpack.c.b16 %v2924, %v2923
  %v3145 = vpack.c.b16 %v2926, %v2925
  %v3146 = vpack.c.b16 %v2928, %v2927
  %v3147 = vpack.c.b16 %v2930, %v2929
  %v3148 = vpack.c.b16 %v2932, %v2931
  %v3149 = vpack.c.b16 %v2934, %v2933
  %v3150 = vpack.c.b16 %v2936, %v2935
  %v3151 = vpack.c.b16 %v2938, %v2937
  %v3152 = vpack.c.b16 %v2940, %v2939
  %v3153 = vpack.c.b16 %v2942, %v2941
  %v3154 = vpack.c.b16 %v2944, %v2943
  %v3155 = vpack.c.b16 %v2946, %v2945
  %v3156 = vpack.c.b16 %v2948, %v2947
  %v3157 = vpack.c.b16 %v2950, %v2949
  %v3158 = vpack.c.b16 %v2952, %v2951
  %v3159 = vpack.c.b16 %v2954, %v2953
  %v3160 = vpack.c.b16 %v2956, %v2955
  %v3161 = vpack.c.b16 %v2958, %v2957
  %v3162 = vpack.c.b16 %v2960, %v2959
  %v3163 = vpack.c.b16 %v2962, %v2961
  %v3164 = vpack.c.b16 %v2964, %v2963
  %v3165 = vpack.c.b16 %v2966, %v2965
  %v3166 = vpack.c.b16 %v2968, %v2967
  %v3167 = vpack.c.b16 %v2970, %v2969
  %v3168 = vpack.c.b16 %v2972, %v2971
  %v3169 = vpack.c.b16 %v2974, %v2973
  %v3170 = vpack.c.b16 %v2976, %v2975
  %v3171 = vpack.c.b16 %v2978, %v2977
  %v3172 = vpack.c.b16 %v2980, %v2979
  %v3173 = vpack.c.b16 %v2982, %v2981
  %v3174 = vpack.c.b16 %v2984, %v2983
  %v3175 = vpack.c.b16 %v2986, %v2985
  %v3176 = vpack.c.b16 %v2988, %v2987
  %v3177 = vpack.c.b16 %v2990, %v2989
  %v3178 = vpack.c.b16 %v2992, %v2991
  %v3179 = vpack.c.b16 %v2994, %v2993
  %v3180 = vpack.c.b16 %v2996, %v2995
  %v3181 = vpack.c.b16 %v2998, %v2997
  %v3182 = vpack.c.b16 %v3000, %v2999
  %v3183 = vpack.c.b16 %v3002, %v3001
  %v3184 = vpack.c.b16 %v3004, %v3003
  %v3185 = vpack.c.b16 %v3006, %v3005
  %v3186 = vpack.c.b16 %v3008, %v3007
  %v3187 = vpack.c.b16 %v3010, %v3009
  %v3188 = vpack.c.b16 %v3012, %v3011
  %v3189 = vpack.c.b16 %v3014, %v3013
  %v3190 = vpack.c.b16 %v3016, %v3015
  %v3191 = vpack.c.b16 %v3018, %v3017
  %v3192 = vpack.c.b16 %v3020, %v3019
  %v3193 = vpack.c.b16 %v3022, %v3021
  %v3194 = vpack.c.b16 %v3024, %v3023
  %v3195 = vpack.c.b16 %v3026, %v3025
  %v3196 = vpack.c.b16 %v3028, %v3027
  %v3197 = vpack.c.b16 %v3030, %v3029
  %v3198 = vpack.c.b16 %v3032, %v3031
  %v3199 = vpack.c.b16 %v3034, %v3033
  %v3200 = vpack.c.b16 %v3036, %v3035
  %v3201 = vpack.c.b16 %v3038, %v3037
  %v3202 = vpack.c.b16 %v3040, %v3039
  %v3203 = vpack.c.b16 %v3042, %v3041
  %v3204 = vpack.c.b16 %v3044, %v3043
  %v3205 = vpack.c.b16 %v3046, %v3045
  %v3206 = vpack.c.b16 %v3048, %v3047
  %v3207 = vpack.c.b16 %v3050, %v3049
  %v3208 = vpack.c.b16 %v3052, %v3051
  %v3209 = vpack.c.b16 %v3054, %v3053
  %v3210 = vpack.c.b16 %v3056, %v3055
  %v3211 = vpack.c.b16 %v3058, %v3057
  %v3212 = vpack.c.b16 %v3060, %v3059
  %v3213 = vpack.c.b16 %v3062, %v3061
  %v3214 = vpack.c.b16 %v3064, %v3063
  %v3215 = vpack.c.b16 %v3066, %v3065
  %v3216 = vpack.c.b16 %v3068, %v3067
  %v3217 = vpack.c.b16 %v3070, %v3069
  %v3218 = vpack.c.b16 %v3072, %v3071
  %v3219 = vpack.c.b16 %v3074, %v3073
  %v3220 = vpack.c.b16 %v3076, %v3075
  %v3221 = vpack.c.b16 %v3078, %v3077
  %v3222 = vpack.c.b16 %v3080, %v3079
  %v3223 = vpack.c.b16 %v3082, %v3081
  %v3224 = vpack.c.b16 %v3084, %v3083
  %v3225 = vpack.c.b16 %v3086, %v3085
  %v3226 = vpack.c.b16 %v3088, %v3087
  %v3227 = vpack.c.b16 %v3090, %v3089
  %v3228 = vpack.c.b16 %v3092, %v3091
  %v3229 = vpack.c.b16 %v3094, %v3093
  %v3230 = vpack.c.b16 %v3096, %v3095
  %v3231 = vpack.c.b16 %v3098, %v3097
  %v3232 = vpack.c.b16 %v3100, %v3099
  %v3233 = vpack.c.b16 %v3102, %v3101
  %v3234 = vpack.c.b16 %v3104, %v3103
  %v3235 = vpack.c.b16 %v3106, %v3105
  %v3236 = vpack.c.b16 %v3108, %v3107
  %3365 = vmatprep.subr.bf16.mxu0 0
  %3366 = vmatpush1.bf16.msra.mxu0 %v3109
  %3367 = vmatprep.subr.bf16.mxu0 0
  %3368 = vmatpush1.bf16.msra.mxu0 %v3110
  %3369 = vmatprep.subr.bf16.mxu0 0
  %3370 = vmatpush1.bf16.msra.mxu0 %v3111
  %3371 = vmatprep.subr.bf16.mxu0 0
  %3372 = vmatpush1.bf16.msra.mxu0 %v3112
  %3373 = vmatprep.subr.bf16.mxu0 0
  %3374 = vmatpush1.bf16.msra.mxu0 %v3113
  %3375 = vmatprep.subr.bf16.mxu0 0
  %3376 = vmatpush1.bf16.msra.mxu0 %v3114
  %3377 = vmatprep.subr.bf16.mxu0 0
  %3378 = vmatpush1.bf16.msra.mxu0 %v3115
  %3379 = vmatprep.subr.bf16.mxu0 0
  %3380 = vmatpush1.bf16.msra.mxu0 %v3116
  %3381 = vmatprep.subr.bf16.mxu0 0
  %3382 = vmatpush1.bf16.msra.mxu0 %v3117
  %3383 = vmatprep.subr.bf16.mxu0 0
  %3384 = vmatpush1.bf16.msra.mxu0 %v3118
  %3385 = vmatprep.subr.bf16.mxu0 0
  %3386 = vmatpush1.bf16.msra.mxu0 %v3119
  %3387 = vmatprep.subr.bf16.mxu0 0
  %3388 = vmatpush1.bf16.msra.mxu0 %v3120
  %3389 = vmatprep.subr.bf16.mxu0 0
  %3390 = vmatpush1.bf16.msra.mxu0 %v3121
  %3391 = vmatprep.subr.bf16.mxu0 0
  %3392 = vmatpush1.bf16.msra.mxu0 %v3122
  %3393 = vmatprep.subr.bf16.mxu0 0
  %3394 = vmatpush1.bf16.msra.mxu0 %v3123
  %3395 = vmatprep.subr.bf16.mxu0 0
  %3396 = vmatpush1.bf16.msra.mxu0 %v3124
  %3397 = vmatprep.mubr.bf16.mxu0 %v2319
  %3398 = vmatmul.mubr.bf16.gmra.mrb[0].mxu0 %v2318
  %v3399 = vpop.f32.mrb[0].mxu0
  %v3400 = vadd.f32 %v2595, %v3399
  %v3401 = vpop.f32.mrb[0].mxu0
  %v3402 = vpop.f32.mrb[0].mxu0
  %v3403 = vadd.f32 %v2595, %v3402
  %v3404 = vpop.f32.mrb[0].mxu0
  %3405 = vdwg.mxu0
  %3406 = vmatprep.subr.bf16.mxu0 0
  %3407 = vmatpush1.bf16.msra.mxu0 %v3125
  %3408 = vmatprep.subr.bf16.mxu0 0
  %3409 = vmatpush1.bf16.msra.mxu0 %v3126
  %3410 = vmatprep.subr.bf16.mxu0 0
  %3411 = vmatpush1.bf16.msra.mxu0 %v3127
  %3412 = vmatprep.subr.bf16.mxu0 0
  %3413 = vmatpush1.bf16.msra.mxu0 %v3128
  %3414 = vmatprep.subr.bf16.mxu0 0
  %3415 = vmatpush1.bf16.msra.mxu0 %v3129
  %3416 = vmatprep.subr.bf16.mxu0 0
  %3417 = vmatpush1.bf16.msra.mxu0 %v3130
  %3418 = vmatprep.subr.bf16.mxu0 0
  %3419 = vmatpush1.bf16.msra.mxu0 %v3131
  %3420 = vmatprep.subr.bf16.mxu0 0
  %3421 = vmatpush1.bf16.msra.mxu0 %v3132
  %3422 = vmatprep.subr.bf16.mxu0 0
  %3423 = vmatpush1.bf16.msra.mxu0 %v3133
  %3424 = vmatprep.subr.bf16.mxu0 0
  %3425 = vmatpush1.bf16.msra.mxu0 %v3134
  %3426 = vmatprep.subr.bf16.mxu0 0
  %3427 = vmatpush1.bf16.msra.mxu0 %v3135
  %3428 = vmatprep.subr.bf16.mxu0 0
  %3429 = vmatpush1.bf16.msra.mxu0 %v3136
  %3430 = vmatprep.subr.bf16.mxu0 0
  %3431 = vmatpush1.bf16.msra.mxu0 %v3137
  %3432 = vmatprep.subr.bf16.mxu0 0
  %3433 = vmatpush1.bf16.msra.mxu0 %v3138
  %3434 = vmatprep.subr.bf16.mxu0 0
  %3435 = vmatpush1.bf16.msra.mxu0 %v3139
  %3436 = vmatprep.subr.bf16.mxu0 0
  %3437 = vmatpush1.bf16.msra.mxu0 %v3140
  %3438 = vmatprep.mubr.bf16.mxu0 %v2321
  %3439 = vmatmul.mubr.bf16.gmra.mrb[0].mxu0 %v2320
  %v3440 = vpop.f32.mrb[0].mxu0
  %v3441 = vadd.f32 %v3400, %v3440
  %v3442 = vpop.f32.mrb[0].mxu0
  %v3443 = vpop.f32.mrb[0].mxu0
  %v3444 = vadd.f32 %v3403, %v3443
  %v3445 = vpop.f32.mrb[0].mxu0
  %3446 = vdwg.mxu0
  %3447 = vmatprep.subr.bf16.mxu0 0
  %3448 = vmatpush1.bf16.msra.mxu0 %v3141
  %3449 = vmatprep.subr.bf16.mxu0 0
  %3450 = vmatpush1.bf16.msra.mxu0 %v3142
  %3451 = vmatprep.subr.bf16.mxu0 0
  %3452 = vmatpush1.bf16.msra.mxu0 %v3143
  %3453 = vmatprep.subr.bf16.mxu0 0
  %3454 = vmatpush1.bf16.msra.mxu0 %v3144
  %3455 = vmatprep.subr.bf16.mxu0 0
  %3456 = vmatpush1.bf16.msra.mxu0 %v3145
  %3457 = vmatprep.subr.bf16.mxu0 0
  %3458 = vmatpush1.bf16.msra.mxu0 %v3146
  %3459 = vmatprep.subr.bf16.mxu0 0
  %3460 = vmatpush1.bf16.msra.mxu0 %v3147
  %3461 = vmatprep.subr.bf16.mxu0 0
  %3462 = vmatpush1.bf16.msra.mxu0 %v3148
  %3463 = vmatprep.subr.bf16.mxu0 0
  %3464 = vmatpush1.bf16.msra.mxu0 %v3149
  %3465 = vmatprep.subr.bf16.mxu0 0
  %3466 = vmatpush1.bf16.msra.mxu0 %v3150
  %3467 = vmatprep.subr.bf16.mxu0 0
  %3468 = vmatpush1.bf16.msra.mxu0 %v3151
  %3469 = vmatprep.subr.bf16.mxu0 0
  %3470 = vmatpush1.bf16.msra.mxu0 %v3152
  %3471 = vmatprep.subr.bf16.mxu0 0
  %3472 = vmatpush1.bf16.msra.mxu0 %v3153
  %3473 = vmatprep.subr.bf16.mxu0 0
  %3474 = vmatpush1.bf16.msra.mxu0 %v3154
  %3475 = vmatprep.subr.bf16.mxu0 0
  %3476 = vmatpush1.bf16.msra.mxu0 %v3155
  %3477 = vmatprep.subr.bf16.mxu0 0
  %3478 = vmatpush1.bf16.msra.mxu0 %v3156
  %3479 = vmatprep.mubr.bf16.mxu0 %v2323
  %3480 = vmatmul.mubr.bf16.gmra.mrb[0].mxu0 %v2322
  %v3481 = vpop.f32.mrb[0].mxu0
  %v3482 = vadd.f32 %v3441, %v3481
  %v3483 = vpop.f32.mrb[0].mxu0
  %v3484 = vpop.f32.mrb[0].mxu0
  %v3485 = vadd.f32 %v3444, %v3484
  %v3486 = vpop.f32.mrb[0].mxu0
  %3487 = vdwg.mxu0
  %3488 = vmatprep.subr.bf16.mxu0 0
  %3489 = vmatpush1.bf16.msra.mxu0 %v3157
  %3490 = vmatprep.subr.bf16.mxu0 0
  %3491 = vmatpush1.bf16.msra.mxu0 %v3158
  %3492 = vmatprep.subr.bf16.mxu0 0
  %3493 = vmatpush1.bf16.msra.mxu0 %v3159
  %3494 = vmatprep.subr.bf16.mxu0 0
  %3495 = vmatpush1.bf16.msra.mxu0 %v3160
  %3496 = vmatprep.subr.bf16.mxu0 0
  %3497 = vmatpush1.bf16.msra.mxu0 %v3161
  %3498 = vmatprep.subr.bf16.mxu0 0
  %3499 = vmatpush1.bf16.msra.mxu0 %v3162
  %3500 = vmatprep.subr.bf16.mxu0 0
  %3501 = vmatpush1.bf16.msra.mxu0 %v3163
  %3502 = vmatprep.subr.bf16.mxu0 0
  %3503 = vmatpush1.bf16.msra.mxu0 %v3164
  %3504 = vmatprep.subr.bf16.mxu0 0
  %3505 = vmatpush1.bf16.msra.mxu0 %v3165
  %3506 = vmatprep.subr.bf16.mxu0 0
  %3507 = vmatpush1.bf16.msra.mxu0 %v3166
  %3508 = vmatprep.subr.bf16.mxu0 0
  %3509 = vmatpush1.bf16.msra.mxu0 %v3167
  %3510 = vmatprep.subr.bf16.mxu0 0
  %3511 = vmatpush1.bf16.msra.mxu0 %v3168
  %3512 = vmatprep.subr.bf16.mxu0 0
  %3513 = vmatpush1.bf16.msra.mxu0 %v3169
  %3514 = vmatprep.subr.bf16.mxu0 0
  %3515 = vmatpush1.bf16.msra.mxu0 %v3170
  %3516 = vmatprep.subr.bf16.mxu0 0
  %3517 = vmatpush1.bf16.msra.mxu0 %v3171
  %3518 = vmatprep.subr.bf16.mxu0 0
  %3519 = vmatpush1.bf16.msra.mxu0 %v3172
  %3520 = vmatprep.mubr.bf16.mxu0 %v2325
  %3521 = vmatmul.mubr.bf16.gmra.mrb[0].mxu0 %v2324
  %v3522 = vpop.f32.mrb[0].mxu0
  %v3523 = vadd.f32 %v3482, %v3522
  %v3524 = vpop.f32.mrb[0].mxu0
  %v3525 = vpop.f32.mrb[0].mxu0
  %v3526 = vadd.f32 %v3485, %v3525
  %v3527 = vpop.f32.mrb[0].mxu0
  %3528 = vdwg.mxu0
  %3529 = vmatprep.subr.bf16.mxu0 0
  %3530 = vmatpush1.bf16.msra.mxu0 %v3173
  %3531 = vmatprep.subr.bf16.mxu0 0
  %3532 = vmatpush1.bf16.msra.mxu0 %v3174
  %3533 = vmatprep.subr.bf16.mxu0 0
  %3534 = vmatpush1.bf16.msra.mxu0 %v3175
  %3535 = vmatprep.subr.bf16.mxu0 0
  %3536 = vmatpush1.bf16.msra.mxu0 %v3176
  %3537 = vmatprep.subr.bf16.mxu0 0
  %3538 = vmatpush1.bf16.msra.mxu0 %v3177
  %3539 = vmatprep.subr.bf16.mxu0 0
  %3540 = vmatpush1.bf16.msra.mxu0 %v3178
  %3541 = vmatprep.subr.bf16.mxu0 0
  %3542 = vmatpush1.bf16.msra.mxu0 %v3179
  %3543 = vmatprep.subr.bf16.mxu0 0
  %3544 = vmatpush1.bf16.msra.mxu0 %v3180
  %3545 = vmatprep.subr.bf16.mxu0 0
  %3546 = vmatpush1.bf16.msra.mxu0 %v3181
  %3547 = vmatprep.subr.bf16.mxu0 0
  %3548 = vmatpush1.bf16.msra.mxu0 %v3182
  %3549 = vmatprep.subr.bf16.mxu0 0
  %3550 = vmatpush1.bf16.msra.mxu0 %v3183
  %3551 = vmatprep.subr.bf16.mxu0 0
  %3552 = vmatpush1.bf16.msra.mxu0 %v3184
  %3553 = vmatprep.subr.bf16.mxu0 0
  %3554 = vmatpush1.bf16.msra.mxu0 %v3185
  %3555 = vmatprep.subr.bf16.mxu0 0
  %3556 = vmatpush1.bf16.msra.mxu0 %v3186
  %3557 = vmatprep.subr.bf16.mxu0 0
  %3558 = vmatpush1.bf16.msra.mxu0 %v3187
  %3559 = vmatprep.subr.bf16.mxu0 0
  %3560 = vmatpush1.bf16.msra.mxu0 %v3188
  %3561 = vmatprep.mubr.bf16.mxu0 %v2327
  %3562 = vmatmul.mubr.bf16.gmra.mrb[0].mxu0 %v2326
  %v3563 = vpop.f32.mrb[0].mxu0
  %v3564 = vadd.f32 %v3523, %v3563
  %v3565 = vpop.f32.mrb[0].mxu0
  %v3566 = vpop.f32.mrb[0].mxu0
  %v3567 = vadd.f32 %v3526, %v3566
  %v3568 = vpop.f32.mrb[0].mxu0
  %3569 = vdwg.mxu0
  %3570 = vmatprep.subr.bf16.mxu0 0
  %3571 = vmatpush1.bf16.msra.mxu0 %v3189
  %3572 = vmatprep.subr.bf16.mxu0 0
  %3573 = vmatpush1.bf16.msra.mxu0 %v3190
  %3574 = vmatprep.subr.bf16.mxu0 0
  %3575 = vmatpush1.bf16.msra.mxu0 %v3191
  %3576 = vmatprep.subr.bf16.mxu0 0
  %3577 = vmatpush1.bf16.msra.mxu0 %v3192
  %3578 = vmatprep.subr.bf16.mxu0 0
  %3579 = vmatpush1.bf16.msra.mxu0 %v3193
  %3580 = vmatprep.subr.bf16.mxu0 0
  %3581 = vmatpush1.bf16.msra.mxu0 %v3194
  %3582 = vmatprep.subr.bf16.mxu0 0
  %3583 = vmatpush1.bf16.msra.mxu0 %v3195
  %3584 = vmatprep.subr.bf16.mxu0 0
  %3585 = vmatpush1.bf16.msra.mxu0 %v3196
  %3586 = vmatprep.subr.bf16.mxu0 0
  %3587 = vmatpush1.bf16.msra.mxu0 %v3197
  %3588 = vmatprep.subr.bf16.mxu0 0
  %3589 = vmatpush1.bf16.msra.mxu0 %v3198
  %3590 = vmatprep.subr.bf16.mxu0 0
  %3591 = vmatpush1.bf16.msra.mxu0 %v3199
  %3592 = vmatprep.subr.bf16.mxu0 0
  %3593 = vmatpush1.bf16.msra.mxu0 %v3200
  %3594 = vmatprep.subr.bf16.mxu0 0
  %3595 = vmatpush1.bf16.msra.mxu0 %v3201
  %3596 = vmatprep.subr.bf16.mxu0 0
  %3597 = vmatpush1.bf16.msra.mxu0 %v3202
  %3598 = vmatprep.subr.bf16.mxu0 0
  %3599 = vmatpush1.bf16.msra.mxu0 %v3203
  %3600 = vmatprep.subr.bf16.mxu0 0
  %3601 = vmatpush1.bf16.msra.mxu0 %v3204
  %3602 = vmatprep.mubr.bf16.mxu0 %v2329
  %3603 = vmatmul.mubr.bf16.gmra.mrb[0].mxu0 %v2328
  %v3604 = vpop.f32.mrb[0].mxu0
  %v3605 = vadd.f32 %v3564, %v3604
  %v3606 = vpop.f32.mrb[0].mxu0
  %v3607 = vpop.f32.mrb[0].mxu0
  %v3608 = vadd.f32 %v3567, %v3607
  %v3609 = vpop.f32.mrb[0].mxu0
  %3610 = vdwg.mxu0
  %3611 = vmatprep.subr.bf16.mxu0 0
  %3612 = vmatpush1.bf16.msra.mxu0 %v3205
  %3613 = vmatprep.subr.bf16.mxu0 0
  %3614 = vmatpush1.bf16.msra.mxu0 %v3206
  %3615 = vmatprep.subr.bf16.mxu0 0
  %3616 = vmatpush1.bf16.msra.mxu0 %v3207
  %3617 = vmatprep.subr.bf16.mxu0 0
  %3618 = vmatpush1.bf16.msra.mxu0 %v3208
  %3619 = vmatprep.subr.bf16.mxu0 0
  %3620 = vmatpush1.bf16.msra.mxu0 %v3209
  %3621 = vmatprep.subr.bf16.mxu0 0
  %3622 = vmatpush1.bf16.msra.mxu0 %v3210
  %3623 = vmatprep.subr.bf16.mxu0 0
  %3624 = vmatpush1.bf16.msra.mxu0 %v3211
  %3625 = vmatprep.subr.bf16.mxu0 0
  %3626 = vmatpush1.bf16.msra.mxu0 %v3212
  %3627 = vmatprep.subr.bf16.mxu0 0
  %3628 = vmatpush1.bf16.msra.mxu0 %v3213
  %3629 = vmatprep.subr.bf16.mxu0 0
  %3630 = vmatpush1.bf16.msra.mxu0 %v3214
  %3631 = vmatprep.subr.bf16.mxu0 0
  %3632 = vmatpush1.bf16.msra.mxu0 %v3215
  %3633 = vmatprep.subr.bf16.mxu0 0
  %3634 = vmatpush1.bf16.msra.mxu0 %v3216
  %3635 = vmatprep.subr.bf16.mxu0 0
  %3636 = vmatpush1.bf16.msra.mxu0 %v3217
  %3637 = vmatprep.subr.bf16.mxu0 0
  %3638 = vmatpush1.bf16.msra.mxu0 %v3218
  %3639 = vmatprep.subr.bf16.mxu0 0
  %3640 = vmatpush1.bf16.msra.mxu0 %v3219
  %3641 = vmatprep.subr.bf16.mxu0 0
  %3642 = vmatpush1.bf16.msra.mxu0 %v3220
  %3643 = vmatprep.mubr.bf16.mxu0 %v2331
  %3644 = vmatmul.mubr.bf16.gmra.mrb[0].mxu0 %v2330
  %v3645 = vpop.f32.mrb[0].mxu0
  %v3646 = vadd.f32 %v3605, %v3645
  %v3647 = vpop.f32.mrb[0].mxu0
  %v3648 = vpop.f32.mrb[0].mxu0
  %v3649 = vadd.f32 %v3608, %v3648
  %v3650 = vpop.f32.mrb[0].mxu0
  %3651 = vdwg.mxu0
  %3652 = vmatprep.subr.bf16.mxu0 0
  %3653 = vmatpush1.bf16.msra.mxu0 %v3221
  %3654 = vmatprep.subr.bf16.mxu0 0
  %3655 = vmatpush1.bf16.msra.mxu0 %v3222
  %3656 = vmatprep.subr.bf16.mxu0 0
  %3657 = vmatpush1.bf16.msra.mxu0 %v3223
  %3658 = vmatprep.subr.bf16.mxu0 0
  %3659 = vmatpush1.bf16.msra.mxu0 %v3224
  %3660 = vmatprep.subr.bf16.mxu0 0
  %3661 = vmatpush1.bf16.msra.mxu0 %v3225
  %3662 = vmatprep.subr.bf16.mxu0 0
  %3663 = vmatpush1.bf16.msra.mxu0 %v3226
  %3664 = vmatprep.subr.bf16.mxu0 0
  %3665 = vmatpush1.bf16.msra.mxu0 %v3227
  %3666 = vmatprep.subr.bf16.mxu0 0
  %3667 = vmatpush1.bf16.msra.mxu0 %v3228
  %3668 = vmatprep.subr.bf16.mxu0 0
  %3669 = vmatpush1.bf16.msra.mxu0 %v3229
  %3670 = vmatprep.subr.bf16.mxu0 0
  %3671 = vmatpush1.bf16.msra.mxu0 %v3230
  %3672 = vmatprep.subr.bf16.mxu0 0
  %3673 = vmatpush1.bf16.msra.mxu0 %v3231
  %3674 = vmatprep.subr.bf16.mxu0 0
  %3675 = vmatpush1.bf16.msra.mxu0 %v3232
  %3676 = vmatprep.subr.bf16.mxu0 0
  %3677 = vmatpush1.bf16.msra.mxu0 %v3233
  %3678 = vmatprep.subr.bf16.mxu0 0
  %3679 = vmatpush1.bf16.msra.mxu0 %v3234
  %3680 = vmatprep.subr.bf16.mxu0 0
  %3681 = vmatpush1.bf16.msra.mxu0 %v3235
  %3682 = vmatprep.subr.bf16.mxu0 0
  %3683 = vmatpush1.bf16.msra.mxu0 %v3236
  %3684 = vmatprep.mubr.bf16.mxu0 %v2333
  %3685 = vmatmul.mubr.bf16.gmra.mrb[0].mxu0 %v2332
  %v3686 = vpop.f32.mrb[0].mxu0
  %v3687 = vadd.f32 %v3646, %v3686
  %v3688 = vpop.f32.mrb[0].mxu0
  %v3689 = vpop.f32.mrb[0].mxu0
  %v3690 = vadd.f32 %v3649, %v3689
  %v3691 = vpop.f32.mrb[0].mxu0
  %3692 = vdwg.mxu0
  %v3693 = vadd.f32 %v1660, %v3687
  %v3694 = vadd.f32 %v1661, %v3690
  %v3695 = vld [vmem:[%s13] sm:$0x1]
  %v3696 = vld [vmem:[%s14] sm:$0x1]
  %v3697 = vsel %vm143, %v3693, 0.0
  %3698 = vadd.xlane.f32.xlu0 %v3697
  %v3699 = vpop.xlane.xlu0 %3698
  %v3700 = vsel %vm143, %v3694, 0.0
  %3701 = vadd.xlane.f32.xlu0 %v3700
  %v3702 = vpop.xlane.xlu0 %3701
  %v3703 = vmul.f32 %v3699, %v1625
  %v3704 = vmul.f32 %v3702, %v1625
  %v3705 = vsub.f32 %v3693, %v3703
  %v3706 = vsub.f32 %v3694, %v3704
  %v3707 = vmul.f32 %v3705, %v3705
  %v3708 = vmul.f32 %v3706, %v3706
  %v3709 = vsel %vm143, %v3707, 0.0
  %3710 = vadd.xlane.f32.xlu0 %v3709
  %v3711 = vpop.xlane.xlu0 %3710
  %v3712 = vsel %vm143, %v3708, 0.0
  %3713 = vadd.xlane.f32.xlu0 %v3712
  %v3714 = vpop.xlane.xlu0 %3713
  %v3715 = vmul.f32 %v3711, %v1625
  %v3716 = vmul.f32 %v3714, %v1625
  %v3717 = vadd.f32 %v3715, 1e-05
  %v3718 = vadd.f32 %v3716, 1e-05
  %v3719 = vrsqrt.pop %v3717
  %v3720 = vrsqrt.pop %v3718
  %v3721 = vmul.f32 %v3705, %v3719
  %v3722 = vmul.f32 %v3706, %v3720
  %v3724 = vlaneseq
  %v3725 = vshrl.u32 %v3724, 7
  %v3726 = vsub.s32 0, %v3725
  %v3727 = vrot.slane %v3695, %v3726
  %v3729 = vmul.f32 %v3721, %v3727
  %v3730 = vmul.f32 %v3722, %v3727
  %v3732 = vlaneseq
  %v3733 = vshrl.u32 %v3732, 7
  %v3734 = vsub.s32 0, %v3733
  %v3735 = vrot.slane %v3696, %v3734
  %v3737 = vadd.f32 %v3729, %v3735
  %v3738 = vadd.f32 %v3730, %v3735
  %v3739 = vpack.c.bf16 %v3738, %v3737
  %s3740 = scalar_lea.vmem %s3, 16
  %v3741 = vld [vmem:[%s3740] sm:$0xf]
  %v3742 = vld [vmem:[%s3740 + $0x4] sm:$0xf]
  %v3743 = vld [vmem:[%s3740 + $0x8] sm:$0xf]
  %v3744 = vld [vmem:[%s3740 + $0xc] sm:$0xf]
  %s3745 = scalar_lea.vmem %s4, 1
  %v3746 = vld [vmem:[%s3745] sm:$0x1]
  %v3748 = vlaneseq
  %v3749 = vshrl.u32 %v3748, 7
  %v3750 = vsub.s32 0, %v3749
  %v3751 = vrot.slane %v3746, %v3750
  %v3757 = vunpack.c.l.b16 %v3741
  %v3758 = vunpack.c.l.b16 %v3742
  %v3759 = vunpack.c.l.b16 %v3743
  %v3760 = vunpack.c.l.b16 %v3744
  %v3761 = vpack.c.b16 %v3758, %v3757
  %v3762 = vpack.c.b16 %v3760, %v3759
  %v3766 = vsel %vm143, %v3739, 0
  %3768 = vmatprep.subr.bf16.mxu0 0
  %3769 = vmatpush1.bf16.msra.mxu0 %v3761
  %3770 = vmatprep.subr.bf16.mxu0 0
  %3771 = vmatpush1.bf16.msra.mxu0 %v3762
  %3772 = vmatprep.subr.bf16.mxu0 0
  %3773 = vmatpush1.bf16.msra.mxu0 0
  %3774 = vmatprep.subr.bf16.mxu0 0
  %3775 = vmatpush1.bf16.msra.mxu0 0
  %3776 = vmatprep.subr.bf16.mxu0 0
  %3777 = vmatpush1.bf16.msra.mxu0 0
  %3778 = vmatprep.subr.bf16.mxu0 0
  %3779 = vmatpush1.bf16.msra.mxu0 0
  %3780 = vmatprep.subr.bf16.mxu0 0
  %3781 = vmatpush1.bf16.msra.mxu0 0
  %3782 = vmatprep.subr.bf16.mxu0 0
  %3783 = vmatpush1.bf16.msra.mxu0 0
  %3784 = vmatprep.subr.bf16.mxu0 0
  %3785 = vmatpush1.bf16.msra.mxu0 0
  %3786 = vmatprep.subr.bf16.mxu0 0
  %3787 = vmatpush1.bf16.msra.mxu0 0
  %3788 = vmatprep.subr.bf16.mxu0 0
  %3789 = vmatpush1.bf16.msra.mxu0 0
  %3790 = vmatprep.subr.bf16.mxu0 0
  %3791 = vmatpush1.bf16.msra.mxu0 0
  %3792 = vmatprep.subr.bf16.mxu0 0
  %3793 = vmatpush1.bf16.msra.mxu0 0
  %3794 = vmatprep.subr.bf16.mxu0 0
  %3795 = vmatpush1.bf16.msra.mxu0 0
  %3796 = vmatprep.subr.bf16.mxu0 0
  %3797 = vmatpush1.bf16.msra.mxu0 0
  %3798 = vmatprep.subr.bf16.mxu0 0
  %3799 = vmatpush1.bf16.msra.mxu0 0
  %3800 = vmatprep.mubr.bf16.mxu0 0
  %3801 = vmatmul.mubr.bf16.gmra.mrb[0].mxu0 %v3766
  %v3802 = vpop.f32.mrb[0].mxu0
  %v3803 = vadd.f32 %v3751, %v3802
  %v3804 = vpop.f32.mrb[0].mxu0
  %v3805 = vpop.f32.mrb[0].mxu0
  %v3806 = vadd.f32 %v3751, %v3805
  %v3807 = vpop.f32.mrb[0].mxu0
  %3808 = vdwg.mxu0
  %3810 = vrot.lane.b32.xlu0 %v3803, 96
  %v3811 = vpop.permute.xlu0 %3810
  %v3812 = vsel %vm191, %v3803, 0
  %v3814 = vsel %vm191, %v3811, 0
  %3816 = vmatprep.subr.mxu0 0.0
  %3817 = vmatpush1.xpose.msra.mxu0 %v3814
  %3818 = vmatprep.subr.mxu0 0.0
  %3819 = vmatpush1.xpose.msra.mxu0 0.0
  %3820 = vmatprep.subr.mxu0 0.0
  %3821 = vmatpush1.xpose.msra.mxu0 0.0
  %3822 = vmatprep.subr.mxu0 0.0
  %3823 = vmatpush1.xpose.msra.mxu0 0.0
  %3824 = vmatprep.subr.mxu0 0.0
  %3825 = vmatpush1.xpose.msra.mxu0 0.0
  %3826 = vmatprep.subr.mxu0 0.0
  %3827 = vmatpush1.xpose.msra.mxu0 0.0
  %3828 = vmatprep.subr.mxu0 0.0
  %3829 = vmatpush1.xpose.msra.mxu0 0.0
  %3830 = vmatprep.subr.mxu0 0.0
  %3831 = vmatpush1.xpose.msra.mxu0 0.0
  %3832 = vmatprep.subr.mxu0 0.0
  %3833 = vmatpush1.xpose.msra.mxu0 0.0
  %3834 = vmatprep.subr.mxu0 0.0
  %3835 = vmatpush1.xpose.msra.mxu0 0.0
  %3836 = vmatprep.subr.mxu0 0.0
  %3837 = vmatpush1.xpose.msra.mxu0 0.0
  %3838 = vmatprep.subr.mxu0 0.0
  %3839 = vmatpush1.xpose.msra.mxu0 0.0
  %3840 = vmatprep.subr.mxu0 0.0
  %3841 = vmatpush1.xpose.msra.mxu0 0.0
  %3842 = vmatprep.subr.mxu0 0.0
  %3843 = vmatpush1.xpose.msra.mxu0 0.0
  %3844 = vmatprep.subr.mxu0 0.0
  %3845 = vmatpush1.xpose.msra.mxu0 0.0
  %3846 = vmatprep.subr.mxu0 0.0
  %3847 = vmatpush1.xpose.msra.mxu0 0.0
  %3848 = vmatprep.subr.mxu0 0.0
  %3849 = vmatpush1.xpose.msra.mxu0 0.0
  %3850 = vmatprep.subr.mxu0 0.0
  %3851 = vmatpush1.xpose.msra.mxu0 0.0
  %3852 = vmatprep.subr.mxu0 0.0
  %3853 = vmatpush1.xpose.msra.mxu0 0.0
  %3854 = vmatprep.subr.mxu0 0.0
  %3855 = vmatpush1.xpose.msra.mxu0 0.0
  %3856 = vmatprep.subr.mxu0 0.0
  %3857 = vmatpush1.xpose.msra.mxu0 0.0
  %3858 = vmatprep.subr.mxu0 0.0
  %3859 = vmatpush1.xpose.msra.mxu0 0.0
  %3860 = vmatprep.subr.mxu0 0.0
  %3861 = vmatpush1.xpose.msra.mxu0 0.0
  %3862 = vmatprep.subr.mxu0 0.0
  %3863 = vmatpush1.xpose.msra.mxu0 0.0
  %3864 = vmatprep.subr.mxu0 0.0
  %3865 = vmatpush1.xpose.msra.mxu0 0.0
  %3866 = vmatprep.subr.mxu0 0.0
  %3867 = vmatpush1.xpose.msra.mxu0 0.0
  %3868 = vmatprep.subr.mxu0 0.0
  %3869 = vmatpush1.xpose.msra.mxu0 0.0
  %3870 = vmatprep.subr.mxu0 0.0
  %3871 = vmatpush1.xpose.msra.mxu0 0.0
  %3872 = vmatprep.subr.mxu0 0.0
  %3873 = vmatpush1.xpose.msra.mxu0 0.0
  %3874 = vmatprep.subr.mxu0 0.0
  %3875 = vmatpush1.xpose.msra.mxu0 0.0
  %3876 = vmatprep.subr.mxu0 0.0
  %3877 = vmatpush1.xpose.msra.mxu0 0.0
  %3878 = vmatprep.subr.mxu0 0.0
  %3879 = vmatpush1.xpose.msra.mxu0 0.0
  %3880 = vmatprep.mubr.f32.mxu0 0.0
  %3881 = vmatmul.mubr.f32.gmra.mrb[0].mxu0 %v3812
  %v3882 = vpop.f32.mrb[0].mxu0
  %v3883 = vadd.f32 0.0, %v3882
  %v3884 = vpop.f32.mrb[0].mxu0
  %3885 = vdwg.mxu0
  %3887 = vrot.lane.b32.xlu0 %v3806, 96
  %v3888 = vpop.permute.xlu0 %3887
  %v3889 = vsel %vm191, %v3806, 0
  %v3891 = vsel %vm191, %v3888, 0
  %3893 = vmatprep.subr.mxu0 0.0
  %3894 = vmatpush1.xpose.msra.mxu0 %v3891
  %3895 = vmatprep.subr.mxu0 0.0
  %3896 = vmatpush1.xpose.msra.mxu0 0.0
  %3897 = vmatprep.subr.mxu0 0.0
  %3898 = vmatpush1.xpose.msra.mxu0 0.0
  %3899 = vmatprep.subr.mxu0 0.0
  %3900 = vmatpush1.xpose.msra.mxu0 0.0
  %3901 = vmatprep.subr.mxu0 0.0
  %3902 = vmatpush1.xpose.msra.mxu0 0.0
  %3903 = vmatprep.subr.mxu0 0.0
  %3904 = vmatpush1.xpose.msra.mxu0 0.0
  %3905 = vmatprep.subr.mxu0 0.0
  %3906 = vmatpush1.xpose.msra.mxu0 0.0
  %3907 = vmatprep.subr.mxu0 0.0
  %3908 = vmatpush1.xpose.msra.mxu0 0.0
  %3909 = vmatprep.subr.mxu0 0.0
  %3910 = vmatpush1.xpose.msra.mxu0 0.0
  %3911 = vmatprep.subr.mxu0 0.0
  %3912 = vmatpush1.xpose.msra.mxu0 0.0
  %3913 = vmatprep.subr.mxu0 0.0
  %3914 = vmatpush1.xpose.msra.mxu0 0.0
  %3915 = vmatprep.subr.mxu0 0.0
  %3916 = vmatpush1.xpose.msra.mxu0 0.0
  %3917 = vmatprep.subr.mxu0 0.0
  %3918 = vmatpush1.xpose.msra.mxu0 0.0
  %3919 = vmatprep.subr.mxu0 0.0
  %3920 = vmatpush1.xpose.msra.mxu0 0.0
  %3921 = vmatprep.subr.mxu0 0.0
  %3922 = vmatpush1.xpose.msra.mxu0 0.0
  %3923 = vmatprep.subr.mxu0 0.0
  %3924 = vmatpush1.xpose.msra.mxu0 0.0
  %3925 = vmatprep.subr.mxu0 0.0
  %3926 = vmatpush1.xpose.msra.mxu0 0.0
  %3927 = vmatprep.subr.mxu0 0.0
  %3928 = vmatpush1.xpose.msra.mxu0 0.0
  %3929 = vmatprep.subr.mxu0 0.0
  %3930 = vmatpush1.xpose.msra.mxu0 0.0
  %3931 = vmatprep.subr.mxu0 0.0
  %3932 = vmatpush1.xpose.msra.mxu0 0.0
  %3933 = vmatprep.subr.mxu0 0.0
  %3934 = vmatpush1.xpose.msra.mxu0 0.0
  %3935 = vmatprep.subr.mxu0 0.0
  %3936 = vmatpush1.xpose.msra.mxu0 0.0
  %3937 = vmatprep.subr.mxu0 0.0
  %3938 = vmatpush1.xpose.msra.mxu0 0.0
  %3939 = vmatprep.subr.mxu0 0.0
  %3940 = vmatpush1.xpose.msra.mxu0 0.0
  %3941 = vmatprep.subr.mxu0 0.0
  %3942 = vmatpush1.xpose.msra.mxu0 0.0
  %3943 = vmatprep.subr.mxu0 0.0
  %3944 = vmatpush1.xpose.msra.mxu0 0.0
  %3945 = vmatprep.subr.mxu0 0.0
  %3946 = vmatpush1.xpose.msra.mxu0 0.0
  %3947 = vmatprep.subr.mxu0 0.0
  %3948 = vmatpush1.xpose.msra.mxu0 0.0
  %3949 = vmatprep.subr.mxu0 0.0
  %3950 = vmatpush1.xpose.msra.mxu0 0.0
  %3951 = vmatprep.subr.mxu0 0.0
  %3952 = vmatpush1.xpose.msra.mxu0 0.0
  %3953 = vmatprep.subr.mxu0 0.0
  %3954 = vmatpush1.xpose.msra.mxu0 0.0
  %3955 = vmatprep.subr.mxu0 0.0
  %3956 = vmatpush1.xpose.msra.mxu0 0.0
  %3957 = vmatprep.mubr.f32.mxu0 0.0
  %3958 = vmatmul.mubr.f32.gmra.mrb[0].mxu0 %v3889
  %v3959 = vpop.f32.mrb[0].mxu0
  %v3960 = vadd.f32 0.0, %v3959
  %v3961 = vpop.f32.mrb[0].mxu0
  %3962 = vdwg.mxu0
  %v3963 = vmul.f32 %v3883, 0.35355338
  %v3964 = vmul.f32 %v3960, 0.35355338
  %v3965 = vsel %vm191, %v3963, -inf
  %3966 = vmax.xlane.f32.xlu0 %v3965
  %v3967 = vpop.xlane.xlu0 %3966
  %v3968 = vsel %vm191, %v3964, -inf
  %3969 = vmax.xlane.f32.xlu0 %v3968
  %v3970 = vpop.xlane.xlu0 %3969
  %v3971 = vsub.f32 %v3963, %v3967
  %v3972 = vsub.f32 %v3964, %v3970
  %v3973 = vmul.f32 %v3971, 1.442695
  %v3974 = vpow.pop %v3973
  %v3975 = vmul.f32 %v3972, 1.442695
  %v3976 = vpow.pop %v3975
  %v3977 = vsel %vm191, %v3974, 0.0
  %3978 = vadd.xlane.f32.xlu0 %v3977
  %v3979 = vpop.xlane.xlu0 %3978
  %v3980 = vsel %vm191, %v3976, 0.0
  %3981 = vadd.xlane.f32.xlu0 %v3980
  %v3982 = vpop.xlane.xlu0 %3981
  %v3983 = vrcp.pop %v3979
  %v3984 = vrcp.pop %v3982
  %v3985 = vmul.f32 %v3974, %v3983
  %v3986 = vmul.f32 %v3976, %v3984
  %3987 = vrot.lane.b32.xlu0 %v3803, 64
  %v3988 = vpop.permute.xlu0 %3987
  %v3991 = vsel %vm191, %v3985, 0
  %3993 = vmatprep.subr.mxu0 0.0
  %3994 = vmatpush1.msra.mxu0 %v3988
  %3995 = vmatprep.subr.mxu0 0.0
  %3996 = vmatpush1.msra.mxu0 0.0
  %3997 = vmatprep.subr.mxu0 0.0
  %3998 = vmatpush1.msra.mxu0 0.0
  %3999 = vmatprep.subr.mxu0 0.0
  %4000 = vmatpush1.msra.mxu0 0.0
  %4001 = vmatprep.subr.mxu0 0.0
  %4002 = vmatpush1.msra.mxu0 0.0
  %4003 = vmatprep.subr.mxu0 0.0
  %4004 = vmatpush1.msra.mxu0 0.0
  %4005 = vmatprep.subr.mxu0 0.0
  %4006 = vmatpush1.msra.mxu0 0.0
  %4007 = vmatprep.subr.mxu0 0.0
  %4008 = vmatpush1.msra.mxu0 0.0
  %4009 = vmatprep.subr.mxu0 0.0
  %4010 = vmatpush1.msra.mxu0 0.0
  %4011 = vmatprep.subr.mxu0 0.0
  %4012 = vmatpush1.msra.mxu0 0.0
  %4013 = vmatprep.subr.mxu0 0.0
  %4014 = vmatpush1.msra.mxu0 0.0
  %4015 = vmatprep.subr.mxu0 0.0
  %4016 = vmatpush1.msra.mxu0 0.0
  %4017 = vmatprep.subr.mxu0 0.0
  %4018 = vmatpush1.msra.mxu0 0.0
  %4019 = vmatprep.subr.mxu0 0.0
  %4020 = vmatpush1.msra.mxu0 0.0
  %4021 = vmatprep.subr.mxu0 0.0
  %4022 = vmatpush1.msra.mxu0 0.0
  %4023 = vmatprep.subr.mxu0 0.0
  %4024 = vmatpush1.msra.mxu0 0.0
  %4025 = vmatprep.subr.mxu0 0.0
  %4026 = vmatpush1.msra.mxu0 0.0
  %4027 = vmatprep.subr.mxu0 0.0
  %4028 = vmatpush1.msra.mxu0 0.0
  %4029 = vmatprep.subr.mxu0 0.0
  %4030 = vmatpush1.msra.mxu0 0.0
  %4031 = vmatprep.subr.mxu0 0.0
  %4032 = vmatpush1.msra.mxu0 0.0
  %4033 = vmatprep.subr.mxu0 0.0
  %4034 = vmatpush1.msra.mxu0 0.0
  %4035 = vmatprep.subr.mxu0 0.0
  %4036 = vmatpush1.msra.mxu0 0.0
  %4037 = vmatprep.subr.mxu0 0.0
  %4038 = vmatpush1.msra.mxu0 0.0
  %4039 = vmatprep.subr.mxu0 0.0
  %4040 = vmatpush1.msra.mxu0 0.0
  %4041 = vmatprep.subr.mxu0 0.0
  %4042 = vmatpush1.msra.mxu0 0.0
  %4043 = vmatprep.subr.mxu0 0.0
  %4044 = vmatpush1.msra.mxu0 0.0
  %4045 = vmatprep.subr.mxu0 0.0
  %4046 = vmatpush1.msra.mxu0 0.0
  %4047 = vmatprep.subr.mxu0 0.0
  %4048 = vmatpush1.msra.mxu0 0.0
  %4049 = vmatprep.subr.mxu0 0.0
  %4050 = vmatpush1.msra.mxu0 0.0
  %4051 = vmatprep.subr.mxu0 0.0
  %4052 = vmatpush1.msra.mxu0 0.0
  %4053 = vmatprep.subr.mxu0 0.0
  %4054 = vmatpush1.msra.mxu0 0.0
  %4055 = vmatprep.subr.mxu0 0.0
  %4056 = vmatpush1.msra.mxu0 0.0
  %4057 = vmatprep.mubr.f32.mxu0 0.0
  %4058 = vmatmul.mubr.f32.gmra.mrb[0].mxu0 %v3991
  %v4059 = vpop.f32.mrb[0].mxu0
  %v4060 = vadd.f32 0.0, %v4059
  %v4061 = vpop.f32.mrb[0].mxu0
  %4062 = vdwg.mxu0
  %4063 = vrot.lane.b32.xlu0 %v3806, 64
  %v4064 = vpop.permute.xlu0 %4063
  %v4067 = vsel %vm191, %v3986, 0
  %4069 = vmatprep.subr.mxu0 0.0
  %4070 = vmatpush1.msra.mxu0 %v4064
  %4071 = vmatprep.subr.mxu0 0.0
  %4072 = vmatpush1.msra.mxu0 0.0
  %4073 = vmatprep.subr.mxu0 0.0
  %4074 = vmatpush1.msra.mxu0 0.0
  %4075 = vmatprep.subr.mxu0 0.0
  %4076 = vmatpush1.msra.mxu0 0.0
  %4077 = vmatprep.subr.mxu0 0.0
  %4078 = vmatpush1.msra.mxu0 0.0
  %4079 = vmatprep.subr.mxu0 0.0
  %4080 = vmatpush1.msra.mxu0 0.0
  %4081 = vmatprep.subr.mxu0 0.0
  %4082 = vmatpush1.msra.mxu0 0.0
  %4083 = vmatprep.subr.mxu0 0.0
  %4084 = vmatpush1.msra.mxu0 0.0
  %4085 = vmatprep.subr.mxu0 0.0
  %4086 = vmatpush1.msra.mxu0 0.0
  %4087 = vmatprep.subr.mxu0 0.0
  %4088 = vmatpush1.msra.mxu0 0.0
  %4089 = vmatprep.subr.mxu0 0.0
  %4090 = vmatpush1.msra.mxu0 0.0
  %4091 = vmatprep.subr.mxu0 0.0
  %4092 = vmatpush1.msra.mxu0 0.0
  %4093 = vmatprep.subr.mxu0 0.0
  %4094 = vmatpush1.msra.mxu0 0.0
  %4095 = vmatprep.subr.mxu0 0.0
  %4096 = vmatpush1.msra.mxu0 0.0
  %4097 = vmatprep.subr.mxu0 0.0
  %4098 = vmatpush1.msra.mxu0 0.0
  %4099 = vmatprep.subr.mxu0 0.0
  %4100 = vmatpush1.msra.mxu0 0.0
  %4101 = vmatprep.subr.mxu0 0.0
  %4102 = vmatpush1.msra.mxu0 0.0
  %4103 = vmatprep.subr.mxu0 0.0
  %4104 = vmatpush1.msra.mxu0 0.0
  %4105 = vmatprep.subr.mxu0 0.0
  %4106 = vmatpush1.msra.mxu0 0.0
  %4107 = vmatprep.subr.mxu0 0.0
  %4108 = vmatpush1.msra.mxu0 0.0
  %4109 = vmatprep.subr.mxu0 0.0
  %4110 = vmatpush1.msra.mxu0 0.0
  %4111 = vmatprep.subr.mxu0 0.0
  %4112 = vmatpush1.msra.mxu0 0.0
  %4113 = vmatprep.subr.mxu0 0.0
  %4114 = vmatpush1.msra.mxu0 0.0
  %4115 = vmatprep.subr.mxu0 0.0
  %4116 = vmatpush1.msra.mxu0 0.0
  %4117 = vmatprep.subr.mxu0 0.0
  %4118 = vmatpush1.msra.mxu0 0.0
  %4119 = vmatprep.subr.mxu0 0.0
  %4120 = vmatpush1.msra.mxu0 0.0
  %4121 = vmatprep.subr.mxu0 0.0
  %4122 = vmatpush1.msra.mxu0 0.0
  %4123 = vmatprep.subr.mxu0 0.0
  %4124 = vmatpush1.msra.mxu0 0.0
  %4125 = vmatprep.subr.mxu0 0.0
  %4126 = vmatpush1.msra.mxu0 0.0
  %4127 = vmatprep.subr.mxu0 0.0
  %4128 = vmatpush1.msra.mxu0 0.0
  %4129 = vmatprep.subr.mxu0 0.0
  %4130 = vmatpush1.msra.mxu0 0.0
  %4131 = vmatprep.subr.mxu0 0.0
  %4132 = vmatpush1.msra.mxu0 0.0
  %4133 = vmatprep.mubr.f32.mxu0 0.0
  %4134 = vmatmul.mubr.f32.gmra.mrb[0].mxu0 %v4067
  %v4135 = vpop.f32.mrb[0].mxu0
  %v4136 = vadd.f32 0.0, %v4135
  %v4137 = vpop.f32.mrb[0].mxu0
  %4138 = vdwg.mxu0
  %4139 = vrot.lane.b32.xlu0 %v3803, 120
  %v4140 = vpop.permute.xlu0 %4139
  %4141 = vrot.lane.b32.xlu0 %v3803, 88
  %v4142 = vpop.permute.xlu0 %4141
  %v4143 = vsel %vm191, %v4140, 0
  %v4145 = vsel %vm191, %v4142, 0
  %4147 = vmatprep.subr.mxu0 0.0
  %4148 = vmatpush1.xpose.msra.mxu0 %v4145
  %4149 = vmatprep.subr.mxu0 0.0
  %4150 = vmatpush1.xpose.msra.mxu0 0.0
  %4151 = vmatprep.subr.mxu0 0.0
  %4152 = vmatpush1.xpose.msra.mxu0 0.0
  %4153 = vmatprep.subr.mxu0 0.0
  %4154 = vmatpush1.xpose.msra.mxu0 0.0
  %4155 = vmatprep.subr.mxu0 0.0
  %4156 = vmatpush1.xpose.msra.mxu0 0.0
  %4157 = vmatprep.subr.mxu0 0.0
  %4158 = vmatpush1.xpose.msra.mxu0 0.0
  %4159 = vmatprep.subr.mxu0 0.0
  %4160 = vmatpush1.xpose.msra.mxu0 0.0
  %4161 = vmatprep.subr.mxu0 0.0
  %4162 = vmatpush1.xpose.msra.mxu0 0.0
  %4163 = vmatprep.subr.mxu0 0.0
  %4164 = vmatpush1.xpose.msra.mxu0 0.0
  %4165 = vmatprep.subr.mxu0 0.0
  %4166 = vmatpush1.xpose.msra.mxu0 0.0
  %4167 = vmatprep.subr.mxu0 0.0
  %4168 = vmatpush1.xpose.msra.mxu0 0.0
  %4169 = vmatprep.subr.mxu0 0.0
  %4170 = vmatpush1.xpose.msra.mxu0 0.0
  %4171 = vmatprep.subr.mxu0 0.0
  %4172 = vmatpush1.xpose.msra.mxu0 0.0
  %4173 = vmatprep.subr.mxu0 0.0
  %4174 = vmatpush1.xpose.msra.mxu0 0.0
  %4175 = vmatprep.subr.mxu0 0.0
  %4176 = vmatpush1.xpose.msra.mxu0 0.0
  %4177 = vmatprep.subr.mxu0 0.0
  %4178 = vmatpush1.xpose.msra.mxu0 0.0
  %4179 = vmatprep.subr.mxu0 0.0
  %4180 = vmatpush1.xpose.msra.mxu0 0.0
  %4181 = vmatprep.subr.mxu0 0.0
  %4182 = vmatpush1.xpose.msra.mxu0 0.0
  %4183 = vmatprep.subr.mxu0 0.0
  %4184 = vmatpush1.xpose.msra.mxu0 0.0
  %4185 = vmatprep.subr.mxu0 0.0
  %4186 = vmatpush1.xpose.msra.mxu0 0.0
  %4187 = vmatprep.subr.mxu0 0.0
  %4188 = vmatpush1.xpose.msra.mxu0 0.0
  %4189 = vmatprep.subr.mxu0 0.0
  %4190 = vmatpush1.xpose.msra.mxu0 0.0
  %4191 = vmatprep.subr.mxu0 0.0
  %4192 = vmatpush1.xpose.msra.mxu0 0.0
  %4193 = vmatprep.subr.mxu0 0.0
  %4194 = vmatpush1.xpose.msra.mxu0 0.0
  %4195 = vmatprep.subr.mxu0 0.0
  %4196 = vmatpush1.xpose.msra.mxu0 0.0
  %4197 = vmatprep.subr.mxu0 0.0
  %4198 = vmatpush1.xpose.msra.mxu0 0.0
  %4199 = vmatprep.subr.mxu0 0.0
  %4200 = vmatpush1.xpose.msra.mxu0 0.0
  %4201 = vmatprep.subr.mxu0 0.0
  %4202 = vmatpush1.xpose.msra.mxu0 0.0
  %4203 = vmatprep.subr.mxu0 0.0
  %4204 = vmatpush1.xpose.msra.mxu0 0.0
  %4205 = vmatprep.subr.mxu0 0.0
  %4206 = vmatpush1.xpose.msra.mxu0 0.0
  %4207 = vmatprep.subr.mxu0 0.0
  %4208 = vmatpush1.xpose.msra.mxu0 0.0
  %4209 = vmatprep.subr.mxu0 0.0
  %4210 = vmatpush1.xpose.msra.mxu0 0.0
  %4211 = vmatprep.mubr.f32.mxu0 0.0
  %4212 = vmatmul.mubr.f32.gmra.mrb[0].mxu0 %v4143
  %v4213 = vpop.f32.mrb[0].mxu0
  %v4214 = vadd.f32 0.0, %v4213
  %v4215 = vpop.f32.mrb[0].mxu0
  %4216 = vdwg.mxu0
  %4217 = vrot.lane.b32.xlu0 %v3806, 120
  %v4218 = vpop.permute.xlu0 %4217
  %4219 = vrot.lane.b32.xlu0 %v3806, 88
  %v4220 = vpop.permute.xlu0 %4219
  %v4221 = vsel %vm191, %v4218, 0
  %v4223 = vsel %vm191, %v4220, 0
  %4225 = vmatprep.subr.mxu0 0.0
  %4226 = vmatpush1.xpose.msra.mxu0 %v4223
  %4227 = vmatprep.subr.mxu0 0.0
  %4228 = vmatpush1.xpose.msra.mxu0 0.0
  %4229 = vmatprep.subr.mxu0 0.0
  %4230 = vmatpush1.xpose.msra.mxu0 0.0
  %4231 = vmatprep.subr.mxu0 0.0
  %4232 = vmatpush1.xpose.msra.mxu0 0.0
  %4233 = vmatprep.subr.mxu0 0.0
  %4234 = vmatpush1.xpose.msra.mxu0 0.0
  %4235 = vmatprep.subr.mxu0 0.0
  %4236 = vmatpush1.xpose.msra.mxu0 0.0
  %4237 = vmatprep.subr.mxu0 0.0
  %4238 = vmatpush1.xpose.msra.mxu0 0.0
  %4239 = vmatprep.subr.mxu0 0.0
  %4240 = vmatpush1.xpose.msra.mxu0 0.0
  %4241 = vmatprep.subr.mxu0 0.0
  %4242 = vmatpush1.xpose.msra.mxu0 0.0
  %4243 = vmatprep.subr.mxu0 0.0
  %4244 = vmatpush1.xpose.msra.mxu0 0.0
  %4245 = vmatprep.subr.mxu0 0.0
  %4246 = vmatpush1.xpose.msra.mxu0 0.0
  %4247 = vmatprep.subr.mxu0 0.0
  %4248 = vmatpush1.xpose.msra.mxu0 0.0
  %4249 = vmatprep.subr.mxu0 0.0
  %4250 = vmatpush1.xpose.msra.mxu0 0.0
  %4251 = vmatprep.subr.mxu0 0.0
  %4252 = vmatpush1.xpose.msra.mxu0 0.0
  %4253 = vmatprep.subr.mxu0 0.0
  %4254 = vmatpush1.xpose.msra.mxu0 0.0
  %4255 = vmatprep.subr.mxu0 0.0
  %4256 = vmatpush1.xpose.msra.mxu0 0.0
  %4257 = vmatprep.subr.mxu0 0.0
  %4258 = vmatpush1.xpose.msra.mxu0 0.0
  %4259 = vmatprep.subr.mxu0 0.0
  %4260 = vmatpush1.xpose.msra.mxu0 0.0
  %4261 = vmatprep.subr.mxu0 0.0
  %4262 = vmatpush1.xpose.msra.mxu0 0.0
  %4263 = vmatprep.subr.mxu0 0.0
  %4264 = vmatpush1.xpose.msra.mxu0 0.0
  %4265 = vmatprep.subr.mxu0 0.0
  %4266 = vmatpush1.xpose.msra.mxu0 0.0
  %4267 = vmatprep.subr.mxu0 0.0
  %4268 = vmatpush1.xpose.msra.mxu0 0.0
  %4269 = vmatprep.subr.mxu0 0.0
  %4270 = vmatpush1.xpose.msra.mxu0 0.0
  %4271 = vmatprep.subr.mxu0 0.0
  %4272 = vmatpush1.xpose.msra.mxu0 0.0
  %4273 = vmatprep.subr.mxu0 0.0
  %4274 = vmatpush1.xpose.msra.mxu0 0.0
  %4275 = vmatprep.subr.mxu0 0.0
  %4276 = vmatpush1.xpose.msra.mxu0 0.0
  %4277 = vmatprep.subr.mxu0 0.0
  %4278 = vmatpush1.xpose.msra.mxu0 0.0
  %4279 = vmatprep.subr.mxu0 0.0
  %4280 = vmatpush1.xpose.msra.mxu0 0.0
  %4281 = vmatprep.subr.mxu0 0.0
  %4282 = vmatpush1.xpose.msra.mxu0 0.0
  %4283 = vmatprep.subr.mxu0 0.0
  %4284 = vmatpush1.xpose.msra.mxu0 0.0
  %4285 = vmatprep.subr.mxu0 0.0
  %4286 = vmatpush1.xpose.msra.mxu0 0.0
  %4287 = vmatprep.subr.mxu0 0.0
  %4288 = vmatpush1.xpose.msra.mxu0 0.0
  %4289 = vmatprep.mubr.f32.mxu0 0.0
  %4290 = vmatmul.mubr.f32.gmra.mrb[0].mxu0 %v4221
  %v4291 = vpop.f32.mrb[0].mxu0
  %v4292 = vadd.f32 0.0, %v4291
  %v4293 = vpop.f32.mrb[0].mxu0
  %4294 = vdwg.mxu0
  %v4295 = vmul.f32 %v4214, 0.35355338
  %v4296 = vmul.f32 %v4292, 0.35355338
  %v4297 = vsel %vm191, %v4295, -inf
  %4298 = vmax.xlane.f32.xlu0 %v4297
  %v4299 = vpop.xlane.xlu0 %4298
  %v4300 = vsel %vm191, %v4296, -inf
  %4301 = vmax.xlane.f32.xlu0 %v4300
  %v4302 = vpop.xlane.xlu0 %4301
  %v4303 = vsub.f32 %v4295, %v4299
  %v4304 = vsub.f32 %v4296, %v4302
  %v4305 = vmul.f32 %v4303, 1.442695
  %v4306 = vpow.pop %v4305
  %v4307 = vmul.f32 %v4304, 1.442695
  %v4308 = vpow.pop %v4307
  %v4309 = vsel %vm191, %v4306, 0.0
  %4310 = vadd.xlane.f32.xlu0 %v4309
  %v4311 = vpop.xlane.xlu0 %4310
  %v4312 = vsel %vm191, %v4308, 0.0
  %4313 = vadd.xlane.f32.xlu0 %v4312
  %v4314 = vpop.xlane.xlu0 %4313
  %v4315 = vrcp.pop %v4311
  %v4316 = vrcp.pop %v4314
  %v4317 = vmul.f32 %v4306, %v4315
  %v4318 = vmul.f32 %v4308, %v4316
  %4319 = vrot.lane.b32.xlu0 %v3803, 56
  %v4320 = vpop.permute.xlu0 %4319
  %v4323 = vsel %vm191, %v4317, 0
  %4325 = vmatprep.subr.mxu0 0.0
  %4326 = vmatpush1.msra.mxu0 %v4320
  %4327 = vmatprep.subr.mxu0 0.0
  %4328 = vmatpush1.msra.mxu0 0.0
  %4329 = vmatprep.subr.mxu0 0.0
  %4330 = vmatpush1.msra.mxu0 0.0
  %4331 = vmatprep.subr.mxu0 0.0
  %4332 = vmatpush1.msra.mxu0 0.0
  %4333 = vmatprep.subr.mxu0 0.0
  %4334 = vmatpush1.msra.mxu0 0.0
  %4335 = vmatprep.subr.mxu0 0.0
  %4336 = vmatpush1.msra.mxu0 0.0
  %4337 = vmatprep.subr.mxu0 0.0
  %4338 = vmatpush1.msra.mxu0 0.0
  %4339 = vmatprep.subr.mxu0 0.0
  %4340 = vmatpush1.msra.mxu0 0.0
  %4341 = vmatprep.subr.mxu0 0.0
  %4342 = vmatpush1.msra.mxu0 0.0
  %4343 = vmatprep.subr.mxu0 0.0
  %4344 = vmatpush1.msra.mxu0 0.0
  %4345 = vmatprep.subr.mxu0 0.0
  %4346 = vmatpush1.msra.mxu0 0.0
  %4347 = vmatprep.subr.mxu0 0.0
  %4348 = vmatpush1.msra.mxu0 0.0
  %4349 = vmatprep.subr.mxu0 0.0
  %4350 = vmatpush1.msra.mxu0 0.0
  %4351 = vmatprep.subr.mxu0 0.0
  %4352 = vmatpush1.msra.mxu0 0.0
  %4353 = vmatprep.subr.mxu0 0.0
  %4354 = vmatpush1.msra.mxu0 0.0
  %4355 = vmatprep.subr.mxu0 0.0
  %4356 = vmatpush1.msra.mxu0 0.0
  %4357 = vmatprep.subr.mxu0 0.0
  %4358 = vmatpush1.msra.mxu0 0.0
  %4359 = vmatprep.subr.mxu0 0.0
  %4360 = vmatpush1.msra.mxu0 0.0
  %4361 = vmatprep.subr.mxu0 0.0
  %4362 = vmatpush1.msra.mxu0 0.0
  %4363 = vmatprep.subr.mxu0 0.0
  %4364 = vmatpush1.msra.mxu0 0.0
  %4365 = vmatprep.subr.mxu0 0.0
  %4366 = vmatpush1.msra.mxu0 0.0
  %4367 = vmatprep.subr.mxu0 0.0
  %4368 = vmatpush1.msra.mxu0 0.0
  %4369 = vmatprep.subr.mxu0 0.0
  %4370 = vmatpush1.msra.mxu0 0.0
  %4371 = vmatprep.subr.mxu0 0.0
  %4372 = vmatpush1.msra.mxu0 0.0
  %4373 = vmatprep.subr.mxu0 0.0
  %4374 = vmatpush1.msra.mxu0 0.0
  %4375 = vmatprep.subr.mxu0 0.0
  %4376 = vmatpush1.msra.mxu0 0.0
  %4377 = vmatprep.subr.mxu0 0.0
  %4378 = vmatpush1.msra.mxu0 0.0
  %4379 = vmatprep.subr.mxu0 0.0
  %4380 = vmatpush1.msra.mxu0 0.0
  %4381 = vmatprep.subr.mxu0 0.0
  %4382 = vmatpush1.msra.mxu0 0.0
  %4383 = vmatprep.subr.mxu0 0.0
  %4384 = vmatpush1.msra.mxu0 0.0
  %4385 = vmatprep.subr.mxu0 0.0
  %4386 = vmatpush1.msra.mxu0 0.0
  %4387 = vmatprep.subr.mxu0 0.0
  %4388 = vmatpush1.msra.mxu0 0.0
  %4389 = vmatprep.mubr.f32.mxu0 0.0
  %4390 = vmatmul.mubr.f32.gmra.mrb[0].mxu0 %v4323
  %v4391 = vpop.f32.mrb[0].mxu0
  %v4392 = vadd.f32 0.0, %v4391
  %v4393 = vpop.f32.mrb[0].mxu0
  %4394 = vdwg.mxu0
  %4395 = vrot.lane.b32.xlu0 %v3806, 56
  %v4396 = vpop.permute.xlu0 %4395
  %v4399 = vsel %vm191, %v4318, 0
  %4401 = vmatprep.subr.mxu0 0.0
  %4402 = vmatpush1.msra.mxu0 %v4396
  %4403 = vmatprep.subr.mxu0 0.0
  %4404 = vmatpush1.msra.mxu0 0.0
  %4405 = vmatprep.subr.mxu0 0.0
  %4406 = vmatpush1.msra.mxu0 0.0
  %4407 = vmatprep.subr.mxu0 0.0
  %4408 = vmatpush1.msra.mxu0 0.0
  %4409 = vmatprep.subr.mxu0 0.0
  %4410 = vmatpush1.msra.mxu0 0.0
  %4411 = vmatprep.subr.mxu0 0.0
  %4412 = vmatpush1.msra.mxu0 0.0
  %4413 = vmatprep.subr.mxu0 0.0
  %4414 = vmatpush1.msra.mxu0 0.0
  %4415 = vmatprep.subr.mxu0 0.0
  %4416 = vmatpush1.msra.mxu0 0.0
  %4417 = vmatprep.subr.mxu0 0.0
  %4418 = vmatpush1.msra.mxu0 0.0
  %4419 = vmatprep.subr.mxu0 0.0
  %4420 = vmatpush1.msra.mxu0 0.0
  %4421 = vmatprep.subr.mxu0 0.0
  %4422 = vmatpush1.msra.mxu0 0.0
  %4423 = vmatprep.subr.mxu0 0.0
  %4424 = vmatpush1.msra.mxu0 0.0
  %4425 = vmatprep.subr.mxu0 0.0
  %4426 = vmatpush1.msra.mxu0 0.0
  %4427 = vmatprep.subr.mxu0 0.0
  %4428 = vmatpush1.msra.mxu0 0.0
  %4429 = vmatprep.subr.mxu0 0.0
  %4430 = vmatpush1.msra.mxu0 0.0
  %4431 = vmatprep.subr.mxu0 0.0
  %4432 = vmatpush1.msra.mxu0 0.0
  %4433 = vmatprep.subr.mxu0 0.0
  %4434 = vmatpush1.msra.mxu0 0.0
  %4435 = vmatprep.subr.mxu0 0.0
  %4436 = vmatpush1.msra.mxu0 0.0
  %4437 = vmatprep.subr.mxu0 0.0
  %4438 = vmatpush1.msra.mxu0 0.0
  %4439 = vmatprep.subr.mxu0 0.0
  %4440 = vmatpush1.msra.mxu0 0.0
  %4441 = vmatprep.subr.mxu0 0.0
  %4442 = vmatpush1.msra.mxu0 0.0
  %4443 = vmatprep.subr.mxu0 0.0
  %4444 = vmatpush1.msra.mxu0 0.0
  %4445 = vmatprep.subr.mxu0 0.0
  %4446 = vmatpush1.msra.mxu0 0.0
  %4447 = vmatprep.subr.mxu0 0.0
  %4448 = vmatpush1.msra.mxu0 0.0
  %4449 = vmatprep.subr.mxu0 0.0
  %4450 = vmatpush1.msra.mxu0 0.0
  %4451 = vmatprep.subr.mxu0 0.0
  %4452 = vmatpush1.msra.mxu0 0.0
  %4453 = vmatprep.subr.mxu0 0.0
  %4454 = vmatpush1.msra.mxu0 0.0
  %4455 = vmatprep.subr.mxu0 0.0
  %4456 = vmatpush1.msra.mxu0 0.0
  %4457 = vmatprep.subr.mxu0 0.0
  %4458 = vmatpush1.msra.mxu0 0.0
  %4459 = vmatprep.subr.mxu0 0.0
  %4460 = vmatpush1.msra.mxu0 0.0
  %4461 = vmatprep.subr.mxu0 0.0
  %4462 = vmatpush1.msra.mxu0 0.0
  %4463 = vmatprep.subr.mxu0 0.0
  %4464 = vmatpush1.msra.mxu0 0.0
  %4465 = vmatprep.mubr.f32.mxu0 0.0
  %4466 = vmatmul.mubr.f32.gmra.mrb[0].mxu0 %v4399
  %v4467 = vpop.f32.mrb[0].mxu0
  %v4468 = vadd.f32 0.0, %v4467
  %v4469 = vpop.f32.mrb[0].mxu0
  %4470 = vdwg.mxu0
  %4471 = vrot.lane.b32.xlu0 %v3803, 112
  %v4472 = vpop.permute.xlu0 %4471
  %4473 = vrot.lane.b32.xlu0 %v3803, 80
  %v4474 = vpop.permute.xlu0 %4473
  %v4475 = vsel %vm191, %v4472, 0
  %v4477 = vsel %vm191, %v4474, 0
  %4479 = vmatprep.subr.mxu0 0.0
  %4480 = vmatpush1.xpose.msra.mxu0 %v4477
  %4481 = vmatprep.subr.mxu0 0.0
  %4482 = vmatpush1.xpose.msra.mxu0 0.0
  %4483 = vmatprep.subr.mxu0 0.0
  %4484 = vmatpush1.xpose.msra.mxu0 0.0
  %4485 = vmatprep.subr.mxu0 0.0
  %4486 = vmatpush1.xpose.msra.mxu0 0.0
  %4487 = vmatprep.subr.mxu0 0.0
  %4488 = vmatpush1.xpose.msra.mxu0 0.0
  %4489 = vmatprep.subr.mxu0 0.0
  %4490 = vmatpush1.xpose.msra.mxu0 0.0
  %4491 = vmatprep.subr.mxu0 0.0
  %4492 = vmatpush1.xpose.msra.mxu0 0.0
  %4493 = vmatprep.subr.mxu0 0.0
  %4494 = vmatpush1.xpose.msra.mxu0 0.0
  %4495 = vmatprep.subr.mxu0 0.0
  %4496 = vmatpush1.xpose.msra.mxu0 0.0
  %4497 = vmatprep.subr.mxu0 0.0
  %4498 = vmatpush1.xpose.msra.mxu0 0.0
  %4499 = vmatprep.subr.mxu0 0.0
  %4500 = vmatpush1.xpose.msra.mxu0 0.0
  %4501 = vmatprep.subr.mxu0 0.0
  %4502 = vmatpush1.xpose.msra.mxu0 0.0
  %4503 = vmatprep.subr.mxu0 0.0
  %4504 = vmatpush1.xpose.msra.mxu0 0.0
  %4505 = vmatprep.subr.mxu0 0.0
  %4506 = vmatpush1.xpose.msra.mxu0 0.0
  %4507 = vmatprep.subr.mxu0 0.0
  %4508 = vmatpush1.xpose.msra.mxu0 0.0
  %4509 = vmatprep.subr.mxu0 0.0
  %4510 = vmatpush1.xpose.msra.mxu0 0.0
  %4511 = vmatprep.subr.mxu0 0.0
  %4512 = vmatpush1.xpose.msra.mxu0 0.0
  %4513 = vmatprep.subr.mxu0 0.0
  %4514 = vmatpush1.xpose.msra.mxu0 0.0
  %4515 = vmatprep.subr.mxu0 0.0
  %4516 = vmatpush1.xpose.msra.mxu0 0.0
  %4517 = vmatprep.subr.mxu0 0.0
  %4518 = vmatpush1.xpose.msra.mxu0 0.0
  %4519 = vmatprep.subr.mxu0 0.0
  %4520 = vmatpush1.xpose.msra.mxu0 0.0
  %4521 = vmatprep.subr.mxu0 0.0
  %4522 = vmatpush1.xpose.msra.mxu0 0.0
  %4523 = vmatprep.subr.mxu0 0.0
  %4524 = vmatpush1.xpose.msra.mxu0 0.0
  %4525 = vmatprep.subr.mxu0 0.0
  %4526 = vmatpush1.xpose.msra.mxu0 0.0
  %4527 = vmatprep.subr.mxu0 0.0
  %4528 = vmatpush1.xpose.msra.mxu0 0.0
  %4529 = vmatprep.subr.mxu0 0.0
  %4530 = vmatpush1.xpose.msra.mxu0 0.0
  %4531 = vmatprep.subr.mxu0 0.0
  %4532 = vmatpush1.xpose.msra.mxu0 0.0
  %4533 = vmatprep.subr.mxu0 0.0
  %4534 = vmatpush1.xpose.msra.mxu0 0.0
  %4535 = vmatprep.subr.mxu0 0.0
  %4536 = vmatpush1.xpose.msra.mxu0 0.0
  %4537 = vmatprep.subr.mxu0 0.0
  %4538 = vmatpush1.xpose.msra.mxu0 0.0
  %4539 = vmatprep.subr.mxu0 0.0
  %4540 = vmatpush1.xpose.msra.mxu0 0.0
  %4541 = vmatprep.subr.mxu0 0.0
  %4542 = vmatpush1.xpose.msra.mxu0 0.0
  %4543 = vmatprep.mubr.f32.mxu0 0.0
  %4544 = vmatmul.mubr.f32.gmra.mrb[0].mxu0 %v4475
  %v4545 = vpop.f32.mrb[0].mxu0
  %v4546 = vadd.f32 0.0, %v4545
  %v4547 = vpop.f32.mrb[0].mxu0
  %4548 = vdwg.mxu0
  %4549 = vrot.lane.b32.xlu0 %v3806, 112
  %v4550 = vpop.permute.xlu0 %4549
  %4551 = vrot.lane.b32.xlu0 %v3806, 80
  %v4552 = vpop.permute.xlu0 %4551
  %v4553 = vsel %vm191, %v4550, 0
  %v4555 = vsel %vm191, %v4552, 0
  %4557 = vmatprep.subr.mxu0 0.0
  %4558 = vmatpush1.xpose.msra.mxu0 %v4555
  %4559 = vmatprep.subr.mxu0 0.0
  %4560 = vmatpush1.xpose.msra.mxu0 0.0
  %4561 = vmatprep.subr.mxu0 0.0
  %4562 = vmatpush1.xpose.msra.mxu0 0.0
  %4563 = vmatprep.subr.mxu0 0.0
  %4564 = vmatpush1.xpose.msra.mxu0 0.0
  %4565 = vmatprep.subr.mxu0 0.0
  %4566 = vmatpush1.xpose.msra.mxu0 0.0
  %4567 = vmatprep.subr.mxu0 0.0
  %4568 = vmatpush1.xpose.msra.mxu0 0.0
  %4569 = vmatprep.subr.mxu0 0.0
  %4570 = vmatpush1.xpose.msra.mxu0 0.0
  %4571 = vmatprep.subr.mxu0 0.0
  %4572 = vmatpush1.xpose.msra.mxu0 0.0
  %4573 = vmatprep.subr.mxu0 0.0
  %4574 = vmatpush1.xpose.msra.mxu0 0.0
  %4575 = vmatprep.subr.mxu0 0.0
  %4576 = vmatpush1.xpose.msra.mxu0 0.0
  %4577 = vmatprep.subr.mxu0 0.0
  %4578 = vmatpush1.xpose.msra.mxu0 0.0
  %4579 = vmatprep.subr.mxu0 0.0
  %4580 = vmatpush1.xpose.msra.mxu0 0.0
  %4581 = vmatprep.subr.mxu0 0.0
  %4582 = vmatpush1.xpose.msra.mxu0 0.0
  %4583 = vmatprep.subr.mxu0 0.0
  %4584 = vmatpush1.xpose.msra.mxu0 0.0
  %4585 = vmatprep.subr.mxu0 0.0
  %4586 = vmatpush1.xpose.msra.mxu0 0.0
  %4587 = vmatprep.subr.mxu0 0.0
  %4588 = vmatpush1.xpose.msra.mxu0 0.0
  %4589 = vmatprep.subr.mxu0 0.0
  %4590 = vmatpush1.xpose.msra.mxu0 0.0
  %4591 = vmatprep.subr.mxu0 0.0
  %4592 = vmatpush1.xpose.msra.mxu0 0.0
  %4593 = vmatprep.subr.mxu0 0.0
  %4594 = vmatpush1.xpose.msra.mxu0 0.0
  %4595 = vmatprep.subr.mxu0 0.0
  %4596 = vmatpush1.xpose.msra.mxu0 0.0
  %4597 = vmatprep.subr.mxu0 0.0
  %4598 = vmatpush1.xpose.msra.mxu0 0.0
  %4599 = vmatprep.subr.mxu0 0.0
  %4600 = vmatpush1.xpose.msra.mxu0 0.0
  %4601 = vmatprep.subr.mxu0 0.0
  %4602 = vmatpush1.xpose.msra.mxu0 0.0
  %4603 = vmatprep.subr.mxu0 0.0
  %4604 = vmatpush1.xpose.msra.mxu0 0.0
  %4605 = vmatprep.subr.mxu0 0.0
  %4606 = vmatpush1.xpose.msra.mxu0 0.0
  %4607 = vmatprep.subr.mxu0 0.0
  %4608 = vmatpush1.xpose.msra.mxu0 0.0
  %4609 = vmatprep.subr.mxu0 0.0
  %4610 = vmatpush1.xpose.msra.mxu0 0.0
  %4611 = vmatprep.subr.mxu0 0.0
  %4612 = vmatpush1.xpose.msra.mxu0 0.0
  %4613 = vmatprep.subr.mxu0 0.0
  %4614 = vmatpush1.xpose.msra.mxu0 0.0
  %4615 = vmatprep.subr.mxu0 0.0
  %4616 = vmatpush1.xpose.msra.mxu0 0.0
  %4617 = vmatprep.subr.mxu0 0.0
  %4618 = vmatpush1.xpose.msra.mxu0 0.0
  %4619 = vmatprep.subr.mxu0 0.0
  %4620 = vmatpush1.xpose.msra.mxu0 0.0
  %4621 = vmatprep.mubr.f32.mxu0 0.0
  %4622 = vmatmul.mubr.f32.gmra.mrb[0].mxu0 %v4553
  %v4623 = vpop.f32.mrb[0].mxu0
  %v4624 = vadd.f32 0.0, %v4623
  %v4625 = vpop.f32.mrb[0].mxu0
  %4626 = vdwg.mxu0
  %v4627 = vmul.f32 %v4546, 0.35355338
  %v4628 = vmul.f32 %v4624, 0.35355338
  %v4629 = vsel %vm191, %v4627, -inf
  %4630 = vmax.xlane.f32.xlu0 %v4629
  %v4631 = vpop.xlane.xlu0 %4630
  %v4632 = vsel %vm191, %v4628, -inf
  %4633 = vmax.xlane.f32.xlu0 %v4632
  %v4634 = vpop.xlane.xlu0 %4633
  %v4635 = vsub.f32 %v4627, %v4631
  %v4636 = vsub.f32 %v4628, %v4634
  %v4637 = vmul.f32 %v4635, 1.442695
  %v4638 = vpow.pop %v4637
  %v4639 = vmul.f32 %v4636, 1.442695
  %v4640 = vpow.pop %v4639
  %v4641 = vsel %vm191, %v4638, 0.0
  %4642 = vadd.xlane.f32.xlu0 %v4641
  %v4643 = vpop.xlane.xlu0 %4642
  %v4644 = vsel %vm191, %v4640, 0.0
  %4645 = vadd.xlane.f32.xlu0 %v4644
  %v4646 = vpop.xlane.xlu0 %4645
  %v4647 = vrcp.pop %v4643
  %v4648 = vrcp.pop %v4646
  %v4649 = vmul.f32 %v4638, %v4647
  %v4650 = vmul.f32 %v4640, %v4648
  %4651 = vrot.lane.b32.xlu0 %v3803, 48
  %v4652 = vpop.permute.xlu0 %4651
  %v4655 = vsel %vm191, %v4649, 0
  %4657 = vmatprep.subr.mxu0 0.0
  %4658 = vmatpush1.msra.mxu0 %v4652
  %4659 = vmatprep.subr.mxu0 0.0
  %4660 = vmatpush1.msra.mxu0 0.0
  %4661 = vmatprep.subr.mxu0 0.0
  %4662 = vmatpush1.msra.mxu0 0.0
  %4663 = vmatprep.subr.mxu0 0.0
  %4664 = vmatpush1.msra.mxu0 0.0
  %4665 = vmatprep.subr.mxu0 0.0
  %4666 = vmatpush1.msra.mxu0 0.0
  %4667 = vmatprep.subr.mxu0 0.0
  %4668 = vmatpush1.msra.mxu0 0.0
  %4669 = vmatprep.subr.mxu0 0.0
  %4670 = vmatpush1.msra.mxu0 0.0
  %4671 = vmatprep.subr.mxu0 0.0
  %4672 = vmatpush1.msra.mxu0 0.0
  %4673 = vmatprep.subr.mxu0 0.0
  %4674 = vmatpush1.msra.mxu0 0.0
  %4675 = vmatprep.subr.mxu0 0.0
  %4676 = vmatpush1.msra.mxu0 0.0
  %4677 = vmatprep.subr.mxu0 0.0
  %4678 = vmatpush1.msra.mxu0 0.0
  %4679 = vmatprep.subr.mxu0 0.0
  %4680 = vmatpush1.msra.mxu0 0.0
  %4681 = vmatprep.subr.mxu0 0.0
  %4682 = vmatpush1.msra.mxu0 0.0
  %4683 = vmatprep.subr.mxu0 0.0
  %4684 = vmatpush1.msra.mxu0 0.0
  %4685 = vmatprep.subr.mxu0 0.0
  %4686 = vmatpush1.msra.mxu0 0.0
  %4687 = vmatprep.subr.mxu0 0.0
  %4688 = vmatpush1.msra.mxu0 0.0
  %4689 = vmatprep.subr.mxu0 0.0
  %4690 = vmatpush1.msra.mxu0 0.0
  %4691 = vmatprep.subr.mxu0 0.0
  %4692 = vmatpush1.msra.mxu0 0.0
  %4693 = vmatprep.subr.mxu0 0.0
  %4694 = vmatpush1.msra.mxu0 0.0
  %4695 = vmatprep.subr.mxu0 0.0
  %4696 = vmatpush1.msra.mxu0 0.0
  %4697 = vmatprep.subr.mxu0 0.0
  %4698 = vmatpush1.msra.mxu0 0.0
  %4699 = vmatprep.subr.mxu0 0.0
  %4700 = vmatpush1.msra.mxu0 0.0
  %4701 = vmatprep.subr.mxu0 0.0
  %4702 = vmatpush1.msra.mxu0 0.0
  %4703 = vmatprep.subr.mxu0 0.0
  %4704 = vmatpush1.msra.mxu0 0.0
  %4705 = vmatprep.subr.mxu0 0.0
  %4706 = vmatpush1.msra.mxu0 0.0
  %4707 = vmatprep.subr.mxu0 0.0
  %4708 = vmatpush1.msra.mxu0 0.0
  %4709 = vmatprep.subr.mxu0 0.0
  %4710 = vmatpush1.msra.mxu0 0.0
  %4711 = vmatprep.subr.mxu0 0.0
  %4712 = vmatpush1.msra.mxu0 0.0
  %4713 = vmatprep.subr.mxu0 0.0
  %4714 = vmatpush1.msra.mxu0 0.0
  %4715 = vmatprep.subr.mxu0 0.0
  %4716 = vmatpush1.msra.mxu0 0.0
  %4717 = vmatprep.subr.mxu0 0.0
  %4718 = vmatpush1.msra.mxu0 0.0
  %4719 = vmatprep.subr.mxu0 0.0
  %4720 = vmatpush1.msra.mxu0 0.0
  %4721 = vmatprep.mubr.f32.mxu0 0.0
  %4722 = vmatmul.mubr.f32.gmra.mrb[0].mxu0 %v4655
  %v4723 = vpop.f32.mrb[0].mxu0
  %v4724 = vadd.f32 0.0, %v4723
  %v4725 = vpop.f32.mrb[0].mxu0
  %4726 = vdwg.mxu0
  %4727 = vrot.lane.b32.xlu0 %v3806, 48
  %v4728 = vpop.permute.xlu0 %4727
  %v4731 = vsel %vm191, %v4650, 0
  %4733 = vmatprep.subr.mxu0 0.0
  %4734 = vmatpush1.msra.mxu0 %v4728
  %4735 = vmatprep.subr.mxu0 0.0
  %4736 = vmatpush1.msra.mxu0 0.0
  %4737 = vmatprep.subr.mxu0 0.0
  %4738 = vmatpush1.msra.mxu0 0.0
  %4739 = vmatprep.subr.mxu0 0.0
  %4740 = vmatpush1.msra.mxu0 0.0
  %4741 = vmatprep.subr.mxu0 0.0
  %4742 = vmatpush1.msra.mxu0 0.0
  %4743 = vmatprep.subr.mxu0 0.0
  %4744 = vmatpush1.msra.mxu0 0.0
  %4745 = vmatprep.subr.mxu0 0.0
  %4746 = vmatpush1.msra.mxu0 0.0
  %4747 = vmatprep.subr.mxu0 0.0
  %4748 = vmatpush1.msra.mxu0 0.0
  %4749 = vmatprep.subr.mxu0 0.0
  %4750 = vmatpush1.msra.mxu0 0.0
  %4751 = vmatprep.subr.mxu0 0.0
  %4752 = vmatpush1.msra.mxu0 0.0
  %4753 = vmatprep.subr.mxu0 0.0
  %4754 = vmatpush1.msra.mxu0 0.0
  %4755 = vmatprep.subr.mxu0 0.0
  %4756 = vmatpush1.msra.mxu0 0.0
  %4757 = vmatprep.subr.mxu0 0.0
  %4758 = vmatpush1.msra.mxu0 0.0
  %4759 = vmatprep.subr.mxu0 0.0
  %4760 = vmatpush1.msra.mxu0 0.0
  %4761 = vmatprep.subr.mxu0 0.0
  %4762 = vmatpush1.msra.mxu0 0.0
  %4763 = vmatprep.subr.mxu0 0.0
  %4764 = vmatpush1.msra.mxu0 0.0
  %4765 = vmatprep.subr.mxu0 0.0
  %4766 = vmatpush1.msra.mxu0 0.0
  %4767 = vmatprep.subr.mxu0 0.0
  %4768 = vmatpush1.msra.mxu0 0.0
  %4769 = vmatprep.subr.mxu0 0.0
  %4770 = vmatpush1.msra.mxu0 0.0
  %4771 = vmatprep.subr.mxu0 0.0
  %4772 = vmatpush1.msra.mxu0 0.0
  %4773 = vmatprep.subr.mxu0 0.0
  %4774 = vmatpush1.msra.mxu0 0.0
  %4775 = vmatprep.subr.mxu0 0.0
  %4776 = vmatpush1.msra.mxu0 0.0
  %4777 = vmatprep.subr.mxu0 0.0
  %4778 = vmatpush1.msra.mxu0 0.0
  %4779 = vmatprep.subr.mxu0 0.0
  %4780 = vmatpush1.msra.mxu0 0.0
  %4781 = vmatprep.subr.mxu0 0.0
  %4782 = vmatpush1.msra.mxu0 0.0
  %4783 = vmatprep.subr.mxu0 0.0
  %4784 = vmatpush1.msra.mxu0 0.0
  %4785 = vmatprep.subr.mxu0 0.0
  %4786 = vmatpush1.msra.mxu0 0.0
  %4787 = vmatprep.subr.mxu0 0.0
  %4788 = vmatpush1.msra.mxu0 0.0
  %4789 = vmatprep.subr.mxu0 0.0
  %4790 = vmatpush1.msra.mxu0 0.0
  %4791 = vmatprep.subr.mxu0 0.0
  %4792 = vmatpush1.msra.mxu0 0.0
  %4793 = vmatprep.subr.mxu0 0.0
  %4794 = vmatpush1.msra.mxu0 0.0
  %4795 = vmatprep.subr.mxu0 0.0
  %4796 = vmatpush1.msra.mxu0 0.0
  %4797 = vmatprep.mubr.f32.mxu0 0.0
  %4798 = vmatmul.mubr.f32.gmra.mrb[0].mxu0 %v4731
  %v4799 = vpop.f32.mrb[0].mxu0
  %v4800 = vadd.f32 0.0, %v4799
  %v4801 = vpop.f32.mrb[0].mxu0
  %4802 = vdwg.mxu0
  %4803 = vrot.lane.b32.xlu0 %v3803, 104
  %v4804 = vpop.permute.xlu0 %4803
  %4805 = vrot.lane.b32.xlu0 %v3803, 72
  %v4806 = vpop.permute.xlu0 %4805
  %v4807 = vsel %vm191, %v4804, 0
  %v4809 = vsel %vm191, %v4806, 0
  %4811 = vmatprep.subr.mxu0 0.0
  %4812 = vmatpush1.xpose.msra.mxu0 %v4809
  %4813 = vmatprep.subr.mxu0 0.0
  %4814 = vmatpush1.xpose.msra.mxu0 0.0
  %4815 = vmatprep.subr.mxu0 0.0
  %4816 = vmatpush1.xpose.msra.mxu0 0.0
  %4817 = vmatprep.subr.mxu0 0.0
  %4818 = vmatpush1.xpose.msra.mxu0 0.0
  %4819 = vmatprep.subr.mxu0 0.0
  %4820 = vmatpush1.xpose.msra.mxu0 0.0
  %4821 = vmatprep.subr.mxu0 0.0
  %4822 = vmatpush1.xpose.msra.mxu0 0.0
  %4823 = vmatprep.subr.mxu0 0.0
  %4824 = vmatpush1.xpose.msra.mxu0 0.0
  %4825 = vmatprep.subr.mxu0 0.0
  %4826 = vmatpush1.xpose.msra.mxu0 0.0
  %4827 = vmatprep.subr.mxu0 0.0
  %4828 = vmatpush1.xpose.msra.mxu0 0.0
  %4829 = vmatprep.subr.mxu0 0.0
  %4830 = vmatpush1.xpose.msra.mxu0 0.0
  %4831 = vmatprep.subr.mxu0 0.0
  %4832 = vmatpush1.xpose.msra.mxu0 0.0
  %4833 = vmatprep.subr.mxu0 0.0
  %4834 = vmatpush1.xpose.msra.mxu0 0.0
  %4835 = vmatprep.subr.mxu0 0.0
  %4836 = vmatpush1.xpose.msra.mxu0 0.0
  %4837 = vmatprep.subr.mxu0 0.0
  %4838 = vmatpush1.xpose.msra.mxu0 0.0
  %4839 = vmatprep.subr.mxu0 0.0
  %4840 = vmatpush1.xpose.msra.mxu0 0.0
  %4841 = vmatprep.subr.mxu0 0.0
  %4842 = vmatpush1.xpose.msra.mxu0 0.0
  %4843 = vmatprep.subr.mxu0 0.0
  %4844 = vmatpush1.xpose.msra.mxu0 0.0
  %4845 = vmatprep.subr.mxu0 0.0
  %4846 = vmatpush1.xpose.msra.mxu0 0.0
  %4847 = vmatprep.subr.mxu0 0.0
  %4848 = vmatpush1.xpose.msra.mxu0 0.0
  %4849 = vmatprep.subr.mxu0 0.0
  %4850 = vmatpush1.xpose.msra.mxu0 0.0
  %4851 = vmatprep.subr.mxu0 0.0
  %4852 = vmatpush1.xpose.msra.mxu0 0.0
  %4853 = vmatprep.subr.mxu0 0.0
  %4854 = vmatpush1.xpose.msra.mxu0 0.0
  %4855 = vmatprep.subr.mxu0 0.0
  %4856 = vmatpush1.xpose.msra.mxu0 0.0
  %4857 = vmatprep.subr.mxu0 0.0
  %4858 = vmatpush1.xpose.msra.mxu0 0.0
  %4859 = vmatprep.subr.mxu0 0.0
  %4860 = vmatpush1.xpose.msra.mxu0 0.0
  %4861 = vmatprep.subr.mxu0 0.0
  %4862 = vmatpush1.xpose.msra.mxu0 0.0
  %4863 = vmatprep.subr.mxu0 0.0
  %4864 = vmatpush1.xpose.msra.mxu0 0.0
  %4865 = vmatprep.subr.mxu0 0.0
  %4866 = vmatpush1.xpose.msra.mxu0 0.0
  %4867 = vmatprep.subr.mxu0 0.0
  %4868 = vmatpush1.xpose.msra.mxu0 0.0
  %4869 = vmatprep.subr.mxu0 0.0
  %4870 = vmatpush1.xpose.msra.mxu0 0.0
  %4871 = vmatprep.subr.mxu0 0.0
  %4872 = vmatpush1.xpose.msra.mxu0 0.0
  %4873 = vmatprep.subr.mxu0 0.0
  %4874 = vmatpush1.xpose.msra.mxu0 0.0
  %4875 = vmatprep.mubr.f32.mxu0 0.0
  %4876 = vmatmul.mubr.f32.gmra.mrb[0].mxu0 %v4807
  %v4877 = vpop.f32.mrb[0].mxu0
  %v4878 = vadd.f32 0.0, %v4877
  %v4879 = vpop.f32.mrb[0].mxu0
  %4880 = vdwg.mxu0
  %4881 = vrot.lane.b32.xlu0 %v3806, 104
  %v4882 = vpop.permute.xlu0 %4881
  %4883 = vrot.lane.b32.xlu0 %v3806, 72
  %v4884 = vpop.permute.xlu0 %4883
  %v4885 = vsel %vm191, %v4882, 0
  %v4887 = vsel %vm191, %v4884, 0
  %4889 = vmatprep.subr.mxu0 0.0
  %4890 = vmatpush1.xpose.msra.mxu0 %v4887
  %4891 = vmatprep.subr.mxu0 0.0
  %4892 = vmatpush1.xpose.msra.mxu0 0.0
  %4893 = vmatprep.subr.mxu0 0.0
  %4894 = vmatpush1.xpose.msra.mxu0 0.0
  %4895 = vmatprep.subr.mxu0 0.0
  %4896 = vmatpush1.xpose.msra.mxu0 0.0
  %4897 = vmatprep.subr.mxu0 0.0
  %4898 = vmatpush1.xpose.msra.mxu0 0.0
  %4899 = vmatprep.subr.mxu0 0.0
  %4900 = vmatpush1.xpose.msra.mxu0 0.0
  %4901 = vmatprep.subr.mxu0 0.0
  %4902 = vmatpush1.xpose.msra.mxu0 0.0
  %4903 = vmatprep.subr.mxu0 0.0
  %4904 = vmatpush1.xpose.msra.mxu0 0.0
  %4905 = vmatprep.subr.mxu0 0.0
  %4906 = vmatpush1.xpose.msra.mxu0 0.0
  %4907 = vmatprep.subr.mxu0 0.0
  %4908 = vmatpush1.xpose.msra.mxu0 0.0
  %4909 = vmatprep.subr.mxu0 0.0
  %4910 = vmatpush1.xpose.msra.mxu0 0.0
  %4911 = vmatprep.subr.mxu0 0.0
  %4912 = vmatpush1.xpose.msra.mxu0 0.0
  %4913 = vmatprep.subr.mxu0 0.0
  %4914 = vmatpush1.xpose.msra.mxu0 0.0
  %4915 = vmatprep.subr.mxu0 0.0
  %4916 = vmatpush1.xpose.msra.mxu0 0.0
  %4917 = vmatprep.subr.mxu0 0.0
  %4918 = vmatpush1.xpose.msra.mxu0 0.0
  %4919 = vmatprep.subr.mxu0 0.0
  %4920 = vmatpush1.xpose.msra.mxu0 0.0
  %4921 = vmatprep.subr.mxu0 0.0
  %4922 = vmatpush1.xpose.msra.mxu0 0.0
  %4923 = vmatprep.subr.mxu0 0.0
  %4924 = vmatpush1.xpose.msra.mxu0 0.0
  %4925 = vmatprep.subr.mxu0 0.0
  %4926 = vmatpush1.xpose.msra.mxu0 0.0
  %4927 = vmatprep.subr.mxu0 0.0
  %4928 = vmatpush1.xpose.msra.mxu0 0.0
  %4929 = vmatprep.subr.mxu0 0.0
  %4930 = vmatpush1.xpose.msra.mxu0 0.0
  %4931 = vmatprep.subr.mxu0 0.0
  %4932 = vmatpush1.xpose.msra.mxu0 0.0
  %4933 = vmatprep.subr.mxu0 0.0
  %4934 = vmatpush1.xpose.msra.mxu0 0.0
  %4935 = vmatprep.subr.mxu0 0.0
  %4936 = vmatpush1.xpose.msra.mxu0 0.0
  %4937 = vmatprep.subr.mxu0 0.0
  %4938 = vmatpush1.xpose.msra.mxu0 0.0
  %4939 = vmatprep.subr.mxu0 0.0
  %4940 = vmatpush1.xpose.msra.mxu0 0.0
  %4941 = vmatprep.subr.mxu0 0.0
  %4942 = vmatpush1.xpose.msra.mxu0 0.0
  %4943 = vmatprep.subr.mxu0 0.0
  %4944 = vmatpush1.xpose.msra.mxu0 0.0
  %4945 = vmatprep.subr.mxu0 0.0
  %4946 = vmatpush1.xpose.msra.mxu0 0.0
  %4947 = vmatprep.subr.mxu0 0.0
  %4948 = vmatpush1.xpose.msra.mxu0 0.0
  %4949 = vmatprep.subr.mxu0 0.0
  %4950 = vmatpush1.xpose.msra.mxu0 0.0
  %4951 = vmatprep.subr.mxu0 0.0
  %4952 = vmatpush1.xpose.msra.mxu0 0.0
  %4953 = vmatprep.mubr.f32.mxu0 0.0
  %4954 = vmatmul.mubr.f32.gmra.mrb[0].mxu0 %v4885
  %v4955 = vpop.f32.mrb[0].mxu0
  %v4956 = vadd.f32 0.0, %v4955
  %v4957 = vpop.f32.mrb[0].mxu0
  %4958 = vdwg.mxu0
  %v4959 = vmul.f32 %v4878, 0.35355338
  %v4960 = vmul.f32 %v4956, 0.35355338
  %v4961 = vsel %vm191, %v4959, -inf
  %4962 = vmax.xlane.f32.xlu0 %v4961
  %v4963 = vpop.xlane.xlu0 %4962
  %v4964 = vsel %vm191, %v4960, -inf
  %4965 = vmax.xlane.f32.xlu0 %v4964
  %v4966 = vpop.xlane.xlu0 %4965
  %v4967 = vsub.f32 %v4959, %v4963
  %v4968 = vsub.f32 %v4960, %v4966
  %v4969 = vmul.f32 %v4967, 1.442695
  %v4970 = vpow.pop %v4969
  %v4971 = vmul.f32 %v4968, 1.442695
  %v4972 = vpow.pop %v4971
  %v4973 = vsel %vm191, %v4970, 0.0
  %4974 = vadd.xlane.f32.xlu0 %v4973
  %v4975 = vpop.xlane.xlu0 %4974
  %v4976 = vsel %vm191, %v4972, 0.0
  %4977 = vadd.xlane.f32.xlu0 %v4976
  %v4978 = vpop.xlane.xlu0 %4977
  %v4979 = vrcp.pop %v4975
  %v4980 = vrcp.pop %v4978
  %v4981 = vmul.f32 %v4970, %v4979
  %v4982 = vmul.f32 %v4972, %v4980
  %4983 = vrot.lane.b32.xlu0 %v3803, 40
  %v4984 = vpop.permute.xlu0 %4983
  %v4987 = vsel %vm191, %v4981, 0
  %4989 = vmatprep.subr.mxu0 0.0
  %4990 = vmatpush1.msra.mxu0 %v4984
  %4991 = vmatprep.subr.mxu0 0.0
  %4992 = vmatpush1.msra.mxu0 0.0
  %4993 = vmatprep.subr.mxu0 0.0
  %4994 = vmatpush1.msra.mxu0 0.0
  %4995 = vmatprep.subr.mxu0 0.0
  %4996 = vmatpush1.msra.mxu0 0.0
  %4997 = vmatprep.subr.mxu0 0.0
  %4998 = vmatpush1.msra.mxu0 0.0
  %4999 = vmatprep.subr.mxu0 0.0
  %5000 = vmatpush1.msra.mxu0 0.0
  %5001 = vmatprep.subr.mxu0 0.0
  %5002 = vmatpush1.msra.mxu0 0.0
  %5003 = vmatprep.subr.mxu0 0.0
  %5004 = vmatpush1.msra.mxu0 0.0
  %5005 = vmatprep.subr.mxu0 0.0
  %5006 = vmatpush1.msra.mxu0 0.0
  %5007 = vmatprep.subr.mxu0 0.0
  %5008 = vmatpush1.msra.mxu0 0.0
  %5009 = vmatprep.subr.mxu0 0.0
  %5010 = vmatpush1.msra.mxu0 0.0
  %5011 = vmatprep.subr.mxu0 0.0
  %5012 = vmatpush1.msra.mxu0 0.0
  %5013 = vmatprep.subr.mxu0 0.0
  %5014 = vmatpush1.msra.mxu0 0.0
  %5015 = vmatprep.subr.mxu0 0.0
  %5016 = vmatpush1.msra.mxu0 0.0
  %5017 = vmatprep.subr.mxu0 0.0
  %5018 = vmatpush1.msra.mxu0 0.0
  %5019 = vmatprep.subr.mxu0 0.0
  %5020 = vmatpush1.msra.mxu0 0.0
  %5021 = vmatprep.subr.mxu0 0.0
  %5022 = vmatpush1.msra.mxu0 0.0
  %5023 = vmatprep.subr.mxu0 0.0
  %5024 = vmatpush1.msra.mxu0 0.0
  %5025 = vmatprep.subr.mxu0 0.0
  %5026 = vmatpush1.msra.mxu0 0.0
  %5027 = vmatprep.subr.mxu0 0.0
  %5028 = vmatpush1.msra.mxu0 0.0
  %5029 = vmatprep.subr.mxu0 0.0
  %5030 = vmatpush1.msra.mxu0 0.0
  %5031 = vmatprep.subr.mxu0 0.0
  %5032 = vmatpush1.msra.mxu0 0.0
  %5033 = vmatprep.subr.mxu0 0.0
  %5034 = vmatpush1.msra.mxu0 0.0
  %5035 = vmatprep.subr.mxu0 0.0
  %5036 = vmatpush1.msra.mxu0 0.0
  %5037 = vmatprep.subr.mxu0 0.0
  %5038 = vmatpush1.msra.mxu0 0.0
  %5039 = vmatprep.subr.mxu0 0.0
  %5040 = vmatpush1.msra.mxu0 0.0
  %5041 = vmatprep.subr.mxu0 0.0
  %5042 = vmatpush1.msra.mxu0 0.0
  %5043 = vmatprep.subr.mxu0 0.0
  %5044 = vmatpush1.msra.mxu0 0.0
  %5045 = vmatprep.subr.mxu0 0.0
  %5046 = vmatpush1.msra.mxu0 0.0
  %5047 = vmatprep.subr.mxu0 0.0
  %5048 = vmatpush1.msra.mxu0 0.0
  %5049 = vmatprep.subr.mxu0 0.0
  %5050 = vmatpush1.msra.mxu0 0.0
  %5051 = vmatprep.subr.mxu0 0.0
  %5052 = vmatpush1.msra.mxu0 0.0
  %5053 = vmatprep.mubr.f32.mxu0 0.0
  %5054 = vmatmul.mubr.f32.gmra.mrb[0].mxu0 %v4987
  %v5055 = vpop.f32.mrb[0].mxu0
  %v5056 = vadd.f32 0.0, %v5055
  %v5057 = vpop.f32.mrb[0].mxu0
  %5058 = vdwg.mxu0
  %5059 = vrot.lane.b32.xlu0 %v3806, 40
  %v5060 = vpop.permute.xlu0 %5059
  %v5063 = vsel %vm191, %v4982, 0
  %5065 = vmatprep.subr.mxu0 0.0
  %5066 = vmatpush1.msra.mxu0 %v5060
  %5067 = vmatprep.subr.mxu0 0.0
  %5068 = vmatpush1.msra.mxu0 0.0
  %5069 = vmatprep.subr.mxu0 0.0
  %5070 = vmatpush1.msra.mxu0 0.0
  %5071 = vmatprep.subr.mxu0 0.0
  %5072 = vmatpush1.msra.mxu0 0.0
  %5073 = vmatprep.subr.mxu0 0.0
  %5074 = vmatpush1.msra.mxu0 0.0
  %5075 = vmatprep.subr.mxu0 0.0
  %5076 = vmatpush1.msra.mxu0 0.0
  %5077 = vmatprep.subr.mxu0 0.0
  %5078 = vmatpush1.msra.mxu0 0.0
  %5079 = vmatprep.subr.mxu0 0.0
  %5080 = vmatpush1.msra.mxu0 0.0
  %5081 = vmatprep.subr.mxu0 0.0
  %5082 = vmatpush1.msra.mxu0 0.0
  %5083 = vmatprep.subr.mxu0 0.0
  %5084 = vmatpush1.msra.mxu0 0.0
  %5085 = vmatprep.subr.mxu0 0.0
  %5086 = vmatpush1.msra.mxu0 0.0
  %5087 = vmatprep.subr.mxu0 0.0
  %5088 = vmatpush1.msra.mxu0 0.0
  %5089 = vmatprep.subr.mxu0 0.0
  %5090 = vmatpush1.msra.mxu0 0.0
  %5091 = vmatprep.subr.mxu0 0.0
  %5092 = vmatpush1.msra.mxu0 0.0
  %5093 = vmatprep.subr.mxu0 0.0
  %5094 = vmatpush1.msra.mxu0 0.0
  %5095 = vmatprep.subr.mxu0 0.0
  %5096 = vmatpush1.msra.mxu0 0.0
  %5097 = vmatprep.subr.mxu0 0.0
  %5098 = vmatpush1.msra.mxu0 0.0
  %5099 = vmatprep.subr.mxu0 0.0
  %5100 = vmatpush1.msra.mxu0 0.0
  %5101 = vmatprep.subr.mxu0 0.0
  %5102 = vmatpush1.msra.mxu0 0.0
  %5103 = vmatprep.subr.mxu0 0.0
  %5104 = vmatpush1.msra.mxu0 0.0
  %5105 = vmatprep.subr.mxu0 0.0
  %5106 = vmatpush1.msra.mxu0 0.0
  %5107 = vmatprep.subr.mxu0 0.0
  %5108 = vmatpush1.msra.mxu0 0.0
  %5109 = vmatprep.subr.mxu0 0.0
  %5110 = vmatpush1.msra.mxu0 0.0
  %5111 = vmatprep.subr.mxu0 0.0
  %5112 = vmatpush1.msra.mxu0 0.0
  %5113 = vmatprep.subr.mxu0 0.0
  %5114 = vmatpush1.msra.mxu0 0.0
  %5115 = vmatprep.subr.mxu0 0.0
  %5116 = vmatpush1.msra.mxu0 0.0
  %5117 = vmatprep.subr.mxu0 0.0
  %5118 = vmatpush1.msra.mxu0 0.0
  %5119 = vmatprep.subr.mxu0 0.0
  %5120 = vmatpush1.msra.mxu0 0.0
  %5121 = vmatprep.subr.mxu0 0.0
  %5122 = vmatpush1.msra.mxu0 0.0
  %5123 = vmatprep.subr.mxu0 0.0
  %5124 = vmatpush1.msra.mxu0 0.0
  %5125 = vmatprep.subr.mxu0 0.0
  %5126 = vmatpush1.msra.mxu0 0.0
  %5127 = vmatprep.subr.mxu0 0.0
  %5128 = vmatpush1.msra.mxu0 0.0
  %5129 = vmatprep.mubr.f32.mxu0 0.0
  %5130 = vmatmul.mubr.f32.gmra.mrb[0].mxu0 %v5063
  %v5131 = vpop.f32.mrb[0].mxu0
  %v5132 = vadd.f32 0.0, %v5131
  %v5133 = vpop.f32.mrb[0].mxu0
  %5134 = vdwg.mxu0
  %5137 = vrot.lane.b32.xlu0 %v4392, 8
  %v5138 = vpop.permute.xlu0 %5137
  %5139 = vrot.lane.b32.xlu0 %v4468, 8
  %v5140 = vpop.permute.xlu0 %5139
  %5145 = vrot.lane.b32.xlu0 %v4724, 16
  %v5146 = vpop.permute.xlu0 %5145
  %5147 = vrot.lane.b32.xlu0 %v4800, 16
  %v5148 = vpop.permute.xlu0 %5147
  %5153 = vrot.lane.b32.xlu0 %v5056, 24
  %v5154 = vpop.permute.xlu0 %5153
  %5155 = vrot.lane.b32.xlu0 %v5132, 24
  %v5156 = vpop.permute.xlu0 %5155
  %v5159 = vsel %vm191, %v4060, %v5138
  %v5160 = vsel %vm191, %v4136, %v5140
  %v5161 = vsel %vm1541, %v5159, %v5146
  %v5162 = vsel %vm1541, %v5160, %v5148
  %v5163 = vsel %vm1544, %v5161, %v5154
  %v5164 = vsel %vm1544, %v5162, %v5156
  %v5165 = vpack.c.bf16 %v5164, %v5163
  %s5166 = scalar_lea.vmem %s5, 16
  %v5167 = vld [vmem:[%s5166] sm:$0xf]
  %v5168 = vld [vmem:[%s5166 + $0x4] sm:$0xf]
  %v5169 = vld [vmem:[%s5166 + $0x8] sm:$0xf]
  %v5170 = vld [vmem:[%s5166 + $0xc] sm:$0xf]
  %s5171 = scalar_lea.vmem %s6, 1
  %v5172 = vld [vmem:[%s5171] sm:$0x1]
  %v5174 = vlaneseq
  %v5175 = vshrl.u32 %v5174, 7
  %v5176 = vsub.s32 0, %v5175
  %v5177 = vrot.slane %v5172, %v5176
  %v5183 = vunpack.c.l.b16 %v5167
  %v5184 = vunpack.c.l.b16 %v5168
  %v5185 = vunpack.c.l.b16 %v5169
  %v5186 = vunpack.c.l.b16 %v5170
  %v5187 = vpack.c.b16 %v5184, %v5183
  %v5188 = vpack.c.b16 %v5186, %v5185
  %v5192 = vsel %vm143, %v5165, 0
  %5194 = vmatprep.subr.bf16.mxu0 0
  %5195 = vmatpush1.bf16.msra.mxu0 %v5187
  %5196 = vmatprep.subr.bf16.mxu0 0
  %5197 = vmatpush1.bf16.msra.mxu0 %v5188
  %5198 = vmatprep.subr.bf16.mxu0 0
  %5199 = vmatpush1.bf16.msra.mxu0 0
  %5200 = vmatprep.subr.bf16.mxu0 0
  %5201 = vmatpush1.bf16.msra.mxu0 0
  %5202 = vmatprep.subr.bf16.mxu0 0
  %5203 = vmatpush1.bf16.msra.mxu0 0
  %5204 = vmatprep.subr.bf16.mxu0 0
  %5205 = vmatpush1.bf16.msra.mxu0 0
  %5206 = vmatprep.subr.bf16.mxu0 0
  %5207 = vmatpush1.bf16.msra.mxu0 0
  %5208 = vmatprep.subr.bf16.mxu0 0
  %5209 = vmatpush1.bf16.msra.mxu0 0
  %5210 = vmatprep.subr.bf16.mxu0 0
  %5211 = vmatpush1.bf16.msra.mxu0 0
  %5212 = vmatprep.subr.bf16.mxu0 0
  %5213 = vmatpush1.bf16.msra.mxu0 0
  %5214 = vmatprep.subr.bf16.mxu0 0
  %5215 = vmatpush1.bf16.msra.mxu0 0
  %5216 = vmatprep.subr.bf16.mxu0 0
  %5217 = vmatpush1.bf16.msra.mxu0 0
  %5218 = vmatprep.subr.bf16.mxu0 0
  %5219 = vmatpush1.bf16.msra.mxu0 0
  %5220 = vmatprep.subr.bf16.mxu0 0
  %5221 = vmatpush1.bf16.msra.mxu0 0
  %5222 = vmatprep.subr.bf16.mxu0 0
  %5223 = vmatpush1.bf16.msra.mxu0 0
  %5224 = vmatprep.subr.bf16.mxu0 0
  %5225 = vmatpush1.bf16.msra.mxu0 0
  %5226 = vmatprep.mubr.bf16.mxu0 0
  %5227 = vmatmul.mubr.bf16.gmra.mrb[0].mxu0 %v5192
  %v5228 = vpop.f32.mrb[0].mxu0
  %v5229 = vadd.f32 %v5177, %v5228
  %v5230 = vpop.f32.mrb[0].mxu0
  %v5231 = vpop.f32.mrb[0].mxu0
  %v5232 = vadd.f32 %v5177, %v5231
  %v5233 = vpop.f32.mrb[0].mxu0
  %5234 = vdwg.mxu0
  %v5235 = vadd.f32 %v3737, %v5229
  %v5236 = vadd.f32 %v3738, %v5232
  %s5237 = scalar_lea.vmem %s7, 1
  %v5238 = vld [vmem:[%s5237] sm:$0x1]
  %s5239 = scalar_lea.vmem %s8, 1
  %v5240 = vld [vmem:[%s5239] sm:$0x1]
  %v5241 = vsel %vm143, %v5235, 0.0
  %5242 = vadd.xlane.f32.xlu0 %v5241
  %v5243 = vpop.xlane.xlu0 %5242
  %v5244 = vsel %vm143, %v5236, 0.0
  %5245 = vadd.xlane.f32.xlu0 %v5244
  %v5246 = vpop.xlane.xlu0 %5245
  %v5247 = vmul.f32 %v5243, %v1625
  %v5248 = vmul.f32 %v5246, %v1625
  %v5249 = vsub.f32 %v5235, %v5247
  %v5250 = vsub.f32 %v5236, %v5248
  %v5251 = vmul.f32 %v5249, %v5249
  %v5252 = vmul.f32 %v5250, %v5250
  %v5253 = vsel %vm143, %v5251, 0.0
  %5254 = vadd.xlane.f32.xlu0 %v5253
  %v5255 = vpop.xlane.xlu0 %5254
  %v5256 = vsel %vm143, %v5252, 0.0
  %5257 = vadd.xlane.f32.xlu0 %v5256
  %v5258 = vpop.xlane.xlu0 %5257
  %v5259 = vmul.f32 %v5255, %v1625
  %v5260 = vmul.f32 %v5258, %v1625
  %v5261 = vadd.f32 %v5259, 1e-05
  %v5262 = vadd.f32 %v5260, 1e-05
  %v5263 = vrsqrt.pop %v5261
  %v5264 = vrsqrt.pop %v5262
  %v5265 = vmul.f32 %v5249, %v5263
  %v5266 = vmul.f32 %v5250, %v5264
  %v5268 = vlaneseq
  %v5269 = vshrl.u32 %v5268, 7
  %v5270 = vsub.s32 0, %v5269
  %v5271 = vrot.slane %v5238, %v5270
  %v5273 = vmul.f32 %v5265, %v5271
  %v5274 = vmul.f32 %v5266, %v5271
  %v5276 = vlaneseq
  %v5277 = vshrl.u32 %v5276, 7
  %v5278 = vsub.s32 0, %v5277
  %v5279 = vrot.slane %v5240, %v5278
  %v5281 = vadd.f32 %v5273, %v5279
  %v5282 = vadd.f32 %v5274, %v5279
  %v5283 = vpack.c.bf16 %v5282, %v5281
  %s5284 = scalar_lea.vmem %s9, 256
  %v5285 = vld [vmem:[%s5284] sm:$0xff]
  %v5286 = vld [vmem:[%s5284 + $0x8] sm:$0xff]
  %v5287 = vld [vmem:[%s5284 + $0x10] sm:$0xff]
  %v5288 = vld [vmem:[%s5284 + $0x18] sm:$0xff]
  %v5289 = vld [vmem:[%s5284 + $0x20] sm:$0xff]
  %v5290 = vld [vmem:[%s5284 + $0x28] sm:$0xff]
  %v5291 = vld [vmem:[%s5284 + $0x30] sm:$0xff]
  %v5292 = vld [vmem:[%s5284 + $0x38] sm:$0xff]
  %v5293 = vld [vmem:[%s5284 + $0x40] sm:$0xff]
  %v5294 = vld [vmem:[%s5284 + $0x48] sm:$0xff]
  %v5295 = vld [vmem:[%s5284 + $0x50] sm:$0xff]
  %v5296 = vld [vmem:[%s5284 + $0x58] sm:$0xff]
  %v5297 = vld [vmem:[%s5284 + $0x60] sm:$0xff]
  %v5298 = vld [vmem:[%s5284 + $0x68] sm:$0xff]
  %v5299 = vld [vmem:[%s5284 + $0x70] sm:$0xff]
  %v5300 = vld [vmem:[%s5284 + $0x78] sm:$0xff]
  %v5301 = vld [vmem:[%s5284 + $0x80] sm:$0xff]
  %v5302 = vld [vmem:[%s5284 + $0x88] sm:$0xff]
  %v5303 = vld [vmem:[%s5284 + $0x90] sm:$0xff]
  %v5304 = vld [vmem:[%s5284 + $0x98] sm:$0xff]
  %v5305 = vld [vmem:[%s5284 + $0xa0] sm:$0xff]
  %v5306 = vld [vmem:[%s5284 + $0xa8] sm:$0xff]
  %v5307 = vld [vmem:[%s5284 + $0xb0] sm:$0xff]
  %v5308 = vld [vmem:[%s5284 + $0xb8] sm:$0xff]
  %v5309 = vld [vmem:[%s5284 + $0xc0] sm:$0xff]
  %v5310 = vld [vmem:[%s5284 + $0xc8] sm:$0xff]
  %v5311 = vld [vmem:[%s5284 + $0xd0] sm:$0xff]
  %v5312 = vld [vmem:[%s5284 + $0xd8] sm:$0xff]
  %v5313 = vld [vmem:[%s5284 + $0xe0] sm:$0xff]
  %v5314 = vld [vmem:[%s5284 + $0xe8] sm:$0xff]
  %v5315 = vld [vmem:[%s5284 + $0xf0] sm:$0xff]
  %v5316 = vld [vmem:[%s5284 + $0xf8] sm:$0xff]
  %s5317 = scalar_lea.vmem %s10, 16
  %v5318 = vld [vmem:[%s5317] sm:$0xff]
  %v5319 = vld [vmem:[%s5317 + $0x8] sm:$0xff]
  %v5322 = vlaneseq
  %v5323 = vshrl.u32 %v5322, 7
  %v5324 = vsub.s32 0, %v5323
  %v5325 = vrot.slane %v5318, %v5324
  %v5326 = vlaneseq
  %v5327 = vshrl.u32 %v5326, 7
  %v5328 = vsub.s32 1, %v5327
  %v5329 = vrot.slane %v5318, %v5328
  %v5330 = vlaneseq
  %v5331 = vshrl.u32 %v5330, 7
  %v5332 = vsub.s32 2, %v5331
  %v5333 = vrot.slane %v5318, %v5332
  %v5334 = vlaneseq
  %v5335 = vshrl.u32 %v5334, 7
  %v5336 = vsub.s32 3, %v5335
  %v5337 = vrot.slane %v5318, %v5336
  %v5338 = vlaneseq
  %v5339 = vshrl.u32 %v5338, 7
  %v5340 = vsub.s32 4, %v5339
  %v5341 = vrot.slane %v5318, %v5340
  %v5342 = vlaneseq
  %v5343 = vshrl.u32 %v5342, 7
  %v5344 = vsub.s32 5, %v5343
  %v5345 = vrot.slane %v5318, %v5344
  %v5346 = vlaneseq
  %v5347 = vshrl.u32 %v5346, 7
  %v5348 = vsub.s32 6, %v5347
  %v5349 = vrot.slane %v5318, %v5348
  %v5350 = vlaneseq
  %v5351 = vshrl.u32 %v5350, 7
  %v5352 = vsub.s32 7, %v5351
  %v5353 = vrot.slane %v5318, %v5352
  %v5354 = vlaneseq
  %v5355 = vshrl.u32 %v5354, 7
  %v5356 = vsub.s32 0, %v5355
  %v5357 = vrot.slane %v5319, %v5356
  %v5358 = vlaneseq
  %v5359 = vshrl.u32 %v5358, 7
  %v5360 = vsub.s32 1, %v5359
  %v5361 = vrot.slane %v5319, %v5360
  %v5362 = vlaneseq
  %v5363 = vshrl.u32 %v5362, 7
  %v5364 = vsub.s32 2, %v5363
  %v5365 = vrot.slane %v5319, %v5364
  %v5366 = vlaneseq
  %v5367 = vshrl.u32 %v5366, 7
  %v5368 = vsub.s32 3, %v5367
  %v5369 = vrot.slane %v5319, %v5368
  %v5370 = vlaneseq
  %v5371 = vshrl.u32 %v5370, 7
  %v5372 = vsub.s32 4, %v5371
  %v5373 = vrot.slane %v5319, %v5372
  %v5374 = vlaneseq
  %v5375 = vshrl.u32 %v5374, 7
  %v5376 = vsub.s32 5, %v5375
  %v5377 = vrot.slane %v5319, %v5376
  %v5378 = vlaneseq
  %v5379 = vshrl.u32 %v5378, 7
  %v5380 = vsub.s32 6, %v5379
  %v5381 = vrot.slane %v5319, %v5380
  %v5382 = vlaneseq
  %v5383 = vshrl.u32 %v5382, 7
  %v5384 = vsub.s32 7, %v5383
  %v5385 = vrot.slane %v5319, %v5384
  %v5434 = vunpack.c.l.b16 %v5285
  %v5435 = vunpack.c.h.b16 %v5285
  %v5436 = vunpack.c.l.b16 %v5286
  %v5437 = vunpack.c.h.b16 %v5286
  %v5438 = vunpack.c.l.b16 %v5287
  %v5439 = vunpack.c.h.b16 %v5287
  %v5440 = vunpack.c.l.b16 %v5288
  %v5441 = vunpack.c.h.b16 %v5288
  %v5442 = vunpack.c.l.b16 %v5289
  %v5443 = vunpack.c.h.b16 %v5289
  %v5444 = vunpack.c.l.b16 %v5290
  %v5445 = vunpack.c.h.b16 %v5290
  %v5446 = vunpack.c.l.b16 %v5291
  %v5447 = vunpack.c.h.b16 %v5291
  %v5448 = vunpack.c.l.b16 %v5292
  %v5449 = vunpack.c.h.b16 %v5292
  %v5450 = vunpack.c.l.b16 %v5293
  %v5451 = vunpack.c.h.b16 %v5293
  %v5452 = vunpack.c.l.b16 %v5294
  %v5453 = vunpack.c.h.b16 %v5294
  %v5454 = vunpack.c.l.b16 %v5295
  %v5455 = vunpack.c.h.b16 %v5295
  %v5456 = vunpack.c.l.b16 %v5296
  %v5457 = vunpack.c.h.b16 %v5296
  %v5458 = vunpack.c.l.b16 %v5297
  %v5459 = vunpack.c.h.b16 %v5297
  %v5460 = vunpack.c.l.b16 %v5298
  %v5461 = vunpack.c.h.b16 %v5298
  %v5462 = vunpack.c.l.b16 %v5299
  %v5463 = vunpack.c.h.b16 %v5299
  %v5464 = vunpack.c.l.b16 %v5300
  %v5465 = vunpack.c.h.b16 %v5300
  %v5466 = vunpack.c.l.b16 %v5301
  %v5467 = vunpack.c.h.b16 %v5301
  %v5468 = vunpack.c.l.b16 %v5302
  %v5469 = vunpack.c.h.b16 %v5302
  %v5470 = vunpack.c.l.b16 %v5303
  %v5471 = vunpack.c.h.b16 %v5303
  %v5472 = vunpack.c.l.b16 %v5304
  %v5473 = vunpack.c.h.b16 %v5304
  %v5474 = vunpack.c.l.b16 %v5305
  %v5475 = vunpack.c.h.b16 %v5305
  %v5476 = vunpack.c.l.b16 %v5306
  %v5477 = vunpack.c.h.b16 %v5306
  %v5478 = vunpack.c.l.b16 %v5307
  %v5479 = vunpack.c.h.b16 %v5307
  %v5480 = vunpack.c.l.b16 %v5308
  %v5481 = vunpack.c.h.b16 %v5308
  %v5482 = vunpack.c.l.b16 %v5309
  %v5483 = vunpack.c.h.b16 %v5309
  %v5484 = vunpack.c.l.b16 %v5310
  %v5485 = vunpack.c.h.b16 %v5310
  %v5486 = vunpack.c.l.b16 %v5311
  %v5487 = vunpack.c.h.b16 %v5311
  %v5488 = vunpack.c.l.b16 %v5312
  %v5489 = vunpack.c.h.b16 %v5312
  %v5490 = vunpack.c.l.b16 %v5313
  %v5491 = vunpack.c.h.b16 %v5313
  %v5492 = vunpack.c.l.b16 %v5314
  %v5493 = vunpack.c.h.b16 %v5314
  %v5494 = vunpack.c.l.b16 %v5315
  %v5495 = vunpack.c.h.b16 %v5315
  %v5496 = vunpack.c.l.b16 %v5316
  %v5497 = vunpack.c.h.b16 %v5316
  %v5498 = vpack.c.b16 %v5450, %v5434
  %v5499 = vpack.c.b16 %v5451, %v5435
  %v5500 = vpack.c.b16 %v5452, %v5436
  %v5501 = vpack.c.b16 %v5453, %v5437
  %v5502 = vpack.c.b16 %v5454, %v5438
  %v5503 = vpack.c.b16 %v5455, %v5439
  %v5504 = vpack.c.b16 %v5456, %v5440
  %v5505 = vpack.c.b16 %v5457, %v5441
  %v5506 = vpack.c.b16 %v5458, %v5442
  %v5507 = vpack.c.b16 %v5459, %v5443
  %v5508 = vpack.c.b16 %v5460, %v5444
  %v5509 = vpack.c.b16 %v5461, %v5445
  %v5510 = vpack.c.b16 %v5462, %v5446
  %v5511 = vpack.c.b16 %v5463, %v5447
  %v5512 = vpack.c.b16 %v5464, %v5448
  %v5513 = vpack.c.b16 %v5465, %v5449
  %v5514 = vpack.c.b16 %v5482, %v5466
  %v5515 = vpack.c.b16 %v5483, %v5467
  %v5516 = vpack.c.b16 %v5484, %v5468
  %v5517 = vpack.c.b16 %v5485, %v5469
  %v5518 = vpack.c.b16 %v5486, %v5470
  %v5519 = vpack.c.b16 %v5487, %v5471
  %v5520 = vpack.c.b16 %v5488, %v5472
  %v5521 = vpack.c.b16 %v5489, %v5473
  %v5522 = vpack.c.b16 %v5490, %v5474
  %v5523 = vpack.c.b16 %v5491, %v5475
  %v5524 = vpack.c.b16 %v5492, %v5476
  %v5525 = vpack.c.b16 %v5493, %v5477
  %v5526 = vpack.c.b16 %v5494, %v5478
  %v5527 = vpack.c.b16 %v5495, %v5479
  %v5528 = vpack.c.b16 %v5496, %v5480
  %v5529 = vpack.c.b16 %v5497, %v5481
  %v5563 = vsel %vm143, %v5283, 0
  %5565 = vmatprep.subr.bf16.mxu0 %v5499
  %5566 = vmatpush1.bf16.msra.mxu0 %v5498
  %5567 = vmatprep.subr.bf16.mxu0 %v5515
  %5568 = vmatpush1.bf16.msra.mxu0 %v5514
  %5569 = vmatprep.subr.bf16.mxu0 0
  %5570 = vmatpush1.bf16.msra.mxu0 0
  %5571 = vmatprep.subr.bf16.mxu0 0
  %5572 = vmatpush1.bf16.msra.mxu0 0
  %5573 = vmatprep.subr.bf16.mxu0 0
  %5574 = vmatpush1.bf16.msra.mxu0 0
  %5575 = vmatprep.subr.bf16.mxu0 0
  %5576 = vmatpush1.bf16.msra.mxu0 0
  %5577 = vmatprep.subr.bf16.mxu0 0
  %5578 = vmatpush1.bf16.msra.mxu0 0
  %5579 = vmatprep.subr.bf16.mxu0 0
  %5580 = vmatpush1.bf16.msra.mxu0 0
  %5581 = vmatprep.subr.bf16.mxu0 0
  %5582 = vmatpush1.bf16.msra.mxu0 0
  %5583 = vmatprep.subr.bf16.mxu0 0
  %5584 = vmatpush1.bf16.msra.mxu0 0
  %5585 = vmatprep.subr.bf16.mxu0 0
  %5586 = vmatpush1.bf16.msra.mxu0 0
  %5587 = vmatprep.subr.bf16.mxu0 0
  %5588 = vmatpush1.bf16.msra.mxu0 0
  %5589 = vmatprep.subr.bf16.mxu0 0
  %5590 = vmatpush1.bf16.msra.mxu0 0
  %5591 = vmatprep.subr.bf16.mxu0 0
  %5592 = vmatpush1.bf16.msra.mxu0 0
  %5593 = vmatprep.subr.bf16.mxu0 0
  %5594 = vmatpush1.bf16.msra.mxu0 0
  %5595 = vmatprep.subr.bf16.mxu0 0
  %5596 = vmatpush1.bf16.msra.mxu0 0
  %5597 = vmatprep.mubr.bf16.mxu0 0
  %5598 = vmatmul.mubr.bf16.gmra.mrb[0].mxu0 %v5563
  %v5599 = vpop.f32.mrb[0].mxu0
  %v5600 = vadd.f32 %v5325, %v5599
  %v5601 = vpop.f32.mrb[0].mxu0
  %v5602 = vadd.f32 %v5329, %v5601
  %v5603 = vpop.f32.mrb[0].mxu0
  %v5604 = vadd.f32 %v5325, %v5603
  %v5605 = vpop.f32.mrb[0].mxu0
  %v5606 = vadd.f32 %v5329, %v5605
  %5607 = vdwg.mxu0
  %5608 = vmatprep.subr.bf16.mxu0 %v5501
  %5609 = vmatpush1.bf16.msra.mxu0 %v5500
  %5610 = vmatprep.subr.bf16.mxu0 %v5517
  %5611 = vmatpush1.bf16.msra.mxu0 %v5516
  %5612 = vmatprep.subr.bf16.mxu0 0
  %5613 = vmatpush1.bf16.msra.mxu0 0
  %5614 = vmatprep.subr.bf16.mxu0 0
  %5615 = vmatpush1.bf16.msra.mxu0 0
  %5616 = vmatprep.subr.bf16.mxu0 0
  %5617 = vmatpush1.bf16.msra.mxu0 0
  %5618 = vmatprep.subr.bf16.mxu0 0
  %5619 = vmatpush1.bf16.msra.mxu0 0
  %5620 = vmatprep.subr.bf16.mxu0 0
  %5621 = vmatpush1.bf16.msra.mxu0 0
  %5622 = vmatprep.subr.bf16.mxu0 0
  %5623 = vmatpush1.bf16.msra.mxu0 0
  %5624 = vmatprep.subr.bf16.mxu0 0
  %5625 = vmatpush1.bf16.msra.mxu0 0
  %5626 = vmatprep.subr.bf16.mxu0 0
  %5627 = vmatpush1.bf16.msra.mxu0 0
  %5628 = vmatprep.subr.bf16.mxu0 0
  %5629 = vmatpush1.bf16.msra.mxu0 0
  %5630 = vmatprep.subr.bf16.mxu0 0
  %5631 = vmatpush1.bf16.msra.mxu0 0
  %5632 = vmatprep.subr.bf16.mxu0 0
  %5633 = vmatpush1.bf16.msra.mxu0 0
  %5634 = vmatprep.subr.bf16.mxu0 0
  %5635 = vmatpush1.bf16.msra.mxu0 0
  %5636 = vmatprep.subr.bf16.mxu0 0
  %5637 = vmatpush1.bf16.msra.mxu0 0
  %5638 = vmatprep.subr.bf16.mxu0 0
  %5639 = vmatpush1.bf16.msra.mxu0 0
  %5640 = vmatprep.mubr.bf16.mxu0 0
  %5641 = vmatmul.mubr.bf16.gmra.mrb[0].mxu0 %v5563
  %v5642 = vpop.f32.mrb[0].mxu0
  %v5643 = vadd.f32 %v5333, %v5642
  %v5644 = vpop.f32.mrb[0].mxu0
  %v5645 = vadd.f32 %v5337, %v5644
  %v5646 = vpop.f32.mrb[0].mxu0
  %v5647 = vadd.f32 %v5333, %v5646
  %v5648 = vpop.f32.mrb[0].mxu0
  %v5649 = vadd.f32 %v5337, %v5648
  %5650 = vdwg.mxu0
  %5651 = vmatprep.subr.bf16.mxu0 %v5503
  %5652 = vmatpush1.bf16.msra.mxu0 %v5502
  %5653 = vmatprep.subr.bf16.mxu0 %v5519
  %5654 = vmatpush1.bf16.msra.mxu0 %v5518
  %5655 = vmatprep.subr.bf16.mxu0 0
  %5656 = vmatpush1.bf16.msra.mxu0 0
  %5657 = vmatprep.subr.bf16.mxu0 0
  %5658 = vmatpush1.bf16.msra.mxu0 0
  %5659 = vmatprep.subr.bf16.mxu0 0
  %5660 = vmatpush1.bf16.msra.mxu0 0
  %5661 = vmatprep.subr.bf16.mxu0 0
  %5662 = vmatpush1.bf16.msra.mxu0 0
  %5663 = vmatprep.subr.bf16.mxu0 0
  %5664 = vmatpush1.bf16.msra.mxu0 0
  %5665 = vmatprep.subr.bf16.mxu0 0
  %5666 = vmatpush1.bf16.msra.mxu0 0
  %5667 = vmatprep.subr.bf16.mxu0 0
  %5668 = vmatpush1.bf16.msra.mxu0 0
  %5669 = vmatprep.subr.bf16.mxu0 0
  %5670 = vmatpush1.bf16.msra.mxu0 0
  %5671 = vmatprep.subr.bf16.mxu0 0
  %5672 = vmatpush1.bf16.msra.mxu0 0
  %5673 = vmatprep.subr.bf16.mxu0 0
  %5674 = vmatpush1.bf16.msra.mxu0 0
  %5675 = vmatprep.subr.bf16.mxu0 0
  %5676 = vmatpush1.bf16.msra.mxu0 0
  %5677 = vmatprep.subr.bf16.mxu0 0
  %5678 = vmatpush1.bf16.msra.mxu0 0
  %5679 = vmatprep.subr.bf16.mxu0 0
  %5680 = vmatpush1.bf16.msra.mxu0 0
  %5681 = vmatprep.subr.bf16.mxu0 0
  %5682 = vmatpush1.bf16.msra.mxu0 0
  %5683 = vmatprep.mubr.bf16.mxu0 0
  %5684 = vmatmul.mubr.bf16.gmra.mrb[0].mxu0 %v5563
  %v5685 = vpop.f32.mrb[0].mxu0
  %v5686 = vadd.f32 %v5341, %v5685
  %v5687 = vpop.f32.mrb[0].mxu0
  %v5688 = vadd.f32 %v5345, %v5687
  %v5689 = vpop.f32.mrb[0].mxu0
  %v5690 = vadd.f32 %v5341, %v5689
  %v5691 = vpop.f32.mrb[0].mxu0
  %v5692 = vadd.f32 %v5345, %v5691
  %5693 = vdwg.mxu0
  %5694 = vmatprep.subr.bf16.mxu0 %v5505
  %5695 = vmatpush1.bf16.msra.mxu0 %v5504
  %5696 = vmatprep.subr.bf16.mxu0 %v5521
  %5697 = vmatpush1.bf16.msra.mxu0 %v5520
  %5698 = vmatprep.subr.bf16.mxu0 0
  %5699 = vmatpush1.bf16.msra.mxu0 0
  %5700 = vmatprep.subr.bf16.mxu0 0
  %5701 = vmatpush1.bf16.msra.mxu0 0
  %5702 = vmatprep.subr.bf16.mxu0 0
  %5703 = vmatpush1.bf16.msra.mxu0 0
  %5704 = vmatprep.subr.bf16.mxu0 0
  %5705 = vmatpush1.bf16.msra.mxu0 0
  %5706 = vmatprep.subr.bf16.mxu0 0
  %5707 = vmatpush1.bf16.msra.mxu0 0
  %5708 = vmatprep.subr.bf16.mxu0 0
  %5709 = vmatpush1.bf16.msra.mxu0 0
  %5710 = vmatprep.subr.bf16.mxu0 0
  %5711 = vmatpush1.bf16.msra.mxu0 0
  %5712 = vmatprep.subr.bf16.mxu0 0
  %5713 = vmatpush1.bf16.msra.mxu0 0
  %5714 = vmatprep.subr.bf16.mxu0 0
  %5715 = vmatpush1.bf16.msra.mxu0 0
  %5716 = vmatprep.subr.bf16.mxu0 0
  %5717 = vmatpush1.bf16.msra.mxu0 0
  %5718 = vmatprep.subr.bf16.mxu0 0
  %5719 = vmatpush1.bf16.msra.mxu0 0
  %5720 = vmatprep.subr.bf16.mxu0 0
  %5721 = vmatpush1.bf16.msra.mxu0 0
  %5722 = vmatprep.subr.bf16.mxu0 0
  %5723 = vmatpush1.bf16.msra.mxu0 0
  %5724 = vmatprep.subr.bf16.mxu0 0
  %5725 = vmatpush1.bf16.msra.mxu0 0
  %5726 = vmatprep.mubr.bf16.mxu0 0
  %5727 = vmatmul.mubr.bf16.gmra.mrb[0].mxu0 %v5563
  %v5728 = vpop.f32.mrb[0].mxu0
  %v5729 = vadd.f32 %v5349, %v5728
  %v5730 = vpop.f32.mrb[0].mxu0
  %v5731 = vadd.f32 %v5353, %v5730
  %v5732 = vpop.f32.mrb[0].mxu0
  %v5733 = vadd.f32 %v5349, %v5732
  %v5734 = vpop.f32.mrb[0].mxu0
  %v5735 = vadd.f32 %v5353, %v5734
  %5736 = vdwg.mxu0
  %5737 = vmatprep.subr.bf16.mxu0 %v5507
  %5738 = vmatpush1.bf16.msra.mxu0 %v5506
  %5739 = vmatprep.subr.bf16.mxu0 %v5523
  %5740 = vmatpush1.bf16.msra.mxu0 %v5522
  %5741 = vmatprep.subr.bf16.mxu0 0
  %5742 = vmatpush1.bf16.msra.mxu0 0
  %5743 = vmatprep.subr.bf16.mxu0 0
  %5744 = vmatpush1.bf16.msra.mxu0 0
  %5745 = vmatprep.subr.bf16.mxu0 0
  %5746 = vmatpush1.bf16.msra.mxu0 0
  %5747 = vmatprep.subr.bf16.mxu0 0
  %5748 = vmatpush1.bf16.msra.mxu0 0
  %5749 = vmatprep.subr.bf16.mxu0 0
  %5750 = vmatpush1.bf16.msra.mxu0 0
  %5751 = vmatprep.subr.bf16.mxu0 0
  %5752 = vmatpush1.bf16.msra.mxu0 0
  %5753 = vmatprep.subr.bf16.mxu0 0
  %5754 = vmatpush1.bf16.msra.mxu0 0
  %5755 = vmatprep.subr.bf16.mxu0 0
  %5756 = vmatpush1.bf16.msra.mxu0 0
  %5757 = vmatprep.subr.bf16.mxu0 0
  %5758 = vmatpush1.bf16.msra.mxu0 0
  %5759 = vmatprep.subr.bf16.mxu0 0
  %5760 = vmatpush1.bf16.msra.mxu0 0
  %5761 = vmatprep.subr.bf16.mxu0 0
  %5762 = vmatpush1.bf16.msra.mxu0 0
  %5763 = vmatprep.subr.bf16.mxu0 0
  %5764 = vmatpush1.bf16.msra.mxu0 0
  %5765 = vmatprep.subr.bf16.mxu0 0
  %5766 = vmatpush1.bf16.msra.mxu0 0
  %5767 = vmatprep.subr.bf16.mxu0 0
  %5768 = vmatpush1.bf16.msra.mxu0 0
  %5769 = vmatprep.mubr.bf16.mxu0 0
  %5770 = vmatmul.mubr.bf16.gmra.mrb[0].mxu0 %v5563
  %v5771 = vpop.f32.mrb[0].mxu0
  %v5772 = vadd.f32 %v5357, %v5771
  %v5773 = vpop.f32.mrb[0].mxu0
  %v5774 = vadd.f32 %v5361, %v5773
  %v5775 = vpop.f32.mrb[0].mxu0
  %v5776 = vadd.f32 %v5357, %v5775
  %v5777 = vpop.f32.mrb[0].mxu0
  %v5778 = vadd.f32 %v5361, %v5777
  %5779 = vdwg.mxu0
  %5780 = vmatprep.subr.bf16.mxu0 %v5509
  %5781 = vmatpush1.bf16.msra.mxu0 %v5508
  %5782 = vmatprep.subr.bf16.mxu0 %v5525
  %5783 = vmatpush1.bf16.msra.mxu0 %v5524
  %5784 = vmatprep.subr.bf16.mxu0 0
  %5785 = vmatpush1.bf16.msra.mxu0 0
  %5786 = vmatprep.subr.bf16.mxu0 0
  %5787 = vmatpush1.bf16.msra.mxu0 0
  %5788 = vmatprep.subr.bf16.mxu0 0
  %5789 = vmatpush1.bf16.msra.mxu0 0
  %5790 = vmatprep.subr.bf16.mxu0 0
  %5791 = vmatpush1.bf16.msra.mxu0 0
  %5792 = vmatprep.subr.bf16.mxu0 0
  %5793 = vmatpush1.bf16.msra.mxu0 0
  %5794 = vmatprep.subr.bf16.mxu0 0
  %5795 = vmatpush1.bf16.msra.mxu0 0
  %5796 = vmatprep.subr.bf16.mxu0 0
  %5797 = vmatpush1.bf16.msra.mxu0 0
  %5798 = vmatprep.subr.bf16.mxu0 0
  %5799 = vmatpush1.bf16.msra.mxu0 0
  %5800 = vmatprep.subr.bf16.mxu0 0
  %5801 = vmatpush1.bf16.msra.mxu0 0
  %5802 = vmatprep.subr.bf16.mxu0 0
  %5803 = vmatpush1.bf16.msra.mxu0 0
  %5804 = vmatprep.subr.bf16.mxu0 0
  %5805 = vmatpush1.bf16.msra.mxu0 0
  %5806 = vmatprep.subr.bf16.mxu0 0
  %5807 = vmatpush1.bf16.msra.mxu0 0
  %5808 = vmatprep.subr.bf16.mxu0 0
  %5809 = vmatpush1.bf16.msra.mxu0 0
  %5810 = vmatprep.subr.bf16.mxu0 0
  %5811 = vmatpush1.bf16.msra.mxu0 0
  %5812 = vmatprep.mubr.bf16.mxu0 0
  %5813 = vmatmul.mubr.bf16.gmra.mrb[0].mxu0 %v5563
  %v5814 = vpop.f32.mrb[0].mxu0
  %v5815 = vadd.f32 %v5365, %v5814
  %v5816 = vpop.f32.mrb[0].mxu0
  %v5817 = vadd.f32 %v5369, %v5816
  %v5818 = vpop.f32.mrb[0].mxu0
  %v5819 = vadd.f32 %v5365, %v5818
  %v5820 = vpop.f32.mrb[0].mxu0
  %v5821 = vadd.f32 %v5369, %v5820
  %5822 = vdwg.mxu0
  %5823 = vmatprep.subr.bf16.mxu0 %v5511
  %5824 = vmatpush1.bf16.msra.mxu0 %v5510
  %5825 = vmatprep.subr.bf16.mxu0 %v5527
  %5826 = vmatpush1.bf16.msra.mxu0 %v5526
  %5827 = vmatprep.subr.bf16.mxu0 0
  %5828 = vmatpush1.bf16.msra.mxu0 0
  %5829 = vmatprep.subr.bf16.mxu0 0
  %5830 = vmatpush1.bf16.msra.mxu0 0
  %5831 = vmatprep.subr.bf16.mxu0 0
  %5832 = vmatpush1.bf16.msra.mxu0 0
  %5833 = vmatprep.subr.bf16.mxu0 0
  %5834 = vmatpush1.bf16.msra.mxu0 0
  %5835 = vmatprep.subr.bf16.mxu0 0
  %5836 = vmatpush1.bf16.msra.mxu0 0
  %5837 = vmatprep.subr.bf16.mxu0 0
  %5838 = vmatpush1.bf16.msra.mxu0 0
  %5839 = vmatprep.subr.bf16.mxu0 0
  %5840 = vmatpush1.bf16.msra.mxu0 0
  %5841 = vmatprep.subr.bf16.mxu0 0
  %5842 = vmatpush1.bf16.msra.mxu0 0
  %5843 = vmatprep.subr.bf16.mxu0 0
  %5844 = vmatpush1.bf16.msra.mxu0 0
  %5845 = vmatprep.subr.bf16.mxu0 0
  %5846 = vmatpush1.bf16.msra.mxu0 0
  %5847 = vmatprep.subr.bf16.mxu0 0
  %5848 = vmatpush1.bf16.msra.mxu0 0
  %5849 = vmatprep.subr.bf16.mxu0 0
  %5850 = vmatpush1.bf16.msra.mxu0 0
  %5851 = vmatprep.subr.bf16.mxu0 0
  %5852 = vmatpush1.bf16.msra.mxu0 0
  %5853 = vmatprep.subr.bf16.mxu0 0
  %5854 = vmatpush1.bf16.msra.mxu0 0
  %5855 = vmatprep.mubr.bf16.mxu0 0
  %5856 = vmatmul.mubr.bf16.gmra.mrb[0].mxu0 %v5563
  %v5857 = vpop.f32.mrb[0].mxu0
  %v5858 = vadd.f32 %v5373, %v5857
  %v5859 = vpop.f32.mrb[0].mxu0
  %v5860 = vadd.f32 %v5377, %v5859
  %v5861 = vpop.f32.mrb[0].mxu0
  %v5862 = vadd.f32 %v5373, %v5861
  %v5863 = vpop.f32.mrb[0].mxu0
  %v5864 = vadd.f32 %v5377, %v5863
  %5865 = vdwg.mxu0
  %5866 = vmatprep.subr.bf16.mxu0 %v5513
  %5867 = vmatpush1.bf16.msra.mxu0 %v5512
  %5868 = vmatprep.subr.bf16.mxu0 %v5529
  %5869 = vmatpush1.bf16.msra.mxu0 %v5528
  %5870 = vmatprep.subr.bf16.mxu0 0
  %5871 = vmatpush1.bf16.msra.mxu0 0
  %5872 = vmatprep.subr.bf16.mxu0 0
  %5873 = vmatpush1.bf16.msra.mxu0 0
  %5874 = vmatprep.subr.bf16.mxu0 0
  %5875 = vmatpush1.bf16.msra.mxu0 0
  %5876 = vmatprep.subr.bf16.mxu0 0
  %5877 = vmatpush1.bf16.msra.mxu0 0
  %5878 = vmatprep.subr.bf16.mxu0 0
  %5879 = vmatpush1.bf16.msra.mxu0 0
  %5880 = vmatprep.subr.bf16.mxu0 0
  %5881 = vmatpush1.bf16.msra.mxu0 0
  %5882 = vmatprep.subr.bf16.mxu0 0
  %5883 = vmatpush1.bf16.msra.mxu0 0
  %5884 = vmatprep.subr.bf16.mxu0 0
  %5885 = vmatpush1.bf16.msra.mxu0 0
  %5886 = vmatprep.subr.bf16.mxu0 0
  %5887 = vmatpush1.bf16.msra.mxu0 0
  %5888 = vmatprep.subr.bf16.mxu0 0
  %5889 = vmatpush1.bf16.msra.mxu0 0
  %5890 = vmatprep.subr.bf16.mxu0 0
  %5891 = vmatpush1.bf16.msra.mxu0 0
  %5892 = vmatprep.subr.bf16.mxu0 0
  %5893 = vmatpush1.bf16.msra.mxu0 0
  %5894 = vmatprep.subr.bf16.mxu0 0
  %5895 = vmatpush1.bf16.msra.mxu0 0
  %5896 = vmatprep.subr.bf16.mxu0 0
  %5897 = vmatpush1.bf16.msra.mxu0 0
  %5898 = vmatprep.mubr.bf16.mxu0 0
  %5899 = vmatmul.mubr.bf16.gmra.mrb[0].mxu0 %v5563
  %v5900 = vpop.f32.mrb[0].mxu0
  %v5901 = vadd.f32 %v5381, %v5900
  %v5902 = vpop.f32.mrb[0].mxu0
  %v5903 = vadd.f32 %v5385, %v5902
  %v5904 = vpop.f32.mrb[0].mxu0
  %v5905 = vadd.f32 %v5381, %v5904
  %v5906 = vpop.f32.mrb[0].mxu0
  %v5907 = vadd.f32 %v5385, %v5906
  %5908 = vdwg.mxu0
  %v5909 = vmax.f32 %v5600, 0.0
  %v5910 = vmax.f32 %v5602, 0.0
  %v5911 = vmax.f32 %v5643, 0.0
  %v5912 = vmax.f32 %v5645, 0.0
  %v5913 = vmax.f32 %v5686, 0.0
  %v5914 = vmax.f32 %v5688, 0.0
  %v5915 = vmax.f32 %v5729, 0.0
  %v5916 = vmax.f32 %v5731, 0.0
  %v5917 = vmax.f32 %v5772, 0.0
  %v5918 = vmax.f32 %v5774, 0.0
  %v5919 = vmax.f32 %v5815, 0.0
  %v5920 = vmax.f32 %v5817, 0.0
  %v5921 = vmax.f32 %v5858, 0.0
  %v5922 = vmax.f32 %v5860, 0.0
  %v5923 = vmax.f32 %v5901, 0.0
  %v5924 = vmax.f32 %v5903, 0.0
  %v5925 = vmax.f32 %v5604, 0.0
  %v5926 = vmax.f32 %v5606, 0.0
  %v5927 = vmax.f32 %v5647, 0.0
  %v5928 = vmax.f32 %v5649, 0.0
  %v5929 = vmax.f32 %v5690, 0.0
  %v5930 = vmax.f32 %v5692, 0.0
  %v5931 = vmax.f32 %v5733, 0.0
  %v5932 = vmax.f32 %v5735, 0.0
  %v5933 = vmax.f32 %v5776, 0.0
  %v5934 = vmax.f32 %v5778, 0.0
  %v5935 = vmax.f32 %v5819, 0.0
  %v5936 = vmax.f32 %v5821, 0.0
  %v5937 = vmax.f32 %v5862, 0.0
  %v5938 = vmax.f32 %v5864, 0.0
  %v5939 = vmax.f32 %v5905, 0.0
  %v5940 = vmax.f32 %v5907, 0.0
  %v5941 = vpack.c.bf16 %v5925, %v5909
  %v5942 = vpack.c.bf16 %v5926, %v5910
  %v5943 = vpack.c.bf16 %v5927, %v5911
  %v5944 = vpack.c.bf16 %v5928, %v5912
  %v5945 = vpack.c.bf16 %v5929, %v5913
  %v5946 = vpack.c.bf16 %v5930, %v5914
  %v5947 = vpack.c.bf16 %v5931, %v5915
  %v5948 = vpack.c.bf16 %v5932, %v5916
  %v5949 = vpack.c.bf16 %v5933, %v5917
  %v5950 = vpack.c.bf16 %v5934, %v5918
  %v5951 = vpack.c.bf16 %v5935, %v5919
  %v5952 = vpack.c.bf16 %v5936, %v5920
  %v5953 = vpack.c.bf16 %v5937, %v5921
  %v5954 = vpack.c.bf16 %v5938, %v5922
  %v5955 = vpack.c.bf16 %v5939, %v5923
  %v5956 = vpack.c.bf16 %v5940, %v5924
  %s5957 = scalar_lea.vmem %s11, 1024
  %v5958 = vld [vmem:[%s5957] sm:$0xf]
  %v5959 = vld [vmem:[%s5957 + $0x4] sm:$0xf]
  %v5960 = vld [vmem:[%s5957 + $0x8] sm:$0xf]
  %v5961 = vld [vmem:[%s5957 + $0xc] sm:$0xf]
  %v5962 = vld [vmem:[%s5957 + $0x10] sm:$0xf]
  %v5963 = vld [vmem:[%s5957 + $0x14] sm:$0xf]
  %v5964 = vld [vmem:[%s5957 + $0x18] sm:$0xf]
  %v5965 = vld [vmem:[%s5957 + $0x1c] sm:$0xf]
  %v5966 = vld [vmem:[%s5957 + $0x20] sm:$0xf]
  %v5967 = vld [vmem:[%s5957 + $0x24] sm:$0xf]
  %v5968 = vld [vmem:[%s5957 + $0x28] sm:$0xf]
  %v5969 = vld [vmem:[%s5957 + $0x2c] sm:$0xf]
  %v5970 = vld [vmem:[%s5957 + $0x30] sm:$0xf]
  %v5971 = vld [vmem:[%s5957 + $0x34] sm:$0xf]
  %v5972 = vld [vmem:[%s5957 + $0x38] sm:$0xf]
  %v5973 = vld [vmem:[%s5957 + $0x3c] sm:$0xf]
  %v5974 = vld [vmem:[%s5957 + $0x40] sm:$0xf]
  %v5975 = vld [vmem:[%s5957 + $0x44] sm:$0xf]
  %v5976 = vld [vmem:[%s5957 + $0x48] sm:$0xf]
  %v5977 = vld [vmem:[%s5957 + $0x4c] sm:$0xf]
  %v5978 = vld [vmem:[%s5957 + $0x50] sm:$0xf]
  %v5979 = vld [vmem:[%s5957 + $0x54] sm:$0xf]
  %v5980 = vld [vmem:[%s5957 + $0x58] sm:$0xf]
  %v5981 = vld [vmem:[%s5957 + $0x5c] sm:$0xf]
  %v5982 = vld [vmem:[%s5957 + $0x60] sm:$0xf]
  %v5983 = vld [vmem:[%s5957 + $0x64] sm:$0xf]
  %v5984 = vld [vmem:[%s5957 + $0x68] sm:$0xf]
  %v5985 = vld [vmem:[%s5957 + $0x6c] sm:$0xf]
  %v5986 = vld [vmem:[%s5957 + $0x70] sm:$0xf]
  %v5987 = vld [vmem:[%s5957 + $0x74] sm:$0xf]
  %v5988 = vld [vmem:[%s5957 + $0x78] sm:$0xf]
  %v5989 = vld [vmem:[%s5957 + $0x7c] sm:$0xf]
  %v5990 = vld [vmem:[%s5957 + $0x80] sm:$0xf]
  %v5991 = vld [vmem:[%s5957 + $0x84] sm:$0xf]
  %v5992 = vld [vmem:[%s5957 + $0x88] sm:$0xf]
  %v5993 = vld [vmem:[%s5957 + $0x8c] sm:$0xf]
  %v5994 = vld [vmem:[%s5957 + $0x90] sm:$0xf]
  %v5995 = vld [vmem:[%s5957 + $0x94] sm:$0xf]
  %v5996 = vld [vmem:[%s5957 + $0x98] sm:$0xf]
  %v5997 = vld [vmem:[%s5957 + $0x9c] sm:$0xf]
  %v5998 = vld [vmem:[%s5957 + $0xa0] sm:$0xf]
  %v5999 = vld [vmem:[%s5957 + $0xa4] sm:$0xf]
  %v6000 = vld [vmem:[%s5957 + $0xa8] sm:$0xf]
  %v6001 = vld [vmem:[%s5957 + $0xac] sm:$0xf]
  %v6002 = vld [vmem:[%s5957 + $0xb0] sm:$0xf]
  %v6003 = vld [vmem:[%s5957 + $0xb4] sm:$0xf]
  %v6004 = vld [vmem:[%s5957 + $0xb8] sm:$0xf]
  %v6005 = vld [vmem:[%s5957 + $0xbc] sm:$0xf]
  %v6006 = vld [vmem:[%s5957 + $0xc0] sm:$0xf]
  %v6007 = vld [vmem:[%s5957 + $0xc4] sm:$0xf]
  %v6008 = vld [vmem:[%s5957 + $0xc8] sm:$0xf]
  %v6009 = vld [vmem:[%s5957 + $0xcc] sm:$0xf]
  %v6010 = vld [vmem:[%s5957 + $0xd0] sm:$0xf]
  %v6011 = vld [vmem:[%s5957 + $0xd4] sm:$0xf]
  %v6012 = vld [vmem:[%s5957 + $0xd8] sm:$0xf]
  %v6013 = vld [vmem:[%s5957 + $0xdc] sm:$0xf]
  %v6014 = vld [vmem:[%s5957 + $0xe0] sm:$0xf]
  %v6015 = vld [vmem:[%s5957 + $0xe4] sm:$0xf]
  %v6016 = vld [vmem:[%s5957 + $0xe8] sm:$0xf]
  %v6017 = vld [vmem:[%s5957 + $0xec] sm:$0xf]
  %v6018 = vld [vmem:[%s5957 + $0xf0] sm:$0xf]
  %v6019 = vld [vmem:[%s5957 + $0xf4] sm:$0xf]
  %v6020 = vld [vmem:[%s5957 + $0xf8] sm:$0xf]
  %v6021 = vld [vmem:[%s5957 + $0xfc] sm:$0xf]
  %v6022 = vld [vmem:[%s5957 + $0x100] sm:$0xf]
  %v6023 = vld [vmem:[%s5957 + $0x104] sm:$0xf]
  %v6024 = vld [vmem:[%s5957 + $0x108] sm:$0xf]
  %v6025 = vld [vmem:[%s5957 + $0x10c] sm:$0xf]
  %v6026 = vld [vmem:[%s5957 + $0x110] sm:$0xf]
  %v6027 = vld [vmem:[%s5957 + $0x114] sm:$0xf]
  %v6028 = vld [vmem:[%s5957 + $0x118] sm:$0xf]
  %v6029 = vld [vmem:[%s5957 + $0x11c] sm:$0xf]
  %v6030 = vld [vmem:[%s5957 + $0x120] sm:$0xf]
  %v6031 = vld [vmem:[%s5957 + $0x124] sm:$0xf]
  %v6032 = vld [vmem:[%s5957 + $0x128] sm:$0xf]
  %v6033 = vld [vmem:[%s5957 + $0x12c] sm:$0xf]
  %v6034 = vld [vmem:[%s5957 + $0x130] sm:$0xf]
  %v6035 = vld [vmem:[%s5957 + $0x134] sm:$0xf]
  %v6036 = vld [vmem:[%s5957 + $0x138] sm:$0xf]
  %v6037 = vld [vmem:[%s5957 + $0x13c] sm:$0xf]
  %v6038 = vld [vmem:[%s5957 + $0x140] sm:$0xf]
  %v6039 = vld [vmem:[%s5957 + $0x144] sm:$0xf]
  %v6040 = vld [vmem:[%s5957 + $0x148] sm:$0xf]
  %v6041 = vld [vmem:[%s5957 + $0x14c] sm:$0xf]
  %v6042 = vld [vmem:[%s5957 + $0x150] sm:$0xf]
  %v6043 = vld [vmem:[%s5957 + $0x154] sm:$0xf]
  %v6044 = vld [vmem:[%s5957 + $0x158] sm:$0xf]
  %v6045 = vld [vmem:[%s5957 + $0x15c] sm:$0xf]
  %v6046 = vld [vmem:[%s5957 + $0x160] sm:$0xf]
  %v6047 = vld [vmem:[%s5957 + $0x164] sm:$0xf]
  %v6048 = vld [vmem:[%s5957 + $0x168] sm:$0xf]
  %v6049 = vld [vmem:[%s5957 + $0x16c] sm:$0xf]
  %v6050 = vld [vmem:[%s5957 + $0x170] sm:$0xf]
  %v6051 = vld [vmem:[%s5957 + $0x174] sm:$0xf]
  %v6052 = vld [vmem:[%s5957 + $0x178] sm:$0xf]
  %v6053 = vld [vmem:[%s5957 + $0x17c] sm:$0xf]
  %v6054 = vld [vmem:[%s5957 + $0x180] sm:$0xf]
  %v6055 = vld [vmem:[%s5957 + $0x184] sm:$0xf]
  %v6056 = vld [vmem:[%s5957 + $0x188] sm:$0xf]
  %v6057 = vld [vmem:[%s5957 + $0x18c] sm:$0xf]
  %v6058 = vld [vmem:[%s5957 + $0x190] sm:$0xf]
  %v6059 = vld [vmem:[%s5957 + $0x194] sm:$0xf]
  %v6060 = vld [vmem:[%s5957 + $0x198] sm:$0xf]
  %v6061 = vld [vmem:[%s5957 + $0x19c] sm:$0xf]
  %v6062 = vld [vmem:[%s5957 + $0x1a0] sm:$0xf]
  %v6063 = vld [vmem:[%s5957 + $0x1a4] sm:$0xf]
  %v6064 = vld [vmem:[%s5957 + $0x1a8] sm:$0xf]
  %v6065 = vld [vmem:[%s5957 + $0x1ac] sm:$0xf]
  %v6066 = vld [vmem:[%s5957 + $0x1b0] sm:$0xf]
  %v6067 = vld [vmem:[%s5957 + $0x1b4] sm:$0xf]
  %v6068 = vld [vmem:[%s5957 + $0x1b8] sm:$0xf]
  %v6069 = vld [vmem:[%s5957 + $0x1bc] sm:$0xf]
  %v6070 = vld [vmem:[%s5957 + $0x1c0] sm:$0xf]
  %v6071 = vld [vmem:[%s5957 + $0x1c4] sm:$0xf]
  %v6072 = vld [vmem:[%s5957 + $0x1c8] sm:$0xf]
  %v6073 = vld [vmem:[%s5957 + $0x1cc] sm:$0xf]
  %v6074 = vld [vmem:[%s5957 + $0x1d0] sm:$0xf]
  %v6075 = vld [vmem:[%s5957 + $0x1d4] sm:$0xf]
  %v6076 = vld [vmem:[%s5957 + $0x1d8] sm:$0xf]
  %v6077 = vld [vmem:[%s5957 + $0x1dc] sm:$0xf]
  %v6078 = vld [vmem:[%s5957 + $0x1e0] sm:$0xf]
  %v6079 = vld [vmem:[%s5957 + $0x1e4] sm:$0xf]
  %v6080 = vld [vmem:[%s5957 + $0x1e8] sm:$0xf]
  %v6081 = vld [vmem:[%s5957 + $0x1ec] sm:$0xf]
  %v6082 = vld [vmem:[%s5957 + $0x1f0] sm:$0xf]
  %v6083 = vld [vmem:[%s5957 + $0x1f4] sm:$0xf]
  %v6084 = vld [vmem:[%s5957 + $0x1f8] sm:$0xf]
  %v6085 = vld [vmem:[%s5957 + $0x1fc] sm:$0xf]
  %v6086 = vld [vmem:[%s5957 + $0x200] sm:$0xf]
  %v6087 = vld [vmem:[%s5957 + $0x204] sm:$0xf]
  %v6088 = vld [vmem:[%s5957 + $0x208] sm:$0xf]
  %v6089 = vld [vmem:[%s5957 + $0x20c] sm:$0xf]
  %v6090 = vld [vmem:[%s5957 + $0x210] sm:$0xf]
  %v6091 = vld [vmem:[%s5957 + $0x214] sm:$0xf]
  %v6092 = vld [vmem:[%s5957 + $0x218] sm:$0xf]
  %v6093 = vld [vmem:[%s5957 + $0x21c] sm:$0xf]
  %v6094 = vld [vmem:[%s5957 + $0x220] sm:$0xf]
  %v6095 = vld [vmem:[%s5957 + $0x224] sm:$0xf]
  %v6096 = vld [vmem:[%s5957 + $0x228] sm:$0xf]
  %v6097 = vld [vmem:[%s5957 + $0x22c] sm:$0xf]
  %v6098 = vld [vmem:[%s5957 + $0x230] sm:$0xf]
  %v6099 = vld [vmem:[%s5957 + $0x234] sm:$0xf]
  %v6100 = vld [vmem:[%s5957 + $0x238] sm:$0xf]
  %v6101 = vld [vmem:[%s5957 + $0x23c] sm:$0xf]
  %v6102 = vld [vmem:[%s5957 + $0x240] sm:$0xf]
  %v6103 = vld [vmem:[%s5957 + $0x244] sm:$0xf]
  %v6104 = vld [vmem:[%s5957 + $0x248] sm:$0xf]
  %v6105 = vld [vmem:[%s5957 + $0x24c] sm:$0xf]
  %v6106 = vld [vmem:[%s5957 + $0x250] sm:$0xf]
  %v6107 = vld [vmem:[%s5957 + $0x254] sm:$0xf]
  %v6108 = vld [vmem:[%s5957 + $0x258] sm:$0xf]
  %v6109 = vld [vmem:[%s5957 + $0x25c] sm:$0xf]
  %v6110 = vld [vmem:[%s5957 + $0x260] sm:$0xf]
  %v6111 = vld [vmem:[%s5957 + $0x264] sm:$0xf]
  %v6112 = vld [vmem:[%s5957 + $0x268] sm:$0xf]
  %v6113 = vld [vmem:[%s5957 + $0x26c] sm:$0xf]
  %v6114 = vld [vmem:[%s5957 + $0x270] sm:$0xf]
  %v6115 = vld [vmem:[%s5957 + $0x274] sm:$0xf]
  %v6116 = vld [vmem:[%s5957 + $0x278] sm:$0xf]
  %v6117 = vld [vmem:[%s5957 + $0x27c] sm:$0xf]
  %v6118 = vld [vmem:[%s5957 + $0x280] sm:$0xf]
  %v6119 = vld [vmem:[%s5957 + $0x284] sm:$0xf]
  %v6120 = vld [vmem:[%s5957 + $0x288] sm:$0xf]
  %v6121 = vld [vmem:[%s5957 + $0x28c] sm:$0xf]
  %v6122 = vld [vmem:[%s5957 + $0x290] sm:$0xf]
  %v6123 = vld [vmem:[%s5957 + $0x294] sm:$0xf]
  %v6124 = vld [vmem:[%s5957 + $0x298] sm:$0xf]
  %v6125 = vld [vmem:[%s5957 + $0x29c] sm:$0xf]
  %v6126 = vld [vmem:[%s5957 + $0x2a0] sm:$0xf]
  %v6127 = vld [vmem:[%s5957 + $0x2a4] sm:$0xf]
  %v6128 = vld [vmem:[%s5957 + $0x2a8] sm:$0xf]
  %v6129 = vld [vmem:[%s5957 + $0x2ac] sm:$0xf]
  %v6130 = vld [vmem:[%s5957 + $0x2b0] sm:$0xf]
  %v6131 = vld [vmem:[%s5957 + $0x2b4] sm:$0xf]
  %v6132 = vld [vmem:[%s5957 + $0x2b8] sm:$0xf]
  %v6133 = vld [vmem:[%s5957 + $0x2bc] sm:$0xf]
  %v6134 = vld [vmem:[%s5957 + $0x2c0] sm:$0xf]
  %v6135 = vld [vmem:[%s5957 + $0x2c4] sm:$0xf]
  %v6136 = vld [vmem:[%s5957 + $0x2c8] sm:$0xf]
  %v6137 = vld [vmem:[%s5957 + $0x2cc] sm:$0xf]
  %v6138 = vld [vmem:[%s5957 + $0x2d0] sm:$0xf]
  %v6139 = vld [vmem:[%s5957 + $0x2d4] sm:$0xf]
  %v6140 = vld [vmem:[%s5957 + $0x2d8] sm:$0xf]
  %v6141 = vld [vmem:[%s5957 + $0x2dc] sm:$0xf]
  %v6142 = vld [vmem:[%s5957 + $0x2e0] sm:$0xf]
  %v6143 = vld [vmem:[%s5957 + $0x2e4] sm:$0xf]
  %v6144 = vld [vmem:[%s5957 + $0x2e8] sm:$0xf]
  %v6145 = vld [vmem:[%s5957 + $0x2ec] sm:$0xf]
  %v6146 = vld [vmem:[%s5957 + $0x2f0] sm:$0xf]
  %v6147 = vld [vmem:[%s5957 + $0x2f4] sm:$0xf]
  %v6148 = vld [vmem:[%s5957 + $0x2f8] sm:$0xf]
  %v6149 = vld [vmem:[%s5957 + $0x2fc] sm:$0xf]
  %v6150 = vld [vmem:[%s5957 + $0x300] sm:$0xf]
  %v6151 = vld [vmem:[%s5957 + $0x304] sm:$0xf]
  %v6152 = vld [vmem:[%s5957 + $0x308] sm:$0xf]
  %v6153 = vld [vmem:[%s5957 + $0x30c] sm:$0xf]
  %v6154 = vld [vmem:[%s5957 + $0x310] sm:$0xf]
  %v6155 = vld [vmem:[%s5957 + $0x314] sm:$0xf]
  %v6156 = vld [vmem:[%s5957 + $0x318] sm:$0xf]
  %v6157 = vld [vmem:[%s5957 + $0x31c] sm:$0xf]
  %v6158 = vld [vmem:[%s5957 + $0x320] sm:$0xf]
  %v6159 = vld [vmem:[%s5957 + $0x324] sm:$0xf]
  %v6160 = vld [vmem:[%s5957 + $0x328] sm:$0xf]
  %v6161 = vld [vmem:[%s5957 + $0x32c] sm:$0xf]
  %v6162 = vld [vmem:[%s5957 + $0x330] sm:$0xf]
  %v6163 = vld [vmem:[%s5957 + $0x334] sm:$0xf]
  %v6164 = vld [vmem:[%s5957 + $0x338] sm:$0xf]
  %v6165 = vld [vmem:[%s5957 + $0x33c] sm:$0xf]
  %v6166 = vld [vmem:[%s5957 + $0x340] sm:$0xf]
  %v6167 = vld [vmem:[%s5957 + $0x344] sm:$0xf]
  %v6168 = vld [vmem:[%s5957 + $0x348] sm:$0xf]
  %v6169 = vld [vmem:[%s5957 + $0x34c] sm:$0xf]
  %v6170 = vld [vmem:[%s5957 + $0x350] sm:$0xf]
  %v6171 = vld [vmem:[%s5957 + $0x354] sm:$0xf]
  %v6172 = vld [vmem:[%s5957 + $0x358] sm:$0xf]
  %v6173 = vld [vmem:[%s5957 + $0x35c] sm:$0xf]
  %v6174 = vld [vmem:[%s5957 + $0x360] sm:$0xf]
  %v6175 = vld [vmem:[%s5957 + $0x364] sm:$0xf]
  %v6176 = vld [vmem:[%s5957 + $0x368] sm:$0xf]
  %v6177 = vld [vmem:[%s5957 + $0x36c] sm:$0xf]
  %v6178 = vld [vmem:[%s5957 + $0x370] sm:$0xf]
  %v6179 = vld [vmem:[%s5957 + $0x374] sm:$0xf]
  %v6180 = vld [vmem:[%s5957 + $0x378] sm:$0xf]
  %v6181 = vld [vmem:[%s5957 + $0x37c] sm:$0xf]
  %v6182 = vld [vmem:[%s5957 + $0x380] sm:$0xf]
  %v6183 = vld [vmem:[%s5957 + $0x384] sm:$0xf]
  %v6184 = vld [vmem:[%s5957 + $0x388] sm:$0xf]
  %v6185 = vld [vmem:[%s5957 + $0x38c] sm:$0xf]
  %v6186 = vld [vmem:[%s5957 + $0x390] sm:$0xf]
  %v6187 = vld [vmem:[%s5957 + $0x394] sm:$0xf]
  %v6188 = vld [vmem:[%s5957 + $0x398] sm:$0xf]
  %v6189 = vld [vmem:[%s5957 + $0x39c] sm:$0xf]
  %v6190 = vld [vmem:[%s5957 + $0x3a0] sm:$0xf]
  %v6191 = vld [vmem:[%s5957 + $0x3a4] sm:$0xf]
  %v6192 = vld [vmem:[%s5957 + $0x3a8] sm:$0xf]
  %v6193 = vld [vmem:[%s5957 + $0x3ac] sm:$0xf]
  %v6194 = vld [vmem:[%s5957 + $0x3b0] sm:$0xf]
  %v6195 = vld [vmem:[%s5957 + $0x3b4] sm:$0xf]
  %v6196 = vld [vmem:[%s5957 + $0x3b8] sm:$0xf]
  %v6197 = vld [vmem:[%s5957 + $0x3bc] sm:$0xf]
  %v6198 = vld [vmem:[%s5957 + $0x3c0] sm:$0xf]
  %v6199 = vld [vmem:[%s5957 + $0x3c4] sm:$0xf]
  %v6200 = vld [vmem:[%s5957 + $0x3c8] sm:$0xf]
  %v6201 = vld [vmem:[%s5957 + $0x3cc] sm:$0xf]
  %v6202 = vld [vmem:[%s5957 + $0x3d0] sm:$0xf]
  %v6203 = vld [vmem:[%s5957 + $0x3d4] sm:$0xf]
  %v6204 = vld [vmem:[%s5957 + $0x3d8] sm:$0xf]
  %v6205 = vld [vmem:[%s5957 + $0x3dc] sm:$0xf]
  %v6206 = vld [vmem:[%s5957 + $0x3e0] sm:$0xf]
  %v6207 = vld [vmem:[%s5957 + $0x3e4] sm:$0xf]
  %v6208 = vld [vmem:[%s5957 + $0x3e8] sm:$0xf]
  %v6209 = vld [vmem:[%s5957 + $0x3ec] sm:$0xf]
  %v6210 = vld [vmem:[%s5957 + $0x3f0] sm:$0xf]
  %v6211 = vld [vmem:[%s5957 + $0x3f4] sm:$0xf]
  %v6212 = vld [vmem:[%s5957 + $0x3f8] sm:$0xf]
  %v6213 = vld [vmem:[%s5957 + $0x3fc] sm:$0xf]
  %s6214 = scalar_lea.vmem %s12, 1
  %v6215 = vld [vmem:[%s6214] sm:$0x1]
  %v6217 = vlaneseq
  %v6218 = vshrl.u32 %v6217, 7
  %v6219 = vsub.s32 0, %v6218
  %v6220 = vrot.slane %v6215, %v6219
  %v6478 = vunpack.c.l.b16 %v5958
  %v6479 = vunpack.c.l.b16 %v5959
  %v6480 = vunpack.c.l.b16 %v5960
  %v6481 = vunpack.c.l.b16 %v5961
  %v6482 = vunpack.c.l.b16 %v5962
  %v6483 = vunpack.c.l.b16 %v5963
  %v6484 = vunpack.c.l.b16 %v5964
  %v6485 = vunpack.c.l.b16 %v5965
  %v6486 = vunpack.c.l.b16 %v5966
  %v6487 = vunpack.c.l.b16 %v5967
  %v6488 = vunpack.c.l.b16 %v5968
  %v6489 = vunpack.c.l.b16 %v5969
  %v6490 = vunpack.c.l.b16 %v5970
  %v6491 = vunpack.c.l.b16 %v5971
  %v6492 = vunpack.c.l.b16 %v5972
  %v6493 = vunpack.c.l.b16 %v5973
  %v6494 = vunpack.c.l.b16 %v5974
  %v6495 = vunpack.c.l.b16 %v5975
  %v6496 = vunpack.c.l.b16 %v5976
  %v6497 = vunpack.c.l.b16 %v5977
  %v6498 = vunpack.c.l.b16 %v5978
  %v6499 = vunpack.c.l.b16 %v5979
  %v6500 = vunpack.c.l.b16 %v5980
  %v6501 = vunpack.c.l.b16 %v5981
  %v6502 = vunpack.c.l.b16 %v5982
  %v6503 = vunpack.c.l.b16 %v5983
  %v6504 = vunpack.c.l.b16 %v5984
  %v6505 = vunpack.c.l.b16 %v5985
  %v6506 = vunpack.c.l.b16 %v5986
  %v6507 = vunpack.c.l.b16 %v5987
  %v6508 = vunpack.c.l.b16 %v5988
  %v6509 = vunpack.c.l.b16 %v5989
  %v6510 = vunpack.c.l.b16 %v5990
  %v6511 = vunpack.c.l.b16 %v5991
  %v6512 = vunpack.c.l.b16 %v5992
  %v6513 = vunpack.c.l.b16 %v5993
  %v6514 = vunpack.c.l.b16 %v5994
  %v6515 = vunpack.c.l.b16 %v5995
  %v6516 = vunpack.c.l.b16 %v5996
  %v6517 = vunpack.c.l.b16 %v5997
  %v6518 = vunpack.c.l.b16 %v5998
  %v6519 = vunpack.c.l.b16 %v5999
  %v6520 = vunpack.c.l.b16 %v6000
  %v6521 = vunpack.c.l.b16 %v6001
  %v6522 = vunpack.c.l.b16 %v6002
  %v6523 = vunpack.c.l.b16 %v6003
  %v6524 = vunpack.c.l.b16 %v6004
  %v6525 = vunpack.c.l.b16 %v6005
  %v6526 = vunpack.c.l.b16 %v6006
  %v6527 = vunpack.c.l.b16 %v6007
  %v6528 = vunpack.c.l.b16 %v6008
  %v6529 = vunpack.c.l.b16 %v6009
  %v6530 = vunpack.c.l.b16 %v6010
  %v6531 = vunpack.c.l.b16 %v6011
  %v6532 = vunpack.c.l.b16 %v6012
  %v6533 = vunpack.c.l.b16 %v6013
  %v6534 = vunpack.c.l.b16 %v6014
  %v6535 = vunpack.c.l.b16 %v6015
  %v6536 = vunpack.c.l.b16 %v6016
  %v6537 = vunpack.c.l.b16 %v6017
  %v6538 = vunpack.c.l.b16 %v6018
  %v6539 = vunpack.c.l.b16 %v6019
  %v6540 = vunpack.c.l.b16 %v6020
  %v6541 = vunpack.c.l.b16 %v6021
  %v6542 = vunpack.c.l.b16 %v6022
  %v6543 = vunpack.c.l.b16 %v6023
  %v6544 = vunpack.c.l.b16 %v6024
  %v6545 = vunpack.c.l.b16 %v6025
  %v6546 = vunpack.c.l.b16 %v6026
  %v6547 = vunpack.c.l.b16 %v6027
  %v6548 = vunpack.c.l.b16 %v6028
  %v6549 = vunpack.c.l.b16 %v6029
  %v6550 = vunpack.c.l.b16 %v6030
  %v6551 = vunpack.c.l.b16 %v6031
  %v6552 = vunpack.c.l.b16 %v6032
  %v6553 = vunpack.c.l.b16 %v6033
  %v6554 = vunpack.c.l.b16 %v6034
  %v6555 = vunpack.c.l.b16 %v6035
  %v6556 = vunpack.c.l.b16 %v6036
  %v6557 = vunpack.c.l.b16 %v6037
  %v6558 = vunpack.c.l.b16 %v6038
  %v6559 = vunpack.c.l.b16 %v6039
  %v6560 = vunpack.c.l.b16 %v6040
  %v6561 = vunpack.c.l.b16 %v6041
  %v6562 = vunpack.c.l.b16 %v6042
  %v6563 = vunpack.c.l.b16 %v6043
  %v6564 = vunpack.c.l.b16 %v6044
  %v6565 = vunpack.c.l.b16 %v6045
  %v6566 = vunpack.c.l.b16 %v6046
  %v6567 = vunpack.c.l.b16 %v6047
  %v6568 = vunpack.c.l.b16 %v6048
  %v6569 = vunpack.c.l.b16 %v6049
  %v6570 = vunpack.c.l.b16 %v6050
  %v6571 = vunpack.c.l.b16 %v6051
  %v6572 = vunpack.c.l.b16 %v6052
  %v6573 = vunpack.c.l.b16 %v6053
  %v6574 = vunpack.c.l.b16 %v6054
  %v6575 = vunpack.c.l.b16 %v6055
  %v6576 = vunpack.c.l.b16 %v6056
  %v6577 = vunpack.c.l.b16 %v6057
  %v6578 = vunpack.c.l.b16 %v6058
  %v6579 = vunpack.c.l.b16 %v6059
  %v6580 = vunpack.c.l.b16 %v6060
  %v6581 = vunpack.c.l.b16 %v6061
  %v6582 = vunpack.c.l.b16 %v6062
  %v6583 = vunpack.c.l.b16 %v6063
  %v6584 = vunpack.c.l.b16 %v6064
  %v6585 = vunpack.c.l.b16 %v6065
  %v6586 = vunpack.c.l.b16 %v6066
  %v6587 = vunpack.c.l.b16 %v6067
  %v6588 = vunpack.c.l.b16 %v6068
  %v6589 = vunpack.c.l.b16 %v6069
  %v6590 = vunpack.c.l.b16 %v6070
  %v6591 = vunpack.c.l.b16 %v6071
  %v6592 = vunpack.c.l.b16 %v6072
  %v6593 = vunpack.c.l.b16 %v6073
  %v6594 = vunpack.c.l.b16 %v6074
  %v6595 = vunpack.c.l.b16 %v6075
  %v6596 = vunpack.c.l.b16 %v6076
  %v6597 = vunpack.c.l.b16 %v6077
  %v6598 = vunpack.c.l.b16 %v6078
  %v6599 = vunpack.c.l.b16 %v6079
  %v6600 = vunpack.c.l.b16 %v6080
  %v6601 = vunpack.c.l.b16 %v6081
  %v6602 = vunpack.c.l.b16 %v6082
  %v6603 = vunpack.c.l.b16 %v6083
  %v6604 = vunpack.c.l.b16 %v6084
  %v6605 = vunpack.c.l.b16 %v6085
  %v6606 = vunpack.c.l.b16 %v6086
  %v6607 = vunpack.c.l.b16 %v6087
  %v6608 = vunpack.c.l.b16 %v6088
  %v6609 = vunpack.c.l.b16 %v6089
  %v6610 = vunpack.c.l.b16 %v6090
  %v6611 = vunpack.c.l.b16 %v6091
  %v6612 = vunpack.c.l.b16 %v6092
  %v6613 = vunpack.c.l.b16 %v6093
  %v6614 = vunpack.c.l.b16 %v6094
  %v6615 = vunpack.c.l.b16 %v6095
  %v6616 = vunpack.c.l.b16 %v6096
  %v6617 = vunpack.c.l.b16 %v6097
  %v6618 = vunpack.c.l.b16 %v6098
  %v6619 = vunpack.c.l.b16 %v6099
  %v6620 = vunpack.c.l.b16 %v6100
  %v6621 = vunpack.c.l.b16 %v6101
  %v6622 = vunpack.c.l.b16 %v6102
  %v6623 = vunpack.c.l.b16 %v6103
  %v6624 = vunpack.c.l.b16 %v6104
  %v6625 = vunpack.c.l.b16 %v6105
  %v6626 = vunpack.c.l.b16 %v6106
  %v6627 = vunpack.c.l.b16 %v6107
  %v6628 = vunpack.c.l.b16 %v6108
  %v6629 = vunpack.c.l.b16 %v6109
  %v6630 = vunpack.c.l.b16 %v6110
  %v6631 = vunpack.c.l.b16 %v6111
  %v6632 = vunpack.c.l.b16 %v6112
  %v6633 = vunpack.c.l.b16 %v6113
  %v6634 = vunpack.c.l.b16 %v6114
  %v6635 = vunpack.c.l.b16 %v6115
  %v6636 = vunpack.c.l.b16 %v6116
  %v6637 = vunpack.c.l.b16 %v6117
  %v6638 = vunpack.c.l.b16 %v6118
  %v6639 = vunpack.c.l.b16 %v6119
  %v6640 = vunpack.c.l.b16 %v6120
  %v6641 = vunpack.c.l.b16 %v6121
  %v6642 = vunpack.c.l.b16 %v6122
  %v6643 = vunpack.c.l.b16 %v6123
  %v6644 = vunpack.c.l.b16 %v6124
  %v6645 = vunpack.c.l.b16 %v6125
  %v6646 = vunpack.c.l.b16 %v6126
  %v6647 = vunpack.c.l.b16 %v6127
  %v6648 = vunpack.c.l.b16 %v6128
  %v6649 = vunpack.c.l.b16 %v6129
  %v6650 = vunpack.c.l.b16 %v6130
  %v6651 = vunpack.c.l.b16 %v6131
  %v6652 = vunpack.c.l.b16 %v6132
  %v6653 = vunpack.c.l.b16 %v6133
  %v6654 = vunpack.c.l.b16 %v6134
  %v6655 = vunpack.c.l.b16 %v6135
  %v6656 = vunpack.c.l.b16 %v6136
  %v6657 = vunpack.c.l.b16 %v6137
  %v6658 = vunpack.c.l.b16 %v6138
  %v6659 = vunpack.c.l.b16 %v6139
  %v6660 = vunpack.c.l.b16 %v6140
  %v6661 = vunpack.c.l.b16 %v6141
  %v6662 = vunpack.c.l.b16 %v6142
  %v6663 = vunpack.c.l.b16 %v6143
  %v6664 = vunpack.c.l.b16 %v6144
  %v6665 = vunpack.c.l.b16 %v6145
  %v6666 = vunpack.c.l.b16 %v6146
  %v6667 = vunpack.c.l.b16 %v6147
  %v6668 = vunpack.c.l.b16 %v6148
  %v6669 = vunpack.c.l.b16 %v6149
  %v6670 = vunpack.c.l.b16 %v6150
  %v6671 = vunpack.c.l.b16 %v6151
  %v6672 = vunpack.c.l.b16 %v6152
  %v6673 = vunpack.c.l.b16 %v6153
  %v6674 = vunpack.c.l.b16 %v6154
  %v6675 = vunpack.c.l.b16 %v6155
  %v6676 = vunpack.c.l.b16 %v6156
  %v6677 = vunpack.c.l.b16 %v6157
  %v6678 = vunpack.c.l.b16 %v6158
  %v6679 = vunpack.c.l.b16 %v6159
  %v6680 = vunpack.c.l.b16 %v6160
  %v6681 = vunpack.c.l.b16 %v6161
  %v6682 = vunpack.c.l.b16 %v6162
  %v6683 = vunpack.c.l.b16 %v6163
  %v6684 = vunpack.c.l.b16 %v6164
  %v6685 = vunpack.c.l.b16 %v6165
  %v6686 = vunpack.c.l.b16 %v6166
  %v6687 = vunpack.c.l.b16 %v6167
  %v6688 = vunpack.c.l.b16 %v6168
  %v6689 = vunpack.c.l.b16 %v6169
  %v6690 = vunpack.c.l.b16 %v6170
  %v6691 = vunpack.c.l.b16 %v6171
  %v6692 = vunpack.c.l.b16 %v6172
  %v6693 = vunpack.c.l.b16 %v6173
  %v6694 = vunpack.c.l.b16 %v6174
  %v6695 = vunpack.c.l.b16 %v6175
  %v6696 = vunpack.c.l.b16 %v6176
  %v6697 = vunpack.c.l.b16 %v6177
  %v6698 = vunpack.c.l.b16 %v6178
  %v6699 = vunpack.c.l.b16 %v6179
  %v6700 = vunpack.c.l.b16 %v6180
  %v6701 = vunpack.c.l.b16 %v6181
  %v6702 = vunpack.c.l.b16 %v6182
  %v6703 = vunpack.c.l.b16 %v6183
  %v6704 = vunpack.c.l.b16 %v6184
  %v6705 = vunpack.c.l.b16 %v6185
  %v6706 = vunpack.c.l.b16 %v6186
  %v6707 = vunpack.c.l.b16 %v6187
  %v6708 = vunpack.c.l.b16 %v6188
  %v6709 = vunpack.c.l.b16 %v6189
  %v6710 = vunpack.c.l.b16 %v6190
  %v6711 = vunpack.c.l.b16 %v6191
  %v6712 = vunpack.c.l.b16 %v6192
  %v6713 = vunpack.c.l.b16 %v6193
  %v6714 = vunpack.c.l.b16 %v6194
  %v6715 = vunpack.c.l.b16 %v6195
  %v6716 = vunpack.c.l.b16 %v6196
  %v6717 = vunpack.c.l.b16 %v6197
  %v6718 = vunpack.c.l.b16 %v6198
  %v6719 = vunpack.c.l.b16 %v6199
  %v6720 = vunpack.c.l.b16 %v6200
  %v6721 = vunpack.c.l.b16 %v6201
  %v6722 = vunpack.c.l.b16 %v6202
  %v6723 = vunpack.c.l.b16 %v6203
  %v6724 = vunpack.c.l.b16 %v6204
  %v6725 = vunpack.c.l.b16 %v6205
  %v6726 = vunpack.c.l.b16 %v6206
  %v6727 = vunpack.c.l.b16 %v6207
  %v6728 = vunpack.c.l.b16 %v6208
  %v6729 = vunpack.c.l.b16 %v6209
  %v6730 = vunpack.c.l.b16 %v6210
  %v6731 = vunpack.c.l.b16 %v6211
  %v6732 = vunpack.c.l.b16 %v6212
  %v6733 = vunpack.c.l.b16 %v6213
  %v6734 = vpack.c.b16 %v6479, %v6478
  %v6735 = vpack.c.b16 %v6481, %v6480
  %v6736 = vpack.c.b16 %v6483, %v6482
  %v6737 = vpack.c.b16 %v6485, %v6484
  %v6738 = vpack.c.b16 %v6487, %v6486
  %v6739 = vpack.c.b16 %v6489, %v6488
  %v6740 = vpack.c.b16 %v6491, %v6490
  %v6741 = vpack.c.b16 %v6493, %v6492
  %v6742 = vpack.c.b16 %v6495, %v6494
  %v6743 = vpack.c.b16 %v6497, %v6496
  %v6744 = vpack.c.b16 %v6499, %v6498
  %v6745 = vpack.c.b16 %v6501, %v6500
  %v6746 = vpack.c.b16 %v6503, %v6502
  %v6747 = vpack.c.b16 %v6505, %v6504
  %v6748 = vpack.c.b16 %v6507, %v6506
  %v6749 = vpack.c.b16 %v6509, %v6508
  %v6750 = vpack.c.b16 %v6511, %v6510
  %v6751 = vpack.c.b16 %v6513, %v6512
  %v6752 = vpack.c.b16 %v6515, %v6514
  %v6753 = vpack.c.b16 %v6517, %v6516
  %v6754 = vpack.c.b16 %v6519, %v6518
  %v6755 = vpack.c.b16 %v6521, %v6520
  %v6756 = vpack.c.b16 %v6523, %v6522
  %v6757 = vpack.c.b16 %v6525, %v6524
  %v6758 = vpack.c.b16 %v6527, %v6526
  %v6759 = vpack.c.b16 %v6529, %v6528
  %v6760 = vpack.c.b16 %v6531, %v6530
  %v6761 = vpack.c.b16 %v6533, %v6532
  %v6762 = vpack.c.b16 %v6535, %v6534
  %v6763 = vpack.c.b16 %v6537, %v6536
  %v6764 = vpack.c.b16 %v6539, %v6538
  %v6765 = vpack.c.b16 %v6541, %v6540
  %v6766 = vpack.c.b16 %v6543, %v6542
  %v6767 = vpack.c.b16 %v6545, %v6544
  %v6768 = vpack.c.b16 %v6547, %v6546
  %v6769 = vpack.c.b16 %v6549, %v6548
  %v6770 = vpack.c.b16 %v6551, %v6550
  %v6771 = vpack.c.b16 %v6553, %v6552
  %v6772 = vpack.c.b16 %v6555, %v6554
  %v6773 = vpack.c.b16 %v6557, %v6556
  %v6774 = vpack.c.b16 %v6559, %v6558
  %v6775 = vpack.c.b16 %v6561, %v6560
  %v6776 = vpack.c.b16 %v6563, %v6562
  %v6777 = vpack.c.b16 %v6565, %v6564
  %v6778 = vpack.c.b16 %v6567, %v6566
  %v6779 = vpack.c.b16 %v6569, %v6568
  %v6780 = vpack.c.b16 %v6571, %v6570
  %v6781 = vpack.c.b16 %v6573, %v6572
  %v6782 = vpack.c.b16 %v6575, %v6574
  %v6783 = vpack.c.b16 %v6577, %v6576
  %v6784 = vpack.c.b16 %v6579, %v6578
  %v6785 = vpack.c.b16 %v6581, %v6580
  %v6786 = vpack.c.b16 %v6583, %v6582
  %v6787 = vpack.c.b16 %v6585, %v6584
  %v6788 = vpack.c.b16 %v6587, %v6586
  %v6789 = vpack.c.b16 %v6589, %v6588
  %v6790 = vpack.c.b16 %v6591, %v6590
  %v6791 = vpack.c.b16 %v6593, %v6592
  %v6792 = vpack.c.b16 %v6595, %v6594
  %v6793 = vpack.c.b16 %v6597, %v6596
  %v6794 = vpack.c.b16 %v6599, %v6598
  %v6795 = vpack.c.b16 %v6601, %v6600
  %v6796 = vpack.c.b16 %v6603, %v6602
  %v6797 = vpack.c.b16 %v6605, %v6604
  %v6798 = vpack.c.b16 %v6607, %v6606
  %v6799 = vpack.c.b16 %v6609, %v6608
  %v6800 = vpack.c.b16 %v6611, %v6610
  %v6801 = vpack.c.b16 %v6613, %v6612
  %v6802 = vpack.c.b16 %v6615, %v6614
  %v6803 = vpack.c.b16 %v6617, %v6616
  %v6804 = vpack.c.b16 %v6619, %v6618
  %v6805 = vpack.c.b16 %v6621, %v6620
  %v6806 = vpack.c.b16 %v6623, %v6622
  %v6807 = vpack.c.b16 %v6625, %v6624
  %v6808 = vpack.c.b16 %v6627, %v6626
  %v6809 = vpack.c.b16 %v6629, %v6628
  %v6810 = vpack.c.b16 %v6631, %v6630
  %v6811 = vpack.c.b16 %v6633, %v6632
  %v6812 = vpack.c.b16 %v6635, %v6634
  %v6813 = vpack.c.b16 %v6637, %v6636
  %v6814 = vpack.c.b16 %v6639, %v6638
  %v6815 = vpack.c.b16 %v6641, %v6640
  %v6816 = vpack.c.b16 %v6643, %v6642
  %v6817 = vpack.c.b16 %v6645, %v6644
  %v6818 = vpack.c.b16 %v6647, %v6646
  %v6819 = vpack.c.b16 %v6649, %v6648
  %v6820 = vpack.c.b16 %v6651, %v6650
  %v6821 = vpack.c.b16 %v6653, %v6652
  %v6822 = vpack.c.b16 %v6655, %v6654
  %v6823 = vpack.c.b16 %v6657, %v6656
  %v6824 = vpack.c.b16 %v6659, %v6658
  %v6825 = vpack.c.b16 %v6661, %v6660
  %v6826 = vpack.c.b16 %v6663, %v6662
  %v6827 = vpack.c.b16 %v6665, %v6664
  %v6828 = vpack.c.b16 %v6667, %v6666
  %v6829 = vpack.c.b16 %v6669, %v6668
  %v6830 = vpack.c.b16 %v6671, %v6670
  %v6831 = vpack.c.b16 %v6673, %v6672
  %v6832 = vpack.c.b16 %v6675, %v6674
  %v6833 = vpack.c.b16 %v6677, %v6676
  %v6834 = vpack.c.b16 %v6679, %v6678
  %v6835 = vpack.c.b16 %v6681, %v6680
  %v6836 = vpack.c.b16 %v6683, %v6682
  %v6837 = vpack.c.b16 %v6685, %v6684
  %v6838 = vpack.c.b16 %v6687, %v6686
  %v6839 = vpack.c.b16 %v6689, %v6688
  %v6840 = vpack.c.b16 %v6691, %v6690
  %v6841 = vpack.c.b16 %v6693, %v6692
  %v6842 = vpack.c.b16 %v6695, %v6694
  %v6843 = vpack.c.b16 %v6697, %v6696
  %v6844 = vpack.c.b16 %v6699, %v6698
  %v6845 = vpack.c.b16 %v6701, %v6700
  %v6846 = vpack.c.b16 %v6703, %v6702
  %v6847 = vpack.c.b16 %v6705, %v6704
  %v6848 = vpack.c.b16 %v6707, %v6706
  %v6849 = vpack.c.b16 %v6709, %v6708
  %v6850 = vpack.c.b16 %v6711, %v6710
  %v6851 = vpack.c.b16 %v6713, %v6712
  %v6852 = vpack.c.b16 %v6715, %v6714
  %v6853 = vpack.c.b16 %v6717, %v6716
  %v6854 = vpack.c.b16 %v6719, %v6718
  %v6855 = vpack.c.b16 %v6721, %v6720
  %v6856 = vpack.c.b16 %v6723, %v6722
  %v6857 = vpack.c.b16 %v6725, %v6724
  %v6858 = vpack.c.b16 %v6727, %v6726
  %v6859 = vpack.c.b16 %v6729, %v6728
  %v6860 = vpack.c.b16 %v6731, %v6730
  %v6861 = vpack.c.b16 %v6733, %v6732
  %6990 = vmatprep.subr.bf16.mxu0 0
  %6991 = vmatpush1.bf16.msra.mxu0 %v6734
  %6992 = vmatprep.subr.bf16.mxu0 0
  %6993 = vmatpush1.bf16.msra.mxu0 %v6735
  %6994 = vmatprep.subr.bf16.mxu0 0
  %6995 = vmatpush1.bf16.msra.mxu0 %v6736
  %6996 = vmatprep.subr.bf16.mxu0 0
  %6997 = vmatpush1.bf16.msra.mxu0 %v6737
  %6998 = vmatprep.subr.bf16.mxu0 0
  %6999 = vmatpush1.bf16.msra.mxu0 %v6738
  %7000 = vmatprep.subr.bf16.mxu0 0
  %7001 = vmatpush1.bf16.msra.mxu0 %v6739
  %7002 = vmatprep.subr.bf16.mxu0 0
  %7003 = vmatpush1.bf16.msra.mxu0 %v6740
  %7004 = vmatprep.subr.bf16.mxu0 0
  %7005 = vmatpush1.bf16.msra.mxu0 %v6741
  %7006 = vmatprep.subr.bf16.mxu0 0
  %7007 = vmatpush1.bf16.msra.mxu0 %v6742
  %7008 = vmatprep.subr.bf16.mxu0 0
  %7009 = vmatpush1.bf16.msra.mxu0 %v6743
  %7010 = vmatprep.subr.bf16.mxu0 0
  %7011 = vmatpush1.bf16.msra.mxu0 %v6744
  %7012 = vmatprep.subr.bf16.mxu0 0
  %7013 = vmatpush1.bf16.msra.mxu0 %v6745
  %7014 = vmatprep.subr.bf16.mxu0 0
  %7015 = vmatpush1.bf16.msra.mxu0 %v6746
  %7016 = vmatprep.subr.bf16.mxu0 0
  %7017 = vmatpush1.bf16.msra.mxu0 %v6747
  %7018 = vmatprep.subr.bf16.mxu0 0
  %7019 = vmatpush1.bf16.msra.mxu0 %v6748
  %7020 = vmatprep.subr.bf16.mxu0 0
  %7021 = vmatpush1.bf16.msra.mxu0 %v6749
  %7022 = vmatprep.mubr.bf16.mxu0 %v5942
  %7023 = vmatmul.mubr.bf16.gmra.mrb[0].mxu0 %v5941
  %v7024 = vpop.f32.mrb[0].mxu0
  %v7025 = vadd.f32 %v6220, %v7024
  %v7026 = vpop.f32.mrb[0].mxu0
  %v7027 = vpop.f32.mrb[0].mxu0
  %v7028 = vadd.f32 %v6220, %v7027
  %v7029 = vpop.f32.mrb[0].mxu0
  %7030 = vdwg.mxu0
  %7031 = vmatprep.subr.bf16.mxu0 0
  %7032 = vmatpush1.bf16.msra.mxu0 %v6750
  %7033 = vmatprep.subr.bf16.mxu0 0
  %7034 = vmatpush1.bf16.msra.mxu0 %v6751
  %7035 = vmatprep.subr.bf16.mxu0 0
  %7036 = vmatpush1.bf16.msra.mxu0 %v6752
  %7037 = vmatprep.subr.bf16.mxu0 0
  %7038 = vmatpush1.bf16.msra.mxu0 %v6753
  %7039 = vmatprep.subr.bf16.mxu0 0
  %7040 = vmatpush1.bf16.msra.mxu0 %v6754
  %7041 = vmatprep.subr.bf16.mxu0 0
  %7042 = vmatpush1.bf16.msra.mxu0 %v6755
  %7043 = vmatprep.subr.bf16.mxu0 0
  %7044 = vmatpush1.bf16.msra.mxu0 %v6756
  %7045 = vmatprep.subr.bf16.mxu0 0
  %7046 = vmatpush1.bf16.msra.mxu0 %v6757
  %7047 = vmatprep.subr.bf16.mxu0 0
  %7048 = vmatpush1.bf16.msra.mxu0 %v6758
  %7049 = vmatprep.subr.bf16.mxu0 0
  %7050 = vmatpush1.bf16.msra.mxu0 %v6759
  %7051 = vmatprep.subr.bf16.mxu0 0
  %7052 = vmatpush1.bf16.msra.mxu0 %v6760
  %7053 = vmatprep.subr.bf16.mxu0 0
  %7054 = vmatpush1.bf16.msra.mxu0 %v6761
  %7055 = vmatprep.subr.bf16.mxu0 0
  %7056 = vmatpush1.bf16.msra.mxu0 %v6762
  %7057 = vmatprep.subr.bf16.mxu0 0
  %7058 = vmatpush1.bf16.msra.mxu0 %v6763
  %7059 = vmatprep.subr.bf16.mxu0 0
  %7060 = vmatpush1.bf16.msra.mxu0 %v6764
  %7061 = vmatprep.subr.bf16.mxu0 0
  %7062 = vmatpush1.bf16.msra.mxu0 %v6765
  %7063 = vmatprep.mubr.bf16.mxu0 %v5944
  %7064 = vmatmul.mubr.bf16.gmra.mrb[0].mxu0 %v5943
  %v7065 = vpop.f32.mrb[0].mxu0
  %v7066 = vadd.f32 %v7025, %v7065
  %v7067 = vpop.f32.mrb[0].mxu0
  %v7068 = vpop.f32.mrb[0].mxu0
  %v7069 = vadd.f32 %v7028, %v7068
  %v7070 = vpop.f32.mrb[0].mxu0
  %7071 = vdwg.mxu0
  %7072 = vmatprep.subr.bf16.mxu0 0
  %7073 = vmatpush1.bf16.msra.mxu0 %v6766
  %7074 = vmatprep.subr.bf16.mxu0 0
  %7075 = vmatpush1.bf16.msra.mxu0 %v6767
  %7076 = vmatprep.subr.bf16.mxu0 0
  %7077 = vmatpush1.bf16.msra.mxu0 %v6768
  %7078 = vmatprep.subr.bf16.mxu0 0
  %7079 = vmatpush1.bf16.msra.mxu0 %v6769
  %7080 = vmatprep.subr.bf16.mxu0 0
  %7081 = vmatpush1.bf16.msra.mxu0 %v6770
  %7082 = vmatprep.subr.bf16.mxu0 0
  %7083 = vmatpush1.bf16.msra.mxu0 %v6771
  %7084 = vmatprep.subr.bf16.mxu0 0
  %7085 = vmatpush1.bf16.msra.mxu0 %v6772
  %7086 = vmatprep.subr.bf16.mxu0 0
  %7087 = vmatpush1.bf16.msra.mxu0 %v6773
  %7088 = vmatprep.subr.bf16.mxu0 0
  %7089 = vmatpush1.bf16.msra.mxu0 %v6774
  %7090 = vmatprep.subr.bf16.mxu0 0
  %7091 = vmatpush1.bf16.msra.mxu0 %v6775
  %7092 = vmatprep.subr.bf16.mxu0 0
  %7093 = vmatpush1.bf16.msra.mxu0 %v6776
  %7094 = vmatprep.subr.bf16.mxu0 0
  %7095 = vmatpush1.bf16.msra.mxu0 %v6777
  %7096 = vmatprep.subr.bf16.mxu0 0
  %7097 = vmatpush1.bf16.msra.mxu0 %v6778
  %7098 = vmatprep.subr.bf16.mxu0 0
  %7099 = vmatpush1.bf16.msra.mxu0 %v6779
  %7100 = vmatprep.subr.bf16.mxu0 0
  %7101 = vmatpush1.bf16.msra.mxu0 %v6780
  %7102 = vmatprep.subr.bf16.mxu0 0
  %7103 = vmatpush1.bf16.msra.mxu0 %v6781
  %7104 = vmatprep.mubr.bf16.mxu0 %v5946
  %7105 = vmatmul.mubr.bf16.gmra.mrb[0].mxu0 %v5945
  %v7106 = vpop.f32.mrb[0].mxu0
  %v7107 = vadd.f32 %v7066, %v7106
  %v7108 = vpop.f32.mrb[0].mxu0
  %v7109 = vpop.f32.mrb[0].mxu0
  %v7110 = vadd.f32 %v7069, %v7109
  %v7111 = vpop.f32.mrb[0].mxu0
  %7112 = vdwg.mxu0
  %7113 = vmatprep.subr.bf16.mxu0 0
  %7114 = vmatpush1.bf16.msra.mxu0 %v6782
  %7115 = vmatprep.subr.bf16.mxu0 0
  %7116 = vmatpush1.bf16.msra.mxu0 %v6783
  %7117 = vmatprep.subr.bf16.mxu0 0
  %7118 = vmatpush1.bf16.msra.mxu0 %v6784
  %7119 = vmatprep.subr.bf16.mxu0 0
  %7120 = vmatpush1.bf16.msra.mxu0 %v6785
  %7121 = vmatprep.subr.bf16.mxu0 0
  %7122 = vmatpush1.bf16.msra.mxu0 %v6786
  %7123 = vmatprep.subr.bf16.mxu0 0
  %7124 = vmatpush1.bf16.msra.mxu0 %v6787
  %7125 = vmatprep.subr.bf16.mxu0 0
  %7126 = vmatpush1.bf16.msra.mxu0 %v6788
  %7127 = vmatprep.subr.bf16.mxu0 0
  %7128 = vmatpush1.bf16.msra.mxu0 %v6789
  %7129 = vmatprep.subr.bf16.mxu0 0
  %7130 = vmatpush1.bf16.msra.mxu0 %v6790
  %7131 = vmatprep.subr.bf16.mxu0 0
  %7132 = vmatpush1.bf16.msra.mxu0 %v6791
  %7133 = vmatprep.subr.bf16.mxu0 0
  %7134 = vmatpush1.bf16.msra.mxu0 %v6792
  %7135 = vmatprep.subr.bf16.mxu0 0
  %7136 = vmatpush1.bf16.msra.mxu0 %v6793
  %7137 = vmatprep.subr.bf16.mxu0 0
  %7138 = vmatpush1.bf16.msra.mxu0 %v6794
  %7139 = vmatprep.subr.bf16.mxu0 0
  %7140 = vmatpush1.bf16.msra.mxu0 %v6795
  %7141 = vmatprep.subr.bf16.mxu0 0
  %7142 = vmatpush1.bf16.msra.mxu0 %v6796
  %7143 = vmatprep.subr.bf16.mxu0 0
  %7144 = vmatpush1.bf16.msra.mxu0 %v6797
  %7145 = vmatprep.mubr.bf16.mxu0 %v5948
  %7146 = vmatmul.mubr.bf16.gmra.mrb[0].mxu0 %v5947
  %v7147 = vpop.f32.mrb[0].mxu0
  %v7148 = vadd.f32 %v7107, %v7147
  %v7149 = vpop.f32.mrb[0].mxu0
  %v7150 = vpop.f32.mrb[0].mxu0
  %v7151 = vadd.f32 %v7110, %v7150
  %v7152 = vpop.f32.mrb[0].mxu0
  %7153 = vdwg.mxu0
  %7154 = vmatprep.subr.bf16.mxu0 0
  %7155 = vmatpush1.bf16.msra.mxu0 %v6798
  %7156 = vmatprep.subr.bf16.mxu0 0
  %7157 = vmatpush1.bf16.msra.mxu0 %v6799
  %7158 = vmatprep.subr.bf16.mxu0 0
  %7159 = vmatpush1.bf16.msra.mxu0 %v6800
  %7160 = vmatprep.subr.bf16.mxu0 0
  %7161 = vmatpush1.bf16.msra.mxu0 %v6801
  %7162 = vmatprep.subr.bf16.mxu0 0
  %7163 = vmatpush1.bf16.msra.mxu0 %v6802
  %7164 = vmatprep.subr.bf16.mxu0 0
  %7165 = vmatpush1.bf16.msra.mxu0 %v6803
  %7166 = vmatprep.subr.bf16.mxu0 0
  %7167 = vmatpush1.bf16.msra.mxu0 %v6804
  %7168 = vmatprep.subr.bf16.mxu0 0
  %7169 = vmatpush1.bf16.msra.mxu0 %v6805
  %7170 = vmatprep.subr.bf16.mxu0 0
  %7171 = vmatpush1.bf16.msra.mxu0 %v6806
  %7172 = vmatprep.subr.bf16.mxu0 0
  %7173 = vmatpush1.bf16.msra.mxu0 %v6807
  %7174 = vmatprep.subr.bf16.mxu0 0
  %7175 = vmatpush1.bf16.msra.mxu0 %v6808
  %7176 = vmatprep.subr.bf16.mxu0 0
  %7177 = vmatpush1.bf16.msra.mxu0 %v6809
  %7178 = vmatprep.subr.bf16.mxu0 0
  %7179 = vmatpush1.bf16.msra.mxu0 %v6810
  %7180 = vmatprep.subr.bf16.mxu0 0
  %7181 = vmatpush1.bf16.msra.mxu0 %v6811
  %7182 = vmatprep.subr.bf16.mxu0 0
  %7183 = vmatpush1.bf16.msra.mxu0 %v6812
  %7184 = vmatprep.subr.bf16.mxu0 0
  %7185 = vmatpush1.bf16.msra.mxu0 %v6813
  %7186 = vmatprep.mubr.bf16.mxu0 %v5950
  %7187 = vmatmul.mubr.bf16.gmra.mrb[0].mxu0 %v5949
  %v7188 = vpop.f32.mrb[0].mxu0
  %v7189 = vadd.f32 %v7148, %v7188
  %v7190 = vpop.f32.mrb[0].mxu0
  %v7191 = vpop.f32.mrb[0].mxu0
  %v7192 = vadd.f32 %v7151, %v7191
  %v7193 = vpop.f32.mrb[0].mxu0
  %7194 = vdwg.mxu0
  %7195 = vmatprep.subr.bf16.mxu0 0
  %7196 = vmatpush1.bf16.msra.mxu0 %v6814
  %7197 = vmatprep.subr.bf16.mxu0 0
  %7198 = vmatpush1.bf16.msra.mxu0 %v6815
  %7199 = vmatprep.subr.bf16.mxu0 0
  %7200 = vmatpush1.bf16.msra.mxu0 %v6816
  %7201 = vmatprep.subr.bf16.mxu0 0
  %7202 = vmatpush1.bf16.msra.mxu0 %v6817
  %7203 = vmatprep.subr.bf16.mxu0 0
  %7204 = vmatpush1.bf16.msra.mxu0 %v6818
  %7205 = vmatprep.subr.bf16.mxu0 0
  %7206 = vmatpush1.bf16.msra.mxu0 %v6819
  %7207 = vmatprep.subr.bf16.mxu0 0
  %7208 = vmatpush1.bf16.msra.mxu0 %v6820
  %7209 = vmatprep.subr.bf16.mxu0 0
  %7210 = vmatpush1.bf16.msra.mxu0 %v6821
  %7211 = vmatprep.subr.bf16.mxu0 0
  %7212 = vmatpush1.bf16.msra.mxu0 %v6822
  %7213 = vmatprep.subr.bf16.mxu0 0
  %7214 = vmatpush1.bf16.msra.mxu0 %v6823
  %7215 = vmatprep.subr.bf16.mxu0 0
  %7216 = vmatpush1.bf16.msra.mxu0 %v6824
  %7217 = vmatprep.subr.bf16.mxu0 0
  %7218 = vmatpush1.bf16.msra.mxu0 %v6825
  %7219 = vmatprep.subr.bf16.mxu0 0
  %7220 = vmatpush1.bf16.msra.mxu0 %v6826
  %7221 = vmatprep.subr.bf16.mxu0 0
  %7222 = vmatpush1.bf16.msra.mxu0 %v6827
  %7223 = vmatprep.subr.bf16.mxu0 0
  %7224 = vmatpush1.bf16.msra.mxu0 %v6828
  %7225 = vmatprep.subr.bf16.mxu0 0
  %7226 = vmatpush1.bf16.msra.mxu0 %v6829
  %7227 = vmatprep.mubr.bf16.mxu0 %v5952
  %7228 = vmatmul.mubr.bf16.gmra.mrb[0].mxu0 %v5951
  %v7229 = vpop.f32.mrb[0].mxu0
  %v7230 = vadd.f32 %v7189, %v7229
  %v7231 = vpop.f32.mrb[0].mxu0
  %v7232 = vpop.f32.mrb[0].mxu0
  %v7233 = vadd.f32 %v7192, %v7232
  %v7234 = vpop.f32.mrb[0].mxu0
  %7235 = vdwg.mxu0
  %7236 = vmatprep.subr.bf16.mxu0 0
  %7237 = vmatpush1.bf16.msra.mxu0 %v6830
  %7238 = vmatprep.subr.bf16.mxu0 0
  %7239 = vmatpush1.bf16.msra.mxu0 %v6831
  %7240 = vmatprep.subr.bf16.mxu0 0
  %7241 = vmatpush1.bf16.msra.mxu0 %v6832
  %7242 = vmatprep.subr.bf16.mxu0 0
  %7243 = vmatpush1.bf16.msra.mxu0 %v6833
  %7244 = vmatprep.subr.bf16.mxu0 0
  %7245 = vmatpush1.bf16.msra.mxu0 %v6834
  %7246 = vmatprep.subr.bf16.mxu0 0
  %7247 = vmatpush1.bf16.msra.mxu0 %v6835
  %7248 = vmatprep.subr.bf16.mxu0 0
  %7249 = vmatpush1.bf16.msra.mxu0 %v6836
  %7250 = vmatprep.subr.bf16.mxu0 0
  %7251 = vmatpush1.bf16.msra.mxu0 %v6837
  %7252 = vmatprep.subr.bf16.mxu0 0
  %7253 = vmatpush1.bf16.msra.mxu0 %v6838
  %7254 = vmatprep.subr.bf16.mxu0 0
  %7255 = vmatpush1.bf16.msra.mxu0 %v6839
  %7256 = vmatprep.subr.bf16.mxu0 0
  %7257 = vmatpush1.bf16.msra.mxu0 %v6840
  %7258 = vmatprep.subr.bf16.mxu0 0
  %7259 = vmatpush1.bf16.msra.mxu0 %v6841
  %7260 = vmatprep.subr.bf16.mxu0 0
  %7261 = vmatpush1.bf16.msra.mxu0 %v6842
  %7262 = vmatprep.subr.bf16.mxu0 0
  %7263 = vmatpush1.bf16.msra.mxu0 %v6843
  %7264 = vmatprep.subr.bf16.mxu0 0
  %7265 = vmatpush1.bf16.msra.mxu0 %v6844
  %7266 = vmatprep.subr.bf16.mxu0 0
  %7267 = vmatpush1.bf16.msra.mxu0 %v6845
  %7268 = vmatprep.mubr.bf16.mxu0 %v5954
  %7269 = vmatmul.mubr.bf16.gmra.mrb[0].mxu0 %v5953
  %v7270 = vpop.f32.mrb[0].mxu0
  %v7271 = vadd.f32 %v7230, %v7270
  %v7272 = vpop.f32.mrb[0].mxu0
  %v7273 = vpop.f32.mrb[0].mxu0
  %v7274 = vadd.f32 %v7233, %v7273
  %v7275 = vpop.f32.mrb[0].mxu0
  %7276 = vdwg.mxu0
  %7277 = vmatprep.subr.bf16.mxu0 0
  %7278 = vmatpush1.bf16.msra.mxu0 %v6846
  %7279 = vmatprep.subr.bf16.mxu0 0
  %7280 = vmatpush1.bf16.msra.mxu0 %v6847
  %7281 = vmatprep.subr.bf16.mxu0 0
  %7282 = vmatpush1.bf16.msra.mxu0 %v6848
  %7283 = vmatprep.subr.bf16.mxu0 0
  %7284 = vmatpush1.bf16.msra.mxu0 %v6849
  %7285 = vmatprep.subr.bf16.mxu0 0
  %7286 = vmatpush1.bf16.msra.mxu0 %v6850
  %7287 = vmatprep.subr.bf16.mxu0 0
  %7288 = vmatpush1.bf16.msra.mxu0 %v6851
  %7289 = vmatprep.subr.bf16.mxu0 0
  %7290 = vmatpush1.bf16.msra.mxu0 %v6852
  %7291 = vmatprep.subr.bf16.mxu0 0
  %7292 = vmatpush1.bf16.msra.mxu0 %v6853
  %7293 = vmatprep.subr.bf16.mxu0 0
  %7294 = vmatpush1.bf16.msra.mxu0 %v6854
  %7295 = vmatprep.subr.bf16.mxu0 0
  %7296 = vmatpush1.bf16.msra.mxu0 %v6855
  %7297 = vmatprep.subr.bf16.mxu0 0
  %7298 = vmatpush1.bf16.msra.mxu0 %v6856
  %7299 = vmatprep.subr.bf16.mxu0 0
  %7300 = vmatpush1.bf16.msra.mxu0 %v6857
  %7301 = vmatprep.subr.bf16.mxu0 0
  %7302 = vmatpush1.bf16.msra.mxu0 %v6858
  %7303 = vmatprep.subr.bf16.mxu0 0
  %7304 = vmatpush1.bf16.msra.mxu0 %v6859
  %7305 = vmatprep.subr.bf16.mxu0 0
  %7306 = vmatpush1.bf16.msra.mxu0 %v6860
  %7307 = vmatprep.subr.bf16.mxu0 0
  %7308 = vmatpush1.bf16.msra.mxu0 %v6861
  %7309 = vmatprep.mubr.bf16.mxu0 %v5956
  %7310 = vmatmul.mubr.bf16.gmra.mrb[0].mxu0 %v5955
  %v7311 = vpop.f32.mrb[0].mxu0
  %v7312 = vadd.f32 %v7271, %v7311
  %v7313 = vpop.f32.mrb[0].mxu0
  %v7314 = vpop.f32.mrb[0].mxu0
  %v7315 = vadd.f32 %v7274, %v7314
  %v7316 = vpop.f32.mrb[0].mxu0
  %7317 = vdwg.mxu0
  %v7318 = vadd.f32 %v5281, %v7312
  %v7319 = vadd.f32 %v5282, %v7315
  %s7320 = scalar_lea.vmem %s13, 1
  %v7321 = vld [vmem:[%s7320] sm:$0x1]
  %s7322 = scalar_lea.vmem %s14, 1
  %v7323 = vld [vmem:[%s7322] sm:$0x1]
  %v7324 = vsel %vm143, %v7318, 0.0
  %7325 = vadd.xlane.f32.xlu0 %v7324
  %v7326 = vpop.xlane.xlu0 %7325
  %v7327 = vsel %vm143, %v7319, 0.0
  %7328 = vadd.xlane.f32.xlu0 %v7327
  %v7329 = vpop.xlane.xlu0 %7328
  %v7330 = vmul.f32 %v7326, %v1625
  %v7331 = vmul.f32 %v7329, %v1625
  %v7332 = vsub.f32 %v7318, %v7330
  %v7333 = vsub.f32 %v7319, %v7331
  %v7334 = vmul.f32 %v7332, %v7332
  %v7335 = vmul.f32 %v7333, %v7333
  %v7336 = vsel %vm143, %v7334, 0.0
  %7337 = vadd.xlane.f32.xlu0 %v7336
  %v7338 = vpop.xlane.xlu0 %7337
  %v7339 = vsel %vm143, %v7335, 0.0
  %7340 = vadd.xlane.f32.xlu0 %v7339
  %v7341 = vpop.xlane.xlu0 %7340
  %v7342 = vmul.f32 %v7338, %v1625
  %v7343 = vmul.f32 %v7341, %v1625
  %v7344 = vadd.f32 %v7342, 1e-05
  %v7345 = vadd.f32 %v7343, 1e-05
  %v7346 = vrsqrt.pop %v7344
  %v7347 = vrsqrt.pop %v7345
  %v7348 = vmul.f32 %v7332, %v7346
  %v7349 = vmul.f32 %v7333, %v7347
  %v7351 = vlaneseq
  %v7352 = vshrl.u32 %v7351, 7
  %v7353 = vsub.s32 0, %v7352
  %v7354 = vrot.slane %v7321, %v7353
  %v7356 = vmul.f32 %v7348, %v7354
  %v7357 = vmul.f32 %v7349, %v7354
  %v7359 = vlaneseq
  %v7360 = vshrl.u32 %v7359, 7
  %v7361 = vsub.s32 0, %v7360
  %v7362 = vrot.slane %v7323, %v7361
  %v7364 = vadd.f32 %v7356, %v7362
  %v7365 = vadd.f32 %v7357, %v7362
  %v7366 = vld [vmem:[%s15] sm:$0xff]
  %v7367 = vld [vmem:[%s15 + $0x8] sm:$0xff]
  %v7368 = vld [vmem:[%s15 + $0x10] sm:$0xff]
  %v7369 = vld [vmem:[%s15 + $0x18] sm:$0xff]
  %v7370 = vld [vmem:[#allocation2] sm:$0x1]
  %v7372 = vlaneseq
  %v7373 = vshrl.u32 %v7372, 7
  %v7374 = vsub.s32 0, %v7373
  %v7375 = vrot.slane %v7370, %v7374
  %v7379 = vrot.slane %v7364, 7
  %v7380 = vrot.slane %v7365, 6
  %vm7381 = vcmask 1041409
  %v7382 = vsel %vm7381, %v7380, %v7379
  %v7383 = vsel %vm143, %v7382, 0
  %7385 = vmatprep.subr.mxu0 0.0
  %7386 = vmatpush1.msra.mxu0 %v7366
  %7387 = vmatprep.subr.mxu0 0.0
  %7388 = vmatpush1.msra.mxu0 %v7367
  %7389 = vmatprep.subr.mxu0 0.0
  %7390 = vmatpush1.msra.mxu0 %v7368
  %7391 = vmatprep.subr.mxu0 0.0
  %7392 = vmatpush1.msra.mxu0 %v7369
  %7393 = vmatprep.subr.mxu0 0.0
  %7394 = vmatpush1.msra.mxu0 0.0
  %7395 = vmatprep.subr.mxu0 0.0
  %7396 = vmatpush1.msra.mxu0 0.0
  %7397 = vmatprep.subr.mxu0 0.0
  %7398 = vmatpush1.msra.mxu0 0.0
  %7399 = vmatprep.subr.mxu0 0.0
  %7400 = vmatpush1.msra.mxu0 0.0
  %7401 = vmatprep.subr.mxu0 0.0
  %7402 = vmatpush1.msra.mxu0 0.0
  %7403 = vmatprep.subr.mxu0 0.0
  %7404 = vmatpush1.msra.mxu0 0.0
  %7405 = vmatprep.subr.mxu0 0.0
  %7406 = vmatpush1.msra.mxu0 0.0
  %7407 = vmatprep.subr.mxu0 0.0
  %7408 = vmatpush1.msra.mxu0 0.0
  %7409 = vmatprep.subr.mxu0 0.0
  %7410 = vmatpush1.msra.mxu0 0.0
  %7411 = vmatprep.subr.mxu0 0.0
  %7412 = vmatpush1.msra.mxu0 0.0
  %7413 = vmatprep.subr.mxu0 0.0
  %7414 = vmatpush1.msra.mxu0 0.0
  %7415 = vmatprep.subr.mxu0 0.0
  %7416 = vmatpush1.msra.mxu0 0.0
  %7417 = vmatprep.subr.mxu0 0.0
  %7418 = vmatpush1.msra.mxu0 0.0
  %7419 = vmatprep.subr.mxu0 0.0
  %7420 = vmatpush1.msra.mxu0 0.0
  %7421 = vmatprep.subr.mxu0 0.0
  %7422 = vmatpush1.msra.mxu0 0.0
  %7423 = vmatprep.subr.mxu0 0.0
  %7424 = vmatpush1.msra.mxu0 0.0
  %7425 = vmatprep.subr.mxu0 0.0
  %7426 = vmatpush1.msra.mxu0 0.0
  %7427 = vmatprep.subr.mxu0 0.0
  %7428 = vmatpush1.msra.mxu0 0.0
  %7429 = vmatprep.subr.mxu0 0.0
  %7430 = vmatpush1.msra.mxu0 0.0
  %7431 = vmatprep.subr.mxu0 0.0
  %7432 = vmatpush1.msra.mxu0 0.0
  %7433 = vmatprep.subr.mxu0 0.0
  %7434 = vmatpush1.msra.mxu0 0.0
  %7435 = vmatprep.subr.mxu0 0.0
  %7436 = vmatpush1.msra.mxu0 0.0
  %7437 = vmatprep.subr.mxu0 0.0
  %7438 = vmatpush1.msra.mxu0 0.0
  %7439 = vmatprep.subr.mxu0 0.0
  %7440 = vmatpush1.msra.mxu0 0.0
  %7441 = vmatprep.subr.mxu0 0.0
  %7442 = vmatpush1.msra.mxu0 0.0
  %7443 = vmatprep.subr.mxu0 0.0
  %7444 = vmatpush1.msra.mxu0 0.0
  %7445 = vmatprep.subr.mxu0 0.0
  %7446 = vmatpush1.msra.mxu0 0.0
  %7447 = vmatprep.subr.mxu0 0.0
  %7448 = vmatpush1.msra.mxu0 0.0
  %7449 = vmatprep.mubr.f32.mxu0 0.0
  %7450 = vmatmul.mubr.f32.gmra.mrb[0].mxu0 %v7383
  %v7451 = vpop.f32.mrb[0].mxu0
  %v7452 = vadd.f32 %v7375, %v7451
  %v7453 = vpop.f32.mrb[0].mxu0
  %7454 = vdwg.mxu0
  %vm7455 = vcmask 1024
  %7456 = vst.msk [vmem:[%s17] sm:$0x3] %vm7455, %v7452
  // Predicated region
  $region70: #{time_series_transformer.1} parent=0 // pred_check
    _
  $region71: #{time_series_transformer.1} parent=0 // pred_check_branch
    %7458 = sbr.rel (0) target = $region73
  $region72: #{time_series_transformer.1} parent=0 // pred_region
    _
  $region73: #{time_series_transformer.1} parent=0 // pred_fallthru
    _
  // Predicated region
  $region74: #{time_series_transformer.1} parent=0 // pred_check
    _
  $region75: #{time_series_transformer.1} parent=0 // pred_check_branch
    %7460 = sbr.rel (0) target = $region77
  $region76: #{time_series_transformer.1} parent=0 // pred_region
    _
  $region77: #{time_series_transformer.1} parent=0 // pred_fallthru
    _

</llo_original>
